<compile_context>
chip_gen: v6e
topology: v6e:2x2x1
jax: 0.10.0
libtpu: 0.0.40
codegen_flags: <defaults>
</compile_context>

<pallas_src>
import functools

import jax
import jax.numpy as jnp
from jax.experimental import pallas as pl
from jax.experimental.pallas import tpu as pltpu

_VMEM_SPEC = pl.BlockSpec(memory_space=pltpu.MemorySpace.VMEM)
_COMPILER_PARAMS = pltpu.CompilerParams(vmem_limit_bytes=48 * 1024 * 1024)


# ------------------------------ fused block kernel ------------------------------

def _resnet_block_kernel(xpad_ref, resid_ref, w1_ref, g1_ref, be1_ref,
                         w2_ref, g2_ref, be2_ref,
                         o_ref, apad_ref, *, eps, width):
    # xpad_ref  : (N, H+2, Wpa, Cp) bf16  spatially pre-padded input (NHWC),
    #                                     Wpa = W+2 rounded up to a multiple of 8
    # resid_ref : (N*H*W, Cp)       f32   lane-dense residual (= unpadded input)
    # w*_ref    : (9*Cp, Cp)        bf16  im2col-packed weights (kh,kw,cin -> K)
    # g*/be*    : (1, Cp)           f32   BN gamma / beta
    # o_ref     : (N*H*W, Cp)       f32   lane-dense output slab
    # apad_ref  : (N, H+2, Wpa, Cp) bf16  VMEM scratch, padded intermediate
    N, Hp, _, Cp = xpad_ref.shape
    H, W = Hp - 2, width
    M = N * H * W
    inv_m = 1.0 / M

    def conv3x3(src_ref, w_ref):
        # In-VMEM im2col: concatenate the 9 shifted windows along the lane
        # axis and contract in a single K = 9*Cp GEMM (bf16 MXU, f32 accum).
        cols = []
        for kh in range(3):
            for kw in range(3):
                win = src_ref[:, kh:kh + H, kw:kw + W, :]      # (N,H,W,Cp) bf16
                cols.append(win.reshape(M, Cp))
        patches = jnp.concatenate(cols, axis=-1)               # (M, 9*Cp) bf16
        return jnp.dot(patches, w_ref[...],
                       preferred_element_type=jnp.float32)     # (M, Cp) f32

    def batchnorm(a, g_ref, be_ref):
        # one-pass training-mode BN over the N*H*W axis (biased variance)
        mean = jnp.sum(a, axis=0, keepdims=True) * inv_m
        var = jnp.sum(a * a, axis=0, keepdims=True) * inv_m - mean * mean
        s = g_ref[...] * jax.lax.rsqrt(var + eps)
        t = be_ref[...] - mean * s
        return a * s + t

    # ---- conv1 -> bn1 -> relu (conv bias cancels under batch-stat BN) ----
    a1 = jnp.maximum(batchnorm(conv3x3(xpad_ref, w1_ref), g1_ref, be1_ref), 0.0)

    # ---- zero only the 1-px halo conv2 reads, then store the interior ----
    a1_bf = a1.astype(jnp.bfloat16).reshape(N, H, W, Cp)
    zrow = jnp.zeros((N, 1, W + 2, Cp), jnp.bfloat16)
    zcol = jnp.zeros((N, H, 1, Cp), jnp.bfloat16)
    apad_ref[:, 0:1, :W + 2, :] = zrow
    apad_ref[:, H + 1:H + 2, :W + 2, :] = zrow
    apad_ref[:, 1:H + 1, 0:1, :] = zcol
    apad_ref[:, 1:H + 1, W + 1:W + 2, :] = zcol
    apad_ref[:, 1:H + 1, 1:W + 1, :] = a1_bf
    # columns >= W+2 of the aligned scratch are never read by the conv2 windows

    # ---- conv2 -> bn2 -> +x -> relu ----
    a2 = batchnorm(conv3x3(apad_ref, w2_ref), g2_ref, be2_ref)
    o_ref[...] = jnp.maximum(a2 + resid_ref[...], 0.0).astype(o_ref.dtype)


# ---------------------------------- wrapper -------------------------------------

def resnet_basic_block(x_nchw, params, *, stride=1, eps=1e-5):
    # The residual add in the torch module only type-checks for stride=1
    # (and in_channels == out_channels), so that is the supported config.
    assert stride == 1, "residual add requires stride == 1"
    N, C, H, W = x_nchw.shape
    Cp = pl.cdiv(C, 128) * 128                 # lane-dense channel padding
    Wpa = max(pl.cdiv(W + 2, 8) * 8, 8)        # sublane-aligned padded width

    # NCHW -> NHWC, channel pad
    x = jnp.transpose(x_nchw, (0, 2, 3, 1)).astype(jnp.float32)
    x = jnp.pad(x, ((0, 0), (0, 0), (0, 0), (0, Cp - C)))
    resid = x.reshape(N * H * W, Cp)                                    # f32 residual
    # spatial zero-pad (Conv2d padding=1) + width alignment, cast once to bf16
    xpad = jnp.pad(x, ((0, 0), (1, 1), (1, Wpa - W - 1), (0, 0))).astype(jnp.bfloat16)

    def prep_w(w):   # torch (Cout, Cin, 3, 3) -> (9*Cin_p, Cout_p) bf16, im2col order
        w = jnp.transpose(w, (2, 3, 1, 0))                              # (3,3,Cin,Cout)
        w = jnp.pad(w, ((0, 0), (0, 0), (0, Cp - C), (0, Cp - C)))
        return w.reshape(9 * Cp, Cp).astype(jnp.bfloat16)

    def prep_vec(v, fill=0.0):
        v = jnp.pad(v.astype(jnp.float32), ((0, Cp - C),), constant_values=fill)
        return v.reshape(1, Cp)

    # NOTE: conv biases params['b1'] / params['b2'] are intentionally NOT passed
    # to the kernel — a bias added before training-mode (batch-stat) BN cancels
    # exactly. Keep them if running-stats/eval BN is ever added.
    w1, w2 = prep_w(params['w1']), prep_w(params['w2'])
    g1, g2 = prep_vec(params['g1'], 1.0), prep_vec(params['g2'], 1.0)
    be1, be2 = prep_vec(params['be1']), prep_vec(params['be2'])

    kernel = functools.partial(_resnet_block_kernel, eps=eps, width=W)
    out2d = pl.pallas_call(
        kernel,
        out_shape=jax.ShapeDtypeStruct((N * H * W, Cp), jnp.float32),
        in_specs=[_VMEM_SPEC] * 8,
        out_specs=_VMEM_SPEC,
        scratch_shapes=[pltpu.VMEM((N, H + 2, Wpa, Cp), jnp.bfloat16)],
        compiler_params=_COMPILER_PARAMS,
    )(xpad, resid, w1, g1, be1, w2, g2, be2)

    out = out2d.reshape(N, H, W, Cp)[..., :C]            # drop channel padding
    return jnp.transpose(out, (0, 3, 1, 2))              # back to NCHW


# ------------------------- pure-JAX reference (for checking) --------------------

def _ref_block(x_nchw, params, eps=1e-5):
    x = jnp.transpose(x_nchw, (0, 2, 3, 1)).astype(jnp.float32)
    H, W = x.shape[1], x.shape[2]

    def conv(a, w, b):
        ap = jnp.pad(a, ((0, 0), (1, 1), (1, 1), (0, 0)))
        wt = jnp.transpose(w, (2, 3, 1, 0))              # (3,3,Cin,Cout)
        out = b
        for kh in range(3):
            for kw in range(3):
                out = out + jnp.einsum('nhwc,cd->nhwd',
                                       ap[:, kh:kh + H, kw:kw + W, :], wt[kh, kw])
        return out

    def bn(a, g, be):
        m = jnp.mean(a, axis=(0, 1, 2), keepdims=True)
        v = jnp.mean(jnp.square(a - m), axis=(0, 1, 2), keepdims=True)
        return (a - m) * jax.lax.rsqrt(v + eps) * g + be

    y = jax.nn.relu(bn(conv(x, params['w1'], params['b1']), params['g1'], params['be1']))
    y = bn(conv(y, params['w2'], params['b2']), params['g2'], params['be2'])
    y = jax.nn.relu(x + y)
    return jnp.transpose(y, (0, 3, 1, 2))


# ------------------------------------ demo --------------------------------------

def init_params(key, channels):
    k1, k2, k3, k4, k5, k6, k7, k8 = jax.random.split(key, 8)
    std = (2.0 / (9 * channels)) ** 0.5
    return {
        'w1': jax.random.normal(k1, (channels, channels, 3, 3), jnp.float32) * std,
        'b1': jax.random.normal(k2, (channels,), jnp.float32) * 0.1,
        'g1': 1.0 + 0.1 * jax.random.normal(k3, (channels,), jnp.float32),
        'be1': 0.1 * jax.random.normal(k4, (channels,), jnp.float32),
        'w2': jax.random.normal(k5, (channels, channels, 3, 3), jnp.float32) * std,
        'b2': jax.random.normal(k6, (channels,), jnp.float32) * 0.1,
        'g2': 1.0 + 0.1 * jax.random.normal(k7, (channels,), jnp.float32),
        'be2': 0.1 * jax.random.normal(k8, (channels,), jnp.float32),
    }


if __name__ == "__main__":
    key = jax.random.PRNGKey(0)
    pkey, xkey = jax.random.split(key)
    N, C, H, W = 2, 64, 16, 16            # in_channels == out_channels, stride == 1
    params = init_params(pkey, C)
    x = jax.random.normal(xkey, (N, C, H, W), jnp.float32)

    out = jax.jit(resnet_basic_block)(x, params)
    out = jax.block_until_ready(out)

    assert out.shape == (N, C, H, W), out.shape
    assert bool(jnp.all(jnp.isfinite(out)))

    ref = _ref_block(x, params)
    # NOTE: intentional precision tradeoff — MXU operands are bf16 (f32 accum),
    # reference is full f32, hence the loose tolerance.
    diff_ok = jnp.all(jnp.abs(out - ref) <= 1e-1 + 1e-2 * jnp.abs(ref))
    assert bool(diff_ok), float(jnp.max(jnp.abs(out - ref)))

    print("KERNEL_OK")
</pallas_src>

<mosaic_0001>
module attributes {stable_mosaic.version = 11 : i64} {
  func.func @_resnet_block_kernel(%arg0: memref<2x18x24x128xbf16, #tpu.memory_space<vmem>>, %arg1: memref<512x128xf32, #tpu.memory_space<vmem>>, %arg2: memref<1152x128xbf16, #tpu.memory_space<vmem>>, %arg3: memref<1x128xf32, #tpu.memory_space<vmem>>, %arg4: memref<1x128xf32, #tpu.memory_space<vmem>>, %arg5: memref<1152x128xbf16, #tpu.memory_space<vmem>>, %arg6: memref<1x128xf32, #tpu.memory_space<vmem>>, %arg7: memref<1x128xf32, #tpu.memory_space<vmem>>, %arg8: memref<512x128xf32, #tpu.memory_space<vmem>>, %arg9: memref<2x18x24x128xbf16, #tpu.memory_space<vmem>>) attributes {dimension_semantics = [], scalar_prefetch = 0 : i64, scratch_operands = 1 : i64, tpu.core_type = #tpu.core_type<tc>} {
    %c0 = arith.constant 0 : index
    %c0_0 = arith.constant 0 : index
    %c0_1 = arith.constant 0 : index
    %c0_2 = arith.constant 0 : index
    %0 = vector.load %arg0[%c0, %c0_0, %c0_1, %c0_2] : memref<2x18x24x128xbf16, #tpu.memory_space<vmem>>, vector<2x16x16x128xbf16>
    %1 = vector.shape_cast %0 : vector<2x16x16x128xbf16> to vector<512x128xbf16>
    %c0_3 = arith.constant 0 : index
    %c0_4 = arith.constant 0 : index
    %c1 = arith.constant 1 : index
    %c0_5 = arith.constant 0 : index
    %2 = vector.load %arg0[%c0_3, %c0_4, %c1, %c0_5] : memref<2x18x24x128xbf16, #tpu.memory_space<vmem>>, vector<2x16x16x128xbf16>
    %3 = vector.shape_cast %2 : vector<2x16x16x128xbf16> to vector<512x128xbf16>
    %c0_6 = arith.constant 0 : index
    %c0_7 = arith.constant 0 : index
    %c2 = arith.constant 2 : index
    %c0_8 = arith.constant 0 : index
    %4 = vector.load %arg0[%c0_6, %c0_7, %c2, %c0_8] : memref<2x18x24x128xbf16, #tpu.memory_space<vmem>>, vector<2x16x16x128xbf16>
    %5 = vector.shape_cast %4 : vector<2x16x16x128xbf16> to vector<512x128xbf16>
    %c0_9 = arith.constant 0 : index
    %c1_10 = arith.constant 1 : index
    %c0_11 = arith.constant 0 : index
    %c0_12 = arith.constant 0 : index
    %6 = vector.load %arg0[%c0_9, %c1_10, %c0_11, %c0_12] : memref<2x18x24x128xbf16, #tpu.memory_space<vmem>>, vector<2x16x16x128xbf16>
    %7 = vector.shape_cast %6 : vector<2x16x16x128xbf16> to vector<512x128xbf16>
    %c0_13 = arith.constant 0 : index
    %c1_14 = arith.constant 1 : index
    %c1_15 = arith.constant 1 : index
    %c0_16 = arith.constant 0 : index
    %8 = vector.load %arg0[%c0_13, %c1_14, %c1_15, %c0_16] : memref<2x18x24x128xbf16, #tpu.memory_space<vmem>>, vector<2x16x16x128xbf16>
    %9 = vector.shape_cast %8 : vector<2x16x16x128xbf16> to vector<512x128xbf16>
    %c0_17 = arith.constant 0 : index
    %c1_18 = arith.constant 1 : index
    %c2_19 = arith.constant 2 : index
    %c0_20 = arith.constant 0 : index
    %10 = vector.load %arg0[%c0_17, %c1_18, %c2_19, %c0_20] : memref<2x18x24x128xbf16, #tpu.memory_space<vmem>>, vector<2x16x16x128xbf16>
    %11 = vector.shape_cast %10 : vector<2x16x16x128xbf16> to vector<512x128xbf16>
    %c0_21 = arith.constant 0 : index
    %c2_22 = arith.constant 2 : index
    %c0_23 = arith.constant 0 : index
    %c0_24 = arith.constant 0 : index
    %12 = vector.load %arg0[%c0_21, %c2_22, %c0_23, %c0_24] : memref<2x18x24x128xbf16, #tpu.memory_space<vmem>>, vector<2x16x16x128xbf16>
    %13 = vector.shape_cast %12 : vector<2x16x16x128xbf16> to vector<512x128xbf16>
    %c0_25 = arith.constant 0 : index
    %c2_26 = arith.constant 2 : index
    %c1_27 = arith.constant 1 : index
    %c0_28 = arith.constant 0 : index
    %14 = vector.load %arg0[%c0_25, %c2_26, %c1_27, %c0_28] : memref<2x18x24x128xbf16, #tpu.memory_space<vmem>>, vector<2x16x16x128xbf16>
    %15 = vector.shape_cast %14 : vector<2x16x16x128xbf16> to vector<512x128xbf16>
    %c0_29 = arith.constant 0 : index
    %c2_30 = arith.constant 2 : index
    %c2_31 = arith.constant 2 : index
    %c0_32 = arith.constant 0 : index
    %16 = vector.load %arg0[%c0_29, %c2_30, %c2_31, %c0_32] : memref<2x18x24x128xbf16, #tpu.memory_space<vmem>>, vector<2x16x16x128xbf16>
    %17 = vector.shape_cast %16 : vector<2x16x16x128xbf16> to vector<512x128xbf16>
    %18 = tpu.concatenate %1, %3, %5, %7, %9, %11, %13, %15, %17 in 1 : vector<512x128xbf16>, vector<512x128xbf16>, vector<512x128xbf16>, vector<512x128xbf16>, vector<512x128xbf16>, vector<512x128xbf16>, vector<512x128xbf16>, vector<512x128xbf16>, vector<512x128xbf16> -> vector<512x1152xbf16>
    %c0_33 = arith.constant 0 : index
    %c0_34 = arith.constant 0 : index
    %19 = vector.load %arg2[%c0_33, %c0_34] : memref<1152x128xbf16, #tpu.memory_space<vmem>>, vector<1152x128xbf16>
    %cst = arith.constant dense<0.000000e+00> : vector<512x128xf32>
    %20 = tpu.matmul %18, %19, %cst {dimension_numbers = #tpu.dot_dimension_numbers<[1], [0], [0], [1], [0, 0, 1, 1], [], []>} : vector<512x1152xbf16>, vector<1152x128xbf16>, vector<512x128xf32> -> vector<512x128xf32>
    %cst_35 = arith.constant dense<0.000000e+00> : vector<128xf32>
    %21 = vector.multi_reduction <add>, %20, %cst_35 [0] : vector<512x128xf32> to vector<128xf32>
    %22 = vector.shape_cast %21 : vector<128xf32> to vector<1x128xf32>
    %cst_36 = arith.constant 0.001953125 : f32
    %23 = vector.broadcast %cst_36 : f32 to vector<1x128xf32>
    %24 = arith.mulf %22, %23 : vector<1x128xf32>
    %25 = arith.mulf %20, %20 : vector<512x128xf32>
    %cst_37 = arith.constant dense<0.000000e+00> : vector<128xf32>
    %26 = vector.multi_reduction <add>, %25, %cst_37 [0] : vector<512x128xf32> to vector<128xf32>
    %27 = vector.shape_cast %26 : vector<128xf32> to vector<1x128xf32>
    %cst_38 = arith.constant 0.001953125 : f32
    %28 = vector.broadcast %cst_38 : f32 to vector<1x128xf32>
    %29 = arith.mulf %27, %28 : vector<1x128xf32>
    %30 = arith.mulf %24, %24 : vector<1x128xf32>
    %31 = arith.subf %29, %30 : vector<1x128xf32>
    %c0_39 = arith.constant 0 : index
    %c0_40 = arith.constant 0 : index
    %32 = vector.load %arg3[%c0_39, %c0_40] : memref<1x128xf32, #tpu.memory_space<vmem>>, vector<1x128xf32>
    %cst_41 = arith.constant 9.99999974E-6 : f32
    %33 = vector.broadcast %cst_41 : f32 to vector<1x128xf32>
    %34 = arith.addf %31, %33 : vector<1x128xf32>
    %35 = math.rsqrt %34 : vector<1x128xf32>
    %36 = arith.mulf %32, %35 : vector<1x128xf32>
    %c0_42 = arith.constant 0 : index
    %c0_43 = arith.constant 0 : index
    %37 = vector.load %arg4[%c0_42, %c0_43] : memref<1x128xf32, #tpu.memory_space<vmem>>, vector<1x128xf32>
    %38 = arith.mulf %24, %36 : vector<1x128xf32>
    %39 = arith.subf %37, %38 : vector<1x128xf32>
    %40 = vector.broadcast %36 : vector<1x128xf32> to vector<512x128xf32>
    %41 = arith.mulf %20, %40 : vector<512x128xf32>
    %42 = vector.broadcast %39 : vector<1x128xf32> to vector<512x128xf32>
    %43 = arith.addf %41, %42 : vector<512x128xf32>
    %cst_44 = arith.constant 0.000000e+00 : f32
    %44 = vector.broadcast %cst_44 : f32 to vector<512x128xf32>
    %45 = arith.maximumf %43, %44 : vector<512x128xf32>
    %46 = arith.truncf %45 : vector<512x128xf32> to vector<512x128xbf16>
    %47 = vector.shape_cast %46 : vector<512x128xbf16> to vector<2x16x16x128xbf16>
    %cst_45 = arith.constant 0.000000e+00 : bf16
    %48 = vector.broadcast %cst_45 : bf16 to vector<2x1x18x128xbf16>
    %cst_46 = arith.constant 0.000000e+00 : bf16
    %49 = vector.broadcast %cst_46 : bf16 to vector<2x16x1x128xbf16>
    %c0_47 = arith.constant 0 : index
    %c0_48 = arith.constant 0 : index
    %c0_49 = arith.constant 0 : index
    %c0_50 = arith.constant 0 : index
    %50 = vector.load %arg9[%c0_47, %c0_48, %c0_49, %c0_50] : memref<2x18x24x128xbf16, #tpu.memory_space<vmem>>, vector<2x1x18x128xbf16>
    tpu.vector_store %arg9[%c0_47, %c0_48, %c0_49, %c0_50], %48 {strides = array<i32>} : memref<2x18x24x128xbf16, #tpu.memory_space<vmem>>, vector<2x1x18x128xbf16>,
    %c0_51 = arith.constant 0 : index
    %c17 = arith.constant 17 : index
    %c0_52 = arith.constant 0 : index
    %c0_53 = arith.constant 0 : index
    %51 = vector.load %arg9[%c0_51, %c17, %c0_52, %c0_53] : memref<2x18x24x128xbf16, #tpu.memory_space<vmem>>, vector<2x1x18x128xbf16>
    tpu.vector_store %arg9[%c0_51, %c17, %c0_52, %c0_53], %48 {strides = array<i32>} : memref<2x18x24x128xbf16, #tpu.memory_space<vmem>>, vector<2x1x18x128xbf16>,
    %c0_54 = arith.constant 0 : index
    %c1_55 = arith.constant 1 : index
    %c0_56 = arith.constant 0 : index
    %c0_57 = arith.constant 0 : index
    %52 = vector.load %arg9[%c0_54, %c1_55, %c0_56, %c0_57] : memref<2x18x24x128xbf16, #tpu.memory_space<vmem>>, vector<2x16x1x128xbf16>
    tpu.vector_store %arg9[%c0_54, %c1_55, %c0_56, %c0_57], %49 {strides = array<i32>} : memref<2x18x24x128xbf16, #tpu.memory_space<vmem>>, vector<2x16x1x128xbf16>,
    %c0_58 = arith.constant 0 : index
    %c1_59 = arith.constant 1 : index
    %c17_60 = arith.constant 17 : index
    %c0_61 = arith.constant 0 : index
    %53 = vector.load %arg9[%c0_58, %c1_59, %c17_60, %c0_61] : memref<2x18x24x128xbf16, #tpu.memory_space<vmem>>, vector<2x16x1x128xbf16>
    tpu.vector_store %arg9[%c0_58, %c1_59, %c17_60, %c0_61], %49 {strides = array<i32>} : memref<2x18x24x128xbf16, #tpu.memory_space<vmem>>, vector<2x16x1x128xbf16>,
    %c0_62 = arith.constant 0 : index
    %c1_63 = arith.constant 1 : index
    %c1_64 = arith.constant 1 : index
    %c0_65 = arith.constant 0 : index
    %54 = vector.load %arg9[%c0_62, %c1_63, %c1_64, %c0_65] : memref<2x18x24x128xbf16, #tpu.memory_space<vmem>>, vector<2x16x16x128xbf16>
    tpu.vector_store %arg9[%c0_62, %c1_63, %c1_64, %c0_65], %47 {strides = array<i32>} : memref<2x18x24x128xbf16, #tpu.memory_space<vmem>>, vector<2x16x16x128xbf16>,
    %c0_66 = arith.constant 0 : index
    %c0_67 = arith.constant 0 : index
    %c0_68 = arith.constant 0 : index
    %c0_69 = arith.constant 0 : index
    %55 = vector.load %arg9[%c0_66, %c0_67, %c0_68, %c0_69] : memref<2x18x24x128xbf16, #tpu.memory_space<vmem>>, vector<2x16x16x128xbf16>
    %56 = vector.shape_cast %55 : vector<2x16x16x128xbf16> to vector<512x128xbf16>
    %c0_70 = arith.constant 0 : index
    %c0_71 = arith.constant 0 : index
    %c1_72 = arith.constant 1 : index
    %c0_73 = arith.constant 0 : index
    %57 = vector.load %arg9[%c0_70, %c0_71, %c1_72, %c0_73] : memref<2x18x24x128xbf16, #tpu.memory_space<vmem>>, vector<2x16x16x128xbf16>
    %58 = vector.shape_cast %57 : vector<2x16x16x128xbf16> to vector<512x128xbf16>
    %c0_74 = arith.constant 0 : index
    %c0_75 = arith.constant 0 : index
    %c2_76 = arith.constant 2 : index
    %c0_77 = arith.constant 0 : index
    %59 = vector.load %arg9[%c0_74, %c0_75, %c2_76, %c0_77] : memref<2x18x24x128xbf16, #tpu.memory_space<vmem>>, vector<2x16x16x128xbf16>
    %60 = vector.shape_cast %59 : vector<2x16x16x128xbf16> to vector<512x128xbf16>
    %c0_78 = arith.constant 0 : index
    %c1_79 = arith.constant 1 : index
    %c0_80 = arith.constant 0 : index
    %c0_81 = arith.constant 0 : index
    %61 = vector.load %arg9[%c0_78, %c1_79, %c0_80, %c0_81] : memref<2x18x24x128xbf16, #tpu.memory_space<vmem>>, vector<2x16x16x128xbf16>
    %62 = vector.shape_cast %61 : vector<2x16x16x128xbf16> to vector<512x128xbf16>
    %c0_82 = arith.constant 0 : index
    %c1_83 = arith.constant 1 : index
    %c1_84 = arith.constant 1 : index
    %c0_85 = arith.constant 0 : index
    %63 = vector.load %arg9[%c0_82, %c1_83, %c1_84, %c0_85] : memref<2x18x24x128xbf16, #tpu.memory_space<vmem>>, vector<2x16x16x128xbf16>
    %64 = vector.shape_cast %63 : vector<2x16x16x128xbf16> to vector<512x128xbf16>
    %c0_86 = arith.constant 0 : index
    %c1_87 = arith.constant 1 : index
    %c2_88 = arith.constant 2 : index
    %c0_89 = arith.constant 0 : index
    %65 = vector.load %arg9[%c0_86, %c1_87, %c2_88, %c0_89] : memref<2x18x24x128xbf16, #tpu.memory_space<vmem>>, vector<2x16x16x128xbf16>
    %66 = vector.shape_cast %65 : vector<2x16x16x128xbf16> to vector<512x128xbf16>
    %c0_90 = arith.constant 0 : index
    %c2_91 = arith.constant 2 : index
    %c0_92 = arith.constant 0 : index
    %c0_93 = arith.constant 0 : index
    %67 = vector.load %arg9[%c0_90, %c2_91, %c0_92, %c0_93] : memref<2x18x24x128xbf16, #tpu.memory_space<vmem>>, vector<2x16x16x128xbf16>
    %68 = vector.shape_cast %67 : vector<2x16x16x128xbf16> to vector<512x128xbf16>
    %c0_94 = arith.constant 0 : index
    %c2_95 = arith.constant 2 : index
    %c1_96 = arith.constant 1 : index
    %c0_97 = arith.constant 0 : index
    %69 = vector.load %arg9[%c0_94, %c2_95, %c1_96, %c0_97] : memref<2x18x24x128xbf16, #tpu.memory_space<vmem>>, vector<2x16x16x128xbf16>
    %70 = vector.shape_cast %69 : vector<2x16x16x128xbf16> to vector<512x128xbf16>
    %c0_98 = arith.constant 0 : index
    %c2_99 = arith.constant 2 : index
    %c2_100 = arith.constant 2 : index
    %c0_101 = arith.constant 0 : index
    %71 = vector.load %arg9[%c0_98, %c2_99, %c2_100, %c0_101] : memref<2x18x24x128xbf16, #tpu.memory_space<vmem>>, vector<2x16x16x128xbf16>
    %72 = vector.shape_cast %71 : vector<2x16x16x128xbf16> to vector<512x128xbf16>
    %73 = tpu.concatenate %56, %58, %60, %62, %64, %66, %68, %70, %72 in 1 : vector<512x128xbf16>, vector<512x128xbf16>, vector<512x128xbf16>, vector<512x128xbf16>, vector<512x128xbf16>, vector<512x128xbf16>, vector<512x128xbf16>, vector<512x128xbf16>, vector<512x128xbf16> -> vector<512x1152xbf16>
    %c0_102 = arith.constant 0 : index
    %c0_103 = arith.constant 0 : index
    %74 = vector.load %arg5[%c0_102, %c0_103] : memref<1152x128xbf16, #tpu.memory_space<vmem>>, vector<1152x128xbf16>
    %cst_104 = arith.constant dense<0.000000e+00> : vector<512x128xf32>
    %75 = tpu.matmul %73, %74, %cst_104 {dimension_numbers = #tpu.dot_dimension_numbers<[1], [0], [0], [1], [0, 0, 1, 1], [], []>} : vector<512x1152xbf16>, vector<1152x128xbf16>, vector<512x128xf32> -> vector<512x128xf32>
    %cst_105 = arith.constant dense<0.000000e+00> : vector<128xf32>
    %76 = vector.multi_reduction <add>, %75, %cst_105 [0] : vector<512x128xf32> to vector<128xf32>
    %77 = vector.shape_cast %76 : vector<128xf32> to vector<1x128xf32>
    %cst_106 = arith.constant 0.001953125 : f32
    %78 = vector.broadcast %cst_106 : f32 to vector<1x128xf32>
    %79 = arith.mulf %77, %78 : vector<1x128xf32>
    %80 = arith.mulf %75, %75 : vector<512x128xf32>
    %cst_107 = arith.constant dense<0.000000e+00> : vector<128xf32>
    %81 = vector.multi_reduction <add>, %80, %cst_107 [0] : vector<512x128xf32> to vector<128xf32>
    %82 = vector.shape_cast %81 : vector<128xf32> to vector<1x128xf32>
    %cst_108 = arith.constant 0.001953125 : f32
    %83 = vector.broadcast %cst_108 : f32 to vector<1x128xf32>
    %84 = arith.mulf %82, %83 : vector<1x128xf32>
    %85 = arith.mulf %79, %79 : vector<1x128xf32>
    %86 = arith.subf %84, %85 : vector<1x128xf32>
    %c0_109 = arith.constant 0 : index
    %c0_110 = arith.constant 0 : index
    %87 = vector.load %arg6[%c0_109, %c0_110] : memref<1x128xf32, #tpu.memory_space<vmem>>, vector<1x128xf32>
    %cst_111 = arith.constant 9.99999974E-6 : f32
    %88 = vector.broadcast %cst_111 : f32 to vector<1x128xf32>
    %89 = arith.addf %86, %88 : vector<1x128xf32>
    %90 = math.rsqrt %89 : vector<1x128xf32>
    %91 = arith.mulf %87, %90 : vector<1x128xf32>
    %c0_112 = arith.constant 0 : index
    %c0_113 = arith.constant 0 : index
    %92 = vector.load %arg7[%c0_112, %c0_113] : memref<1x128xf32, #tpu.memory_space<vmem>>, vector<1x128xf32>
    %93 = arith.mulf %79, %91 : vector<1x128xf32>
    %94 = arith.subf %92, %93 : vector<1x128xf32>
    %95 = vector.broadcast %91 : vector<1x128xf32> to vector<512x128xf32>
    %96 = arith.mulf %75, %95 : vector<512x128xf32>
    %97 = vector.broadcast %94 : vector<1x128xf32> to vector<512x128xf32>
    %98 = arith.addf %96, %97 : vector<512x128xf32>
    %c0_114 = arith.constant 0 : index
    %c0_115 = arith.constant 0 : index
    %99 = vector.load %arg1[%c0_114, %c0_115] : memref<512x128xf32, #tpu.memory_space<vmem>>, vector<512x128xf32>
    %100 = arith.addf %98, %99 : vector<512x128xf32>
    %cst_116 = arith.constant 0.000000e+00 : f32
    %101 = vector.broadcast %cst_116 : f32 to vector<512x128xf32>
    %102 = arith.maximumf %100, %101 : vector<512x128xf32>
    %c0_117 = arith.constant 0 : index
    %c0_118 = arith.constant 0 : index
    %103 = vector.load %arg8[%c0_117, %c0_118] : memref<512x128xf32, #tpu.memory_space<vmem>>, vector<512x128xf32>
    tpu.vector_store %arg8[%c0_117, %c0_118], %102 {strides = array<i32>} : memref<512x128xf32, #tpu.memory_space<vmem>>, vector<512x128xf32>,
    return
  }
}

</mosaic_0001>

<llo_original>
// kernel: resnet_basic_block.1
$region0: #{resnet_basic_block.1}
  #allocation0 [shape = 'u32[]', space=smem, size = 0x4, offset = 0x4, fixed_abs, tag = 'smem constant byte address 0x4 - core index']
  #allocation1 [shape = 'u32[144,128]{1,0:T(1,128)}', space=vmem, size = 0x12000, scoped, tag = 'internal scratch']
  #allocation2 [shape = 'bf16[2,18,24,128]{3,2,1,0:T(8,128)(2,1)}', space=vmem, size = 0x36000, scoped, tag = 'scratch operand']
  %s0 = inlined_call_operand.vmem [shape: bf16[2,18,24,128], index: 0, kind: input, shape index: {}]
  %s1 = inlined_call_operand.vmem [shape: f32[512,128], index: 1, kind: input, shape index: {}]
  %s2 = inlined_call_operand.vmem [shape: bf16[1152,128], index: 2, kind: input, shape index: {}]
  %s3 = inlined_call_operand.vmem [shape: f32[1,128], index: 3, kind: input, shape index: {}]
  %s4 = inlined_call_operand.vmem [shape: f32[1,128], index: 4, kind: input, shape index: {}]
  %s5 = inlined_call_operand.vmem [shape: bf16[1152,128], index: 5, kind: input, shape index: {}]
  %s6 = inlined_call_operand.vmem [shape: f32[1,128], index: 6, kind: input, shape index: {}]
  %s7 = inlined_call_operand.vmem [shape: f32[1,128], index: 7, kind: input, shape index: {}]
  %s8 = inlined_call_operand.vmem [shape: f32[512,128], index: 8, kind: output, shape index: {}]
  %s9 = sld [smem:[#allocation0]]
  $region42: #{resnet_basic_block.1} parent=0
    _
  %s11 = ssub.s32 1, %s9
  %s12 = scalar_select 0, %s11, %s9
  // Predicated region
  $region2: #{resnet_basic_block.1} parent=0 // pred_check
    _
  $region3: #{resnet_basic_block.1} parent=0 // pred_check_branch
    %14 = sbr.rel (0) target = $region5
  $region4: #{resnet_basic_block.1} parent=0 // pred_region
    _
  $region5: #{resnet_basic_block.1} parent=0 // pred_fallthru
    _
  // Predicated region
  $region6: #{resnet_basic_block.1} parent=0 // pred_check
    _
  $region7: #{resnet_basic_block.1} parent=0 // pred_check_branch
    %16 = sbr.rel (0) target = $region9
  $region8: #{resnet_basic_block.1} parent=0 // pred_region
    _
  $region9: #{resnet_basic_block.1} parent=0 // pred_fallthru
    _
  // Predicated region
  $region10: #{resnet_basic_block.1} parent=0 // pred_check
    _
  $region11: #{resnet_basic_block.1} parent=0 // pred_check_branch
    %18 = sbr.rel (0) target = $region13
  $region12: #{resnet_basic_block.1} parent=0 // pred_region
    _
  $region13: #{resnet_basic_block.1} parent=0 // pred_fallthru
    _
  // Predicated region
  $region14: #{resnet_basic_block.1} parent=0 // pred_check
    _
  $region15: #{resnet_basic_block.1} parent=0 // pred_check_branch
    %20 = sbr.rel (0) target = $region17
  $region16: #{resnet_basic_block.1} parent=0 // pred_region
    _
  $region17: #{resnet_basic_block.1} parent=0 // pred_fallthru
    _
  // Predicated region
  $region18: #{resnet_basic_block.1} parent=0 // pred_check
    _
  $region19: #{resnet_basic_block.1} parent=0 // pred_check_branch
    %22 = sbr.rel (0) target = $region21
  $region20: #{resnet_basic_block.1} parent=0 // pred_region
    _
  $region21: #{resnet_basic_block.1} parent=0 // pred_fallthru
    _
  // Predicated region
  $region22: #{resnet_basic_block.1} parent=0 // pred_check
    _
  $region23: #{resnet_basic_block.1} parent=0 // pred_check_branch
    %24 = sbr.rel (0) target = $region25
  $region24: #{resnet_basic_block.1} parent=0 // pred_region
    _
  $region25: #{resnet_basic_block.1} parent=0 // pred_fallthru
    _
  // Predicated region
  $region26: #{resnet_basic_block.1} parent=0 // pred_check
    _
  $region27: #{resnet_basic_block.1} parent=0 // pred_check_branch
    %26 = sbr.rel (0) target = $region29
  $region28: #{resnet_basic_block.1} parent=0 // pred_region
    _
  $region29: #{resnet_basic_block.1} parent=0 // pred_fallthru
    _
  // Predicated region
  $region30: #{resnet_basic_block.1} parent=0 // pred_check
    _
  $region31: #{resnet_basic_block.1} parent=0 // pred_check_branch
    %28 = sbr.rel (0) target = $region33
  $region32: #{resnet_basic_block.1} parent=0 // pred_region
    _
  $region33: #{resnet_basic_block.1} parent=0 // pred_fallthru
    _
  %v30 = vld [vmem:[%s0] sm:$0xf]
  %v31 = vld [vmem:[%s0 + $0x4] sm:$0xf]
  %v32 = vld [vmem:[%s0 + $0xc] sm:$0xf]
  %v33 = vld [vmem:[%s0 + $0x10] sm:$0xf]
  %v34 = vld [vmem:[%s0 + $0x18] sm:$0xf]
  %v35 = vld [vmem:[%s0 + $0x1c] sm:$0xf]
  %v36 = vld [vmem:[%s0 + $0x24] sm:$0xf]
  %v37 = vld [vmem:[%s0 + $0x28] sm:$0xf]
  %v38 = vld [vmem:[%s0 + $0x30] sm:$0xf]
  %v39 = vld [vmem:[%s0 + $0x34] sm:$0xf]
  %v40 = vld [vmem:[%s0 + $0x3c] sm:$0xf]
  %v41 = vld [vmem:[%s0 + $0x40] sm:$0xf]
  %v42 = vld [vmem:[%s0 + $0x48] sm:$0xf]
  %v43 = vld [vmem:[%s0 + $0x4c] sm:$0xf]
  %v44 = vld [vmem:[%s0 + $0x54] sm:$0xf]
  %v45 = vld [vmem:[%s0 + $0x58] sm:$0xf]
  %v46 = vld [vmem:[%s0 + $0x60] sm:$0xf]
  %v47 = vld [vmem:[%s0 + $0x64] sm:$0xf]
  %v48 = vld [vmem:[%s0 + $0x6c] sm:$0xf]
  %v49 = vld [vmem:[%s0 + $0x70] sm:$0xf]
  %v50 = vld [vmem:[%s0 + $0x78] sm:$0xf]
  %v51 = vld [vmem:[%s0 + $0x7c] sm:$0xf]
  %v52 = vld [vmem:[%s0 + $0x84] sm:$0xf]
  %v53 = vld [vmem:[%s0 + $0x88] sm:$0xf]
  %v54 = vld [vmem:[%s0 + $0x90] sm:$0xf]
  %v55 = vld [vmem:[%s0 + $0x94] sm:$0xf]
  %v56 = vld [vmem:[%s0 + $0x9c] sm:$0xf]
  %v57 = vld [vmem:[%s0 + $0xa0] sm:$0xf]
  %v58 = vld [vmem:[%s0 + $0xa8] sm:$0xf]
  %v59 = vld [vmem:[%s0 + $0xac] sm:$0xf]
  %v60 = vld [vmem:[%s0 + $0xb4] sm:$0xf]
  %v61 = vld [vmem:[%s0 + $0xb8] sm:$0xf]
  %v62 = vld [vmem:[%s0 + $0xd8] sm:$0xf]
  %v63 = vld [vmem:[%s0 + $0xdc] sm:$0xf]
  %v64 = vld [vmem:[%s0 + $0xe4] sm:$0xf]
  %v65 = vld [vmem:[%s0 + $0xe8] sm:$0xf]
  %v66 = vld [vmem:[%s0 + $0xf0] sm:$0xf]
  %v67 = vld [vmem:[%s0 + $0xf4] sm:$0xf]
  %v68 = vld [vmem:[%s0 + $0xfc] sm:$0xf]
  %v69 = vld [vmem:[%s0 + $0x100] sm:$0xf]
  %v70 = vld [vmem:[%s0 + $0x108] sm:$0xf]
  %v71 = vld [vmem:[%s0 + $0x10c] sm:$0xf]
  %v72 = vld [vmem:[%s0 + $0x114] sm:$0xf]
  %v73 = vld [vmem:[%s0 + $0x118] sm:$0xf]
  %v74 = vld [vmem:[%s0 + $0x120] sm:$0xf]
  %v75 = vld [vmem:[%s0 + $0x124] sm:$0xf]
  %v76 = vld [vmem:[%s0 + $0x12c] sm:$0xf]
  %v77 = vld [vmem:[%s0 + $0x130] sm:$0xf]
  %v78 = vld [vmem:[%s0 + $0x138] sm:$0xf]
  %v79 = vld [vmem:[%s0 + $0x13c] sm:$0xf]
  %v80 = vld [vmem:[%s0 + $0x144] sm:$0xf]
  %v81 = vld [vmem:[%s0 + $0x148] sm:$0xf]
  %v82 = vld [vmem:[%s0 + $0x150] sm:$0xf]
  %v83 = vld [vmem:[%s0 + $0x154] sm:$0xf]
  %v84 = vld [vmem:[%s0 + $0x15c] sm:$0xf]
  %v85 = vld [vmem:[%s0 + $0x160] sm:$0xf]
  %v86 = vld [vmem:[%s0 + $0x168] sm:$0xf]
  %v87 = vld [vmem:[%s0 + $0x16c] sm:$0xf]
  %v88 = vld [vmem:[%s0 + $0x174] sm:$0xf]
  %v89 = vld [vmem:[%s0 + $0x178] sm:$0xf]
  %v90 = vld [vmem:[%s0 + $0x180] sm:$0xf]
  %v91 = vld [vmem:[%s0 + $0x184] sm:$0xf]
  %v92 = vld [vmem:[%s0 + $0x18c] sm:$0xf]
  %v93 = vld [vmem:[%s0 + $0x190] sm:$0xf]
  %v94 = vld [vmem:[%s0 + $0x8] sm:$0x1]
  %v95 = vld [vmem:[%s0 + $0x14] sm:$0x1]
  %v96 = vld [vmem:[%s0 + $0x20] sm:$0x1]
  %v97 = vld [vmem:[%s0 + $0x2c] sm:$0x1]
  %v98 = vld [vmem:[%s0 + $0x38] sm:$0x1]
  %v99 = vld [vmem:[%s0 + $0x44] sm:$0x1]
  %v100 = vld [vmem:[%s0 + $0x50] sm:$0x1]
  %v101 = vld [vmem:[%s0 + $0x5c] sm:$0x1]
  %v102 = vld [vmem:[%s0 + $0x68] sm:$0x1]
  %v103 = vld [vmem:[%s0 + $0x74] sm:$0x1]
  %v104 = vld [vmem:[%s0 + $0x80] sm:$0x1]
  %v105 = vld [vmem:[%s0 + $0x8c] sm:$0x1]
  %v106 = vld [vmem:[%s0 + $0x98] sm:$0x1]
  %v107 = vld [vmem:[%s0 + $0xa4] sm:$0x1]
  %v108 = vld [vmem:[%s0 + $0xb0] sm:$0x1]
  %v109 = vld [vmem:[%s0 + $0xbc] sm:$0x1]
  %v110 = vld [vmem:[%s0 + $0xe0] sm:$0x1]
  %v111 = vld [vmem:[%s0 + $0xec] sm:$0x1]
  %v112 = vld [vmem:[%s0 + $0xf8] sm:$0x1]
  %v113 = vld [vmem:[%s0 + $0x104] sm:$0x1]
  %v114 = vld [vmem:[%s0 + $0x110] sm:$0x1]
  %v115 = vld [vmem:[%s0 + $0x11c] sm:$0x1]
  %v116 = vld [vmem:[%s0 + $0x128] sm:$0x1]
  %v117 = vld [vmem:[%s0 + $0x134] sm:$0x1]
  %v118 = vld [vmem:[%s0 + $0x140] sm:$0x1]
  %v119 = vld [vmem:[%s0 + $0x14c] sm:$0x1]
  %v120 = vld [vmem:[%s0 + $0x158] sm:$0x1]
  %v121 = vld [vmem:[%s0 + $0x164] sm:$0x1]
  %v122 = vld [vmem:[%s0 + $0x170] sm:$0x1]
  %v123 = vld [vmem:[%s0 + $0x17c] sm:$0x1]
  %v124 = vld [vmem:[%s0 + $0x188] sm:$0x1]
  %v125 = vld [vmem:[%s0 + $0x194] sm:$0x1]
  %vm126 = vsmask.f32 3328
  %vm127 = vsmask.f32 7440
  %vm128 = vmor %vm126, %vm127
  %v130 = vshrl.u32 %v30, 16
  %v132 = vrot.slane %v130, 4
  %v133 = vshll.u32 %v30, 16
  %v135 = vrot.slane %v133, 5
  %v136 = vor.u32 %v132, %v135
  %v137 = vrot.slane %v136, 4
  %v139 = vshll.u32 %v31, 16
  %v141 = vrot.slane %v139, 5
  %v142 = vsel %vm128, %v137, %v141
  %v143 = vshrl.u32 %v31, 16
  %v145 = vrot.slane %v143, 4
  %v146 = vor.u32 %v145, %v141
  %v147 = vrot.slane %v146, 4
  %v149 = vshll.u32 %v94, 16
  %v151 = vrot.slane %v149, 5
  %v152 = vsel %vm128, %v147, %v151
  %v154 = vshrl.u32 %v32, 16
  %v156 = vrot.slane %v154, 4
  %v157 = vshll.u32 %v32, 16
  %v159 = vrot.slane %v157, 5
  %v160 = vor.u32 %v156, %v159
  %v161 = vrot.slane %v160, 4
  %v163 = vshll.u32 %v33, 16
  %v165 = vrot.slane %v163, 5
  %v166 = vsel %vm128, %v161, %v165
  %v167 = vshrl.u32 %v33, 16
  %v169 = vrot.slane %v167, 4
  %v170 = vor.u32 %v169, %v165
  %v171 = vrot.slane %v170, 4
  %v173 = vshll.u32 %v95, 16
  %v175 = vrot.slane %v173, 5
  %v176 = vsel %vm128, %v171, %v175
  %v178 = vshrl.u32 %v34, 16
  %v180 = vrot.slane %v178, 4
  %v181 = vshll.u32 %v34, 16
  %v183 = vrot.slane %v181, 5
  %v184 = vor.u32 %v180, %v183
  %v185 = vrot.slane %v184, 4
  %v187 = vshll.u32 %v35, 16
  %v189 = vrot.slane %v187, 5
  %v190 = vsel %vm128, %v185, %v189
  %v191 = vshrl.u32 %v35, 16
  %v193 = vrot.slane %v191, 4
  %v194 = vor.u32 %v193, %v189
  %v195 = vrot.slane %v194, 4
  %v197 = vshll.u32 %v96, 16
  %v199 = vrot.slane %v197, 5
  %v200 = vsel %vm128, %v195, %v199
  %v202 = vshrl.u32 %v36, 16
  %v204 = vrot.slane %v202, 4
  %v205 = vshll.u32 %v36, 16
  %v207 = vrot.slane %v205, 5
  %v208 = vor.u32 %v204, %v207
  %v209 = vrot.slane %v208, 4
  %v211 = vshll.u32 %v37, 16
  %v213 = vrot.slane %v211, 5
  %v214 = vsel %vm128, %v209, %v213
  %v215 = vshrl.u32 %v37, 16
  %v217 = vrot.slane %v215, 4
  %v218 = vor.u32 %v217, %v213
  %v219 = vrot.slane %v218, 4
  %v221 = vshll.u32 %v97, 16
  %v223 = vrot.slane %v221, 5
  %v224 = vsel %vm128, %v219, %v223
  %v226 = vshrl.u32 %v38, 16
  %v228 = vrot.slane %v226, 4
  %v229 = vshll.u32 %v38, 16
  %v231 = vrot.slane %v229, 5
  %v232 = vor.u32 %v228, %v231
  %v233 = vrot.slane %v232, 4
  %v235 = vshll.u32 %v39, 16
  %v237 = vrot.slane %v235, 5
  %v238 = vsel %vm128, %v233, %v237
  %v239 = vshrl.u32 %v39, 16
  %v241 = vrot.slane %v239, 4
  %v242 = vor.u32 %v241, %v237
  %v243 = vrot.slane %v242, 4
  %v245 = vshll.u32 %v98, 16
  %v247 = vrot.slane %v245, 5
  %v248 = vsel %vm128, %v243, %v247
  %v250 = vshrl.u32 %v40, 16
  %v252 = vrot.slane %v250, 4
  %v253 = vshll.u32 %v40, 16
  %v255 = vrot.slane %v253, 5
  %v256 = vor.u32 %v252, %v255
  %v257 = vrot.slane %v256, 4
  %v259 = vshll.u32 %v41, 16
  %v261 = vrot.slane %v259, 5
  %v262 = vsel %vm128, %v257, %v261
  %v263 = vshrl.u32 %v41, 16
  %v265 = vrot.slane %v263, 4
  %v266 = vor.u32 %v265, %v261
  %v267 = vrot.slane %v266, 4
  %v269 = vshll.u32 %v99, 16
  %v271 = vrot.slane %v269, 5
  %v272 = vsel %vm128, %v267, %v271
  %v274 = vshrl.u32 %v42, 16
  %v276 = vrot.slane %v274, 4
  %v277 = vshll.u32 %v42, 16
  %v279 = vrot.slane %v277, 5
  %v280 = vor.u32 %v276, %v279
  %v281 = vrot.slane %v280, 4
  %v283 = vshll.u32 %v43, 16
  %v285 = vrot.slane %v283, 5
  %v286 = vsel %vm128, %v281, %v285
  %v287 = vshrl.u32 %v43, 16
  %v289 = vrot.slane %v287, 4
  %v290 = vor.u32 %v289, %v285
  %v291 = vrot.slane %v290, 4
  %v293 = vshll.u32 %v100, 16
  %v295 = vrot.slane %v293, 5
  %v296 = vsel %vm128, %v291, %v295
  %v298 = vshrl.u32 %v44, 16
  %v300 = vrot.slane %v298, 4
  %v301 = vshll.u32 %v44, 16
  %v303 = vrot.slane %v301, 5
  %v304 = vor.u32 %v300, %v303
  %v305 = vrot.slane %v304, 4
  %v307 = vshll.u32 %v45, 16
  %v309 = vrot.slane %v307, 5
  %v310 = vsel %vm128, %v305, %v309
  %v311 = vshrl.u32 %v45, 16
  %v313 = vrot.slane %v311, 4
  %v314 = vor.u32 %v313, %v309
  %v315 = vrot.slane %v314, 4
  %v317 = vshll.u32 %v101, 16
  %v319 = vrot.slane %v317, 5
  %v320 = vsel %vm128, %v315, %v319
  %v322 = vshrl.u32 %v46, 16
  %v324 = vrot.slane %v322, 4
  %v325 = vshll.u32 %v46, 16
  %v327 = vrot.slane %v325, 5
  %v328 = vor.u32 %v324, %v327
  %v329 = vrot.slane %v328, 4
  %v331 = vshll.u32 %v47, 16
  %v333 = vrot.slane %v331, 5
  %v334 = vsel %vm128, %v329, %v333
  %v335 = vshrl.u32 %v47, 16
  %v337 = vrot.slane %v335, 4
  %v338 = vor.u32 %v337, %v333
  %v339 = vrot.slane %v338, 4
  %v341 = vshll.u32 %v102, 16
  %v343 = vrot.slane %v341, 5
  %v344 = vsel %vm128, %v339, %v343
  %v346 = vshrl.u32 %v48, 16
  %v348 = vrot.slane %v346, 4
  %v349 = vshll.u32 %v48, 16
  %v351 = vrot.slane %v349, 5
  %v352 = vor.u32 %v348, %v351
  %v353 = vrot.slane %v352, 4
  %v355 = vshll.u32 %v49, 16
  %v357 = vrot.slane %v355, 5
  %v358 = vsel %vm128, %v353, %v357
  %v359 = vshrl.u32 %v49, 16
  %v361 = vrot.slane %v359, 4
  %v362 = vor.u32 %v361, %v357
  %v363 = vrot.slane %v362, 4
  %v365 = vshll.u32 %v103, 16
  %v367 = vrot.slane %v365, 5
  %v368 = vsel %vm128, %v363, %v367
  %v370 = vshrl.u32 %v50, 16
  %v372 = vrot.slane %v370, 4
  %v373 = vshll.u32 %v50, 16
  %v375 = vrot.slane %v373, 5
  %v376 = vor.u32 %v372, %v375
  %v377 = vrot.slane %v376, 4
  %v379 = vshll.u32 %v51, 16
  %v381 = vrot.slane %v379, 5
  %v382 = vsel %vm128, %v377, %v381
  %v383 = vshrl.u32 %v51, 16
  %v385 = vrot.slane %v383, 4
  %v386 = vor.u32 %v385, %v381
  %v387 = vrot.slane %v386, 4
  %v389 = vshll.u32 %v104, 16
  %v391 = vrot.slane %v389, 5
  %v392 = vsel %vm128, %v387, %v391
  %v394 = vshrl.u32 %v52, 16
  %v396 = vrot.slane %v394, 4
  %v397 = vshll.u32 %v52, 16
  %v399 = vrot.slane %v397, 5
  %v400 = vor.u32 %v396, %v399
  %v401 = vrot.slane %v400, 4
  %v403 = vshll.u32 %v53, 16
  %v405 = vrot.slane %v403, 5
  %v406 = vsel %vm128, %v401, %v405
  %v407 = vshrl.u32 %v53, 16
  %v409 = vrot.slane %v407, 4
  %v410 = vor.u32 %v409, %v405
  %v411 = vrot.slane %v410, 4
  %v413 = vshll.u32 %v105, 16
  %v415 = vrot.slane %v413, 5
  %v416 = vsel %vm128, %v411, %v415
  %v418 = vshrl.u32 %v54, 16
  %v420 = vrot.slane %v418, 4
  %v421 = vshll.u32 %v54, 16
  %v423 = vrot.slane %v421, 5
  %v424 = vor.u32 %v420, %v423
  %v425 = vrot.slane %v424, 4
  %v427 = vshll.u32 %v55, 16
  %v429 = vrot.slane %v427, 5
  %v430 = vsel %vm128, %v425, %v429
  %v431 = vshrl.u32 %v55, 16
  %v433 = vrot.slane %v431, 4
  %v434 = vor.u32 %v433, %v429
  %v435 = vrot.slane %v434, 4
  %v437 = vshll.u32 %v106, 16
  %v439 = vrot.slane %v437, 5
  %v440 = vsel %vm128, %v435, %v439
  %v442 = vshrl.u32 %v56, 16
  %v444 = vrot.slane %v442, 4
  %v445 = vshll.u32 %v56, 16
  %v447 = vrot.slane %v445, 5
  %v448 = vor.u32 %v444, %v447
  %v449 = vrot.slane %v448, 4
  %v451 = vshll.u32 %v57, 16
  %v453 = vrot.slane %v451, 5
  %v454 = vsel %vm128, %v449, %v453
  %v455 = vshrl.u32 %v57, 16
  %v457 = vrot.slane %v455, 4
  %v458 = vor.u32 %v457, %v453
  %v459 = vrot.slane %v458, 4
  %v461 = vshll.u32 %v107, 16
  %v463 = vrot.slane %v461, 5
  %v464 = vsel %vm128, %v459, %v463
  %v466 = vshrl.u32 %v58, 16
  %v468 = vrot.slane %v466, 4
  %v469 = vshll.u32 %v58, 16
  %v471 = vrot.slane %v469, 5
  %v472 = vor.u32 %v468, %v471
  %v473 = vrot.slane %v472, 4
  %v475 = vshll.u32 %v59, 16
  %v477 = vrot.slane %v475, 5
  %v478 = vsel %vm128, %v473, %v477
  %v479 = vshrl.u32 %v59, 16
  %v481 = vrot.slane %v479, 4
  %v482 = vor.u32 %v481, %v477
  %v483 = vrot.slane %v482, 4
  %v485 = vshll.u32 %v108, 16
  %v487 = vrot.slane %v485, 5
  %v488 = vsel %vm128, %v483, %v487
  %v490 = vshrl.u32 %v60, 16
  %v492 = vrot.slane %v490, 4
  %v493 = vshll.u32 %v60, 16
  %v495 = vrot.slane %v493, 5
  %v496 = vor.u32 %v492, %v495
  %v497 = vrot.slane %v496, 4
  %v499 = vshll.u32 %v61, 16
  %v501 = vrot.slane %v499, 5
  %v502 = vsel %vm128, %v497, %v501
  %v503 = vshrl.u32 %v61, 16
  %v505 = vrot.slane %v503, 4
  %v506 = vor.u32 %v505, %v501
  %v507 = vrot.slane %v506, 4
  %v509 = vshll.u32 %v109, 16
  %v511 = vrot.slane %v509, 5
  %v512 = vsel %vm128, %v507, %v511
  %v514 = vshrl.u32 %v62, 16
  %v516 = vrot.slane %v514, 4
  %v517 = vshll.u32 %v62, 16
  %v519 = vrot.slane %v517, 5
  %v520 = vor.u32 %v516, %v519
  %v521 = vrot.slane %v520, 4
  %v523 = vshll.u32 %v63, 16
  %v525 = vrot.slane %v523, 5
  %v526 = vsel %vm128, %v521, %v525
  %v527 = vshrl.u32 %v63, 16
  %v529 = vrot.slane %v527, 4
  %v530 = vor.u32 %v529, %v525
  %v531 = vrot.slane %v530, 4
  %v533 = vshll.u32 %v110, 16
  %v535 = vrot.slane %v533, 5
  %v536 = vsel %vm128, %v531, %v535
  %v538 = vshrl.u32 %v64, 16
  %v540 = vrot.slane %v538, 4
  %v541 = vshll.u32 %v64, 16
  %v543 = vrot.slane %v541, 5
  %v544 = vor.u32 %v540, %v543
  %v545 = vrot.slane %v544, 4
  %v547 = vshll.u32 %v65, 16
  %v549 = vrot.slane %v547, 5
  %v550 = vsel %vm128, %v545, %v549
  %v551 = vshrl.u32 %v65, 16
  %v553 = vrot.slane %v551, 4
  %v554 = vor.u32 %v553, %v549
  %v555 = vrot.slane %v554, 4
  %v557 = vshll.u32 %v111, 16
  %v559 = vrot.slane %v557, 5
  %v560 = vsel %vm128, %v555, %v559
  %v562 = vshrl.u32 %v66, 16
  %v564 = vrot.slane %v562, 4
  %v565 = vshll.u32 %v66, 16
  %v567 = vrot.slane %v565, 5
  %v568 = vor.u32 %v564, %v567
  %v569 = vrot.slane %v568, 4
  %v571 = vshll.u32 %v67, 16
  %v573 = vrot.slane %v571, 5
  %v574 = vsel %vm128, %v569, %v573
  %v575 = vshrl.u32 %v67, 16
  %v577 = vrot.slane %v575, 4
  %v578 = vor.u32 %v577, %v573
  %v579 = vrot.slane %v578, 4
  %v581 = vshll.u32 %v112, 16
  %v583 = vrot.slane %v581, 5
  %v584 = vsel %vm128, %v579, %v583
  %v586 = vshrl.u32 %v68, 16
  %v588 = vrot.slane %v586, 4
  %v589 = vshll.u32 %v68, 16
  %v591 = vrot.slane %v589, 5
  %v592 = vor.u32 %v588, %v591
  %v593 = vrot.slane %v592, 4
  %v595 = vshll.u32 %v69, 16
  %v597 = vrot.slane %v595, 5
  %v598 = vsel %vm128, %v593, %v597
  %v599 = vshrl.u32 %v69, 16
  %v601 = vrot.slane %v599, 4
  %v602 = vor.u32 %v601, %v597
  %v603 = vrot.slane %v602, 4
  %v605 = vshll.u32 %v113, 16
  %v607 = vrot.slane %v605, 5
  %v608 = vsel %vm128, %v603, %v607
  %v610 = vshrl.u32 %v70, 16
  %v612 = vrot.slane %v610, 4
  %v613 = vshll.u32 %v70, 16
  %v615 = vrot.slane %v613, 5
  %v616 = vor.u32 %v612, %v615
  %v617 = vrot.slane %v616, 4
  %v619 = vshll.u32 %v71, 16
  %v621 = vrot.slane %v619, 5
  %v622 = vsel %vm128, %v617, %v621
  %v623 = vshrl.u32 %v71, 16
  %v625 = vrot.slane %v623, 4
  %v626 = vor.u32 %v625, %v621
  %v627 = vrot.slane %v626, 4
  %v629 = vshll.u32 %v114, 16
  %v631 = vrot.slane %v629, 5
  %v632 = vsel %vm128, %v627, %v631
  %v634 = vshrl.u32 %v72, 16
  %v636 = vrot.slane %v634, 4
  %v637 = vshll.u32 %v72, 16
  %v639 = vrot.slane %v637, 5
  %v640 = vor.u32 %v636, %v639
  %v641 = vrot.slane %v640, 4
  %v643 = vshll.u32 %v73, 16
  %v645 = vrot.slane %v643, 5
  %v646 = vsel %vm128, %v641, %v645
  %v647 = vshrl.u32 %v73, 16
  %v649 = vrot.slane %v647, 4
  %v650 = vor.u32 %v649, %v645
  %v651 = vrot.slane %v650, 4
  %v653 = vshll.u32 %v115, 16
  %v655 = vrot.slane %v653, 5
  %v656 = vsel %vm128, %v651, %v655
  %v658 = vshrl.u32 %v74, 16
  %v660 = vrot.slane %v658, 4
  %v661 = vshll.u32 %v74, 16
  %v663 = vrot.slane %v661, 5
  %v664 = vor.u32 %v660, %v663
  %v665 = vrot.slane %v664, 4
  %v667 = vshll.u32 %v75, 16
  %v669 = vrot.slane %v667, 5
  %v670 = vsel %vm128, %v665, %v669
  %v671 = vshrl.u32 %v75, 16
  %v673 = vrot.slane %v671, 4
  %v674 = vor.u32 %v673, %v669
  %v675 = vrot.slane %v674, 4
  %v677 = vshll.u32 %v116, 16
  %v679 = vrot.slane %v677, 5
  %v680 = vsel %vm128, %v675, %v679
  %v682 = vshrl.u32 %v76, 16
  %v684 = vrot.slane %v682, 4
  %v685 = vshll.u32 %v76, 16
  %v687 = vrot.slane %v685, 5
  %v688 = vor.u32 %v684, %v687
  %v689 = vrot.slane %v688, 4
  %v691 = vshll.u32 %v77, 16
  %v693 = vrot.slane %v691, 5
  %v694 = vsel %vm128, %v689, %v693
  %v695 = vshrl.u32 %v77, 16
  %v697 = vrot.slane %v695, 4
  %v698 = vor.u32 %v697, %v693
  %v699 = vrot.slane %v698, 4
  %v701 = vshll.u32 %v117, 16
  %v703 = vrot.slane %v701, 5
  %v704 = vsel %vm128, %v699, %v703
  %v706 = vshrl.u32 %v78, 16
  %v708 = vrot.slane %v706, 4
  %v709 = vshll.u32 %v78, 16
  %v711 = vrot.slane %v709, 5
  %v712 = vor.u32 %v708, %v711
  %v713 = vrot.slane %v712, 4
  %v715 = vshll.u32 %v79, 16
  %v717 = vrot.slane %v715, 5
  %v718 = vsel %vm128, %v713, %v717
  %v719 = vshrl.u32 %v79, 16
  %v721 = vrot.slane %v719, 4
  %v722 = vor.u32 %v721, %v717
  %v723 = vrot.slane %v722, 4
  %v725 = vshll.u32 %v118, 16
  %v727 = vrot.slane %v725, 5
  %v728 = vsel %vm128, %v723, %v727
  %v730 = vshrl.u32 %v80, 16
  %v732 = vrot.slane %v730, 4
  %v733 = vshll.u32 %v80, 16
  %v735 = vrot.slane %v733, 5
  %v736 = vor.u32 %v732, %v735
  %v737 = vrot.slane %v736, 4
  %v739 = vshll.u32 %v81, 16
  %v741 = vrot.slane %v739, 5
  %v742 = vsel %vm128, %v737, %v741
  %v743 = vshrl.u32 %v81, 16
  %v745 = vrot.slane %v743, 4
  %v746 = vor.u32 %v745, %v741
  %v747 = vrot.slane %v746, 4
  %v749 = vshll.u32 %v119, 16
  %v751 = vrot.slane %v749, 5
  %v752 = vsel %vm128, %v747, %v751
  %v754 = vshrl.u32 %v82, 16
  %v756 = vrot.slane %v754, 4
  %v757 = vshll.u32 %v82, 16
  %v759 = vrot.slane %v757, 5
  %v760 = vor.u32 %v756, %v759
  %v761 = vrot.slane %v760, 4
  %v763 = vshll.u32 %v83, 16
  %v765 = vrot.slane %v763, 5
  %v766 = vsel %vm128, %v761, %v765
  %v767 = vshrl.u32 %v83, 16
  %v769 = vrot.slane %v767, 4
  %v770 = vor.u32 %v769, %v765
  %v771 = vrot.slane %v770, 4
  %v773 = vshll.u32 %v120, 16
  %v775 = vrot.slane %v773, 5
  %v776 = vsel %vm128, %v771, %v775
  %v778 = vshrl.u32 %v84, 16
  %v780 = vrot.slane %v778, 4
  %v781 = vshll.u32 %v84, 16
  %v783 = vrot.slane %v781, 5
  %v784 = vor.u32 %v780, %v783
  %v785 = vrot.slane %v784, 4
  %v787 = vshll.u32 %v85, 16
  %v789 = vrot.slane %v787, 5
  %v790 = vsel %vm128, %v785, %v789
  %v791 = vshrl.u32 %v85, 16
  %v793 = vrot.slane %v791, 4
  %v794 = vor.u32 %v793, %v789
  %v795 = vrot.slane %v794, 4
  %v797 = vshll.u32 %v121, 16
  %v799 = vrot.slane %v797, 5
  %v800 = vsel %vm128, %v795, %v799
  %v802 = vshrl.u32 %v86, 16
  %v804 = vrot.slane %v802, 4
  %v805 = vshll.u32 %v86, 16
  %v807 = vrot.slane %v805, 5
  %v808 = vor.u32 %v804, %v807
  %v809 = vrot.slane %v808, 4
  %v811 = vshll.u32 %v87, 16
  %v813 = vrot.slane %v811, 5
  %v814 = vsel %vm128, %v809, %v813
  %v815 = vshrl.u32 %v87, 16
  %v817 = vrot.slane %v815, 4
  %v818 = vor.u32 %v817, %v813
  %v819 = vrot.slane %v818, 4
  %v821 = vshll.u32 %v122, 16
  %v823 = vrot.slane %v821, 5
  %v824 = vsel %vm128, %v819, %v823
  %v826 = vshrl.u32 %v88, 16
  %v828 = vrot.slane %v826, 4
  %v829 = vshll.u32 %v88, 16
  %v831 = vrot.slane %v829, 5
  %v832 = vor.u32 %v828, %v831
  %v833 = vrot.slane %v832, 4
  %v835 = vshll.u32 %v89, 16
  %v837 = vrot.slane %v835, 5
  %v838 = vsel %vm128, %v833, %v837
  %v839 = vshrl.u32 %v89, 16
  %v841 = vrot.slane %v839, 4
  %v842 = vor.u32 %v841, %v837
  %v843 = vrot.slane %v842, 4
  %v845 = vshll.u32 %v123, 16
  %v847 = vrot.slane %v845, 5
  %v848 = vsel %vm128, %v843, %v847
  %v850 = vshrl.u32 %v90, 16
  %v852 = vrot.slane %v850, 4
  %v853 = vshll.u32 %v90, 16
  %v855 = vrot.slane %v853, 5
  %v856 = vor.u32 %v852, %v855
  %v857 = vrot.slane %v856, 4
  %v859 = vshll.u32 %v91, 16
  %v861 = vrot.slane %v859, 5
  %v862 = vsel %vm128, %v857, %v861
  %v863 = vshrl.u32 %v91, 16
  %v865 = vrot.slane %v863, 4
  %v866 = vor.u32 %v865, %v861
  %v867 = vrot.slane %v866, 4
  %v869 = vshll.u32 %v124, 16
  %v871 = vrot.slane %v869, 5
  %v872 = vsel %vm128, %v867, %v871
  %v874 = vshrl.u32 %v92, 16
  %v876 = vrot.slane %v874, 4
  %v877 = vshll.u32 %v92, 16
  %v879 = vrot.slane %v877, 5
  %v880 = vor.u32 %v876, %v879
  %v881 = vrot.slane %v880, 4
  %v883 = vshll.u32 %v93, 16
  %v885 = vrot.slane %v883, 5
  %v886 = vsel %vm128, %v881, %v885
  %v887 = vshrl.u32 %v93, 16
  %v889 = vrot.slane %v887, 4
  %v890 = vor.u32 %v889, %v885
  %v891 = vrot.slane %v890, 4
  %v893 = vshll.u32 %v125, 16
  %v895 = vrot.slane %v893, 5
  %v896 = vsel %vm128, %v891, %v895
  %v897 = vld [vmem:[%s0] sm:$0xe]
  %v898 = vld [vmem:[%s0 + $0xc] sm:$0xe]
  %v899 = vld [vmem:[%s0 + $0x18] sm:$0xe]
  %v900 = vld [vmem:[%s0 + $0x24] sm:$0xe]
  %v901 = vld [vmem:[%s0 + $0x30] sm:$0xe]
  %v902 = vld [vmem:[%s0 + $0x3c] sm:$0xe]
  %v903 = vld [vmem:[%s0 + $0x48] sm:$0xe]
  %v904 = vld [vmem:[%s0 + $0x54] sm:$0xe]
  %v905 = vld [vmem:[%s0 + $0x60] sm:$0xe]
  %v906 = vld [vmem:[%s0 + $0x6c] sm:$0xe]
  %v907 = vld [vmem:[%s0 + $0x78] sm:$0xe]
  %v908 = vld [vmem:[%s0 + $0x84] sm:$0xe]
  %v909 = vld [vmem:[%s0 + $0x90] sm:$0xe]
  %v910 = vld [vmem:[%s0 + $0x9c] sm:$0xe]
  %v911 = vld [vmem:[%s0 + $0xa8] sm:$0xe]
  %v912 = vld [vmem:[%s0 + $0xb4] sm:$0xe]
  %v913 = vld [vmem:[%s0 + $0xd8] sm:$0xe]
  %v914 = vld [vmem:[%s0 + $0xe4] sm:$0xe]
  %v915 = vld [vmem:[%s0 + $0xf0] sm:$0xe]
  %v916 = vld [vmem:[%s0 + $0xfc] sm:$0xe]
  %v917 = vld [vmem:[%s0 + $0x108] sm:$0xe]
  %v918 = vld [vmem:[%s0 + $0x114] sm:$0xe]
  %v919 = vld [vmem:[%s0 + $0x120] sm:$0xe]
  %v920 = vld [vmem:[%s0 + $0x12c] sm:$0xe]
  %v921 = vld [vmem:[%s0 + $0x138] sm:$0xe]
  %v922 = vld [vmem:[%s0 + $0x144] sm:$0xe]
  %v923 = vld [vmem:[%s0 + $0x150] sm:$0xe]
  %v924 = vld [vmem:[%s0 + $0x15c] sm:$0xe]
  %v925 = vld [vmem:[%s0 + $0x168] sm:$0xe]
  %v926 = vld [vmem:[%s0 + $0x174] sm:$0xe]
  %v927 = vld [vmem:[%s0 + $0x180] sm:$0xe]
  %v928 = vld [vmem:[%s0 + $0x18c] sm:$0xe]
  %vm1025 = vcmask 1042432
  %vm1026 = vcmask 1046532
  %vm1027 = vmor %vm1025, %vm1026
  %v1028 = vrot.slane %v897, 5
  %v1029 = vrot.slane %v1028, 4
  %v1030 = vrot.slane %v31, 5
  %v1031 = vsel %vm1027, %v1029, %v1030
  %v1032 = vrot.slane %v1030, 4
  %v1033 = vrot.slane %v94, 5
  %v1034 = vsel %vm1027, %v1032, %v1033
  %v1035 = vrot.slane %v898, 5
  %v1036 = vrot.slane %v1035, 4
  %v1037 = vrot.slane %v33, 5
  %v1038 = vsel %vm1027, %v1036, %v1037
  %v1039 = vrot.slane %v1037, 4
  %v1040 = vrot.slane %v95, 5
  %v1041 = vsel %vm1027, %v1039, %v1040
  %v1042 = vrot.slane %v899, 5
  %v1043 = vrot.slane %v1042, 4
  %v1044 = vrot.slane %v35, 5
  %v1045 = vsel %vm1027, %v1043, %v1044
  %v1046 = vrot.slane %v1044, 4
  %v1047 = vrot.slane %v96, 5
  %v1048 = vsel %vm1027, %v1046, %v1047
  %v1049 = vrot.slane %v900, 5
  %v1050 = vrot.slane %v1049, 4
  %v1051 = vrot.slane %v37, 5
  %v1052 = vsel %vm1027, %v1050, %v1051
  %v1053 = vrot.slane %v1051, 4
  %v1054 = vrot.slane %v97, 5
  %v1055 = vsel %vm1027, %v1053, %v1054
  %v1056 = vrot.slane %v901, 5
  %v1057 = vrot.slane %v1056, 4
  %v1058 = vrot.slane %v39, 5
  %v1059 = vsel %vm1027, %v1057, %v1058
  %v1060 = vrot.slane %v1058, 4
  %v1061 = vrot.slane %v98, 5
  %v1062 = vsel %vm1027, %v1060, %v1061
  %v1063 = vrot.slane %v902, 5
  %v1064 = vrot.slane %v1063, 4
  %v1065 = vrot.slane %v41, 5
  %v1066 = vsel %vm1027, %v1064, %v1065
  %v1067 = vrot.slane %v1065, 4
  %v1068 = vrot.slane %v99, 5
  %v1069 = vsel %vm1027, %v1067, %v1068
  %v1070 = vrot.slane %v903, 5
  %v1071 = vrot.slane %v1070, 4
  %v1072 = vrot.slane %v43, 5
  %v1073 = vsel %vm1027, %v1071, %v1072
  %v1074 = vrot.slane %v1072, 4
  %v1075 = vrot.slane %v100, 5
  %v1076 = vsel %vm1027, %v1074, %v1075
  %v1077 = vrot.slane %v904, 5
  %v1078 = vrot.slane %v1077, 4
  %v1079 = vrot.slane %v45, 5
  %v1080 = vsel %vm1027, %v1078, %v1079
  %v1081 = vrot.slane %v1079, 4
  %v1082 = vrot.slane %v101, 5
  %v1083 = vsel %vm1027, %v1081, %v1082
  %v1084 = vrot.slane %v905, 5
  %v1085 = vrot.slane %v1084, 4
  %v1086 = vrot.slane %v47, 5
  %v1087 = vsel %vm1027, %v1085, %v1086
  %v1088 = vrot.slane %v1086, 4
  %v1089 = vrot.slane %v102, 5
  %v1090 = vsel %vm1027, %v1088, %v1089
  %v1091 = vrot.slane %v906, 5
  %v1092 = vrot.slane %v1091, 4
  %v1093 = vrot.slane %v49, 5
  %v1094 = vsel %vm1027, %v1092, %v1093
  %v1095 = vrot.slane %v1093, 4
  %v1096 = vrot.slane %v103, 5
  %v1097 = vsel %vm1027, %v1095, %v1096
  %v1098 = vrot.slane %v907, 5
  %v1099 = vrot.slane %v1098, 4
  %v1100 = vrot.slane %v51, 5
  %v1101 = vsel %vm1027, %v1099, %v1100
  %v1102 = vrot.slane %v1100, 4
  %v1103 = vrot.slane %v104, 5
  %v1104 = vsel %vm1027, %v1102, %v1103
  %v1105 = vrot.slane %v908, 5
  %v1106 = vrot.slane %v1105, 4
  %v1107 = vrot.slane %v53, 5
  %v1108 = vsel %vm1027, %v1106, %v1107
  %v1109 = vrot.slane %v1107, 4
  %v1110 = vrot.slane %v105, 5
  %v1111 = vsel %vm1027, %v1109, %v1110
  %v1112 = vrot.slane %v909, 5
  %v1113 = vrot.slane %v1112, 4
  %v1114 = vrot.slane %v55, 5
  %v1115 = vsel %vm1027, %v1113, %v1114
  %v1116 = vrot.slane %v1114, 4
  %v1117 = vrot.slane %v106, 5
  %v1118 = vsel %vm1027, %v1116, %v1117
  %v1119 = vrot.slane %v910, 5
  %v1120 = vrot.slane %v1119, 4
  %v1121 = vrot.slane %v57, 5
  %v1122 = vsel %vm1027, %v1120, %v1121
  %v1123 = vrot.slane %v1121, 4
  %v1124 = vrot.slane %v107, 5
  %v1125 = vsel %vm1027, %v1123, %v1124
  %v1126 = vrot.slane %v911, 5
  %v1127 = vrot.slane %v1126, 4
  %v1128 = vrot.slane %v59, 5
  %v1129 = vsel %vm1027, %v1127, %v1128
  %v1130 = vrot.slane %v1128, 4
  %v1131 = vrot.slane %v108, 5
  %v1132 = vsel %vm1027, %v1130, %v1131
  %v1133 = vrot.slane %v912, 5
  %v1134 = vrot.slane %v1133, 4
  %v1135 = vrot.slane %v61, 5
  %v1136 = vsel %vm1027, %v1134, %v1135
  %v1137 = vrot.slane %v1135, 4
  %v1138 = vrot.slane %v109, 5
  %v1139 = vsel %vm1027, %v1137, %v1138
  %v1140 = vrot.slane %v913, 5
  %v1141 = vrot.slane %v1140, 4
  %v1142 = vrot.slane %v63, 5
  %v1143 = vsel %vm1027, %v1141, %v1142
  %v1144 = vrot.slane %v1142, 4
  %v1145 = vrot.slane %v110, 5
  %v1146 = vsel %vm1027, %v1144, %v1145
  %v1147 = vrot.slane %v914, 5
  %v1148 = vrot.slane %v1147, 4
  %v1149 = vrot.slane %v65, 5
  %v1150 = vsel %vm1027, %v1148, %v1149
  %v1151 = vrot.slane %v1149, 4
  %v1152 = vrot.slane %v111, 5
  %v1153 = vsel %vm1027, %v1151, %v1152
  %v1154 = vrot.slane %v915, 5
  %v1155 = vrot.slane %v1154, 4
  %v1156 = vrot.slane %v67, 5
  %v1157 = vsel %vm1027, %v1155, %v1156
  %v1158 = vrot.slane %v1156, 4
  %v1159 = vrot.slane %v112, 5
  %v1160 = vsel %vm1027, %v1158, %v1159
  %v1161 = vrot.slane %v916, 5
  %v1162 = vrot.slane %v1161, 4
  %v1163 = vrot.slane %v69, 5
  %v1164 = vsel %vm1027, %v1162, %v1163
  %v1165 = vrot.slane %v1163, 4
  %v1166 = vrot.slane %v113, 5
  %v1167 = vsel %vm1027, %v1165, %v1166
  %v1168 = vrot.slane %v917, 5
  %v1169 = vrot.slane %v1168, 4
  %v1170 = vrot.slane %v71, 5
  %v1171 = vsel %vm1027, %v1169, %v1170
  %v1172 = vrot.slane %v1170, 4
  %v1173 = vrot.slane %v114, 5
  %v1174 = vsel %vm1027, %v1172, %v1173
  %v1175 = vrot.slane %v918, 5
  %v1176 = vrot.slane %v1175, 4
  %v1177 = vrot.slane %v73, 5
  %v1178 = vsel %vm1027, %v1176, %v1177
  %v1179 = vrot.slane %v1177, 4
  %v1180 = vrot.slane %v115, 5
  %v1181 = vsel %vm1027, %v1179, %v1180
  %v1182 = vrot.slane %v919, 5
  %v1183 = vrot.slane %v1182, 4
  %v1184 = vrot.slane %v75, 5
  %v1185 = vsel %vm1027, %v1183, %v1184
  %v1186 = vrot.slane %v1184, 4
  %v1187 = vrot.slane %v116, 5
  %v1188 = vsel %vm1027, %v1186, %v1187
  %v1189 = vrot.slane %v920, 5
  %v1190 = vrot.slane %v1189, 4
  %v1191 = vrot.slane %v77, 5
  %v1192 = vsel %vm1027, %v1190, %v1191
  %v1193 = vrot.slane %v1191, 4
  %v1194 = vrot.slane %v117, 5
  %v1195 = vsel %vm1027, %v1193, %v1194
  %v1196 = vrot.slane %v921, 5
  %v1197 = vrot.slane %v1196, 4
  %v1198 = vrot.slane %v79, 5
  %v1199 = vsel %vm1027, %v1197, %v1198
  %v1200 = vrot.slane %v1198, 4
  %v1201 = vrot.slane %v118, 5
  %v1202 = vsel %vm1027, %v1200, %v1201
  %v1203 = vrot.slane %v922, 5
  %v1204 = vrot.slane %v1203, 4
  %v1205 = vrot.slane %v81, 5
  %v1206 = vsel %vm1027, %v1204, %v1205
  %v1207 = vrot.slane %v1205, 4
  %v1208 = vrot.slane %v119, 5
  %v1209 = vsel %vm1027, %v1207, %v1208
  %v1210 = vrot.slane %v923, 5
  %v1211 = vrot.slane %v1210, 4
  %v1212 = vrot.slane %v83, 5
  %v1213 = vsel %vm1027, %v1211, %v1212
  %v1214 = vrot.slane %v1212, 4
  %v1215 = vrot.slane %v120, 5
  %v1216 = vsel %vm1027, %v1214, %v1215
  %v1217 = vrot.slane %v924, 5
  %v1218 = vrot.slane %v1217, 4
  %v1219 = vrot.slane %v85, 5
  %v1220 = vsel %vm1027, %v1218, %v1219
  %v1221 = vrot.slane %v1219, 4
  %v1222 = vrot.slane %v121, 5
  %v1223 = vsel %vm1027, %v1221, %v1222
  %v1224 = vrot.slane %v925, 5
  %v1225 = vrot.slane %v1224, 4
  %v1226 = vrot.slane %v87, 5
  %v1227 = vsel %vm1027, %v1225, %v1226
  %v1228 = vrot.slane %v1226, 4
  %v1229 = vrot.slane %v122, 5
  %v1230 = vsel %vm1027, %v1228, %v1229
  %v1231 = vrot.slane %v926, 5
  %v1232 = vrot.slane %v1231, 4
  %v1233 = vrot.slane %v89, 5
  %v1234 = vsel %vm1027, %v1232, %v1233
  %v1235 = vrot.slane %v1233, 4
  %v1236 = vrot.slane %v123, 5
  %v1237 = vsel %vm1027, %v1235, %v1236
  %v1238 = vrot.slane %v927, 5
  %v1239 = vrot.slane %v1238, 4
  %v1240 = vrot.slane %v91, 5
  %v1241 = vsel %vm1027, %v1239, %v1240
  %v1242 = vrot.slane %v1240, 4
  %v1243 = vrot.slane %v124, 5
  %v1244 = vsel %vm1027, %v1242, %v1243
  %v1245 = vrot.slane %v928, 5
  %v1246 = vrot.slane %v1245, 4
  %v1247 = vrot.slane %v93, 5
  %v1248 = vsel %vm1027, %v1246, %v1247
  %v1249 = vrot.slane %v1247, 4
  %v1250 = vrot.slane %v125, 5
  %v1251 = vsel %vm1027, %v1249, %v1250
  %s1252 = scalar_lea.vmem %s0, 12
  %v1253 = vld [vmem:[%s1252] sm:$0xf]
  %v1254 = vld [vmem:[%s1252 + $0x4] sm:$0xf]
  %v1255 = vld [vmem:[%s1252 + $0xc] sm:$0xf]
  %v1256 = vld [vmem:[%s1252 + $0x10] sm:$0xf]
  %v1257 = vld [vmem:[%s1252 + $0x18] sm:$0xf]
  %v1258 = vld [vmem:[%s1252 + $0x1c] sm:$0xf]
  %v1259 = vld [vmem:[%s1252 + $0x24] sm:$0xf]
  %v1260 = vld [vmem:[%s1252 + $0x28] sm:$0xf]
  %v1261 = vld [vmem:[%s1252 + $0x30] sm:$0xf]
  %v1262 = vld [vmem:[%s1252 + $0x34] sm:$0xf]
  %v1263 = vld [vmem:[%s1252 + $0x3c] sm:$0xf]
  %v1264 = vld [vmem:[%s1252 + $0x40] sm:$0xf]
  %v1265 = vld [vmem:[%s1252 + $0x48] sm:$0xf]
  %v1266 = vld [vmem:[%s1252 + $0x4c] sm:$0xf]
  %v1267 = vld [vmem:[%s1252 + $0x54] sm:$0xf]
  %v1268 = vld [vmem:[%s1252 + $0x58] sm:$0xf]
  %v1269 = vld [vmem:[%s1252 + $0x60] sm:$0xf]
  %v1270 = vld [vmem:[%s1252 + $0x64] sm:$0xf]
  %v1271 = vld [vmem:[%s1252 + $0x6c] sm:$0xf]
  %v1272 = vld [vmem:[%s1252 + $0x70] sm:$0xf]
  %v1273 = vld [vmem:[%s1252 + $0x78] sm:$0xf]
  %v1274 = vld [vmem:[%s1252 + $0x7c] sm:$0xf]
  %v1275 = vld [vmem:[%s1252 + $0x84] sm:$0xf]
  %v1276 = vld [vmem:[%s1252 + $0x88] sm:$0xf]
  %v1277 = vld [vmem:[%s1252 + $0x90] sm:$0xf]
  %v1278 = vld [vmem:[%s1252 + $0x94] sm:$0xf]
  %v1279 = vld [vmem:[%s1252 + $0x9c] sm:$0xf]
  %v1280 = vld [vmem:[%s1252 + $0xa0] sm:$0xf]
  %v1281 = vld [vmem:[%s1252 + $0xa8] sm:$0xf]
  %v1282 = vld [vmem:[%s1252 + $0xac] sm:$0xf]
  %v1283 = vld [vmem:[%s1252 + $0xb4] sm:$0xf]
  %v1284 = vld [vmem:[%s1252 + $0xb8] sm:$0xf]
  %v1285 = vld [vmem:[%s1252 + $0xd8] sm:$0xf]
  %v1286 = vld [vmem:[%s1252 + $0xdc] sm:$0xf]
  %v1287 = vld [vmem:[%s1252 + $0xe4] sm:$0xf]
  %v1288 = vld [vmem:[%s1252 + $0xe8] sm:$0xf]
  %v1289 = vld [vmem:[%s1252 + $0xf0] sm:$0xf]
  %v1290 = vld [vmem:[%s1252 + $0xf4] sm:$0xf]
  %v1291 = vld [vmem:[%s1252 + $0xfc] sm:$0xf]
  %v1292 = vld [vmem:[%s1252 + $0x100] sm:$0xf]
  %v1293 = vld [vmem:[%s1252 + $0x108] sm:$0xf]
  %v1294 = vld [vmem:[%s1252 + $0x10c] sm:$0xf]
  %v1295 = vld [vmem:[%s1252 + $0x114] sm:$0xf]
  %v1296 = vld [vmem:[%s1252 + $0x118] sm:$0xf]
  %v1297 = vld [vmem:[%s1252 + $0x120] sm:$0xf]
  %v1298 = vld [vmem:[%s1252 + $0x124] sm:$0xf]
  %v1299 = vld [vmem:[%s1252 + $0x12c] sm:$0xf]
  %v1300 = vld [vmem:[%s1252 + $0x130] sm:$0xf]
  %v1301 = vld [vmem:[%s1252 + $0x138] sm:$0xf]
  %v1302 = vld [vmem:[%s1252 + $0x13c] sm:$0xf]
  %v1303 = vld [vmem:[%s1252 + $0x144] sm:$0xf]
  %v1304 = vld [vmem:[%s1252 + $0x148] sm:$0xf]
  %v1305 = vld [vmem:[%s1252 + $0x150] sm:$0xf]
  %v1306 = vld [vmem:[%s1252 + $0x154] sm:$0xf]
  %v1307 = vld [vmem:[%s1252 + $0x15c] sm:$0xf]
  %v1308 = vld [vmem:[%s1252 + $0x160] sm:$0xf]
  %v1309 = vld [vmem:[%s1252 + $0x168] sm:$0xf]
  %v1310 = vld [vmem:[%s1252 + $0x16c] sm:$0xf]
  %v1311 = vld [vmem:[%s1252 + $0x174] sm:$0xf]
  %v1312 = vld [vmem:[%s1252 + $0x178] sm:$0xf]
  %v1313 = vld [vmem:[%s1252 + $0x180] sm:$0xf]
  %v1314 = vld [vmem:[%s1252 + $0x184] sm:$0xf]
  %v1315 = vld [vmem:[%s1252 + $0x18c] sm:$0xf]
  %v1316 = vld [vmem:[%s1252 + $0x190] sm:$0xf]
  %v1317 = vld [vmem:[%s1252 + $0x8] sm:$0x1]
  %v1318 = vld [vmem:[%s1252 + $0x14] sm:$0x1]
  %v1319 = vld [vmem:[%s1252 + $0x20] sm:$0x1]
  %v1320 = vld [vmem:[%s1252 + $0x2c] sm:$0x1]
  %v1321 = vld [vmem:[%s1252 + $0x38] sm:$0x1]
  %v1322 = vld [vmem:[%s1252 + $0x44] sm:$0x1]
  %v1323 = vld [vmem:[%s1252 + $0x50] sm:$0x1]
  %v1324 = vld [vmem:[%s1252 + $0x5c] sm:$0x1]
  %v1325 = vld [vmem:[%s1252 + $0x68] sm:$0x1]
  %v1326 = vld [vmem:[%s1252 + $0x74] sm:$0x1]
  %v1327 = vld [vmem:[%s1252 + $0x80] sm:$0x1]
  %v1328 = vld [vmem:[%s1252 + $0x8c] sm:$0x1]
  %v1329 = vld [vmem:[%s1252 + $0x98] sm:$0x1]
  %v1330 = vld [vmem:[%s1252 + $0xa4] sm:$0x1]
  %v1331 = vld [vmem:[%s1252 + $0xb0] sm:$0x1]
  %v1332 = vld [vmem:[%s1252 + $0xbc] sm:$0x1]
  %v1333 = vld [vmem:[%s1252 + $0xe0] sm:$0x1]
  %v1334 = vld [vmem:[%s1252 + $0xec] sm:$0x1]
  %v1335 = vld [vmem:[%s1252 + $0xf8] sm:$0x1]
  %v1336 = vld [vmem:[%s1252 + $0x104] sm:$0x1]
  %v1337 = vld [vmem:[%s1252 + $0x110] sm:$0x1]
  %v1338 = vld [vmem:[%s1252 + $0x11c] sm:$0x1]
  %v1339 = vld [vmem:[%s1252 + $0x128] sm:$0x1]
  %v1340 = vld [vmem:[%s1252 + $0x134] sm:$0x1]
  %v1341 = vld [vmem:[%s1252 + $0x140] sm:$0x1]
  %v1342 = vld [vmem:[%s1252 + $0x14c] sm:$0x1]
  %v1343 = vld [vmem:[%s1252 + $0x158] sm:$0x1]
  %v1344 = vld [vmem:[%s1252 + $0x164] sm:$0x1]
  %v1345 = vld [vmem:[%s1252 + $0x170] sm:$0x1]
  %v1346 = vld [vmem:[%s1252 + $0x17c] sm:$0x1]
  %v1347 = vld [vmem:[%s1252 + $0x188] sm:$0x1]
  %v1348 = vld [vmem:[%s1252 + $0x194] sm:$0x1]
  %v1350 = vshrl.u32 %v1253, 16
  %v1352 = vrot.slane %v1350, 4
  %v1353 = vshll.u32 %v1253, 16
  %v1355 = vrot.slane %v1353, 5
  %v1356 = vor.u32 %v1352, %v1355
  %v1357 = vrot.slane %v1356, 4
  %v1359 = vshll.u32 %v1254, 16
  %v1361 = vrot.slane %v1359, 5
  %v1362 = vsel %vm128, %v1357, %v1361
  %v1363 = vshrl.u32 %v1254, 16
  %v1365 = vrot.slane %v1363, 4
  %v1366 = vor.u32 %v1365, %v1361
  %v1367 = vrot.slane %v1366, 4
  %v1369 = vshll.u32 %v1317, 16
  %v1371 = vrot.slane %v1369, 5
  %v1372 = vsel %vm128, %v1367, %v1371
  %v1374 = vshrl.u32 %v1255, 16
  %v1376 = vrot.slane %v1374, 4
  %v1377 = vshll.u32 %v1255, 16
  %v1379 = vrot.slane %v1377, 5
  %v1380 = vor.u32 %v1376, %v1379
  %v1381 = vrot.slane %v1380, 4
  %v1383 = vshll.u32 %v1256, 16
  %v1385 = vrot.slane %v1383, 5
  %v1386 = vsel %vm128, %v1381, %v1385
  %v1387 = vshrl.u32 %v1256, 16
  %v1389 = vrot.slane %v1387, 4
  %v1390 = vor.u32 %v1389, %v1385
  %v1391 = vrot.slane %v1390, 4
  %v1393 = vshll.u32 %v1318, 16
  %v1395 = vrot.slane %v1393, 5
  %v1396 = vsel %vm128, %v1391, %v1395
  %v1398 = vshrl.u32 %v1257, 16
  %v1400 = vrot.slane %v1398, 4
  %v1401 = vshll.u32 %v1257, 16
  %v1403 = vrot.slane %v1401, 5
  %v1404 = vor.u32 %v1400, %v1403
  %v1405 = vrot.slane %v1404, 4
  %v1407 = vshll.u32 %v1258, 16
  %v1409 = vrot.slane %v1407, 5
  %v1410 = vsel %vm128, %v1405, %v1409
  %v1411 = vshrl.u32 %v1258, 16
  %v1413 = vrot.slane %v1411, 4
  %v1414 = vor.u32 %v1413, %v1409
  %v1415 = vrot.slane %v1414, 4
  %v1417 = vshll.u32 %v1319, 16
  %v1419 = vrot.slane %v1417, 5
  %v1420 = vsel %vm128, %v1415, %v1419
  %v1422 = vshrl.u32 %v1259, 16
  %v1424 = vrot.slane %v1422, 4
  %v1425 = vshll.u32 %v1259, 16
  %v1427 = vrot.slane %v1425, 5
  %v1428 = vor.u32 %v1424, %v1427
  %v1429 = vrot.slane %v1428, 4
  %v1431 = vshll.u32 %v1260, 16
  %v1433 = vrot.slane %v1431, 5
  %v1434 = vsel %vm128, %v1429, %v1433
  %v1435 = vshrl.u32 %v1260, 16
  %v1437 = vrot.slane %v1435, 4
  %v1438 = vor.u32 %v1437, %v1433
  %v1439 = vrot.slane %v1438, 4
  %v1441 = vshll.u32 %v1320, 16
  %v1443 = vrot.slane %v1441, 5
  %v1444 = vsel %vm128, %v1439, %v1443
  %v1446 = vshrl.u32 %v1261, 16
  %v1448 = vrot.slane %v1446, 4
  %v1449 = vshll.u32 %v1261, 16
  %v1451 = vrot.slane %v1449, 5
  %v1452 = vor.u32 %v1448, %v1451
  %v1453 = vrot.slane %v1452, 4
  %v1455 = vshll.u32 %v1262, 16
  %v1457 = vrot.slane %v1455, 5
  %v1458 = vsel %vm128, %v1453, %v1457
  %v1459 = vshrl.u32 %v1262, 16
  %v1461 = vrot.slane %v1459, 4
  %v1462 = vor.u32 %v1461, %v1457
  %v1463 = vrot.slane %v1462, 4
  %v1465 = vshll.u32 %v1321, 16
  %v1467 = vrot.slane %v1465, 5
  %v1468 = vsel %vm128, %v1463, %v1467
  %v1470 = vshrl.u32 %v1263, 16
  %v1472 = vrot.slane %v1470, 4
  %v1473 = vshll.u32 %v1263, 16
  %v1475 = vrot.slane %v1473, 5
  %v1476 = vor.u32 %v1472, %v1475
  %v1477 = vrot.slane %v1476, 4
  %v1479 = vshll.u32 %v1264, 16
  %v1481 = vrot.slane %v1479, 5
  %v1482 = vsel %vm128, %v1477, %v1481
  %v1483 = vshrl.u32 %v1264, 16
  %v1485 = vrot.slane %v1483, 4
  %v1486 = vor.u32 %v1485, %v1481
  %v1487 = vrot.slane %v1486, 4
  %v1489 = vshll.u32 %v1322, 16
  %v1491 = vrot.slane %v1489, 5
  %v1492 = vsel %vm128, %v1487, %v1491
  %v1494 = vshrl.u32 %v1265, 16
  %v1496 = vrot.slane %v1494, 4
  %v1497 = vshll.u32 %v1265, 16
  %v1499 = vrot.slane %v1497, 5
  %v1500 = vor.u32 %v1496, %v1499
  %v1501 = vrot.slane %v1500, 4
  %v1503 = vshll.u32 %v1266, 16
  %v1505 = vrot.slane %v1503, 5
  %v1506 = vsel %vm128, %v1501, %v1505
  %v1507 = vshrl.u32 %v1266, 16
  %v1509 = vrot.slane %v1507, 4
  %v1510 = vor.u32 %v1509, %v1505
  %v1511 = vrot.slane %v1510, 4
  %v1513 = vshll.u32 %v1323, 16
  %v1515 = vrot.slane %v1513, 5
  %v1516 = vsel %vm128, %v1511, %v1515
  %v1518 = vshrl.u32 %v1267, 16
  %v1520 = vrot.slane %v1518, 4
  %v1521 = vshll.u32 %v1267, 16
  %v1523 = vrot.slane %v1521, 5
  %v1524 = vor.u32 %v1520, %v1523
  %v1525 = vrot.slane %v1524, 4
  %v1527 = vshll.u32 %v1268, 16
  %v1529 = vrot.slane %v1527, 5
  %v1530 = vsel %vm128, %v1525, %v1529
  %v1531 = vshrl.u32 %v1268, 16
  %v1533 = vrot.slane %v1531, 4
  %v1534 = vor.u32 %v1533, %v1529
  %v1535 = vrot.slane %v1534, 4
  %v1537 = vshll.u32 %v1324, 16
  %v1539 = vrot.slane %v1537, 5
  %v1540 = vsel %vm128, %v1535, %v1539
  %v1542 = vshrl.u32 %v1269, 16
  %v1544 = vrot.slane %v1542, 4
  %v1545 = vshll.u32 %v1269, 16
  %v1547 = vrot.slane %v1545, 5
  %v1548 = vor.u32 %v1544, %v1547
  %v1549 = vrot.slane %v1548, 4
  %v1551 = vshll.u32 %v1270, 16
  %v1553 = vrot.slane %v1551, 5
  %v1554 = vsel %vm128, %v1549, %v1553
  %v1555 = vshrl.u32 %v1270, 16
  %v1557 = vrot.slane %v1555, 4
  %v1558 = vor.u32 %v1557, %v1553
  %v1559 = vrot.slane %v1558, 4
  %v1561 = vshll.u32 %v1325, 16
  %v1563 = vrot.slane %v1561, 5
  %v1564 = vsel %vm128, %v1559, %v1563
  %v1566 = vshrl.u32 %v1271, 16
  %v1568 = vrot.slane %v1566, 4
  %v1569 = vshll.u32 %v1271, 16
  %v1571 = vrot.slane %v1569, 5
  %v1572 = vor.u32 %v1568, %v1571
  %v1573 = vrot.slane %v1572, 4
  %v1575 = vshll.u32 %v1272, 16
  %v1577 = vrot.slane %v1575, 5
  %v1578 = vsel %vm128, %v1573, %v1577
  %v1579 = vshrl.u32 %v1272, 16
  %v1581 = vrot.slane %v1579, 4
  %v1582 = vor.u32 %v1581, %v1577
  %v1583 = vrot.slane %v1582, 4
  %v1585 = vshll.u32 %v1326, 16
  %v1587 = vrot.slane %v1585, 5
  %v1588 = vsel %vm128, %v1583, %v1587
  %v1590 = vshrl.u32 %v1273, 16
  %v1592 = vrot.slane %v1590, 4
  %v1593 = vshll.u32 %v1273, 16
  %v1595 = vrot.slane %v1593, 5
  %v1596 = vor.u32 %v1592, %v1595
  %v1597 = vrot.slane %v1596, 4
  %v1599 = vshll.u32 %v1274, 16
  %v1601 = vrot.slane %v1599, 5
  %v1602 = vsel %vm128, %v1597, %v1601
  %v1603 = vshrl.u32 %v1274, 16
  %v1605 = vrot.slane %v1603, 4
  %v1606 = vor.u32 %v1605, %v1601
  %v1607 = vrot.slane %v1606, 4
  %v1609 = vshll.u32 %v1327, 16
  %v1611 = vrot.slane %v1609, 5
  %v1612 = vsel %vm128, %v1607, %v1611
  %v1614 = vshrl.u32 %v1275, 16
  %v1616 = vrot.slane %v1614, 4
  %v1617 = vshll.u32 %v1275, 16
  %v1619 = vrot.slane %v1617, 5
  %v1620 = vor.u32 %v1616, %v1619
  %v1621 = vrot.slane %v1620, 4
  %v1623 = vshll.u32 %v1276, 16
  %v1625 = vrot.slane %v1623, 5
  %v1626 = vsel %vm128, %v1621, %v1625
  %v1627 = vshrl.u32 %v1276, 16
  %v1629 = vrot.slane %v1627, 4
  %v1630 = vor.u32 %v1629, %v1625
  %v1631 = vrot.slane %v1630, 4
  %v1633 = vshll.u32 %v1328, 16
  %v1635 = vrot.slane %v1633, 5
  %v1636 = vsel %vm128, %v1631, %v1635
  %v1638 = vshrl.u32 %v1277, 16
  %v1640 = vrot.slane %v1638, 4
  %v1641 = vshll.u32 %v1277, 16
  %v1643 = vrot.slane %v1641, 5
  %v1644 = vor.u32 %v1640, %v1643
  %v1645 = vrot.slane %v1644, 4
  %v1647 = vshll.u32 %v1278, 16
  %v1649 = vrot.slane %v1647, 5
  %v1650 = vsel %vm128, %v1645, %v1649
  %v1651 = vshrl.u32 %v1278, 16
  %v1653 = vrot.slane %v1651, 4
  %v1654 = vor.u32 %v1653, %v1649
  %v1655 = vrot.slane %v1654, 4
  %v1657 = vshll.u32 %v1329, 16
  %v1659 = vrot.slane %v1657, 5
  %v1660 = vsel %vm128, %v1655, %v1659
  %v1662 = vshrl.u32 %v1279, 16
  %v1664 = vrot.slane %v1662, 4
  %v1665 = vshll.u32 %v1279, 16
  %v1667 = vrot.slane %v1665, 5
  %v1668 = vor.u32 %v1664, %v1667
  %v1669 = vrot.slane %v1668, 4
  %v1671 = vshll.u32 %v1280, 16
  %v1673 = vrot.slane %v1671, 5
  %v1674 = vsel %vm128, %v1669, %v1673
  %v1675 = vshrl.u32 %v1280, 16
  %v1677 = vrot.slane %v1675, 4
  %v1678 = vor.u32 %v1677, %v1673
  %v1679 = vrot.slane %v1678, 4
  %v1681 = vshll.u32 %v1330, 16
  %v1683 = vrot.slane %v1681, 5
  %v1684 = vsel %vm128, %v1679, %v1683
  %v1686 = vshrl.u32 %v1281, 16
  %v1688 = vrot.slane %v1686, 4
  %v1689 = vshll.u32 %v1281, 16
  %v1691 = vrot.slane %v1689, 5
  %v1692 = vor.u32 %v1688, %v1691
  %v1693 = vrot.slane %v1692, 4
  %v1695 = vshll.u32 %v1282, 16
  %v1697 = vrot.slane %v1695, 5
  %v1698 = vsel %vm128, %v1693, %v1697
  %v1699 = vshrl.u32 %v1282, 16
  %v1701 = vrot.slane %v1699, 4
  %v1702 = vor.u32 %v1701, %v1697
  %v1703 = vrot.slane %v1702, 4
  %v1705 = vshll.u32 %v1331, 16
  %v1707 = vrot.slane %v1705, 5
  %v1708 = vsel %vm128, %v1703, %v1707
  %v1710 = vshrl.u32 %v1283, 16
  %v1712 = vrot.slane %v1710, 4
  %v1713 = vshll.u32 %v1283, 16
  %v1715 = vrot.slane %v1713, 5
  %v1716 = vor.u32 %v1712, %v1715
  %v1717 = vrot.slane %v1716, 4
  %v1719 = vshll.u32 %v1284, 16
  %v1721 = vrot.slane %v1719, 5
  %v1722 = vsel %vm128, %v1717, %v1721
  %v1723 = vshrl.u32 %v1284, 16
  %v1725 = vrot.slane %v1723, 4
  %v1726 = vor.u32 %v1725, %v1721
  %v1727 = vrot.slane %v1726, 4
  %v1729 = vshll.u32 %v1332, 16
  %v1731 = vrot.slane %v1729, 5
  %v1732 = vsel %vm128, %v1727, %v1731
  %v1734 = vshrl.u32 %v1285, 16
  %v1736 = vrot.slane %v1734, 4
  %v1737 = vshll.u32 %v1285, 16
  %v1739 = vrot.slane %v1737, 5
  %v1740 = vor.u32 %v1736, %v1739
  %v1741 = vrot.slane %v1740, 4
  %v1743 = vshll.u32 %v1286, 16
  %v1745 = vrot.slane %v1743, 5
  %v1746 = vsel %vm128, %v1741, %v1745
  %v1747 = vshrl.u32 %v1286, 16
  %v1749 = vrot.slane %v1747, 4
  %v1750 = vor.u32 %v1749, %v1745
  %v1751 = vrot.slane %v1750, 4
  %v1753 = vshll.u32 %v1333, 16
  %v1755 = vrot.slane %v1753, 5
  %v1756 = vsel %vm128, %v1751, %v1755
  %v1758 = vshrl.u32 %v1287, 16
  %v1760 = vrot.slane %v1758, 4
  %v1761 = vshll.u32 %v1287, 16
  %v1763 = vrot.slane %v1761, 5
  %v1764 = vor.u32 %v1760, %v1763
  %v1765 = vrot.slane %v1764, 4
  %v1767 = vshll.u32 %v1288, 16
  %v1769 = vrot.slane %v1767, 5
  %v1770 = vsel %vm128, %v1765, %v1769
  %v1771 = vshrl.u32 %v1288, 16
  %v1773 = vrot.slane %v1771, 4
  %v1774 = vor.u32 %v1773, %v1769
  %v1775 = vrot.slane %v1774, 4
  %v1777 = vshll.u32 %v1334, 16
  %v1779 = vrot.slane %v1777, 5
  %v1780 = vsel %vm128, %v1775, %v1779
  %v1782 = vshrl.u32 %v1289, 16
  %v1784 = vrot.slane %v1782, 4
  %v1785 = vshll.u32 %v1289, 16
  %v1787 = vrot.slane %v1785, 5
  %v1788 = vor.u32 %v1784, %v1787
  %v1789 = vrot.slane %v1788, 4
  %v1791 = vshll.u32 %v1290, 16
  %v1793 = vrot.slane %v1791, 5
  %v1794 = vsel %vm128, %v1789, %v1793
  %v1795 = vshrl.u32 %v1290, 16
  %v1797 = vrot.slane %v1795, 4
  %v1798 = vor.u32 %v1797, %v1793
  %v1799 = vrot.slane %v1798, 4
  %v1801 = vshll.u32 %v1335, 16
  %v1803 = vrot.slane %v1801, 5
  %v1804 = vsel %vm128, %v1799, %v1803
  %v1806 = vshrl.u32 %v1291, 16
  %v1808 = vrot.slane %v1806, 4
  %v1809 = vshll.u32 %v1291, 16
  %v1811 = vrot.slane %v1809, 5
  %v1812 = vor.u32 %v1808, %v1811
  %v1813 = vrot.slane %v1812, 4
  %v1815 = vshll.u32 %v1292, 16
  %v1817 = vrot.slane %v1815, 5
  %v1818 = vsel %vm128, %v1813, %v1817
  %v1819 = vshrl.u32 %v1292, 16
  %v1821 = vrot.slane %v1819, 4
  %v1822 = vor.u32 %v1821, %v1817
  %v1823 = vrot.slane %v1822, 4
  %v1825 = vshll.u32 %v1336, 16
  %v1827 = vrot.slane %v1825, 5
  %v1828 = vsel %vm128, %v1823, %v1827
  %v1830 = vshrl.u32 %v1293, 16
  %v1832 = vrot.slane %v1830, 4
  %v1833 = vshll.u32 %v1293, 16
  %v1835 = vrot.slane %v1833, 5
  %v1836 = vor.u32 %v1832, %v1835
  %v1837 = vrot.slane %v1836, 4
  %v1839 = vshll.u32 %v1294, 16
  %v1841 = vrot.slane %v1839, 5
  %v1842 = vsel %vm128, %v1837, %v1841
  %v1843 = vshrl.u32 %v1294, 16
  %v1845 = vrot.slane %v1843, 4
  %v1846 = vor.u32 %v1845, %v1841
  %v1847 = vrot.slane %v1846, 4
  %v1849 = vshll.u32 %v1337, 16
  %v1851 = vrot.slane %v1849, 5
  %v1852 = vsel %vm128, %v1847, %v1851
  %v1854 = vshrl.u32 %v1295, 16
  %v1856 = vrot.slane %v1854, 4
  %v1857 = vshll.u32 %v1295, 16
  %v1859 = vrot.slane %v1857, 5
  %v1860 = vor.u32 %v1856, %v1859
  %v1861 = vrot.slane %v1860, 4
  %v1863 = vshll.u32 %v1296, 16
  %v1865 = vrot.slane %v1863, 5
  %v1866 = vsel %vm128, %v1861, %v1865
  %v1867 = vshrl.u32 %v1296, 16
  %v1869 = vrot.slane %v1867, 4
  %v1870 = vor.u32 %v1869, %v1865
  %v1871 = vrot.slane %v1870, 4
  %v1873 = vshll.u32 %v1338, 16
  %v1875 = vrot.slane %v1873, 5
  %v1876 = vsel %vm128, %v1871, %v1875
  %v1878 = vshrl.u32 %v1297, 16
  %v1880 = vrot.slane %v1878, 4
  %v1881 = vshll.u32 %v1297, 16
  %v1883 = vrot.slane %v1881, 5
  %v1884 = vor.u32 %v1880, %v1883
  %v1885 = vrot.slane %v1884, 4
  %v1887 = vshll.u32 %v1298, 16
  %v1889 = vrot.slane %v1887, 5
  %v1890 = vsel %vm128, %v1885, %v1889
  %v1891 = vshrl.u32 %v1298, 16
  %v1893 = vrot.slane %v1891, 4
  %v1894 = vor.u32 %v1893, %v1889
  %v1895 = vrot.slane %v1894, 4
  %v1897 = vshll.u32 %v1339, 16
  %v1899 = vrot.slane %v1897, 5
  %v1900 = vsel %vm128, %v1895, %v1899
  %v1902 = vshrl.u32 %v1299, 16
  %v1904 = vrot.slane %v1902, 4
  %v1905 = vshll.u32 %v1299, 16
  %v1907 = vrot.slane %v1905, 5
  %v1908 = vor.u32 %v1904, %v1907
  %v1909 = vrot.slane %v1908, 4
  %v1911 = vshll.u32 %v1300, 16
  %v1913 = vrot.slane %v1911, 5
  %v1914 = vsel %vm128, %v1909, %v1913
  %v1915 = vshrl.u32 %v1300, 16
  %v1917 = vrot.slane %v1915, 4
  %v1918 = vor.u32 %v1917, %v1913
  %v1919 = vrot.slane %v1918, 4
  %v1921 = vshll.u32 %v1340, 16
  %v1923 = vrot.slane %v1921, 5
  %v1924 = vsel %vm128, %v1919, %v1923
  %v1926 = vshrl.u32 %v1301, 16
  %v1928 = vrot.slane %v1926, 4
  %v1929 = vshll.u32 %v1301, 16
  %v1931 = vrot.slane %v1929, 5
  %v1932 = vor.u32 %v1928, %v1931
  %v1933 = vrot.slane %v1932, 4
  %v1935 = vshll.u32 %v1302, 16
  %v1937 = vrot.slane %v1935, 5
  %v1938 = vsel %vm128, %v1933, %v1937
  %v1939 = vshrl.u32 %v1302, 16
  %v1941 = vrot.slane %v1939, 4
  %v1942 = vor.u32 %v1941, %v1937
  %v1943 = vrot.slane %v1942, 4
  %v1945 = vshll.u32 %v1341, 16
  %v1947 = vrot.slane %v1945, 5
  %v1948 = vsel %vm128, %v1943, %v1947
  %v1950 = vshrl.u32 %v1303, 16
  %v1952 = vrot.slane %v1950, 4
  %v1953 = vshll.u32 %v1303, 16
  %v1955 = vrot.slane %v1953, 5
  %v1956 = vor.u32 %v1952, %v1955
  %v1957 = vrot.slane %v1956, 4
  %v1959 = vshll.u32 %v1304, 16
  %v1961 = vrot.slane %v1959, 5
  %v1962 = vsel %vm128, %v1957, %v1961
  %v1963 = vshrl.u32 %v1304, 16
  %v1965 = vrot.slane %v1963, 4
  %v1966 = vor.u32 %v1965, %v1961
  %v1967 = vrot.slane %v1966, 4
  %v1969 = vshll.u32 %v1342, 16
  %v1971 = vrot.slane %v1969, 5
  %v1972 = vsel %vm128, %v1967, %v1971
  %v1974 = vshrl.u32 %v1305, 16
  %v1976 = vrot.slane %v1974, 4
  %v1977 = vshll.u32 %v1305, 16
  %v1979 = vrot.slane %v1977, 5
  %v1980 = vor.u32 %v1976, %v1979
  %v1981 = vrot.slane %v1980, 4
  %v1983 = vshll.u32 %v1306, 16
  %v1985 = vrot.slane %v1983, 5
  %v1986 = vsel %vm128, %v1981, %v1985
  %v1987 = vshrl.u32 %v1306, 16
  %v1989 = vrot.slane %v1987, 4
  %v1990 = vor.u32 %v1989, %v1985
  %v1991 = vrot.slane %v1990, 4
  %v1993 = vshll.u32 %v1343, 16
  %v1995 = vrot.slane %v1993, 5
  %v1996 = vsel %vm128, %v1991, %v1995
  %v1998 = vshrl.u32 %v1307, 16
  %v2000 = vrot.slane %v1998, 4
  %v2001 = vshll.u32 %v1307, 16
  %v2003 = vrot.slane %v2001, 5
  %v2004 = vor.u32 %v2000, %v2003
  %v2005 = vrot.slane %v2004, 4
  %v2007 = vshll.u32 %v1308, 16
  %v2009 = vrot.slane %v2007, 5
  %v2010 = vsel %vm128, %v2005, %v2009
  %v2011 = vshrl.u32 %v1308, 16
  %v2013 = vrot.slane %v2011, 4
  %v2014 = vor.u32 %v2013, %v2009
  %v2015 = vrot.slane %v2014, 4
  %v2017 = vshll.u32 %v1344, 16
  %v2019 = vrot.slane %v2017, 5
  %v2020 = vsel %vm128, %v2015, %v2019
  %v2022 = vshrl.u32 %v1309, 16
  %v2024 = vrot.slane %v2022, 4
  %v2025 = vshll.u32 %v1309, 16
  %v2027 = vrot.slane %v2025, 5
  %v2028 = vor.u32 %v2024, %v2027
  %v2029 = vrot.slane %v2028, 4
  %v2031 = vshll.u32 %v1310, 16
  %v2033 = vrot.slane %v2031, 5
  %v2034 = vsel %vm128, %v2029, %v2033
  %v2035 = vshrl.u32 %v1310, 16
  %v2037 = vrot.slane %v2035, 4
  %v2038 = vor.u32 %v2037, %v2033
  %v2039 = vrot.slane %v2038, 4
  %v2041 = vshll.u32 %v1345, 16
  %v2043 = vrot.slane %v2041, 5
  %v2044 = vsel %vm128, %v2039, %v2043
  %v2046 = vshrl.u32 %v1311, 16
  %v2048 = vrot.slane %v2046, 4
  %v2049 = vshll.u32 %v1311, 16
  %v2051 = vrot.slane %v2049, 5
  %v2052 = vor.u32 %v2048, %v2051
  %v2053 = vrot.slane %v2052, 4
  %v2055 = vshll.u32 %v1312, 16
  %v2057 = vrot.slane %v2055, 5
  %v2058 = vsel %vm128, %v2053, %v2057
  %v2059 = vshrl.u32 %v1312, 16
  %v2061 = vrot.slane %v2059, 4
  %v2062 = vor.u32 %v2061, %v2057
  %v2063 = vrot.slane %v2062, 4
  %v2065 = vshll.u32 %v1346, 16
  %v2067 = vrot.slane %v2065, 5
  %v2068 = vsel %vm128, %v2063, %v2067
  %v2070 = vshrl.u32 %v1313, 16
  %v2072 = vrot.slane %v2070, 4
  %v2073 = vshll.u32 %v1313, 16
  %v2075 = vrot.slane %v2073, 5
  %v2076 = vor.u32 %v2072, %v2075
  %v2077 = vrot.slane %v2076, 4
  %v2079 = vshll.u32 %v1314, 16
  %v2081 = vrot.slane %v2079, 5
  %v2082 = vsel %vm128, %v2077, %v2081
  %v2083 = vshrl.u32 %v1314, 16
  %v2085 = vrot.slane %v2083, 4
  %v2086 = vor.u32 %v2085, %v2081
  %v2087 = vrot.slane %v2086, 4
  %v2089 = vshll.u32 %v1347, 16
  %v2091 = vrot.slane %v2089, 5
  %v2092 = vsel %vm128, %v2087, %v2091
  %v2094 = vshrl.u32 %v1315, 16
  %v2096 = vrot.slane %v2094, 4
  %v2097 = vshll.u32 %v1315, 16
  %v2099 = vrot.slane %v2097, 5
  %v2100 = vor.u32 %v2096, %v2099
  %v2101 = vrot.slane %v2100, 4
  %v2103 = vshll.u32 %v1316, 16
  %v2105 = vrot.slane %v2103, 5
  %v2106 = vsel %vm128, %v2101, %v2105
  %v2107 = vshrl.u32 %v1316, 16
  %v2109 = vrot.slane %v2107, 4
  %v2110 = vor.u32 %v2109, %v2105
  %v2111 = vrot.slane %v2110, 4
  %v2113 = vshll.u32 %v1348, 16
  %v2115 = vrot.slane %v2113, 5
  %v2116 = vsel %vm128, %v2111, %v2115
  %v2117 = vld [vmem:[%s1252] sm:$0xe]
  %v2118 = vld [vmem:[%s1252 + $0xc] sm:$0xe]
  %v2119 = vld [vmem:[%s1252 + $0x18] sm:$0xe]
  %v2120 = vld [vmem:[%s1252 + $0x24] sm:$0xe]
  %v2121 = vld [vmem:[%s1252 + $0x30] sm:$0xe]
  %v2122 = vld [vmem:[%s1252 + $0x3c] sm:$0xe]
  %v2123 = vld [vmem:[%s1252 + $0x48] sm:$0xe]
  %v2124 = vld [vmem:[%s1252 + $0x54] sm:$0xe]
  %v2125 = vld [vmem:[%s1252 + $0x60] sm:$0xe]
  %v2126 = vld [vmem:[%s1252 + $0x6c] sm:$0xe]
  %v2127 = vld [vmem:[%s1252 + $0x78] sm:$0xe]
  %v2128 = vld [vmem:[%s1252 + $0x84] sm:$0xe]
  %v2129 = vld [vmem:[%s1252 + $0x90] sm:$0xe]
  %v2130 = vld [vmem:[%s1252 + $0x9c] sm:$0xe]
  %v2131 = vld [vmem:[%s1252 + $0xa8] sm:$0xe]
  %v2132 = vld [vmem:[%s1252 + $0xb4] sm:$0xe]
  %v2133 = vld [vmem:[%s1252 + $0xd8] sm:$0xe]
  %v2134 = vld [vmem:[%s1252 + $0xe4] sm:$0xe]
  %v2135 = vld [vmem:[%s1252 + $0xf0] sm:$0xe]
  %v2136 = vld [vmem:[%s1252 + $0xfc] sm:$0xe]
  %v2137 = vld [vmem:[%s1252 + $0x108] sm:$0xe]
  %v2138 = vld [vmem:[%s1252 + $0x114] sm:$0xe]
  %v2139 = vld [vmem:[%s1252 + $0x120] sm:$0xe]
  %v2140 = vld [vmem:[%s1252 + $0x12c] sm:$0xe]
  %v2141 = vld [vmem:[%s1252 + $0x138] sm:$0xe]
  %v2142 = vld [vmem:[%s1252 + $0x144] sm:$0xe]
  %v2143 = vld [vmem:[%s1252 + $0x150] sm:$0xe]
  %v2144 = vld [vmem:[%s1252 + $0x15c] sm:$0xe]
  %v2145 = vld [vmem:[%s1252 + $0x168] sm:$0xe]
  %v2146 = vld [vmem:[%s1252 + $0x174] sm:$0xe]
  %v2147 = vld [vmem:[%s1252 + $0x180] sm:$0xe]
  %v2148 = vld [vmem:[%s1252 + $0x18c] sm:$0xe]
  %v2245 = vrot.slane %v2117, 5
  %v2246 = vrot.slane %v2245, 4
  %v2247 = vrot.slane %v1254, 5
  %v2248 = vsel %vm1027, %v2246, %v2247
  %v2249 = vrot.slane %v2247, 4
  %v2250 = vrot.slane %v1317, 5
  %v2251 = vsel %vm1027, %v2249, %v2250
  %v2252 = vrot.slane %v2118, 5
  %v2253 = vrot.slane %v2252, 4
  %v2254 = vrot.slane %v1256, 5
  %v2255 = vsel %vm1027, %v2253, %v2254
  %v2256 = vrot.slane %v2254, 4
  %v2257 = vrot.slane %v1318, 5
  %v2258 = vsel %vm1027, %v2256, %v2257
  %v2259 = vrot.slane %v2119, 5
  %v2260 = vrot.slane %v2259, 4
  %v2261 = vrot.slane %v1258, 5
  %v2262 = vsel %vm1027, %v2260, %v2261
  %v2263 = vrot.slane %v2261, 4
  %v2264 = vrot.slane %v1319, 5
  %v2265 = vsel %vm1027, %v2263, %v2264
  %v2266 = vrot.slane %v2120, 5
  %v2267 = vrot.slane %v2266, 4
  %v2268 = vrot.slane %v1260, 5
  %v2269 = vsel %vm1027, %v2267, %v2268
  %v2270 = vrot.slane %v2268, 4
  %v2271 = vrot.slane %v1320, 5
  %v2272 = vsel %vm1027, %v2270, %v2271
  %v2273 = vrot.slane %v2121, 5
  %v2274 = vrot.slane %v2273, 4
  %v2275 = vrot.slane %v1262, 5
  %v2276 = vsel %vm1027, %v2274, %v2275
  %v2277 = vrot.slane %v2275, 4
  %v2278 = vrot.slane %v1321, 5
  %v2279 = vsel %vm1027, %v2277, %v2278
  %v2280 = vrot.slane %v2122, 5
  %v2281 = vrot.slane %v2280, 4
  %v2282 = vrot.slane %v1264, 5
  %v2283 = vsel %vm1027, %v2281, %v2282
  %v2284 = vrot.slane %v2282, 4
  %v2285 = vrot.slane %v1322, 5
  %v2286 = vsel %vm1027, %v2284, %v2285
  %v2287 = vrot.slane %v2123, 5
  %v2288 = vrot.slane %v2287, 4
  %v2289 = vrot.slane %v1266, 5
  %v2290 = vsel %vm1027, %v2288, %v2289
  %v2291 = vrot.slane %v2289, 4
  %v2292 = vrot.slane %v1323, 5
  %v2293 = vsel %vm1027, %v2291, %v2292
  %v2294 = vrot.slane %v2124, 5
  %v2295 = vrot.slane %v2294, 4
  %v2296 = vrot.slane %v1268, 5
  %v2297 = vsel %vm1027, %v2295, %v2296
  %v2298 = vrot.slane %v2296, 4
  %v2299 = vrot.slane %v1324, 5
  %v2300 = vsel %vm1027, %v2298, %v2299
  %v2301 = vrot.slane %v2125, 5
  %v2302 = vrot.slane %v2301, 4
  %v2303 = vrot.slane %v1270, 5
  %v2304 = vsel %vm1027, %v2302, %v2303
  %v2305 = vrot.slane %v2303, 4
  %v2306 = vrot.slane %v1325, 5
  %v2307 = vsel %vm1027, %v2305, %v2306
  %v2308 = vrot.slane %v2126, 5
  %v2309 = vrot.slane %v2308, 4
  %v2310 = vrot.slane %v1272, 5
  %v2311 = vsel %vm1027, %v2309, %v2310
  %v2312 = vrot.slane %v2310, 4
  %v2313 = vrot.slane %v1326, 5
  %v2314 = vsel %vm1027, %v2312, %v2313
  %v2315 = vrot.slane %v2127, 5
  %v2316 = vrot.slane %v2315, 4
  %v2317 = vrot.slane %v1274, 5
  %v2318 = vsel %vm1027, %v2316, %v2317
  %v2319 = vrot.slane %v2317, 4
  %v2320 = vrot.slane %v1327, 5
  %v2321 = vsel %vm1027, %v2319, %v2320
  %v2322 = vrot.slane %v2128, 5
  %v2323 = vrot.slane %v2322, 4
  %v2324 = vrot.slane %v1276, 5
  %v2325 = vsel %vm1027, %v2323, %v2324
  %v2326 = vrot.slane %v2324, 4
  %v2327 = vrot.slane %v1328, 5
  %v2328 = vsel %vm1027, %v2326, %v2327
  %v2329 = vrot.slane %v2129, 5
  %v2330 = vrot.slane %v2329, 4
  %v2331 = vrot.slane %v1278, 5
  %v2332 = vsel %vm1027, %v2330, %v2331
  %v2333 = vrot.slane %v2331, 4
  %v2334 = vrot.slane %v1329, 5
  %v2335 = vsel %vm1027, %v2333, %v2334
  %v2336 = vrot.slane %v2130, 5
  %v2337 = vrot.slane %v2336, 4
  %v2338 = vrot.slane %v1280, 5
  %v2339 = vsel %vm1027, %v2337, %v2338
  %v2340 = vrot.slane %v2338, 4
  %v2341 = vrot.slane %v1330, 5
  %v2342 = vsel %vm1027, %v2340, %v2341
  %v2343 = vrot.slane %v2131, 5
  %v2344 = vrot.slane %v2343, 4
  %v2345 = vrot.slane %v1282, 5
  %v2346 = vsel %vm1027, %v2344, %v2345
  %v2347 = vrot.slane %v2345, 4
  %v2348 = vrot.slane %v1331, 5
  %v2349 = vsel %vm1027, %v2347, %v2348
  %v2350 = vrot.slane %v2132, 5
  %v2351 = vrot.slane %v2350, 4
  %v2352 = vrot.slane %v1284, 5
  %v2353 = vsel %vm1027, %v2351, %v2352
  %v2354 = vrot.slane %v2352, 4
  %v2355 = vrot.slane %v1332, 5
  %v2356 = vsel %vm1027, %v2354, %v2355
  %v2357 = vrot.slane %v2133, 5
  %v2358 = vrot.slane %v2357, 4
  %v2359 = vrot.slane %v1286, 5
  %v2360 = vsel %vm1027, %v2358, %v2359
  %v2361 = vrot.slane %v2359, 4
  %v2362 = vrot.slane %v1333, 5
  %v2363 = vsel %vm1027, %v2361, %v2362
  %v2364 = vrot.slane %v2134, 5
  %v2365 = vrot.slane %v2364, 4
  %v2366 = vrot.slane %v1288, 5
  %v2367 = vsel %vm1027, %v2365, %v2366
  %v2368 = vrot.slane %v2366, 4
  %v2369 = vrot.slane %v1334, 5
  %v2370 = vsel %vm1027, %v2368, %v2369
  %v2371 = vrot.slane %v2135, 5
  %v2372 = vrot.slane %v2371, 4
  %v2373 = vrot.slane %v1290, 5
  %v2374 = vsel %vm1027, %v2372, %v2373
  %v2375 = vrot.slane %v2373, 4
  %v2376 = vrot.slane %v1335, 5
  %v2377 = vsel %vm1027, %v2375, %v2376
  %v2378 = vrot.slane %v2136, 5
  %v2379 = vrot.slane %v2378, 4
  %v2380 = vrot.slane %v1292, 5
  %v2381 = vsel %vm1027, %v2379, %v2380
  %v2382 = vrot.slane %v2380, 4
  %v2383 = vrot.slane %v1336, 5
  %v2384 = vsel %vm1027, %v2382, %v2383
  %v2385 = vrot.slane %v2137, 5
  %v2386 = vrot.slane %v2385, 4
  %v2387 = vrot.slane %v1294, 5
  %v2388 = vsel %vm1027, %v2386, %v2387
  %v2389 = vrot.slane %v2387, 4
  %v2390 = vrot.slane %v1337, 5
  %v2391 = vsel %vm1027, %v2389, %v2390
  %v2392 = vrot.slane %v2138, 5
  %v2393 = vrot.slane %v2392, 4
  %v2394 = vrot.slane %v1296, 5
  %v2395 = vsel %vm1027, %v2393, %v2394
  %v2396 = vrot.slane %v2394, 4
  %v2397 = vrot.slane %v1338, 5
  %v2398 = vsel %vm1027, %v2396, %v2397
  %v2399 = vrot.slane %v2139, 5
  %v2400 = vrot.slane %v2399, 4
  %v2401 = vrot.slane %v1298, 5
  %v2402 = vsel %vm1027, %v2400, %v2401
  %v2403 = vrot.slane %v2401, 4
  %v2404 = vrot.slane %v1339, 5
  %v2405 = vsel %vm1027, %v2403, %v2404
  %v2406 = vrot.slane %v2140, 5
  %v2407 = vrot.slane %v2406, 4
  %v2408 = vrot.slane %v1300, 5
  %v2409 = vsel %vm1027, %v2407, %v2408
  %v2410 = vrot.slane %v2408, 4
  %v2411 = vrot.slane %v1340, 5
  %v2412 = vsel %vm1027, %v2410, %v2411
  %v2413 = vrot.slane %v2141, 5
  %v2414 = vrot.slane %v2413, 4
  %v2415 = vrot.slane %v1302, 5
  %v2416 = vsel %vm1027, %v2414, %v2415
  %v2417 = vrot.slane %v2415, 4
  %v2418 = vrot.slane %v1341, 5
  %v2419 = vsel %vm1027, %v2417, %v2418
  %v2420 = vrot.slane %v2142, 5
  %v2421 = vrot.slane %v2420, 4
  %v2422 = vrot.slane %v1304, 5
  %v2423 = vsel %vm1027, %v2421, %v2422
  %v2424 = vrot.slane %v2422, 4
  %v2425 = vrot.slane %v1342, 5
  %v2426 = vsel %vm1027, %v2424, %v2425
  %v2427 = vrot.slane %v2143, 5
  %v2428 = vrot.slane %v2427, 4
  %v2429 = vrot.slane %v1306, 5
  %v2430 = vsel %vm1027, %v2428, %v2429
  %v2431 = vrot.slane %v2429, 4
  %v2432 = vrot.slane %v1343, 5
  %v2433 = vsel %vm1027, %v2431, %v2432
  %v2434 = vrot.slane %v2144, 5
  %v2435 = vrot.slane %v2434, 4
  %v2436 = vrot.slane %v1308, 5
  %v2437 = vsel %vm1027, %v2435, %v2436
  %v2438 = vrot.slane %v2436, 4
  %v2439 = vrot.slane %v1344, 5
  %v2440 = vsel %vm1027, %v2438, %v2439
  %v2441 = vrot.slane %v2145, 5
  %v2442 = vrot.slane %v2441, 4
  %v2443 = vrot.slane %v1310, 5
  %v2444 = vsel %vm1027, %v2442, %v2443
  %v2445 = vrot.slane %v2443, 4
  %v2446 = vrot.slane %v1345, 5
  %v2447 = vsel %vm1027, %v2445, %v2446
  %v2448 = vrot.slane %v2146, 5
  %v2449 = vrot.slane %v2448, 4
  %v2450 = vrot.slane %v1312, 5
  %v2451 = vsel %vm1027, %v2449, %v2450
  %v2452 = vrot.slane %v2450, 4
  %v2453 = vrot.slane %v1346, 5
  %v2454 = vsel %vm1027, %v2452, %v2453
  %v2455 = vrot.slane %v2147, 5
  %v2456 = vrot.slane %v2455, 4
  %v2457 = vrot.slane %v1314, 5
  %v2458 = vsel %vm1027, %v2456, %v2457
  %v2459 = vrot.slane %v2457, 4
  %v2460 = vrot.slane %v1347, 5
  %v2461 = vsel %vm1027, %v2459, %v2460
  %v2462 = vrot.slane %v2148, 5
  %v2463 = vrot.slane %v2462, 4
  %v2464 = vrot.slane %v1316, 5
  %v2465 = vsel %vm1027, %v2463, %v2464
  %v2466 = vrot.slane %v2464, 4
  %v2467 = vrot.slane %v1348, 5
  %v2468 = vsel %vm1027, %v2466, %v2467
  %s2469 = scalar_lea.vmem %s0, 24
  %v2470 = vld [vmem:[%s2469] sm:$0xf]
  %v2471 = vld [vmem:[%s2469 + $0x4] sm:$0xf]
  %v2472 = vld [vmem:[%s2469 + $0xc] sm:$0xf]
  %v2473 = vld [vmem:[%s2469 + $0x10] sm:$0xf]
  %v2474 = vld [vmem:[%s2469 + $0x18] sm:$0xf]
  %v2475 = vld [vmem:[%s2469 + $0x1c] sm:$0xf]
  %v2476 = vld [vmem:[%s2469 + $0x24] sm:$0xf]
  %v2477 = vld [vmem:[%s2469 + $0x28] sm:$0xf]
  %v2478 = vld [vmem:[%s2469 + $0x30] sm:$0xf]
  %v2479 = vld [vmem:[%s2469 + $0x34] sm:$0xf]
  %v2480 = vld [vmem:[%s2469 + $0x3c] sm:$0xf]
  %v2481 = vld [vmem:[%s2469 + $0x40] sm:$0xf]
  %v2482 = vld [vmem:[%s2469 + $0x48] sm:$0xf]
  %v2483 = vld [vmem:[%s2469 + $0x4c] sm:$0xf]
  %v2484 = vld [vmem:[%s2469 + $0x54] sm:$0xf]
  %v2485 = vld [vmem:[%s2469 + $0x58] sm:$0xf]
  %v2486 = vld [vmem:[%s2469 + $0x60] sm:$0xf]
  %v2487 = vld [vmem:[%s2469 + $0x64] sm:$0xf]
  %v2488 = vld [vmem:[%s2469 + $0x6c] sm:$0xf]
  %v2489 = vld [vmem:[%s2469 + $0x70] sm:$0xf]
  %v2490 = vld [vmem:[%s2469 + $0x78] sm:$0xf]
  %v2491 = vld [vmem:[%s2469 + $0x7c] sm:$0xf]
  %v2492 = vld [vmem:[%s2469 + $0x84] sm:$0xf]
  %v2493 = vld [vmem:[%s2469 + $0x88] sm:$0xf]
  %v2494 = vld [vmem:[%s2469 + $0x90] sm:$0xf]
  %v2495 = vld [vmem:[%s2469 + $0x94] sm:$0xf]
  %v2496 = vld [vmem:[%s2469 + $0x9c] sm:$0xf]
  %v2497 = vld [vmem:[%s2469 + $0xa0] sm:$0xf]
  %v2498 = vld [vmem:[%s2469 + $0xa8] sm:$0xf]
  %v2499 = vld [vmem:[%s2469 + $0xac] sm:$0xf]
  %v2500 = vld [vmem:[%s2469 + $0xb4] sm:$0xf]
  %v2501 = vld [vmem:[%s2469 + $0xb8] sm:$0xf]
  %v2502 = vld [vmem:[%s2469 + $0xd8] sm:$0xf]
  %v2503 = vld [vmem:[%s2469 + $0xdc] sm:$0xf]
  %v2504 = vld [vmem:[%s2469 + $0xe4] sm:$0xf]
  %v2505 = vld [vmem:[%s2469 + $0xe8] sm:$0xf]
  %v2506 = vld [vmem:[%s2469 + $0xf0] sm:$0xf]
  %v2507 = vld [vmem:[%s2469 + $0xf4] sm:$0xf]
  %v2508 = vld [vmem:[%s2469 + $0xfc] sm:$0xf]
  %v2509 = vld [vmem:[%s2469 + $0x100] sm:$0xf]
  %v2510 = vld [vmem:[%s2469 + $0x108] sm:$0xf]
  %v2511 = vld [vmem:[%s2469 + $0x10c] sm:$0xf]
  %v2512 = vld [vmem:[%s2469 + $0x114] sm:$0xf]
  %v2513 = vld [vmem:[%s2469 + $0x118] sm:$0xf]
  %v2514 = vld [vmem:[%s2469 + $0x120] sm:$0xf]
  %v2515 = vld [vmem:[%s2469 + $0x124] sm:$0xf]
  %v2516 = vld [vmem:[%s2469 + $0x12c] sm:$0xf]
  %v2517 = vld [vmem:[%s2469 + $0x130] sm:$0xf]
  %v2518 = vld [vmem:[%s2469 + $0x138] sm:$0xf]
  %v2519 = vld [vmem:[%s2469 + $0x13c] sm:$0xf]
  %v2520 = vld [vmem:[%s2469 + $0x144] sm:$0xf]
  %v2521 = vld [vmem:[%s2469 + $0x148] sm:$0xf]
  %v2522 = vld [vmem:[%s2469 + $0x150] sm:$0xf]
  %v2523 = vld [vmem:[%s2469 + $0x154] sm:$0xf]
  %v2524 = vld [vmem:[%s2469 + $0x15c] sm:$0xf]
  %v2525 = vld [vmem:[%s2469 + $0x160] sm:$0xf]
  %v2526 = vld [vmem:[%s2469 + $0x168] sm:$0xf]
  %v2527 = vld [vmem:[%s2469 + $0x16c] sm:$0xf]
  %v2528 = vld [vmem:[%s2469 + $0x174] sm:$0xf]
  %v2529 = vld [vmem:[%s2469 + $0x178] sm:$0xf]
  %v2530 = vld [vmem:[%s2469 + $0x180] sm:$0xf]
  %v2531 = vld [vmem:[%s2469 + $0x184] sm:$0xf]
  %v2532 = vld [vmem:[%s2469 + $0x18c] sm:$0xf]
  %v2533 = vld [vmem:[%s2469 + $0x190] sm:$0xf]
  %v2534 = vld [vmem:[%s2469 + $0x8] sm:$0x1]
  %v2535 = vld [vmem:[%s2469 + $0x14] sm:$0x1]
  %v2536 = vld [vmem:[%s2469 + $0x20] sm:$0x1]
  %v2537 = vld [vmem:[%s2469 + $0x2c] sm:$0x1]
  %v2538 = vld [vmem:[%s2469 + $0x38] sm:$0x1]
  %v2539 = vld [vmem:[%s2469 + $0x44] sm:$0x1]
  %v2540 = vld [vmem:[%s2469 + $0x50] sm:$0x1]
  %v2541 = vld [vmem:[%s2469 + $0x5c] sm:$0x1]
  %v2542 = vld [vmem:[%s2469 + $0x68] sm:$0x1]
  %v2543 = vld [vmem:[%s2469 + $0x74] sm:$0x1]
  %v2544 = vld [vmem:[%s2469 + $0x80] sm:$0x1]
  %v2545 = vld [vmem:[%s2469 + $0x8c] sm:$0x1]
  %v2546 = vld [vmem:[%s2469 + $0x98] sm:$0x1]
  %v2547 = vld [vmem:[%s2469 + $0xa4] sm:$0x1]
  %v2548 = vld [vmem:[%s2469 + $0xb0] sm:$0x1]
  %v2549 = vld [vmem:[%s2469 + $0xbc] sm:$0x1]
  %v2550 = vld [vmem:[%s2469 + $0xe0] sm:$0x1]
  %v2551 = vld [vmem:[%s2469 + $0xec] sm:$0x1]
  %v2552 = vld [vmem:[%s2469 + $0xf8] sm:$0x1]
  %v2553 = vld [vmem:[%s2469 + $0x104] sm:$0x1]
  %v2554 = vld [vmem:[%s2469 + $0x110] sm:$0x1]
  %v2555 = vld [vmem:[%s2469 + $0x11c] sm:$0x1]
  %v2556 = vld [vmem:[%s2469 + $0x128] sm:$0x1]
  %v2557 = vld [vmem:[%s2469 + $0x134] sm:$0x1]
  %v2558 = vld [vmem:[%s2469 + $0x140] sm:$0x1]
  %v2559 = vld [vmem:[%s2469 + $0x14c] sm:$0x1]
  %v2560 = vld [vmem:[%s2469 + $0x158] sm:$0x1]
  %v2561 = vld [vmem:[%s2469 + $0x164] sm:$0x1]
  %v2562 = vld [vmem:[%s2469 + $0x170] sm:$0x1]
  %v2563 = vld [vmem:[%s2469 + $0x17c] sm:$0x1]
  %v2564 = vld [vmem:[%s2469 + $0x188] sm:$0x1]
  %v2565 = vld [vmem:[%s2469 + $0x194] sm:$0x1]
  %v2567 = vshrl.u32 %v2470, 16
  %v2569 = vrot.slane %v2567, 4
  %v2570 = vshll.u32 %v2470, 16
  %v2572 = vrot.slane %v2570, 5
  %v2573 = vor.u32 %v2569, %v2572
  %v2574 = vrot.slane %v2573, 4
  %v2576 = vshll.u32 %v2471, 16
  %v2578 = vrot.slane %v2576, 5
  %v2579 = vsel %vm128, %v2574, %v2578
  %v2580 = vshrl.u32 %v2471, 16
  %v2582 = vrot.slane %v2580, 4
  %v2583 = vor.u32 %v2582, %v2578
  %v2584 = vrot.slane %v2583, 4
  %v2586 = vshll.u32 %v2534, 16
  %v2588 = vrot.slane %v2586, 5
  %v2589 = vsel %vm128, %v2584, %v2588
  %v2591 = vshrl.u32 %v2472, 16
  %v2593 = vrot.slane %v2591, 4
  %v2594 = vshll.u32 %v2472, 16
  %v2596 = vrot.slane %v2594, 5
  %v2597 = vor.u32 %v2593, %v2596
  %v2598 = vrot.slane %v2597, 4
  %v2600 = vshll.u32 %v2473, 16
  %v2602 = vrot.slane %v2600, 5
  %v2603 = vsel %vm128, %v2598, %v2602
  %v2604 = vshrl.u32 %v2473, 16
  %v2606 = vrot.slane %v2604, 4
  %v2607 = vor.u32 %v2606, %v2602
  %v2608 = vrot.slane %v2607, 4
  %v2610 = vshll.u32 %v2535, 16
  %v2612 = vrot.slane %v2610, 5
  %v2613 = vsel %vm128, %v2608, %v2612
  %v2615 = vshrl.u32 %v2474, 16
  %v2617 = vrot.slane %v2615, 4
  %v2618 = vshll.u32 %v2474, 16
  %v2620 = vrot.slane %v2618, 5
  %v2621 = vor.u32 %v2617, %v2620
  %v2622 = vrot.slane %v2621, 4
  %v2624 = vshll.u32 %v2475, 16
  %v2626 = vrot.slane %v2624, 5
  %v2627 = vsel %vm128, %v2622, %v2626
  %v2628 = vshrl.u32 %v2475, 16
  %v2630 = vrot.slane %v2628, 4
  %v2631 = vor.u32 %v2630, %v2626
  %v2632 = vrot.slane %v2631, 4
  %v2634 = vshll.u32 %v2536, 16
  %v2636 = vrot.slane %v2634, 5
  %v2637 = vsel %vm128, %v2632, %v2636
  %v2639 = vshrl.u32 %v2476, 16
  %v2641 = vrot.slane %v2639, 4
  %v2642 = vshll.u32 %v2476, 16
  %v2644 = vrot.slane %v2642, 5
  %v2645 = vor.u32 %v2641, %v2644
  %v2646 = vrot.slane %v2645, 4
  %v2648 = vshll.u32 %v2477, 16
  %v2650 = vrot.slane %v2648, 5
  %v2651 = vsel %vm128, %v2646, %v2650
  %v2652 = vshrl.u32 %v2477, 16
  %v2654 = vrot.slane %v2652, 4
  %v2655 = vor.u32 %v2654, %v2650
  %v2656 = vrot.slane %v2655, 4
  %v2658 = vshll.u32 %v2537, 16
  %v2660 = vrot.slane %v2658, 5
  %v2661 = vsel %vm128, %v2656, %v2660
  %v2663 = vshrl.u32 %v2478, 16
  %v2665 = vrot.slane %v2663, 4
  %v2666 = vshll.u32 %v2478, 16
  %v2668 = vrot.slane %v2666, 5
  %v2669 = vor.u32 %v2665, %v2668
  %v2670 = vrot.slane %v2669, 4
  %v2672 = vshll.u32 %v2479, 16
  %v2674 = vrot.slane %v2672, 5
  %v2675 = vsel %vm128, %v2670, %v2674
  %v2676 = vshrl.u32 %v2479, 16
  %v2678 = vrot.slane %v2676, 4
  %v2679 = vor.u32 %v2678, %v2674
  %v2680 = vrot.slane %v2679, 4
  %v2682 = vshll.u32 %v2538, 16
  %v2684 = vrot.slane %v2682, 5
  %v2685 = vsel %vm128, %v2680, %v2684
  %v2687 = vshrl.u32 %v2480, 16
  %v2689 = vrot.slane %v2687, 4
  %v2690 = vshll.u32 %v2480, 16
  %v2692 = vrot.slane %v2690, 5
  %v2693 = vor.u32 %v2689, %v2692
  %v2694 = vrot.slane %v2693, 4
  %v2696 = vshll.u32 %v2481, 16
  %v2698 = vrot.slane %v2696, 5
  %v2699 = vsel %vm128, %v2694, %v2698
  %v2700 = vshrl.u32 %v2481, 16
  %v2702 = vrot.slane %v2700, 4
  %v2703 = vor.u32 %v2702, %v2698
  %v2704 = vrot.slane %v2703, 4
  %v2706 = vshll.u32 %v2539, 16
  %v2708 = vrot.slane %v2706, 5
  %v2709 = vsel %vm128, %v2704, %v2708
  %v2711 = vshrl.u32 %v2482, 16
  %v2713 = vrot.slane %v2711, 4
  %v2714 = vshll.u32 %v2482, 16
  %v2716 = vrot.slane %v2714, 5
  %v2717 = vor.u32 %v2713, %v2716
  %v2718 = vrot.slane %v2717, 4
  %v2720 = vshll.u32 %v2483, 16
  %v2722 = vrot.slane %v2720, 5
  %v2723 = vsel %vm128, %v2718, %v2722
  %v2724 = vshrl.u32 %v2483, 16
  %v2726 = vrot.slane %v2724, 4
  %v2727 = vor.u32 %v2726, %v2722
  %v2728 = vrot.slane %v2727, 4
  %v2730 = vshll.u32 %v2540, 16
  %v2732 = vrot.slane %v2730, 5
  %v2733 = vsel %vm128, %v2728, %v2732
  %v2735 = vshrl.u32 %v2484, 16
  %v2737 = vrot.slane %v2735, 4
  %v2738 = vshll.u32 %v2484, 16
  %v2740 = vrot.slane %v2738, 5
  %v2741 = vor.u32 %v2737, %v2740
  %v2742 = vrot.slane %v2741, 4
  %v2744 = vshll.u32 %v2485, 16
  %v2746 = vrot.slane %v2744, 5
  %v2747 = vsel %vm128, %v2742, %v2746
  %v2748 = vshrl.u32 %v2485, 16
  %v2750 = vrot.slane %v2748, 4
  %v2751 = vor.u32 %v2750, %v2746
  %v2752 = vrot.slane %v2751, 4
  %v2754 = vshll.u32 %v2541, 16
  %v2756 = vrot.slane %v2754, 5
  %v2757 = vsel %vm128, %v2752, %v2756
  %v2759 = vshrl.u32 %v2486, 16
  %v2761 = vrot.slane %v2759, 4
  %v2762 = vshll.u32 %v2486, 16
  %v2764 = vrot.slane %v2762, 5
  %v2765 = vor.u32 %v2761, %v2764
  %v2766 = vrot.slane %v2765, 4
  %v2768 = vshll.u32 %v2487, 16
  %v2770 = vrot.slane %v2768, 5
  %v2771 = vsel %vm128, %v2766, %v2770
  %v2772 = vshrl.u32 %v2487, 16
  %v2774 = vrot.slane %v2772, 4
  %v2775 = vor.u32 %v2774, %v2770
  %v2776 = vrot.slane %v2775, 4
  %v2778 = vshll.u32 %v2542, 16
  %v2780 = vrot.slane %v2778, 5
  %v2781 = vsel %vm128, %v2776, %v2780
  %v2783 = vshrl.u32 %v2488, 16
  %v2785 = vrot.slane %v2783, 4
  %v2786 = vshll.u32 %v2488, 16
  %v2788 = vrot.slane %v2786, 5
  %v2789 = vor.u32 %v2785, %v2788
  %v2790 = vrot.slane %v2789, 4
  %v2792 = vshll.u32 %v2489, 16
  %v2794 = vrot.slane %v2792, 5
  %v2795 = vsel %vm128, %v2790, %v2794
  %v2796 = vshrl.u32 %v2489, 16
  %v2798 = vrot.slane %v2796, 4
  %v2799 = vor.u32 %v2798, %v2794
  %v2800 = vrot.slane %v2799, 4
  %v2802 = vshll.u32 %v2543, 16
  %v2804 = vrot.slane %v2802, 5
  %v2805 = vsel %vm128, %v2800, %v2804
  %v2807 = vshrl.u32 %v2490, 16
  %v2809 = vrot.slane %v2807, 4
  %v2810 = vshll.u32 %v2490, 16
  %v2812 = vrot.slane %v2810, 5
  %v2813 = vor.u32 %v2809, %v2812
  %v2814 = vrot.slane %v2813, 4
  %v2816 = vshll.u32 %v2491, 16
  %v2818 = vrot.slane %v2816, 5
  %v2819 = vsel %vm128, %v2814, %v2818
  %v2820 = vshrl.u32 %v2491, 16
  %v2822 = vrot.slane %v2820, 4
  %v2823 = vor.u32 %v2822, %v2818
  %v2824 = vrot.slane %v2823, 4
  %v2826 = vshll.u32 %v2544, 16
  %v2828 = vrot.slane %v2826, 5
  %v2829 = vsel %vm128, %v2824, %v2828
  %v2831 = vshrl.u32 %v2492, 16
  %v2833 = vrot.slane %v2831, 4
  %v2834 = vshll.u32 %v2492, 16
  %v2836 = vrot.slane %v2834, 5
  %v2837 = vor.u32 %v2833, %v2836
  %v2838 = vrot.slane %v2837, 4
  %v2840 = vshll.u32 %v2493, 16
  %v2842 = vrot.slane %v2840, 5
  %v2843 = vsel %vm128, %v2838, %v2842
  %v2844 = vshrl.u32 %v2493, 16
  %v2846 = vrot.slane %v2844, 4
  %v2847 = vor.u32 %v2846, %v2842
  %v2848 = vrot.slane %v2847, 4
  %v2850 = vshll.u32 %v2545, 16
  %v2852 = vrot.slane %v2850, 5
  %v2853 = vsel %vm128, %v2848, %v2852
  %v2855 = vshrl.u32 %v2494, 16
  %v2857 = vrot.slane %v2855, 4
  %v2858 = vshll.u32 %v2494, 16
  %v2860 = vrot.slane %v2858, 5
  %v2861 = vor.u32 %v2857, %v2860
  %v2862 = vrot.slane %v2861, 4
  %v2864 = vshll.u32 %v2495, 16
  %v2866 = vrot.slane %v2864, 5
  %v2867 = vsel %vm128, %v2862, %v2866
  %v2868 = vshrl.u32 %v2495, 16
  %v2870 = vrot.slane %v2868, 4
  %v2871 = vor.u32 %v2870, %v2866
  %v2872 = vrot.slane %v2871, 4
  %v2874 = vshll.u32 %v2546, 16
  %v2876 = vrot.slane %v2874, 5
  %v2877 = vsel %vm128, %v2872, %v2876
  %v2879 = vshrl.u32 %v2496, 16
  %v2881 = vrot.slane %v2879, 4
  %v2882 = vshll.u32 %v2496, 16
  %v2884 = vrot.slane %v2882, 5
  %v2885 = vor.u32 %v2881, %v2884
  %v2886 = vrot.slane %v2885, 4
  %v2888 = vshll.u32 %v2497, 16
  %v2890 = vrot.slane %v2888, 5
  %v2891 = vsel %vm128, %v2886, %v2890
  %v2892 = vshrl.u32 %v2497, 16
  %v2894 = vrot.slane %v2892, 4
  %v2895 = vor.u32 %v2894, %v2890
  %v2896 = vrot.slane %v2895, 4
  %v2898 = vshll.u32 %v2547, 16
  %v2900 = vrot.slane %v2898, 5
  %v2901 = vsel %vm128, %v2896, %v2900
  %v2903 = vshrl.u32 %v2498, 16
  %v2905 = vrot.slane %v2903, 4
  %v2906 = vshll.u32 %v2498, 16
  %v2908 = vrot.slane %v2906, 5
  %v2909 = vor.u32 %v2905, %v2908
  %v2910 = vrot.slane %v2909, 4
  %v2912 = vshll.u32 %v2499, 16
  %v2914 = vrot.slane %v2912, 5
  %v2915 = vsel %vm128, %v2910, %v2914
  %v2916 = vshrl.u32 %v2499, 16
  %v2918 = vrot.slane %v2916, 4
  %v2919 = vor.u32 %v2918, %v2914
  %v2920 = vrot.slane %v2919, 4
  %v2922 = vshll.u32 %v2548, 16
  %v2924 = vrot.slane %v2922, 5
  %v2925 = vsel %vm128, %v2920, %v2924
  %v2927 = vshrl.u32 %v2500, 16
  %v2929 = vrot.slane %v2927, 4
  %v2930 = vshll.u32 %v2500, 16
  %v2932 = vrot.slane %v2930, 5
  %v2933 = vor.u32 %v2929, %v2932
  %v2934 = vrot.slane %v2933, 4
  %v2936 = vshll.u32 %v2501, 16
  %v2938 = vrot.slane %v2936, 5
  %v2939 = vsel %vm128, %v2934, %v2938
  %v2940 = vshrl.u32 %v2501, 16
  %v2942 = vrot.slane %v2940, 4
  %v2943 = vor.u32 %v2942, %v2938
  %v2944 = vrot.slane %v2943, 4
  %v2946 = vshll.u32 %v2549, 16
  %v2948 = vrot.slane %v2946, 5
  %v2949 = vsel %vm128, %v2944, %v2948
  %v2951 = vshrl.u32 %v2502, 16
  %v2953 = vrot.slane %v2951, 4
  %v2954 = vshll.u32 %v2502, 16
  %v2956 = vrot.slane %v2954, 5
  %v2957 = vor.u32 %v2953, %v2956
  %v2958 = vrot.slane %v2957, 4
  %v2960 = vshll.u32 %v2503, 16
  %v2962 = vrot.slane %v2960, 5
  %v2963 = vsel %vm128, %v2958, %v2962
  %v2964 = vshrl.u32 %v2503, 16
  %v2966 = vrot.slane %v2964, 4
  %v2967 = vor.u32 %v2966, %v2962
  %v2968 = vrot.slane %v2967, 4
  %v2970 = vshll.u32 %v2550, 16
  %v2972 = vrot.slane %v2970, 5
  %v2973 = vsel %vm128, %v2968, %v2972
  %v2975 = vshrl.u32 %v2504, 16
  %v2977 = vrot.slane %v2975, 4
  %v2978 = vshll.u32 %v2504, 16
  %v2980 = vrot.slane %v2978, 5
  %v2981 = vor.u32 %v2977, %v2980
  %v2982 = vrot.slane %v2981, 4
  %v2984 = vshll.u32 %v2505, 16
  %v2986 = vrot.slane %v2984, 5
  %v2987 = vsel %vm128, %v2982, %v2986
  %v2988 = vshrl.u32 %v2505, 16
  %v2990 = vrot.slane %v2988, 4
  %v2991 = vor.u32 %v2990, %v2986
  %v2992 = vrot.slane %v2991, 4
  %v2994 = vshll.u32 %v2551, 16
  %v2996 = vrot.slane %v2994, 5
  %v2997 = vsel %vm128, %v2992, %v2996
  %v2999 = vshrl.u32 %v2506, 16
  %v3001 = vrot.slane %v2999, 4
  %v3002 = vshll.u32 %v2506, 16
  %v3004 = vrot.slane %v3002, 5
  %v3005 = vor.u32 %v3001, %v3004
  %v3006 = vrot.slane %v3005, 4
  %v3008 = vshll.u32 %v2507, 16
  %v3010 = vrot.slane %v3008, 5
  %v3011 = vsel %vm128, %v3006, %v3010
  %v3012 = vshrl.u32 %v2507, 16
  %v3014 = vrot.slane %v3012, 4
  %v3015 = vor.u32 %v3014, %v3010
  %v3016 = vrot.slane %v3015, 4
  %v3018 = vshll.u32 %v2552, 16
  %v3020 = vrot.slane %v3018, 5
  %v3021 = vsel %vm128, %v3016, %v3020
  %v3023 = vshrl.u32 %v2508, 16
  %v3025 = vrot.slane %v3023, 4
  %v3026 = vshll.u32 %v2508, 16
  %v3028 = vrot.slane %v3026, 5
  %v3029 = vor.u32 %v3025, %v3028
  %v3030 = vrot.slane %v3029, 4
  %v3032 = vshll.u32 %v2509, 16
  %v3034 = vrot.slane %v3032, 5
  %v3035 = vsel %vm128, %v3030, %v3034
  %v3036 = vshrl.u32 %v2509, 16
  %v3038 = vrot.slane %v3036, 4
  %v3039 = vor.u32 %v3038, %v3034
  %v3040 = vrot.slane %v3039, 4
  %v3042 = vshll.u32 %v2553, 16
  %v3044 = vrot.slane %v3042, 5
  %v3045 = vsel %vm128, %v3040, %v3044
  %v3047 = vshrl.u32 %v2510, 16
  %v3049 = vrot.slane %v3047, 4
  %v3050 = vshll.u32 %v2510, 16
  %v3052 = vrot.slane %v3050, 5
  %v3053 = vor.u32 %v3049, %v3052
  %v3054 = vrot.slane %v3053, 4
  %v3056 = vshll.u32 %v2511, 16
  %v3058 = vrot.slane %v3056, 5
  %v3059 = vsel %vm128, %v3054, %v3058
  %v3060 = vshrl.u32 %v2511, 16
  %v3062 = vrot.slane %v3060, 4
  %v3063 = vor.u32 %v3062, %v3058
  %v3064 = vrot.slane %v3063, 4
  %v3066 = vshll.u32 %v2554, 16
  %v3068 = vrot.slane %v3066, 5
  %v3069 = vsel %vm128, %v3064, %v3068
  %v3071 = vshrl.u32 %v2512, 16
  %v3073 = vrot.slane %v3071, 4
  %v3074 = vshll.u32 %v2512, 16
  %v3076 = vrot.slane %v3074, 5
  %v3077 = vor.u32 %v3073, %v3076
  %v3078 = vrot.slane %v3077, 4
  %v3080 = vshll.u32 %v2513, 16
  %v3082 = vrot.slane %v3080, 5
  %v3083 = vsel %vm128, %v3078, %v3082
  %v3084 = vshrl.u32 %v2513, 16
  %v3086 = vrot.slane %v3084, 4
  %v3087 = vor.u32 %v3086, %v3082
  %v3088 = vrot.slane %v3087, 4
  %v3090 = vshll.u32 %v2555, 16
  %v3092 = vrot.slane %v3090, 5
  %v3093 = vsel %vm128, %v3088, %v3092
  %v3095 = vshrl.u32 %v2514, 16
  %v3097 = vrot.slane %v3095, 4
  %v3098 = vshll.u32 %v2514, 16
  %v3100 = vrot.slane %v3098, 5
  %v3101 = vor.u32 %v3097, %v3100
  %v3102 = vrot.slane %v3101, 4
  %v3104 = vshll.u32 %v2515, 16
  %v3106 = vrot.slane %v3104, 5
  %v3107 = vsel %vm128, %v3102, %v3106
  %v3108 = vshrl.u32 %v2515, 16
  %v3110 = vrot.slane %v3108, 4
  %v3111 = vor.u32 %v3110, %v3106
  %v3112 = vrot.slane %v3111, 4
  %v3114 = vshll.u32 %v2556, 16
  %v3116 = vrot.slane %v3114, 5
  %v3117 = vsel %vm128, %v3112, %v3116
  %v3119 = vshrl.u32 %v2516, 16
  %v3121 = vrot.slane %v3119, 4
  %v3122 = vshll.u32 %v2516, 16
  %v3124 = vrot.slane %v3122, 5
  %v3125 = vor.u32 %v3121, %v3124
  %v3126 = vrot.slane %v3125, 4
  %v3128 = vshll.u32 %v2517, 16
  %v3130 = vrot.slane %v3128, 5
  %v3131 = vsel %vm128, %v3126, %v3130
  %v3132 = vshrl.u32 %v2517, 16
  %v3134 = vrot.slane %v3132, 4
  %v3135 = vor.u32 %v3134, %v3130
  %v3136 = vrot.slane %v3135, 4
  %v3138 = vshll.u32 %v2557, 16
  %v3140 = vrot.slane %v3138, 5
  %v3141 = vsel %vm128, %v3136, %v3140
  %v3143 = vshrl.u32 %v2518, 16
  %v3145 = vrot.slane %v3143, 4
  %v3146 = vshll.u32 %v2518, 16
  %v3148 = vrot.slane %v3146, 5
  %v3149 = vor.u32 %v3145, %v3148
  %v3150 = vrot.slane %v3149, 4
  %v3152 = vshll.u32 %v2519, 16
  %v3154 = vrot.slane %v3152, 5
  %v3155 = vsel %vm128, %v3150, %v3154
  %v3156 = vshrl.u32 %v2519, 16
  %v3158 = vrot.slane %v3156, 4
  %v3159 = vor.u32 %v3158, %v3154
  %v3160 = vrot.slane %v3159, 4
  %v3162 = vshll.u32 %v2558, 16
  %v3164 = vrot.slane %v3162, 5
  %v3165 = vsel %vm128, %v3160, %v3164
  %v3167 = vshrl.u32 %v2520, 16
  %v3169 = vrot.slane %v3167, 4
  %v3170 = vshll.u32 %v2520, 16
  %v3172 = vrot.slane %v3170, 5
  %v3173 = vor.u32 %v3169, %v3172
  %v3174 = vrot.slane %v3173, 4
  %v3176 = vshll.u32 %v2521, 16
  %v3178 = vrot.slane %v3176, 5
  %v3179 = vsel %vm128, %v3174, %v3178
  %v3180 = vshrl.u32 %v2521, 16
  %v3182 = vrot.slane %v3180, 4
  %v3183 = vor.u32 %v3182, %v3178
  %v3184 = vrot.slane %v3183, 4
  %v3186 = vshll.u32 %v2559, 16
  %v3188 = vrot.slane %v3186, 5
  %v3189 = vsel %vm128, %v3184, %v3188
  %v3191 = vshrl.u32 %v2522, 16
  %v3193 = vrot.slane %v3191, 4
  %v3194 = vshll.u32 %v2522, 16
  %v3196 = vrot.slane %v3194, 5
  %v3197 = vor.u32 %v3193, %v3196
  %v3198 = vrot.slane %v3197, 4
  %v3200 = vshll.u32 %v2523, 16
  %v3202 = vrot.slane %v3200, 5
  %v3203 = vsel %vm128, %v3198, %v3202
  %v3204 = vshrl.u32 %v2523, 16
  %v3206 = vrot.slane %v3204, 4
  %v3207 = vor.u32 %v3206, %v3202
  %v3208 = vrot.slane %v3207, 4
  %v3210 = vshll.u32 %v2560, 16
  %v3212 = vrot.slane %v3210, 5
  %v3213 = vsel %vm128, %v3208, %v3212
  %v3215 = vshrl.u32 %v2524, 16
  %v3217 = vrot.slane %v3215, 4
  %v3218 = vshll.u32 %v2524, 16
  %v3220 = vrot.slane %v3218, 5
  %v3221 = vor.u32 %v3217, %v3220
  %v3222 = vrot.slane %v3221, 4
  %v3224 = vshll.u32 %v2525, 16
  %v3226 = vrot.slane %v3224, 5
  %v3227 = vsel %vm128, %v3222, %v3226
  %v3228 = vshrl.u32 %v2525, 16
  %v3230 = vrot.slane %v3228, 4
  %v3231 = vor.u32 %v3230, %v3226
  %v3232 = vrot.slane %v3231, 4
  %v3234 = vshll.u32 %v2561, 16
  %v3236 = vrot.slane %v3234, 5
  %v3237 = vsel %vm128, %v3232, %v3236
  %v3239 = vshrl.u32 %v2526, 16
  %v3241 = vrot.slane %v3239, 4
  %v3242 = vshll.u32 %v2526, 16
  %v3244 = vrot.slane %v3242, 5
  %v3245 = vor.u32 %v3241, %v3244
  %v3246 = vrot.slane %v3245, 4
  %v3248 = vshll.u32 %v2527, 16
  %v3250 = vrot.slane %v3248, 5
  %v3251 = vsel %vm128, %v3246, %v3250
  %v3252 = vshrl.u32 %v2527, 16
  %v3254 = vrot.slane %v3252, 4
  %v3255 = vor.u32 %v3254, %v3250
  %v3256 = vrot.slane %v3255, 4
  %v3258 = vshll.u32 %v2562, 16
  %v3260 = vrot.slane %v3258, 5
  %v3261 = vsel %vm128, %v3256, %v3260
  %v3263 = vshrl.u32 %v2528, 16
  %v3265 = vrot.slane %v3263, 4
  %v3266 = vshll.u32 %v2528, 16
  %v3268 = vrot.slane %v3266, 5
  %v3269 = vor.u32 %v3265, %v3268
  %v3270 = vrot.slane %v3269, 4
  %v3272 = vshll.u32 %v2529, 16
  %v3274 = vrot.slane %v3272, 5
  %v3275 = vsel %vm128, %v3270, %v3274
  %v3276 = vshrl.u32 %v2529, 16
  %v3278 = vrot.slane %v3276, 4
  %v3279 = vor.u32 %v3278, %v3274
  %v3280 = vrot.slane %v3279, 4
  %v3282 = vshll.u32 %v2563, 16
  %v3284 = vrot.slane %v3282, 5
  %v3285 = vsel %vm128, %v3280, %v3284
  %v3287 = vshrl.u32 %v2530, 16
  %v3289 = vrot.slane %v3287, 4
  %v3290 = vshll.u32 %v2530, 16
  %v3292 = vrot.slane %v3290, 5
  %v3293 = vor.u32 %v3289, %v3292
  %v3294 = vrot.slane %v3293, 4
  %v3296 = vshll.u32 %v2531, 16
  %v3298 = vrot.slane %v3296, 5
  %v3299 = vsel %vm128, %v3294, %v3298
  %v3300 = vshrl.u32 %v2531, 16
  %v3302 = vrot.slane %v3300, 4
  %v3303 = vor.u32 %v3302, %v3298
  %v3304 = vrot.slane %v3303, 4
  %v3306 = vshll.u32 %v2564, 16
  %v3308 = vrot.slane %v3306, 5
  %v3309 = vsel %vm128, %v3304, %v3308
  %v3311 = vshrl.u32 %v2532, 16
  %v3313 = vrot.slane %v3311, 4
  %v3314 = vshll.u32 %v2532, 16
  %v3316 = vrot.slane %v3314, 5
  %v3317 = vor.u32 %v3313, %v3316
  %v3318 = vrot.slane %v3317, 4
  %v3320 = vshll.u32 %v2533, 16
  %v3322 = vrot.slane %v3320, 5
  %v3323 = vsel %vm128, %v3318, %v3322
  %v3324 = vshrl.u32 %v2533, 16
  %v3326 = vrot.slane %v3324, 4
  %v3327 = vor.u32 %v3326, %v3322
  %v3328 = vrot.slane %v3327, 4
  %v3330 = vshll.u32 %v2565, 16
  %v3332 = vrot.slane %v3330, 5
  %v3333 = vsel %vm128, %v3328, %v3332
  %v3334 = vld [vmem:[%s2469] sm:$0xe]
  %v3335 = vld [vmem:[%s2469 + $0xc] sm:$0xe]
  %v3336 = vld [vmem:[%s2469 + $0x18] sm:$0xe]
  %v3337 = vld [vmem:[%s2469 + $0x24] sm:$0xe]
  %v3338 = vld [vmem:[%s2469 + $0x30] sm:$0xe]
  %v3339 = vld [vmem:[%s2469 + $0x3c] sm:$0xe]
  %v3340 = vld [vmem:[%s2469 + $0x48] sm:$0xe]
  %v3341 = vld [vmem:[%s2469 + $0x54] sm:$0xe]
  %v3342 = vld [vmem:[%s2469 + $0x60] sm:$0xe]
  %v3343 = vld [vmem:[%s2469 + $0x6c] sm:$0xe]
  %v3344 = vld [vmem:[%s2469 + $0x78] sm:$0xe]
  %v3345 = vld [vmem:[%s2469 + $0x84] sm:$0xe]
  %v3346 = vld [vmem:[%s2469 + $0x90] sm:$0xe]
  %v3347 = vld [vmem:[%s2469 + $0x9c] sm:$0xe]
  %v3348 = vld [vmem:[%s2469 + $0xa8] sm:$0xe]
  %v3349 = vld [vmem:[%s2469 + $0xb4] sm:$0xe]
  %v3350 = vld [vmem:[%s2469 + $0xd8] sm:$0xe]
  %v3351 = vld [vmem:[%s2469 + $0xe4] sm:$0xe]
  %v3352 = vld [vmem:[%s2469 + $0xf0] sm:$0xe]
  %v3353 = vld [vmem:[%s2469 + $0xfc] sm:$0xe]
  %v3354 = vld [vmem:[%s2469 + $0x108] sm:$0xe]
  %v3355 = vld [vmem:[%s2469 + $0x114] sm:$0xe]
  %v3356 = vld [vmem:[%s2469 + $0x120] sm:$0xe]
  %v3357 = vld [vmem:[%s2469 + $0x12c] sm:$0xe]
  %v3358 = vld [vmem:[%s2469 + $0x138] sm:$0xe]
  %v3359 = vld [vmem:[%s2469 + $0x144] sm:$0xe]
  %v3360 = vld [vmem:[%s2469 + $0x150] sm:$0xe]
  %v3361 = vld [vmem:[%s2469 + $0x15c] sm:$0xe]
  %v3362 = vld [vmem:[%s2469 + $0x168] sm:$0xe]
  %v3363 = vld [vmem:[%s2469 + $0x174] sm:$0xe]
  %v3364 = vld [vmem:[%s2469 + $0x180] sm:$0xe]
  %v3365 = vld [vmem:[%s2469 + $0x18c] sm:$0xe]
  %v3462 = vrot.slane %v3334, 5
  %v3463 = vrot.slane %v3462, 4
  %v3464 = vrot.slane %v2471, 5
  %v3465 = vsel %vm1027, %v3463, %v3464
  %v3466 = vrot.slane %v3464, 4
  %v3467 = vrot.slane %v2534, 5
  %v3468 = vsel %vm1027, %v3466, %v3467
  %v3469 = vrot.slane %v3335, 5
  %v3470 = vrot.slane %v3469, 4
  %v3471 = vrot.slane %v2473, 5
  %v3472 = vsel %vm1027, %v3470, %v3471
  %v3473 = vrot.slane %v3471, 4
  %v3474 = vrot.slane %v2535, 5
  %v3475 = vsel %vm1027, %v3473, %v3474
  %v3476 = vrot.slane %v3336, 5
  %v3477 = vrot.slane %v3476, 4
  %v3478 = vrot.slane %v2475, 5
  %v3479 = vsel %vm1027, %v3477, %v3478
  %v3480 = vrot.slane %v3478, 4
  %v3481 = vrot.slane %v2536, 5
  %v3482 = vsel %vm1027, %v3480, %v3481
  %v3483 = vrot.slane %v3337, 5
  %v3484 = vrot.slane %v3483, 4
  %v3485 = vrot.slane %v2477, 5
  %v3486 = vsel %vm1027, %v3484, %v3485
  %v3487 = vrot.slane %v3485, 4
  %v3488 = vrot.slane %v2537, 5
  %v3489 = vsel %vm1027, %v3487, %v3488
  %v3490 = vrot.slane %v3338, 5
  %v3491 = vrot.slane %v3490, 4
  %v3492 = vrot.slane %v2479, 5
  %v3493 = vsel %vm1027, %v3491, %v3492
  %v3494 = vrot.slane %v3492, 4
  %v3495 = vrot.slane %v2538, 5
  %v3496 = vsel %vm1027, %v3494, %v3495
  %v3497 = vrot.slane %v3339, 5
  %v3498 = vrot.slane %v3497, 4
  %v3499 = vrot.slane %v2481, 5
  %v3500 = vsel %vm1027, %v3498, %v3499
  %v3501 = vrot.slane %v3499, 4
  %v3502 = vrot.slane %v2539, 5
  %v3503 = vsel %vm1027, %v3501, %v3502
  %v3504 = vrot.slane %v3340, 5
  %v3505 = vrot.slane %v3504, 4
  %v3506 = vrot.slane %v2483, 5
  %v3507 = vsel %vm1027, %v3505, %v3506
  %v3508 = vrot.slane %v3506, 4
  %v3509 = vrot.slane %v2540, 5
  %v3510 = vsel %vm1027, %v3508, %v3509
  %v3511 = vrot.slane %v3341, 5
  %v3512 = vrot.slane %v3511, 4
  %v3513 = vrot.slane %v2485, 5
  %v3514 = vsel %vm1027, %v3512, %v3513
  %v3515 = vrot.slane %v3513, 4
  %v3516 = vrot.slane %v2541, 5
  %v3517 = vsel %vm1027, %v3515, %v3516
  %v3518 = vrot.slane %v3342, 5
  %v3519 = vrot.slane %v3518, 4
  %v3520 = vrot.slane %v2487, 5
  %v3521 = vsel %vm1027, %v3519, %v3520
  %v3522 = vrot.slane %v3520, 4
  %v3523 = vrot.slane %v2542, 5
  %v3524 = vsel %vm1027, %v3522, %v3523
  %v3525 = vrot.slane %v3343, 5
  %v3526 = vrot.slane %v3525, 4
  %v3527 = vrot.slane %v2489, 5
  %v3528 = vsel %vm1027, %v3526, %v3527
  %v3529 = vrot.slane %v3527, 4
  %v3530 = vrot.slane %v2543, 5
  %v3531 = vsel %vm1027, %v3529, %v3530
  %v3532 = vrot.slane %v3344, 5
  %v3533 = vrot.slane %v3532, 4
  %v3534 = vrot.slane %v2491, 5
  %v3535 = vsel %vm1027, %v3533, %v3534
  %v3536 = vrot.slane %v3534, 4
  %v3537 = vrot.slane %v2544, 5
  %v3538 = vsel %vm1027, %v3536, %v3537
  %v3539 = vrot.slane %v3345, 5
  %v3540 = vrot.slane %v3539, 4
  %v3541 = vrot.slane %v2493, 5
  %v3542 = vsel %vm1027, %v3540, %v3541
  %v3543 = vrot.slane %v3541, 4
  %v3544 = vrot.slane %v2545, 5
  %v3545 = vsel %vm1027, %v3543, %v3544
  %v3546 = vrot.slane %v3346, 5
  %v3547 = vrot.slane %v3546, 4
  %v3548 = vrot.slane %v2495, 5
  %v3549 = vsel %vm1027, %v3547, %v3548
  %v3550 = vrot.slane %v3548, 4
  %v3551 = vrot.slane %v2546, 5
  %v3552 = vsel %vm1027, %v3550, %v3551
  %v3553 = vrot.slane %v3347, 5
  %v3554 = vrot.slane %v3553, 4
  %v3555 = vrot.slane %v2497, 5
  %v3556 = vsel %vm1027, %v3554, %v3555
  %v3557 = vrot.slane %v3555, 4
  %v3558 = vrot.slane %v2547, 5
  %v3559 = vsel %vm1027, %v3557, %v3558
  %v3560 = vrot.slane %v3348, 5
  %v3561 = vrot.slane %v3560, 4
  %v3562 = vrot.slane %v2499, 5
  %v3563 = vsel %vm1027, %v3561, %v3562
  %v3564 = vrot.slane %v3562, 4
  %v3565 = vrot.slane %v2548, 5
  %v3566 = vsel %vm1027, %v3564, %v3565
  %v3567 = vrot.slane %v3349, 5
  %v3568 = vrot.slane %v3567, 4
  %v3569 = vrot.slane %v2501, 5
  %v3570 = vsel %vm1027, %v3568, %v3569
  %v3571 = vrot.slane %v3569, 4
  %v3572 = vrot.slane %v2549, 5
  %v3573 = vsel %vm1027, %v3571, %v3572
  %v3574 = vrot.slane %v3350, 5
  %v3575 = vrot.slane %v3574, 4
  %v3576 = vrot.slane %v2503, 5
  %v3577 = vsel %vm1027, %v3575, %v3576
  %v3578 = vrot.slane %v3576, 4
  %v3579 = vrot.slane %v2550, 5
  %v3580 = vsel %vm1027, %v3578, %v3579
  %v3581 = vrot.slane %v3351, 5
  %v3582 = vrot.slane %v3581, 4
  %v3583 = vrot.slane %v2505, 5
  %v3584 = vsel %vm1027, %v3582, %v3583
  %v3585 = vrot.slane %v3583, 4
  %v3586 = vrot.slane %v2551, 5
  %v3587 = vsel %vm1027, %v3585, %v3586
  %v3588 = vrot.slane %v3352, 5
  %v3589 = vrot.slane %v3588, 4
  %v3590 = vrot.slane %v2507, 5
  %v3591 = vsel %vm1027, %v3589, %v3590
  %v3592 = vrot.slane %v3590, 4
  %v3593 = vrot.slane %v2552, 5
  %v3594 = vsel %vm1027, %v3592, %v3593
  %v3595 = vrot.slane %v3353, 5
  %v3596 = vrot.slane %v3595, 4
  %v3597 = vrot.slane %v2509, 5
  %v3598 = vsel %vm1027, %v3596, %v3597
  %v3599 = vrot.slane %v3597, 4
  %v3600 = vrot.slane %v2553, 5
  %v3601 = vsel %vm1027, %v3599, %v3600
  %v3602 = vrot.slane %v3354, 5
  %v3603 = vrot.slane %v3602, 4
  %v3604 = vrot.slane %v2511, 5
  %v3605 = vsel %vm1027, %v3603, %v3604
  %v3606 = vrot.slane %v3604, 4
  %v3607 = vrot.slane %v2554, 5
  %v3608 = vsel %vm1027, %v3606, %v3607
  %v3609 = vrot.slane %v3355, 5
  %v3610 = vrot.slane %v3609, 4
  %v3611 = vrot.slane %v2513, 5
  %v3612 = vsel %vm1027, %v3610, %v3611
  %v3613 = vrot.slane %v3611, 4
  %v3614 = vrot.slane %v2555, 5
  %v3615 = vsel %vm1027, %v3613, %v3614
  %v3616 = vrot.slane %v3356, 5
  %v3617 = vrot.slane %v3616, 4
  %v3618 = vrot.slane %v2515, 5
  %v3619 = vsel %vm1027, %v3617, %v3618
  %v3620 = vrot.slane %v3618, 4
  %v3621 = vrot.slane %v2556, 5
  %v3622 = vsel %vm1027, %v3620, %v3621
  %v3623 = vrot.slane %v3357, 5
  %v3624 = vrot.slane %v3623, 4
  %v3625 = vrot.slane %v2517, 5
  %v3626 = vsel %vm1027, %v3624, %v3625
  %v3627 = vrot.slane %v3625, 4
  %v3628 = vrot.slane %v2557, 5
  %v3629 = vsel %vm1027, %v3627, %v3628
  %v3630 = vrot.slane %v3358, 5
  %v3631 = vrot.slane %v3630, 4
  %v3632 = vrot.slane %v2519, 5
  %v3633 = vsel %vm1027, %v3631, %v3632
  %v3634 = vrot.slane %v3632, 4
  %v3635 = vrot.slane %v2558, 5
  %v3636 = vsel %vm1027, %v3634, %v3635
  %v3637 = vrot.slane %v3359, 5
  %v3638 = vrot.slane %v3637, 4
  %v3639 = vrot.slane %v2521, 5
  %v3640 = vsel %vm1027, %v3638, %v3639
  %v3641 = vrot.slane %v3639, 4
  %v3642 = vrot.slane %v2559, 5
  %v3643 = vsel %vm1027, %v3641, %v3642
  %v3644 = vrot.slane %v3360, 5
  %v3645 = vrot.slane %v3644, 4
  %v3646 = vrot.slane %v2523, 5
  %v3647 = vsel %vm1027, %v3645, %v3646
  %v3648 = vrot.slane %v3646, 4
  %v3649 = vrot.slane %v2560, 5
  %v3650 = vsel %vm1027, %v3648, %v3649
  %v3651 = vrot.slane %v3361, 5
  %v3652 = vrot.slane %v3651, 4
  %v3653 = vrot.slane %v2525, 5
  %v3654 = vsel %vm1027, %v3652, %v3653
  %v3655 = vrot.slane %v3653, 4
  %v3656 = vrot.slane %v2561, 5
  %v3657 = vsel %vm1027, %v3655, %v3656
  %v3658 = vrot.slane %v3362, 5
  %v3659 = vrot.slane %v3658, 4
  %v3660 = vrot.slane %v2527, 5
  %v3661 = vsel %vm1027, %v3659, %v3660
  %v3662 = vrot.slane %v3660, 4
  %v3663 = vrot.slane %v2562, 5
  %v3664 = vsel %vm1027, %v3662, %v3663
  %v3665 = vrot.slane %v3363, 5
  %v3666 = vrot.slane %v3665, 4
  %v3667 = vrot.slane %v2529, 5
  %v3668 = vsel %vm1027, %v3666, %v3667
  %v3669 = vrot.slane %v3667, 4
  %v3670 = vrot.slane %v2563, 5
  %v3671 = vsel %vm1027, %v3669, %v3670
  %v3672 = vrot.slane %v3364, 5
  %v3673 = vrot.slane %v3672, 4
  %v3674 = vrot.slane %v2531, 5
  %v3675 = vsel %vm1027, %v3673, %v3674
  %v3676 = vrot.slane %v3674, 4
  %v3677 = vrot.slane %v2564, 5
  %v3678 = vsel %vm1027, %v3676, %v3677
  %v3679 = vrot.slane %v3365, 5
  %v3680 = vrot.slane %v3679, 4
  %v3681 = vrot.slane %v2533, 5
  %v3682 = vsel %vm1027, %v3680, %v3681
  %v3683 = vrot.slane %v3681, 4
  %v3684 = vrot.slane %v2565, 5
  %v3685 = vsel %vm1027, %v3683, %v3684
  %v3718 = vunpack.c.l.b16 %v30
  %v3719 = vunpack.c.l.b16 %v31
  %v3720 = vunpack.c.l.b16 %v32
  %v3721 = vunpack.c.l.b16 %v33
  %v3722 = vunpack.c.l.b16 %v34
  %v3723 = vunpack.c.l.b16 %v35
  %v3724 = vunpack.c.l.b16 %v36
  %v3725 = vunpack.c.l.b16 %v37
  %v3726 = vunpack.c.l.b16 %v38
  %v3727 = vunpack.c.l.b16 %v39
  %v3728 = vunpack.c.l.b16 %v40
  %v3729 = vunpack.c.l.b16 %v41
  %v3730 = vunpack.c.l.b16 %v42
  %v3731 = vunpack.c.l.b16 %v43
  %v3732 = vunpack.c.l.b16 %v44
  %v3733 = vunpack.c.l.b16 %v45
  %v3734 = vunpack.c.l.b16 %v46
  %v3735 = vunpack.c.l.b16 %v47
  %v3736 = vunpack.c.l.b16 %v48
  %v3737 = vunpack.c.l.b16 %v49
  %v3738 = vunpack.c.l.b16 %v50
  %v3739 = vunpack.c.l.b16 %v51
  %v3740 = vunpack.c.l.b16 %v52
  %v3741 = vunpack.c.l.b16 %v53
  %v3742 = vunpack.c.l.b16 %v54
  %v3743 = vunpack.c.l.b16 %v55
  %v3744 = vunpack.c.l.b16 %v56
  %v3745 = vunpack.c.l.b16 %v57
  %v3746 = vunpack.c.l.b16 %v58
  %v3747 = vunpack.c.l.b16 %v59
  %v3748 = vunpack.c.l.b16 %v60
  %v3749 = vunpack.c.l.b16 %v61
  %v3750 = vunpack.c.l.b16 %v62
  %v3751 = vunpack.c.l.b16 %v63
  %v3752 = vunpack.c.l.b16 %v64
  %v3753 = vunpack.c.l.b16 %v65
  %v3754 = vunpack.c.l.b16 %v66
  %v3755 = vunpack.c.l.b16 %v67
  %v3756 = vunpack.c.l.b16 %v68
  %v3757 = vunpack.c.l.b16 %v69
  %v3758 = vunpack.c.l.b16 %v70
  %v3759 = vunpack.c.l.b16 %v71
  %v3760 = vunpack.c.l.b16 %v72
  %v3761 = vunpack.c.l.b16 %v73
  %v3762 = vunpack.c.l.b16 %v74
  %v3763 = vunpack.c.l.b16 %v75
  %v3764 = vunpack.c.l.b16 %v76
  %v3765 = vunpack.c.l.b16 %v77
  %v3766 = vunpack.c.l.b16 %v78
  %v3767 = vunpack.c.l.b16 %v79
  %v3768 = vunpack.c.l.b16 %v80
  %v3769 = vunpack.c.l.b16 %v81
  %v3770 = vunpack.c.l.b16 %v82
  %v3771 = vunpack.c.l.b16 %v83
  %v3772 = vunpack.c.l.b16 %v84
  %v3773 = vunpack.c.l.b16 %v85
  %v3774 = vunpack.c.l.b16 %v86
  %v3775 = vunpack.c.l.b16 %v87
  %v3776 = vunpack.c.l.b16 %v88
  %v3777 = vunpack.c.l.b16 %v89
  %v3778 = vunpack.c.l.b16 %v90
  %v3779 = vunpack.c.l.b16 %v91
  %v3780 = vunpack.c.l.b16 %v92
  %v3781 = vunpack.c.l.b16 %v93
  %v3782 = vpack.c.b16 %v3719, %v3718
  %v3783 = vpack.c.b16 %v3721, %v3720
  %v3784 = vpack.c.b16 %v3723, %v3722
  %v3785 = vpack.c.b16 %v3725, %v3724
  %v3786 = vpack.c.b16 %v3727, %v3726
  %v3787 = vpack.c.b16 %v3729, %v3728
  %v3788 = vpack.c.b16 %v3731, %v3730
  %v3789 = vpack.c.b16 %v3733, %v3732
  %v3790 = vpack.c.b16 %v3735, %v3734
  %v3791 = vpack.c.b16 %v3737, %v3736
  %v3792 = vpack.c.b16 %v3739, %v3738
  %v3793 = vpack.c.b16 %v3741, %v3740
  %v3794 = vpack.c.b16 %v3743, %v3742
  %v3795 = vpack.c.b16 %v3745, %v3744
  %v3796 = vpack.c.b16 %v3747, %v3746
  %v3797 = vpack.c.b16 %v3749, %v3748
  %v3798 = vpack.c.b16 %v3751, %v3750
  %v3799 = vpack.c.b16 %v3753, %v3752
  %v3800 = vpack.c.b16 %v3755, %v3754
  %v3801 = vpack.c.b16 %v3757, %v3756
  %v3802 = vpack.c.b16 %v3759, %v3758
  %v3803 = vpack.c.b16 %v3761, %v3760
  %v3804 = vpack.c.b16 %v3763, %v3762
  %v3805 = vpack.c.b16 %v3765, %v3764
  %v3806 = vpack.c.b16 %v3767, %v3766
  %v3807 = vpack.c.b16 %v3769, %v3768
  %v3808 = vpack.c.b16 %v3771, %v3770
  %v3809 = vpack.c.b16 %v3773, %v3772
  %v3810 = vpack.c.b16 %v3775, %v3774
  %v3811 = vpack.c.b16 %v3777, %v3776
  %v3812 = vpack.c.b16 %v3779, %v3778
  %v3813 = vpack.c.b16 %v3781, %v3780
  %v3846 = vunpack.c.l.b16 %v142
  %v3847 = vunpack.c.l.b16 %v152
  %v3848 = vunpack.c.l.b16 %v166
  %v3849 = vunpack.c.l.b16 %v176
  %v3850 = vunpack.c.l.b16 %v190
  %v3851 = vunpack.c.l.b16 %v200
  %v3852 = vunpack.c.l.b16 %v214
  %v3853 = vunpack.c.l.b16 %v224
  %v3854 = vunpack.c.l.b16 %v238
  %v3855 = vunpack.c.l.b16 %v248
  %v3856 = vunpack.c.l.b16 %v262
  %v3857 = vunpack.c.l.b16 %v272
  %v3858 = vunpack.c.l.b16 %v286
  %v3859 = vunpack.c.l.b16 %v296
  %v3860 = vunpack.c.l.b16 %v310
  %v3861 = vunpack.c.l.b16 %v320
  %v3862 = vunpack.c.l.b16 %v334
  %v3863 = vunpack.c.l.b16 %v344
  %v3864 = vunpack.c.l.b16 %v358
  %v3865 = vunpack.c.l.b16 %v368
  %v3866 = vunpack.c.l.b16 %v382
  %v3867 = vunpack.c.l.b16 %v392
  %v3868 = vunpack.c.l.b16 %v406
  %v3869 = vunpack.c.l.b16 %v416
  %v3870 = vunpack.c.l.b16 %v430
  %v3871 = vunpack.c.l.b16 %v440
  %v3872 = vunpack.c.l.b16 %v454
  %v3873 = vunpack.c.l.b16 %v464
  %v3874 = vunpack.c.l.b16 %v478
  %v3875 = vunpack.c.l.b16 %v488
  %v3876 = vunpack.c.l.b16 %v502
  %v3877 = vunpack.c.l.b16 %v512
  %v3878 = vunpack.c.l.b16 %v526
  %v3879 = vunpack.c.l.b16 %v536
  %v3880 = vunpack.c.l.b16 %v550
  %v3881 = vunpack.c.l.b16 %v560
  %v3882 = vunpack.c.l.b16 %v574
  %v3883 = vunpack.c.l.b16 %v584
  %v3884 = vunpack.c.l.b16 %v598
  %v3885 = vunpack.c.l.b16 %v608
  %v3886 = vunpack.c.l.b16 %v622
  %v3887 = vunpack.c.l.b16 %v632
  %v3888 = vunpack.c.l.b16 %v646
  %v3889 = vunpack.c.l.b16 %v656
  %v3890 = vunpack.c.l.b16 %v670
  %v3891 = vunpack.c.l.b16 %v680
  %v3892 = vunpack.c.l.b16 %v694
  %v3893 = vunpack.c.l.b16 %v704
  %v3894 = vunpack.c.l.b16 %v718
  %v3895 = vunpack.c.l.b16 %v728
  %v3896 = vunpack.c.l.b16 %v742
  %v3897 = vunpack.c.l.b16 %v752
  %v3898 = vunpack.c.l.b16 %v766
  %v3899 = vunpack.c.l.b16 %v776
  %v3900 = vunpack.c.l.b16 %v790
  %v3901 = vunpack.c.l.b16 %v800
  %v3902 = vunpack.c.l.b16 %v814
  %v3903 = vunpack.c.l.b16 %v824
  %v3904 = vunpack.c.l.b16 %v838
  %v3905 = vunpack.c.l.b16 %v848
  %v3906 = vunpack.c.l.b16 %v862
  %v3907 = vunpack.c.l.b16 %v872
  %v3908 = vunpack.c.l.b16 %v886
  %v3909 = vunpack.c.l.b16 %v896
  %v3910 = vpack.c.b16 %v3847, %v3846
  %v3911 = vpack.c.b16 %v3849, %v3848
  %v3912 = vpack.c.b16 %v3851, %v3850
  %v3913 = vpack.c.b16 %v3853, %v3852
  %v3914 = vpack.c.b16 %v3855, %v3854
  %v3915 = vpack.c.b16 %v3857, %v3856
  %v3916 = vpack.c.b16 %v3859, %v3858
  %v3917 = vpack.c.b16 %v3861, %v3860
  %v3918 = vpack.c.b16 %v3863, %v3862
  %v3919 = vpack.c.b16 %v3865, %v3864
  %v3920 = vpack.c.b16 %v3867, %v3866
  %v3921 = vpack.c.b16 %v3869, %v3868
  %v3922 = vpack.c.b16 %v3871, %v3870
  %v3923 = vpack.c.b16 %v3873, %v3872
  %v3924 = vpack.c.b16 %v3875, %v3874
  %v3925 = vpack.c.b16 %v3877, %v3876
  %v3926 = vpack.c.b16 %v3879, %v3878
  %v3927 = vpack.c.b16 %v3881, %v3880
  %v3928 = vpack.c.b16 %v3883, %v3882
  %v3929 = vpack.c.b16 %v3885, %v3884
  %v3930 = vpack.c.b16 %v3887, %v3886
  %v3931 = vpack.c.b16 %v3889, %v3888
  %v3932 = vpack.c.b16 %v3891, %v3890
  %v3933 = vpack.c.b16 %v3893, %v3892
  %v3934 = vpack.c.b16 %v3895, %v3894
  %v3935 = vpack.c.b16 %v3897, %v3896
  %v3936 = vpack.c.b16 %v3899, %v3898
  %v3937 = vpack.c.b16 %v3901, %v3900
  %v3938 = vpack.c.b16 %v3903, %v3902
  %v3939 = vpack.c.b16 %v3905, %v3904
  %v3940 = vpack.c.b16 %v3907, %v3906
  %v3941 = vpack.c.b16 %v3909, %v3908
  %v3974 = vunpack.c.l.b16 %v1031
  %v3975 = vunpack.c.l.b16 %v1034
  %v3976 = vunpack.c.l.b16 %v1038
  %v3977 = vunpack.c.l.b16 %v1041
  %v3978 = vunpack.c.l.b16 %v1045
  %v3979 = vunpack.c.l.b16 %v1048
  %v3980 = vunpack.c.l.b16 %v1052
  %v3981 = vunpack.c.l.b16 %v1055
  %v3982 = vunpack.c.l.b16 %v1059
  %v3983 = vunpack.c.l.b16 %v1062
  %v3984 = vunpack.c.l.b16 %v1066
  %v3985 = vunpack.c.l.b16 %v1069
  %v3986 = vunpack.c.l.b16 %v1073
  %v3987 = vunpack.c.l.b16 %v1076
  %v3988 = vunpack.c.l.b16 %v1080
  %v3989 = vunpack.c.l.b16 %v1083
  %v3990 = vunpack.c.l.b16 %v1087
  %v3991 = vunpack.c.l.b16 %v1090
  %v3992 = vunpack.c.l.b16 %v1094
  %v3993 = vunpack.c.l.b16 %v1097
  %v3994 = vunpack.c.l.b16 %v1101
  %v3995 = vunpack.c.l.b16 %v1104
  %v3996 = vunpack.c.l.b16 %v1108
  %v3997 = vunpack.c.l.b16 %v1111
  %v3998 = vunpack.c.l.b16 %v1115
  %v3999 = vunpack.c.l.b16 %v1118
  %v4000 = vunpack.c.l.b16 %v1122
  %v4001 = vunpack.c.l.b16 %v1125
  %v4002 = vunpack.c.l.b16 %v1129
  %v4003 = vunpack.c.l.b16 %v1132
  %v4004 = vunpack.c.l.b16 %v1136
  %v4005 = vunpack.c.l.b16 %v1139
  %v4006 = vunpack.c.l.b16 %v1143
  %v4007 = vunpack.c.l.b16 %v1146
  %v4008 = vunpack.c.l.b16 %v1150
  %v4009 = vunpack.c.l.b16 %v1153
  %v4010 = vunpack.c.l.b16 %v1157
  %v4011 = vunpack.c.l.b16 %v1160
  %v4012 = vunpack.c.l.b16 %v1164
  %v4013 = vunpack.c.l.b16 %v1167
  %v4014 = vunpack.c.l.b16 %v1171
  %v4015 = vunpack.c.l.b16 %v1174
  %v4016 = vunpack.c.l.b16 %v1178
  %v4017 = vunpack.c.l.b16 %v1181
  %v4018 = vunpack.c.l.b16 %v1185
  %v4019 = vunpack.c.l.b16 %v1188
  %v4020 = vunpack.c.l.b16 %v1192
  %v4021 = vunpack.c.l.b16 %v1195
  %v4022 = vunpack.c.l.b16 %v1199
  %v4023 = vunpack.c.l.b16 %v1202
  %v4024 = vunpack.c.l.b16 %v1206
  %v4025 = vunpack.c.l.b16 %v1209
  %v4026 = vunpack.c.l.b16 %v1213
  %v4027 = vunpack.c.l.b16 %v1216
  %v4028 = vunpack.c.l.b16 %v1220
  %v4029 = vunpack.c.l.b16 %v1223
  %v4030 = vunpack.c.l.b16 %v1227
  %v4031 = vunpack.c.l.b16 %v1230
  %v4032 = vunpack.c.l.b16 %v1234
  %v4033 = vunpack.c.l.b16 %v1237
  %v4034 = vunpack.c.l.b16 %v1241
  %v4035 = vunpack.c.l.b16 %v1244
  %v4036 = vunpack.c.l.b16 %v1248
  %v4037 = vunpack.c.l.b16 %v1251
  %v4038 = vpack.c.b16 %v3975, %v3974
  %v4039 = vpack.c.b16 %v3977, %v3976
  %v4040 = vpack.c.b16 %v3979, %v3978
  %v4041 = vpack.c.b16 %v3981, %v3980
  %v4042 = vpack.c.b16 %v3983, %v3982
  %v4043 = vpack.c.b16 %v3985, %v3984
  %v4044 = vpack.c.b16 %v3987, %v3986
  %v4045 = vpack.c.b16 %v3989, %v3988
  %v4046 = vpack.c.b16 %v3991, %v3990
  %v4047 = vpack.c.b16 %v3993, %v3992
  %v4048 = vpack.c.b16 %v3995, %v3994
  %v4049 = vpack.c.b16 %v3997, %v3996
  %v4050 = vpack.c.b16 %v3999, %v3998
  %v4051 = vpack.c.b16 %v4001, %v4000
  %v4052 = vpack.c.b16 %v4003, %v4002
  %v4053 = vpack.c.b16 %v4005, %v4004
  %v4054 = vpack.c.b16 %v4007, %v4006
  %v4055 = vpack.c.b16 %v4009, %v4008
  %v4056 = vpack.c.b16 %v4011, %v4010
  %v4057 = vpack.c.b16 %v4013, %v4012
  %v4058 = vpack.c.b16 %v4015, %v4014
  %v4059 = vpack.c.b16 %v4017, %v4016
  %v4060 = vpack.c.b16 %v4019, %v4018
  %v4061 = vpack.c.b16 %v4021, %v4020
  %v4062 = vpack.c.b16 %v4023, %v4022
  %v4063 = vpack.c.b16 %v4025, %v4024
  %v4064 = vpack.c.b16 %v4027, %v4026
  %v4065 = vpack.c.b16 %v4029, %v4028
  %v4066 = vpack.c.b16 %v4031, %v4030
  %v4067 = vpack.c.b16 %v4033, %v4032
  %v4068 = vpack.c.b16 %v4035, %v4034
  %v4069 = vpack.c.b16 %v4037, %v4036
  %v4134 = vunpack.c.l.b16 %v1253
  %v4135 = vunpack.c.l.b16 %v1254
  %v4136 = vunpack.c.l.b16 %v1255
  %v4137 = vunpack.c.l.b16 %v1256
  %v4138 = vunpack.c.l.b16 %v1257
  %v4139 = vunpack.c.l.b16 %v1258
  %v4140 = vunpack.c.l.b16 %v1259
  %v4141 = vunpack.c.l.b16 %v1260
  %v4142 = vunpack.c.l.b16 %v1261
  %v4143 = vunpack.c.l.b16 %v1262
  %v4144 = vunpack.c.l.b16 %v1263
  %v4145 = vunpack.c.l.b16 %v1264
  %v4146 = vunpack.c.l.b16 %v1265
  %v4147 = vunpack.c.l.b16 %v1266
  %v4148 = vunpack.c.l.b16 %v1267
  %v4149 = vunpack.c.l.b16 %v1268
  %v4150 = vunpack.c.l.b16 %v1269
  %v4151 = vunpack.c.l.b16 %v1270
  %v4152 = vunpack.c.l.b16 %v1271
  %v4153 = vunpack.c.l.b16 %v1272
  %v4154 = vunpack.c.l.b16 %v1273
  %v4155 = vunpack.c.l.b16 %v1274
  %v4156 = vunpack.c.l.b16 %v1275
  %v4157 = vunpack.c.l.b16 %v1276
  %v4158 = vunpack.c.l.b16 %v1277
  %v4159 = vunpack.c.l.b16 %v1278
  %v4160 = vunpack.c.l.b16 %v1279
  %v4161 = vunpack.c.l.b16 %v1280
  %v4162 = vunpack.c.l.b16 %v1281
  %v4163 = vunpack.c.l.b16 %v1282
  %v4164 = vunpack.c.l.b16 %v1283
  %v4165 = vunpack.c.l.b16 %v1284
  %v4166 = vunpack.c.l.b16 %v1285
  %v4167 = vunpack.c.l.b16 %v1286
  %v4168 = vunpack.c.l.b16 %v1287
  %v4169 = vunpack.c.l.b16 %v1288
  %v4170 = vunpack.c.l.b16 %v1289
  %v4171 = vunpack.c.l.b16 %v1290
  %v4172 = vunpack.c.l.b16 %v1291
  %v4173 = vunpack.c.l.b16 %v1292
  %v4174 = vunpack.c.l.b16 %v1293
  %v4175 = vunpack.c.l.b16 %v1294
  %v4176 = vunpack.c.l.b16 %v1295
  %v4177 = vunpack.c.l.b16 %v1296
  %v4178 = vunpack.c.l.b16 %v1297
  %v4179 = vunpack.c.l.b16 %v1298
  %v4180 = vunpack.c.l.b16 %v1299
  %v4181 = vunpack.c.l.b16 %v1300
  %v4182 = vunpack.c.l.b16 %v1301
  %v4183 = vunpack.c.l.b16 %v1302
  %v4184 = vunpack.c.l.b16 %v1303
  %v4185 = vunpack.c.l.b16 %v1304
  %v4186 = vunpack.c.l.b16 %v1305
  %v4187 = vunpack.c.l.b16 %v1306
  %v4188 = vunpack.c.l.b16 %v1307
  %v4189 = vunpack.c.l.b16 %v1308
  %v4190 = vunpack.c.l.b16 %v1309
  %v4191 = vunpack.c.l.b16 %v1310
  %v4192 = vunpack.c.l.b16 %v1311
  %v4193 = vunpack.c.l.b16 %v1312
  %v4194 = vunpack.c.l.b16 %v1313
  %v4195 = vunpack.c.l.b16 %v1314
  %v4196 = vunpack.c.l.b16 %v1315
  %v4197 = vunpack.c.l.b16 %v1316
  %v4198 = vpack.c.b16 %v4135, %v4134
  %v4199 = vpack.c.b16 %v4137, %v4136
  %v4200 = vpack.c.b16 %v4139, %v4138
  %v4201 = vpack.c.b16 %v4141, %v4140
  %v4202 = vpack.c.b16 %v4143, %v4142
  %v4203 = vpack.c.b16 %v4145, %v4144
  %v4204 = vpack.c.b16 %v4147, %v4146
  %v4205 = vpack.c.b16 %v4149, %v4148
  %v4206 = vpack.c.b16 %v4151, %v4150
  %v4207 = vpack.c.b16 %v4153, %v4152
  %v4208 = vpack.c.b16 %v4155, %v4154
  %v4209 = vpack.c.b16 %v4157, %v4156
  %v4210 = vpack.c.b16 %v4159, %v4158
  %v4211 = vpack.c.b16 %v4161, %v4160
  %v4212 = vpack.c.b16 %v4163, %v4162
  %v4213 = vpack.c.b16 %v4165, %v4164
  %v4214 = vpack.c.b16 %v4167, %v4166
  %v4215 = vpack.c.b16 %v4169, %v4168
  %v4216 = vpack.c.b16 %v4171, %v4170
  %v4217 = vpack.c.b16 %v4173, %v4172
  %v4218 = vpack.c.b16 %v4175, %v4174
  %v4219 = vpack.c.b16 %v4177, %v4176
  %v4220 = vpack.c.b16 %v4179, %v4178
  %v4221 = vpack.c.b16 %v4181, %v4180
  %v4222 = vpack.c.b16 %v4183, %v4182
  %v4223 = vpack.c.b16 %v4185, %v4184
  %v4224 = vpack.c.b16 %v4187, %v4186
  %v4225 = vpack.c.b16 %v4189, %v4188
  %v4226 = vpack.c.b16 %v4191, %v4190
  %v4227 = vpack.c.b16 %v4193, %v4192
  %v4228 = vpack.c.b16 %v4195, %v4194
  %v4229 = vpack.c.b16 %v4197, %v4196
  %v4262 = vunpack.c.l.b16 %v1362
  %v4263 = vunpack.c.l.b16 %v1372
  %v4264 = vunpack.c.l.b16 %v1386
  %v4265 = vunpack.c.l.b16 %v1396
  %v4266 = vunpack.c.l.b16 %v1410
  %v4267 = vunpack.c.l.b16 %v1420
  %v4268 = vunpack.c.l.b16 %v1434
  %v4269 = vunpack.c.l.b16 %v1444
  %v4270 = vunpack.c.l.b16 %v1458
  %v4271 = vunpack.c.l.b16 %v1468
  %v4272 = vunpack.c.l.b16 %v1482
  %v4273 = vunpack.c.l.b16 %v1492
  %v4274 = vunpack.c.l.b16 %v1506
  %v4275 = vunpack.c.l.b16 %v1516
  %v4276 = vunpack.c.l.b16 %v1530
  %v4277 = vunpack.c.l.b16 %v1540
  %v4278 = vunpack.c.l.b16 %v1554
  %v4279 = vunpack.c.l.b16 %v1564
  %v4280 = vunpack.c.l.b16 %v1578
  %v4281 = vunpack.c.l.b16 %v1588
  %v4282 = vunpack.c.l.b16 %v1602
  %v4283 = vunpack.c.l.b16 %v1612
  %v4284 = vunpack.c.l.b16 %v1626
  %v4285 = vunpack.c.l.b16 %v1636
  %v4286 = vunpack.c.l.b16 %v1650
  %v4287 = vunpack.c.l.b16 %v1660
  %v4288 = vunpack.c.l.b16 %v1674
  %v4289 = vunpack.c.l.b16 %v1684
  %v4290 = vunpack.c.l.b16 %v1698
  %v4291 = vunpack.c.l.b16 %v1708
  %v4292 = vunpack.c.l.b16 %v1722
  %v4293 = vunpack.c.l.b16 %v1732
  %v4294 = vunpack.c.l.b16 %v1746
  %v4295 = vunpack.c.l.b16 %v1756
  %v4296 = vunpack.c.l.b16 %v1770
  %v4297 = vunpack.c.l.b16 %v1780
  %v4298 = vunpack.c.l.b16 %v1794
  %v4299 = vunpack.c.l.b16 %v1804
  %v4300 = vunpack.c.l.b16 %v1818
  %v4301 = vunpack.c.l.b16 %v1828
  %v4302 = vunpack.c.l.b16 %v1842
  %v4303 = vunpack.c.l.b16 %v1852
  %v4304 = vunpack.c.l.b16 %v1866
  %v4305 = vunpack.c.l.b16 %v1876
  %v4306 = vunpack.c.l.b16 %v1890
  %v4307 = vunpack.c.l.b16 %v1900
  %v4308 = vunpack.c.l.b16 %v1914
  %v4309 = vunpack.c.l.b16 %v1924
  %v4310 = vunpack.c.l.b16 %v1938
  %v4311 = vunpack.c.l.b16 %v1948
  %v4312 = vunpack.c.l.b16 %v1962
  %v4313 = vunpack.c.l.b16 %v1972
  %v4314 = vunpack.c.l.b16 %v1986
  %v4315 = vunpack.c.l.b16 %v1996
  %v4316 = vunpack.c.l.b16 %v2010
  %v4317 = vunpack.c.l.b16 %v2020
  %v4318 = vunpack.c.l.b16 %v2034
  %v4319 = vunpack.c.l.b16 %v2044
  %v4320 = vunpack.c.l.b16 %v2058
  %v4321 = vunpack.c.l.b16 %v2068
  %v4322 = vunpack.c.l.b16 %v2082
  %v4323 = vunpack.c.l.b16 %v2092
  %v4324 = vunpack.c.l.b16 %v2106
  %v4325 = vunpack.c.l.b16 %v2116
  %v4326 = vpack.c.b16 %v4263, %v4262
  %v4327 = vpack.c.b16 %v4265, %v4264
  %v4328 = vpack.c.b16 %v4267, %v4266
  %v4329 = vpack.c.b16 %v4269, %v4268
  %v4330 = vpack.c.b16 %v4271, %v4270
  %v4331 = vpack.c.b16 %v4273, %v4272
  %v4332 = vpack.c.b16 %v4275, %v4274
  %v4333 = vpack.c.b16 %v4277, %v4276
  %v4334 = vpack.c.b16 %v4279, %v4278
  %v4335 = vpack.c.b16 %v4281, %v4280
  %v4336 = vpack.c.b16 %v4283, %v4282
  %v4337 = vpack.c.b16 %v4285, %v4284
  %v4338 = vpack.c.b16 %v4287, %v4286
  %v4339 = vpack.c.b16 %v4289, %v4288
  %v4340 = vpack.c.b16 %v4291, %v4290
  %v4341 = vpack.c.b16 %v4293, %v4292
  %v4342 = vpack.c.b16 %v4295, %v4294
  %v4343 = vpack.c.b16 %v4297, %v4296
  %v4344 = vpack.c.b16 %v4299, %v4298
  %v4345 = vpack.c.b16 %v4301, %v4300
  %v4346 = vpack.c.b16 %v4303, %v4302
  %v4347 = vpack.c.b16 %v4305, %v4304
  %v4348 = vpack.c.b16 %v4307, %v4306
  %v4349 = vpack.c.b16 %v4309, %v4308
  %v4350 = vpack.c.b16 %v4311, %v4310
  %v4351 = vpack.c.b16 %v4313, %v4312
  %v4352 = vpack.c.b16 %v4315, %v4314
  %v4353 = vpack.c.b16 %v4317, %v4316
  %v4354 = vpack.c.b16 %v4319, %v4318
  %v4355 = vpack.c.b16 %v4321, %v4320
  %v4356 = vpack.c.b16 %v4323, %v4322
  %v4357 = vpack.c.b16 %v4325, %v4324
  %v4390 = vunpack.c.l.b16 %v2248
  %v4391 = vunpack.c.l.b16 %v2251
  %v4392 = vunpack.c.l.b16 %v2255
  %v4393 = vunpack.c.l.b16 %v2258
  %v4394 = vunpack.c.l.b16 %v2262
  %v4395 = vunpack.c.l.b16 %v2265
  %v4396 = vunpack.c.l.b16 %v2269
  %v4397 = vunpack.c.l.b16 %v2272
  %v4398 = vunpack.c.l.b16 %v2276
  %v4399 = vunpack.c.l.b16 %v2279
  %v4400 = vunpack.c.l.b16 %v2283
  %v4401 = vunpack.c.l.b16 %v2286
  %v4402 = vunpack.c.l.b16 %v2290
  %v4403 = vunpack.c.l.b16 %v2293
  %v4404 = vunpack.c.l.b16 %v2297
  %v4405 = vunpack.c.l.b16 %v2300
  %v4406 = vunpack.c.l.b16 %v2304
  %v4407 = vunpack.c.l.b16 %v2307
  %v4408 = vunpack.c.l.b16 %v2311
  %v4409 = vunpack.c.l.b16 %v2314
  %v4410 = vunpack.c.l.b16 %v2318
  %v4411 = vunpack.c.l.b16 %v2321
  %v4412 = vunpack.c.l.b16 %v2325
  %v4413 = vunpack.c.l.b16 %v2328
  %v4414 = vunpack.c.l.b16 %v2332
  %v4415 = vunpack.c.l.b16 %v2335
  %v4416 = vunpack.c.l.b16 %v2339
  %v4417 = vunpack.c.l.b16 %v2342
  %v4418 = vunpack.c.l.b16 %v2346
  %v4419 = vunpack.c.l.b16 %v2349
  %v4420 = vunpack.c.l.b16 %v2353
  %v4421 = vunpack.c.l.b16 %v2356
  %v4422 = vunpack.c.l.b16 %v2360
  %v4423 = vunpack.c.l.b16 %v2363
  %v4424 = vunpack.c.l.b16 %v2367
  %v4425 = vunpack.c.l.b16 %v2370
  %v4426 = vunpack.c.l.b16 %v2374
  %v4427 = vunpack.c.l.b16 %v2377
  %v4428 = vunpack.c.l.b16 %v2381
  %v4429 = vunpack.c.l.b16 %v2384
  %v4430 = vunpack.c.l.b16 %v2388
  %v4431 = vunpack.c.l.b16 %v2391
  %v4432 = vunpack.c.l.b16 %v2395
  %v4433 = vunpack.c.l.b16 %v2398
  %v4434 = vunpack.c.l.b16 %v2402
  %v4435 = vunpack.c.l.b16 %v2405
  %v4436 = vunpack.c.l.b16 %v2409
  %v4437 = vunpack.c.l.b16 %v2412
  %v4438 = vunpack.c.l.b16 %v2416
  %v4439 = vunpack.c.l.b16 %v2419
  %v4440 = vunpack.c.l.b16 %v2423
  %v4441 = vunpack.c.l.b16 %v2426
  %v4442 = vunpack.c.l.b16 %v2430
  %v4443 = vunpack.c.l.b16 %v2433
  %v4444 = vunpack.c.l.b16 %v2437
  %v4445 = vunpack.c.l.b16 %v2440
  %v4446 = vunpack.c.l.b16 %v2444
  %v4447 = vunpack.c.l.b16 %v2447
  %v4448 = vunpack.c.l.b16 %v2451
  %v4449 = vunpack.c.l.b16 %v2454
  %v4450 = vunpack.c.l.b16 %v2458
  %v4451 = vunpack.c.l.b16 %v2461
  %v4452 = vunpack.c.l.b16 %v2465
  %v4453 = vunpack.c.l.b16 %v2468
  %v4454 = vpack.c.b16 %v4391, %v4390
  %v4455 = vpack.c.b16 %v4393, %v4392
  %v4456 = vpack.c.b16 %v4395, %v4394
  %v4457 = vpack.c.b16 %v4397, %v4396
  %v4458 = vpack.c.b16 %v4399, %v4398
  %v4459 = vpack.c.b16 %v4401, %v4400
  %v4460 = vpack.c.b16 %v4403, %v4402
  %v4461 = vpack.c.b16 %v4405, %v4404
  %v4462 = vpack.c.b16 %v4407, %v4406
  %v4463 = vpack.c.b16 %v4409, %v4408
  %v4464 = vpack.c.b16 %v4411, %v4410
  %v4465 = vpack.c.b16 %v4413, %v4412
  %v4466 = vpack.c.b16 %v4415, %v4414
  %v4467 = vpack.c.b16 %v4417, %v4416
  %v4468 = vpack.c.b16 %v4419, %v4418
  %v4469 = vpack.c.b16 %v4421, %v4420
  %v4470 = vpack.c.b16 %v4423, %v4422
  %v4471 = vpack.c.b16 %v4425, %v4424
  %v4472 = vpack.c.b16 %v4427, %v4426
  %v4473 = vpack.c.b16 %v4429, %v4428
  %v4474 = vpack.c.b16 %v4431, %v4430
  %v4475 = vpack.c.b16 %v4433, %v4432
  %v4476 = vpack.c.b16 %v4435, %v4434
  %v4477 = vpack.c.b16 %v4437, %v4436
  %v4478 = vpack.c.b16 %v4439, %v4438
  %v4479 = vpack.c.b16 %v4441, %v4440
  %v4480 = vpack.c.b16 %v4443, %v4442
  %v4481 = vpack.c.b16 %v4445, %v4444
  %v4482 = vpack.c.b16 %v4447, %v4446
  %v4483 = vpack.c.b16 %v4449, %v4448
  %v4484 = vpack.c.b16 %v4451, %v4450
  %v4485 = vpack.c.b16 %v4453, %v4452
  %v4550 = vunpack.c.l.b16 %v2470
  %v4551 = vunpack.c.l.b16 %v2471
  %v4552 = vunpack.c.l.b16 %v2472
  %v4553 = vunpack.c.l.b16 %v2473
  %v4554 = vunpack.c.l.b16 %v2474
  %v4555 = vunpack.c.l.b16 %v2475
  %v4556 = vunpack.c.l.b16 %v2476
  %v4557 = vunpack.c.l.b16 %v2477
  %v4558 = vunpack.c.l.b16 %v2478
  %v4559 = vunpack.c.l.b16 %v2479
  %v4560 = vunpack.c.l.b16 %v2480
  %v4561 = vunpack.c.l.b16 %v2481
  %v4562 = vunpack.c.l.b16 %v2482
  %v4563 = vunpack.c.l.b16 %v2483
  %v4564 = vunpack.c.l.b16 %v2484
  %v4565 = vunpack.c.l.b16 %v2485
  %v4566 = vunpack.c.l.b16 %v2486
  %v4567 = vunpack.c.l.b16 %v2487
  %v4568 = vunpack.c.l.b16 %v2488
  %v4569 = vunpack.c.l.b16 %v2489
  %v4570 = vunpack.c.l.b16 %v2490
  %v4571 = vunpack.c.l.b16 %v2491
  %v4572 = vunpack.c.l.b16 %v2492
  %v4573 = vunpack.c.l.b16 %v2493
  %v4574 = vunpack.c.l.b16 %v2494
  %v4575 = vunpack.c.l.b16 %v2495
  %v4576 = vunpack.c.l.b16 %v2496
  %v4577 = vunpack.c.l.b16 %v2497
  %v4578 = vunpack.c.l.b16 %v2498
  %v4579 = vunpack.c.l.b16 %v2499
  %v4580 = vunpack.c.l.b16 %v2500
  %v4581 = vunpack.c.l.b16 %v2501
  %v4582 = vunpack.c.l.b16 %v2502
  %v4583 = vunpack.c.l.b16 %v2503
  %v4584 = vunpack.c.l.b16 %v2504
  %v4585 = vunpack.c.l.b16 %v2505
  %v4586 = vunpack.c.l.b16 %v2506
  %v4587 = vunpack.c.l.b16 %v2507
  %v4588 = vunpack.c.l.b16 %v2508
  %v4589 = vunpack.c.l.b16 %v2509
  %v4590 = vunpack.c.l.b16 %v2510
  %v4591 = vunpack.c.l.b16 %v2511
  %v4592 = vunpack.c.l.b16 %v2512
  %v4593 = vunpack.c.l.b16 %v2513
  %v4594 = vunpack.c.l.b16 %v2514
  %v4595 = vunpack.c.l.b16 %v2515
  %v4596 = vunpack.c.l.b16 %v2516
  %v4597 = vunpack.c.l.b16 %v2517
  %v4598 = vunpack.c.l.b16 %v2518
  %v4599 = vunpack.c.l.b16 %v2519
  %v4600 = vunpack.c.l.b16 %v2520
  %v4601 = vunpack.c.l.b16 %v2521
  %v4602 = vunpack.c.l.b16 %v2522
  %v4603 = vunpack.c.l.b16 %v2523
  %v4604 = vunpack.c.l.b16 %v2524
  %v4605 = vunpack.c.l.b16 %v2525
  %v4606 = vunpack.c.l.b16 %v2526
  %v4607 = vunpack.c.l.b16 %v2527
  %v4608 = vunpack.c.l.b16 %v2528
  %v4609 = vunpack.c.l.b16 %v2529
  %v4610 = vunpack.c.l.b16 %v2530
  %v4611 = vunpack.c.l.b16 %v2531
  %v4612 = vunpack.c.l.b16 %v2532
  %v4613 = vunpack.c.l.b16 %v2533
  %v4614 = vpack.c.b16 %v4551, %v4550
  %v4615 = vpack.c.b16 %v4553, %v4552
  %v4616 = vpack.c.b16 %v4555, %v4554
  %v4617 = vpack.c.b16 %v4557, %v4556
  %v4618 = vpack.c.b16 %v4559, %v4558
  %v4619 = vpack.c.b16 %v4561, %v4560
  %v4620 = vpack.c.b16 %v4563, %v4562
  %v4621 = vpack.c.b16 %v4565, %v4564
  %v4622 = vpack.c.b16 %v4567, %v4566
  %v4623 = vpack.c.b16 %v4569, %v4568
  %v4624 = vpack.c.b16 %v4571, %v4570
  %v4625 = vpack.c.b16 %v4573, %v4572
  %v4626 = vpack.c.b16 %v4575, %v4574
  %v4627 = vpack.c.b16 %v4577, %v4576
  %v4628 = vpack.c.b16 %v4579, %v4578
  %v4629 = vpack.c.b16 %v4581, %v4580
  %v4630 = vpack.c.b16 %v4583, %v4582
  %v4631 = vpack.c.b16 %v4585, %v4584
  %v4632 = vpack.c.b16 %v4587, %v4586
  %v4633 = vpack.c.b16 %v4589, %v4588
  %v4634 = vpack.c.b16 %v4591, %v4590
  %v4635 = vpack.c.b16 %v4593, %v4592
  %v4636 = vpack.c.b16 %v4595, %v4594
  %v4637 = vpack.c.b16 %v4597, %v4596
  %v4638 = vpack.c.b16 %v4599, %v4598
  %v4639 = vpack.c.b16 %v4601, %v4600
  %v4640 = vpack.c.b16 %v4603, %v4602
  %v4641 = vpack.c.b16 %v4605, %v4604
  %v4642 = vpack.c.b16 %v4607, %v4606
  %v4643 = vpack.c.b16 %v4609, %v4608
  %v4644 = vpack.c.b16 %v4611, %v4610
  %v4645 = vpack.c.b16 %v4613, %v4612
  %v4678 = vunpack.c.l.b16 %v2579
  %v4679 = vunpack.c.l.b16 %v2589
  %v4680 = vunpack.c.l.b16 %v2603
  %v4681 = vunpack.c.l.b16 %v2613
  %v4682 = vunpack.c.l.b16 %v2627
  %v4683 = vunpack.c.l.b16 %v2637
  %v4684 = vunpack.c.l.b16 %v2651
  %v4685 = vunpack.c.l.b16 %v2661
  %v4686 = vunpack.c.l.b16 %v2675
  %v4687 = vunpack.c.l.b16 %v2685
  %v4688 = vunpack.c.l.b16 %v2699
  %v4689 = vunpack.c.l.b16 %v2709
  %v4690 = vunpack.c.l.b16 %v2723
  %v4691 = vunpack.c.l.b16 %v2733
  %v4692 = vunpack.c.l.b16 %v2747
  %v4693 = vunpack.c.l.b16 %v2757
  %v4694 = vunpack.c.l.b16 %v2771
  %v4695 = vunpack.c.l.b16 %v2781
  %v4696 = vunpack.c.l.b16 %v2795
  %v4697 = vunpack.c.l.b16 %v2805
  %v4698 = vunpack.c.l.b16 %v2819
  %v4699 = vunpack.c.l.b16 %v2829
  %v4700 = vunpack.c.l.b16 %v2843
  %v4701 = vunpack.c.l.b16 %v2853
  %v4702 = vunpack.c.l.b16 %v2867
  %v4703 = vunpack.c.l.b16 %v2877
  %v4704 = vunpack.c.l.b16 %v2891
  %v4705 = vunpack.c.l.b16 %v2901
  %v4706 = vunpack.c.l.b16 %v2915
  %v4707 = vunpack.c.l.b16 %v2925
  %v4708 = vunpack.c.l.b16 %v2939
  %v4709 = vunpack.c.l.b16 %v2949
  %v4710 = vunpack.c.l.b16 %v2963
  %v4711 = vunpack.c.l.b16 %v2973
  %v4712 = vunpack.c.l.b16 %v2987
  %v4713 = vunpack.c.l.b16 %v2997
  %v4714 = vunpack.c.l.b16 %v3011
  %v4715 = vunpack.c.l.b16 %v3021
  %v4716 = vunpack.c.l.b16 %v3035
  %v4717 = vunpack.c.l.b16 %v3045
  %v4718 = vunpack.c.l.b16 %v3059
  %v4719 = vunpack.c.l.b16 %v3069
  %v4720 = vunpack.c.l.b16 %v3083
  %v4721 = vunpack.c.l.b16 %v3093
  %v4722 = vunpack.c.l.b16 %v3107
  %v4723 = vunpack.c.l.b16 %v3117
  %v4724 = vunpack.c.l.b16 %v3131
  %v4725 = vunpack.c.l.b16 %v3141
  %v4726 = vunpack.c.l.b16 %v3155
  %v4727 = vunpack.c.l.b16 %v3165
  %v4728 = vunpack.c.l.b16 %v3179
  %v4729 = vunpack.c.l.b16 %v3189
  %v4730 = vunpack.c.l.b16 %v3203
  %v4731 = vunpack.c.l.b16 %v3213
  %v4732 = vunpack.c.l.b16 %v3227
  %v4733 = vunpack.c.l.b16 %v3237
  %v4734 = vunpack.c.l.b16 %v3251
  %v4735 = vunpack.c.l.b16 %v3261
  %v4736 = vunpack.c.l.b16 %v3275
  %v4737 = vunpack.c.l.b16 %v3285
  %v4738 = vunpack.c.l.b16 %v3299
  %v4739 = vunpack.c.l.b16 %v3309
  %v4740 = vunpack.c.l.b16 %v3323
  %v4741 = vunpack.c.l.b16 %v3333
  %v4742 = vpack.c.b16 %v4679, %v4678
  %v4743 = vpack.c.b16 %v4681, %v4680
  %v4744 = vpack.c.b16 %v4683, %v4682
  %v4745 = vpack.c.b16 %v4685, %v4684
  %v4746 = vpack.c.b16 %v4687, %v4686
  %v4747 = vpack.c.b16 %v4689, %v4688
  %v4748 = vpack.c.b16 %v4691, %v4690
  %v4749 = vpack.c.b16 %v4693, %v4692
  %v4750 = vpack.c.b16 %v4695, %v4694
  %v4751 = vpack.c.b16 %v4697, %v4696
  %v4752 = vpack.c.b16 %v4699, %v4698
  %v4753 = vpack.c.b16 %v4701, %v4700
  %v4754 = vpack.c.b16 %v4703, %v4702
  %v4755 = vpack.c.b16 %v4705, %v4704
  %v4756 = vpack.c.b16 %v4707, %v4706
  %v4757 = vpack.c.b16 %v4709, %v4708
  %v4758 = vpack.c.b16 %v4711, %v4710
  %v4759 = vpack.c.b16 %v4713, %v4712
  %v4760 = vpack.c.b16 %v4715, %v4714
  %v4761 = vpack.c.b16 %v4717, %v4716
  %v4762 = vpack.c.b16 %v4719, %v4718
  %v4763 = vpack.c.b16 %v4721, %v4720
  %v4764 = vpack.c.b16 %v4723, %v4722
  %v4765 = vpack.c.b16 %v4725, %v4724
  %v4766 = vpack.c.b16 %v4727, %v4726
  %v4767 = vpack.c.b16 %v4729, %v4728
  %v4768 = vpack.c.b16 %v4731, %v4730
  %v4769 = vpack.c.b16 %v4733, %v4732
  %v4770 = vpack.c.b16 %v4735, %v4734
  %v4771 = vpack.c.b16 %v4737, %v4736
  %v4772 = vpack.c.b16 %v4739, %v4738
  %v4773 = vpack.c.b16 %v4741, %v4740
  %v4806 = vunpack.c.l.b16 %v3465
  %v4807 = vunpack.c.l.b16 %v3468
  %v4808 = vunpack.c.l.b16 %v3472
  %v4809 = vunpack.c.l.b16 %v3475
  %v4810 = vunpack.c.l.b16 %v3479
  %v4811 = vunpack.c.l.b16 %v3482
  %v4812 = vunpack.c.l.b16 %v3486
  %v4813 = vunpack.c.l.b16 %v3489
  %v4814 = vunpack.c.l.b16 %v3493
  %v4815 = vunpack.c.l.b16 %v3496
  %v4816 = vunpack.c.l.b16 %v3500
  %v4817 = vunpack.c.l.b16 %v3503
  %v4818 = vunpack.c.l.b16 %v3507
  %v4819 = vunpack.c.l.b16 %v3510
  %v4820 = vunpack.c.l.b16 %v3514
  %v4821 = vunpack.c.l.b16 %v3517
  %v4822 = vunpack.c.l.b16 %v3521
  %v4823 = vunpack.c.l.b16 %v3524
  %v4824 = vunpack.c.l.b16 %v3528
  %v4825 = vunpack.c.l.b16 %v3531
  %v4826 = vunpack.c.l.b16 %v3535
  %v4827 = vunpack.c.l.b16 %v3538
  %v4828 = vunpack.c.l.b16 %v3542
  %v4829 = vunpack.c.l.b16 %v3545
  %v4830 = vunpack.c.l.b16 %v3549
  %v4831 = vunpack.c.l.b16 %v3552
  %v4832 = vunpack.c.l.b16 %v3556
  %v4833 = vunpack.c.l.b16 %v3559
  %v4834 = vunpack.c.l.b16 %v3563
  %v4835 = vunpack.c.l.b16 %v3566
  %v4836 = vunpack.c.l.b16 %v3570
  %v4837 = vunpack.c.l.b16 %v3573
  %v4838 = vunpack.c.l.b16 %v3577
  %v4839 = vunpack.c.l.b16 %v3580
  %v4840 = vunpack.c.l.b16 %v3584
  %v4841 = vunpack.c.l.b16 %v3587
  %v4842 = vunpack.c.l.b16 %v3591
  %v4843 = vunpack.c.l.b16 %v3594
  %v4844 = vunpack.c.l.b16 %v3598
  %v4845 = vunpack.c.l.b16 %v3601
  %v4846 = vunpack.c.l.b16 %v3605
  %v4847 = vunpack.c.l.b16 %v3608
  %v4848 = vunpack.c.l.b16 %v3612
  %v4849 = vunpack.c.l.b16 %v3615
  %v4850 = vunpack.c.l.b16 %v3619
  %v4851 = vunpack.c.l.b16 %v3622
  %v4852 = vunpack.c.l.b16 %v3626
  %v4853 = vunpack.c.l.b16 %v3629
  %v4854 = vunpack.c.l.b16 %v3633
  %v4855 = vunpack.c.l.b16 %v3636
  %v4856 = vunpack.c.l.b16 %v3640
  %v4857 = vunpack.c.l.b16 %v3643
  %v4858 = vunpack.c.l.b16 %v3647
  %v4859 = vunpack.c.l.b16 %v3650
  %v4860 = vunpack.c.l.b16 %v3654
  %v4861 = vunpack.c.l.b16 %v3657
  %v4862 = vunpack.c.l.b16 %v3661
  %v4863 = vunpack.c.l.b16 %v3664
  %v4864 = vunpack.c.l.b16 %v3668
  %v4865 = vunpack.c.l.b16 %v3671
  %v4866 = vunpack.c.l.b16 %v3675
  %v4867 = vunpack.c.l.b16 %v3678
  %v4868 = vunpack.c.l.b16 %v3682
  %v4869 = vunpack.c.l.b16 %v3685
  %v4870 = vpack.c.b16 %v4807, %v4806
  %v4871 = vpack.c.b16 %v4809, %v4808
  %v4872 = vpack.c.b16 %v4811, %v4810
  %v4873 = vpack.c.b16 %v4813, %v4812
  %v4874 = vpack.c.b16 %v4815, %v4814
  %v4875 = vpack.c.b16 %v4817, %v4816
  %v4876 = vpack.c.b16 %v4819, %v4818
  %v4877 = vpack.c.b16 %v4821, %v4820
  %v4878 = vpack.c.b16 %v4823, %v4822
  %v4879 = vpack.c.b16 %v4825, %v4824
  %v4880 = vpack.c.b16 %v4827, %v4826
  %v4881 = vpack.c.b16 %v4829, %v4828
  %v4882 = vpack.c.b16 %v4831, %v4830
  %v4883 = vpack.c.b16 %v4833, %v4832
  %v4884 = vpack.c.b16 %v4835, %v4834
  %v4885 = vpack.c.b16 %v4837, %v4836
  %v4886 = vpack.c.b16 %v4839, %v4838
  %v4887 = vpack.c.b16 %v4841, %v4840
  %v4888 = vpack.c.b16 %v4843, %v4842
  %v4889 = vpack.c.b16 %v4845, %v4844
  %v4890 = vpack.c.b16 %v4847, %v4846
  %v4891 = vpack.c.b16 %v4849, %v4848
  %v4892 = vpack.c.b16 %v4851, %v4850
  %v4893 = vpack.c.b16 %v4853, %v4852
  %v4894 = vpack.c.b16 %v4855, %v4854
  %v4895 = vpack.c.b16 %v4857, %v4856
  %v4896 = vpack.c.b16 %v4859, %v4858
  %v4897 = vpack.c.b16 %v4861, %v4860
  %v4898 = vpack.c.b16 %v4863, %v4862
  %v4899 = vpack.c.b16 %v4865, %v4864
  %v4900 = vpack.c.b16 %v4867, %v4866
  %v4901 = vpack.c.b16 %v4869, %v4868
  %v4934 = vld [vmem:[%s2] sm:$0xf]
  %v4935 = vld [vmem:[%s2 + $0x4] sm:$0xf]
  %v4936 = vld [vmem:[%s2 + $0x8] sm:$0xf]
  %v4937 = vld [vmem:[%s2 + $0xc] sm:$0xf]
  %v4938 = vld [vmem:[%s2 + $0x10] sm:$0xf]
  %v4939 = vld [vmem:[%s2 + $0x14] sm:$0xf]
  %v4940 = vld [vmem:[%s2 + $0x18] sm:$0xf]
  %v4941 = vld [vmem:[%s2 + $0x1c] sm:$0xf]
  %v4942 = vld [vmem:[%s2 + $0x20] sm:$0xf]
  %v4943 = vld [vmem:[%s2 + $0x24] sm:$0xf]
  %v4944 = vld [vmem:[%s2 + $0x28] sm:$0xf]
  %v4945 = vld [vmem:[%s2 + $0x2c] sm:$0xf]
  %v4946 = vld [vmem:[%s2 + $0x30] sm:$0xf]
  %v4947 = vld [vmem:[%s2 + $0x34] sm:$0xf]
  %v4948 = vld [vmem:[%s2 + $0x38] sm:$0xf]
  %v4949 = vld [vmem:[%s2 + $0x3c] sm:$0xf]
  %v4950 = vld [vmem:[%s2 + $0x40] sm:$0xf]
  %v4951 = vld [vmem:[%s2 + $0x44] sm:$0xf]
  %v4952 = vld [vmem:[%s2 + $0x48] sm:$0xf]
  %v4953 = vld [vmem:[%s2 + $0x4c] sm:$0xf]
  %v4954 = vld [vmem:[%s2 + $0x50] sm:$0xf]
  %v4955 = vld [vmem:[%s2 + $0x54] sm:$0xf]
  %v4956 = vld [vmem:[%s2 + $0x58] sm:$0xf]
  %v4957 = vld [vmem:[%s2 + $0x5c] sm:$0xf]
  %v4958 = vld [vmem:[%s2 + $0x60] sm:$0xf]
  %v4959 = vld [vmem:[%s2 + $0x64] sm:$0xf]
  %v4960 = vld [vmem:[%s2 + $0x68] sm:$0xf]
  %v4961 = vld [vmem:[%s2 + $0x6c] sm:$0xf]
  %v4962 = vld [vmem:[%s2 + $0x70] sm:$0xf]
  %v4963 = vld [vmem:[%s2 + $0x74] sm:$0xf]
  %v4964 = vld [vmem:[%s2 + $0x78] sm:$0xf]
  %v4965 = vld [vmem:[%s2 + $0x7c] sm:$0xf]
  %v4966 = vld [vmem:[%s2 + $0x80] sm:$0xf]
  %v4967 = vld [vmem:[%s2 + $0x84] sm:$0xf]
  %v4968 = vld [vmem:[%s2 + $0x88] sm:$0xf]
  %v4969 = vld [vmem:[%s2 + $0x8c] sm:$0xf]
  %v4970 = vld [vmem:[%s2 + $0x90] sm:$0xf]
  %v4971 = vld [vmem:[%s2 + $0x94] sm:$0xf]
  %v4972 = vld [vmem:[%s2 + $0x98] sm:$0xf]
  %v4973 = vld [vmem:[%s2 + $0x9c] sm:$0xf]
  %v4974 = vld [vmem:[%s2 + $0xa0] sm:$0xf]
  %v4975 = vld [vmem:[%s2 + $0xa4] sm:$0xf]
  %v4976 = vld [vmem:[%s2 + $0xa8] sm:$0xf]
  %v4977 = vld [vmem:[%s2 + $0xac] sm:$0xf]
  %v4978 = vld [vmem:[%s2 + $0xb0] sm:$0xf]
  %v4979 = vld [vmem:[%s2 + $0xb4] sm:$0xf]
  %v4980 = vld [vmem:[%s2 + $0xb8] sm:$0xf]
  %v4981 = vld [vmem:[%s2 + $0xbc] sm:$0xf]
  %v4982 = vld [vmem:[%s2 + $0xc0] sm:$0xf]
  %v4983 = vld [vmem:[%s2 + $0xc4] sm:$0xf]
  %v4984 = vld [vmem:[%s2 + $0xc8] sm:$0xf]
  %v4985 = vld [vmem:[%s2 + $0xcc] sm:$0xf]
  %v4986 = vld [vmem:[%s2 + $0xd0] sm:$0xf]
  %v4987 = vld [vmem:[%s2 + $0xd4] sm:$0xf]
  %v4988 = vld [vmem:[%s2 + $0xd8] sm:$0xf]
  %v4989 = vld [vmem:[%s2 + $0xdc] sm:$0xf]
  %v4990 = vld [vmem:[%s2 + $0xe0] sm:$0xf]
  %v4991 = vld [vmem:[%s2 + $0xe4] sm:$0xf]
  %v4992 = vld [vmem:[%s2 + $0xe8] sm:$0xf]
  %v4993 = vld [vmem:[%s2 + $0xec] sm:$0xf]
  %v4994 = vld [vmem:[%s2 + $0xf0] sm:$0xf]
  %v4995 = vld [vmem:[%s2 + $0xf4] sm:$0xf]
  %v4996 = vld [vmem:[%s2 + $0xf8] sm:$0xf]
  %v4997 = vld [vmem:[%s2 + $0xfc] sm:$0xf]
  %v4998 = vld [vmem:[%s2 + $0x100] sm:$0xf]
  %v4999 = vld [vmem:[%s2 + $0x104] sm:$0xf]
  %v5000 = vld [vmem:[%s2 + $0x108] sm:$0xf]
  %v5001 = vld [vmem:[%s2 + $0x10c] sm:$0xf]
  %v5002 = vld [vmem:[%s2 + $0x110] sm:$0xf]
  %v5003 = vld [vmem:[%s2 + $0x114] sm:$0xf]
  %v5004 = vld [vmem:[%s2 + $0x118] sm:$0xf]
  %v5005 = vld [vmem:[%s2 + $0x11c] sm:$0xf]
  %v5006 = vld [vmem:[%s2 + $0x120] sm:$0xf]
  %v5007 = vld [vmem:[%s2 + $0x124] sm:$0xf]
  %v5008 = vld [vmem:[%s2 + $0x128] sm:$0xf]
  %v5009 = vld [vmem:[%s2 + $0x12c] sm:$0xf]
  %v5010 = vld [vmem:[%s2 + $0x130] sm:$0xf]
  %v5011 = vld [vmem:[%s2 + $0x134] sm:$0xf]
  %v5012 = vld [vmem:[%s2 + $0x138] sm:$0xf]
  %v5013 = vld [vmem:[%s2 + $0x13c] sm:$0xf]
  %v5014 = vld [vmem:[%s2 + $0x140] sm:$0xf]
  %v5015 = vld [vmem:[%s2 + $0x144] sm:$0xf]
  %v5016 = vld [vmem:[%s2 + $0x148] sm:$0xf]
  %v5017 = vld [vmem:[%s2 + $0x14c] sm:$0xf]
  %v5018 = vld [vmem:[%s2 + $0x150] sm:$0xf]
  %v5019 = vld [vmem:[%s2 + $0x154] sm:$0xf]
  %v5020 = vld [vmem:[%s2 + $0x158] sm:$0xf]
  %v5021 = vld [vmem:[%s2 + $0x15c] sm:$0xf]
  %v5022 = vld [vmem:[%s2 + $0x160] sm:$0xf]
  %v5023 = vld [vmem:[%s2 + $0x164] sm:$0xf]
  %v5024 = vld [vmem:[%s2 + $0x168] sm:$0xf]
  %v5025 = vld [vmem:[%s2 + $0x16c] sm:$0xf]
  %v5026 = vld [vmem:[%s2 + $0x170] sm:$0xf]
  %v5027 = vld [vmem:[%s2 + $0x174] sm:$0xf]
  %v5028 = vld [vmem:[%s2 + $0x178] sm:$0xf]
  %v5029 = vld [vmem:[%s2 + $0x17c] sm:$0xf]
  %v5030 = vld [vmem:[%s2 + $0x180] sm:$0xf]
  %v5031 = vld [vmem:[%s2 + $0x184] sm:$0xf]
  %v5032 = vld [vmem:[%s2 + $0x188] sm:$0xf]
  %v5033 = vld [vmem:[%s2 + $0x18c] sm:$0xf]
  %v5034 = vld [vmem:[%s2 + $0x190] sm:$0xf]
  %v5035 = vld [vmem:[%s2 + $0x194] sm:$0xf]
  %v5036 = vld [vmem:[%s2 + $0x198] sm:$0xf]
  %v5037 = vld [vmem:[%s2 + $0x19c] sm:$0xf]
  %v5038 = vld [vmem:[%s2 + $0x1a0] sm:$0xf]
  %v5039 = vld [vmem:[%s2 + $0x1a4] sm:$0xf]
  %v5040 = vld [vmem:[%s2 + $0x1a8] sm:$0xf]
  %v5041 = vld [vmem:[%s2 + $0x1ac] sm:$0xf]
  %v5042 = vld [vmem:[%s2 + $0x1b0] sm:$0xf]
  %v5043 = vld [vmem:[%s2 + $0x1b4] sm:$0xf]
  %v5044 = vld [vmem:[%s2 + $0x1b8] sm:$0xf]
  %v5045 = vld [vmem:[%s2 + $0x1bc] sm:$0xf]
  %v5046 = vld [vmem:[%s2 + $0x1c0] sm:$0xf]
  %v5047 = vld [vmem:[%s2 + $0x1c4] sm:$0xf]
  %v5048 = vld [vmem:[%s2 + $0x1c8] sm:$0xf]
  %v5049 = vld [vmem:[%s2 + $0x1cc] sm:$0xf]
  %v5050 = vld [vmem:[%s2 + $0x1d0] sm:$0xf]
  %v5051 = vld [vmem:[%s2 + $0x1d4] sm:$0xf]
  %v5052 = vld [vmem:[%s2 + $0x1d8] sm:$0xf]
  %v5053 = vld [vmem:[%s2 + $0x1dc] sm:$0xf]
  %v5054 = vld [vmem:[%s2 + $0x1e0] sm:$0xf]
  %v5055 = vld [vmem:[%s2 + $0x1e4] sm:$0xf]
  %v5056 = vld [vmem:[%s2 + $0x1e8] sm:$0xf]
  %v5057 = vld [vmem:[%s2 + $0x1ec] sm:$0xf]
  %v5058 = vld [vmem:[%s2 + $0x1f0] sm:$0xf]
  %v5059 = vld [vmem:[%s2 + $0x1f4] sm:$0xf]
  %v5060 = vld [vmem:[%s2 + $0x1f8] sm:$0xf]
  %v5061 = vld [vmem:[%s2 + $0x1fc] sm:$0xf]
  %v5062 = vld [vmem:[%s2 + $0x200] sm:$0xf]
  %v5063 = vld [vmem:[%s2 + $0x204] sm:$0xf]
  %v5064 = vld [vmem:[%s2 + $0x208] sm:$0xf]
  %v5065 = vld [vmem:[%s2 + $0x20c] sm:$0xf]
  %v5066 = vld [vmem:[%s2 + $0x210] sm:$0xf]
  %v5067 = vld [vmem:[%s2 + $0x214] sm:$0xf]
  %v5068 = vld [vmem:[%s2 + $0x218] sm:$0xf]
  %v5069 = vld [vmem:[%s2 + $0x21c] sm:$0xf]
  %v5070 = vld [vmem:[%s2 + $0x220] sm:$0xf]
  %v5071 = vld [vmem:[%s2 + $0x224] sm:$0xf]
  %v5072 = vld [vmem:[%s2 + $0x228] sm:$0xf]
  %v5073 = vld [vmem:[%s2 + $0x22c] sm:$0xf]
  %v5074 = vld [vmem:[%s2 + $0x230] sm:$0xf]
  %v5075 = vld [vmem:[%s2 + $0x234] sm:$0xf]
  %v5076 = vld [vmem:[%s2 + $0x238] sm:$0xf]
  %v5077 = vld [vmem:[%s2 + $0x23c] sm:$0xf]
  %v5222 = vunpack.c.l.b16 %v4934
  %v5223 = vunpack.c.l.b16 %v4935
  %v5224 = vunpack.c.l.b16 %v4936
  %v5225 = vunpack.c.l.b16 %v4937
  %v5226 = vunpack.c.l.b16 %v4938
  %v5227 = vunpack.c.l.b16 %v4939
  %v5228 = vunpack.c.l.b16 %v4940
  %v5229 = vunpack.c.l.b16 %v4941
  %v5230 = vunpack.c.l.b16 %v4942
  %v5231 = vunpack.c.l.b16 %v4943
  %v5232 = vunpack.c.l.b16 %v4944
  %v5233 = vunpack.c.l.b16 %v4945
  %v5234 = vunpack.c.l.b16 %v4946
  %v5235 = vunpack.c.l.b16 %v4947
  %v5236 = vunpack.c.l.b16 %v4948
  %v5237 = vunpack.c.l.b16 %v4949
  %v5238 = vunpack.c.l.b16 %v4950
  %v5239 = vunpack.c.l.b16 %v4951
  %v5240 = vunpack.c.l.b16 %v4952
  %v5241 = vunpack.c.l.b16 %v4953
  %v5242 = vunpack.c.l.b16 %v4954
  %v5243 = vunpack.c.l.b16 %v4955
  %v5244 = vunpack.c.l.b16 %v4956
  %v5245 = vunpack.c.l.b16 %v4957
  %v5246 = vunpack.c.l.b16 %v4958
  %v5247 = vunpack.c.l.b16 %v4959
  %v5248 = vunpack.c.l.b16 %v4960
  %v5249 = vunpack.c.l.b16 %v4961
  %v5250 = vunpack.c.l.b16 %v4962
  %v5251 = vunpack.c.l.b16 %v4963
  %v5252 = vunpack.c.l.b16 %v4964
  %v5253 = vunpack.c.l.b16 %v4965
  %v5254 = vunpack.c.l.b16 %v4966
  %v5255 = vunpack.c.l.b16 %v4967
  %v5256 = vunpack.c.l.b16 %v4968
  %v5257 = vunpack.c.l.b16 %v4969
  %v5258 = vunpack.c.l.b16 %v4970
  %v5259 = vunpack.c.l.b16 %v4971
  %v5260 = vunpack.c.l.b16 %v4972
  %v5261 = vunpack.c.l.b16 %v4973
  %v5262 = vunpack.c.l.b16 %v4974
  %v5263 = vunpack.c.l.b16 %v4975
  %v5264 = vunpack.c.l.b16 %v4976
  %v5265 = vunpack.c.l.b16 %v4977
  %v5266 = vunpack.c.l.b16 %v4978
  %v5267 = vunpack.c.l.b16 %v4979
  %v5268 = vunpack.c.l.b16 %v4980
  %v5269 = vunpack.c.l.b16 %v4981
  %v5270 = vunpack.c.l.b16 %v4982
  %v5271 = vunpack.c.l.b16 %v4983
  %v5272 = vunpack.c.l.b16 %v4984
  %v5273 = vunpack.c.l.b16 %v4985
  %v5274 = vunpack.c.l.b16 %v4986
  %v5275 = vunpack.c.l.b16 %v4987
  %v5276 = vunpack.c.l.b16 %v4988
  %v5277 = vunpack.c.l.b16 %v4989
  %v5278 = vunpack.c.l.b16 %v4990
  %v5279 = vunpack.c.l.b16 %v4991
  %v5280 = vunpack.c.l.b16 %v4992
  %v5281 = vunpack.c.l.b16 %v4993
  %v5282 = vunpack.c.l.b16 %v4994
  %v5283 = vunpack.c.l.b16 %v4995
  %v5284 = vunpack.c.l.b16 %v4996
  %v5285 = vunpack.c.l.b16 %v4997
  %v5286 = vunpack.c.l.b16 %v4998
  %v5287 = vunpack.c.l.b16 %v4999
  %v5288 = vunpack.c.l.b16 %v5000
  %v5289 = vunpack.c.l.b16 %v5001
  %v5290 = vunpack.c.l.b16 %v5002
  %v5291 = vunpack.c.l.b16 %v5003
  %v5292 = vunpack.c.l.b16 %v5004
  %v5293 = vunpack.c.l.b16 %v5005
  %v5294 = vunpack.c.l.b16 %v5006
  %v5295 = vunpack.c.l.b16 %v5007
  %v5296 = vunpack.c.l.b16 %v5008
  %v5297 = vunpack.c.l.b16 %v5009
  %v5298 = vunpack.c.l.b16 %v5010
  %v5299 = vunpack.c.l.b16 %v5011
  %v5300 = vunpack.c.l.b16 %v5012
  %v5301 = vunpack.c.l.b16 %v5013
  %v5302 = vunpack.c.l.b16 %v5014
  %v5303 = vunpack.c.l.b16 %v5015
  %v5304 = vunpack.c.l.b16 %v5016
  %v5305 = vunpack.c.l.b16 %v5017
  %v5306 = vunpack.c.l.b16 %v5018
  %v5307 = vunpack.c.l.b16 %v5019
  %v5308 = vunpack.c.l.b16 %v5020
  %v5309 = vunpack.c.l.b16 %v5021
  %v5310 = vunpack.c.l.b16 %v5022
  %v5311 = vunpack.c.l.b16 %v5023
  %v5312 = vunpack.c.l.b16 %v5024
  %v5313 = vunpack.c.l.b16 %v5025
  %v5314 = vunpack.c.l.b16 %v5026
  %v5315 = vunpack.c.l.b16 %v5027
  %v5316 = vunpack.c.l.b16 %v5028
  %v5317 = vunpack.c.l.b16 %v5029
  %v5318 = vunpack.c.l.b16 %v5030
  %v5319 = vunpack.c.l.b16 %v5031
  %v5320 = vunpack.c.l.b16 %v5032
  %v5321 = vunpack.c.l.b16 %v5033
  %v5322 = vunpack.c.l.b16 %v5034
  %v5323 = vunpack.c.l.b16 %v5035
  %v5324 = vunpack.c.l.b16 %v5036
  %v5325 = vunpack.c.l.b16 %v5037
  %v5326 = vunpack.c.l.b16 %v5038
  %v5327 = vunpack.c.l.b16 %v5039
  %v5328 = vunpack.c.l.b16 %v5040
  %v5329 = vunpack.c.l.b16 %v5041
  %v5330 = vunpack.c.l.b16 %v5042
  %v5331 = vunpack.c.l.b16 %v5043
  %v5332 = vunpack.c.l.b16 %v5044
  %v5333 = vunpack.c.l.b16 %v5045
  %v5334 = vunpack.c.l.b16 %v5046
  %v5335 = vunpack.c.l.b16 %v5047
  %v5336 = vunpack.c.l.b16 %v5048
  %v5337 = vunpack.c.l.b16 %v5049
  %v5338 = vunpack.c.l.b16 %v5050
  %v5339 = vunpack.c.l.b16 %v5051
  %v5340 = vunpack.c.l.b16 %v5052
  %v5341 = vunpack.c.l.b16 %v5053
  %v5342 = vunpack.c.l.b16 %v5054
  %v5343 = vunpack.c.l.b16 %v5055
  %v5344 = vunpack.c.l.b16 %v5056
  %v5345 = vunpack.c.l.b16 %v5057
  %v5346 = vunpack.c.l.b16 %v5058
  %v5347 = vunpack.c.l.b16 %v5059
  %v5348 = vunpack.c.l.b16 %v5060
  %v5349 = vunpack.c.l.b16 %v5061
  %v5350 = vunpack.c.l.b16 %v5062
  %v5351 = vunpack.c.l.b16 %v5063
  %v5352 = vunpack.c.l.b16 %v5064
  %v5353 = vunpack.c.l.b16 %v5065
  %v5354 = vunpack.c.l.b16 %v5066
  %v5355 = vunpack.c.l.b16 %v5067
  %v5356 = vunpack.c.l.b16 %v5068
  %v5357 = vunpack.c.l.b16 %v5069
  %v5358 = vunpack.c.l.b16 %v5070
  %v5359 = vunpack.c.l.b16 %v5071
  %v5360 = vunpack.c.l.b16 %v5072
  %v5361 = vunpack.c.l.b16 %v5073
  %v5362 = vunpack.c.l.b16 %v5074
  %v5363 = vunpack.c.l.b16 %v5075
  %v5364 = vunpack.c.l.b16 %v5076
  %v5365 = vunpack.c.l.b16 %v5077
  %v5366 = vpack.c.b16 %v5223, %v5222
  %v5367 = vpack.c.b16 %v5225, %v5224
  %v5368 = vpack.c.b16 %v5227, %v5226
  %v5369 = vpack.c.b16 %v5229, %v5228
  %v5370 = vpack.c.b16 %v5231, %v5230
  %v5371 = vpack.c.b16 %v5233, %v5232
  %v5372 = vpack.c.b16 %v5235, %v5234
  %v5373 = vpack.c.b16 %v5237, %v5236
  %v5374 = vpack.c.b16 %v5239, %v5238
  %v5375 = vpack.c.b16 %v5241, %v5240
  %v5376 = vpack.c.b16 %v5243, %v5242
  %v5377 = vpack.c.b16 %v5245, %v5244
  %v5378 = vpack.c.b16 %v5247, %v5246
  %v5379 = vpack.c.b16 %v5249, %v5248
  %v5380 = vpack.c.b16 %v5251, %v5250
  %v5381 = vpack.c.b16 %v5253, %v5252
  %v5382 = vpack.c.b16 %v5255, %v5254
  %v5383 = vpack.c.b16 %v5257, %v5256
  %v5384 = vpack.c.b16 %v5259, %v5258
  %v5385 = vpack.c.b16 %v5261, %v5260
  %v5386 = vpack.c.b16 %v5263, %v5262
  %v5387 = vpack.c.b16 %v5265, %v5264
  %v5388 = vpack.c.b16 %v5267, %v5266
  %v5389 = vpack.c.b16 %v5269, %v5268
  %v5390 = vpack.c.b16 %v5271, %v5270
  %v5391 = vpack.c.b16 %v5273, %v5272
  %v5392 = vpack.c.b16 %v5275, %v5274
  %v5393 = vpack.c.b16 %v5277, %v5276
  %v5394 = vpack.c.b16 %v5279, %v5278
  %v5395 = vpack.c.b16 %v5281, %v5280
  %v5396 = vpack.c.b16 %v5283, %v5282
  %v5397 = vpack.c.b16 %v5285, %v5284
  %v5398 = vpack.c.b16 %v5287, %v5286
  %v5399 = vpack.c.b16 %v5289, %v5288
  %v5400 = vpack.c.b16 %v5291, %v5290
  %v5401 = vpack.c.b16 %v5293, %v5292
  %v5402 = vpack.c.b16 %v5295, %v5294
  %v5403 = vpack.c.b16 %v5297, %v5296
  %v5404 = vpack.c.b16 %v5299, %v5298
  %v5405 = vpack.c.b16 %v5301, %v5300
  %v5406 = vpack.c.b16 %v5303, %v5302
  %v5407 = vpack.c.b16 %v5305, %v5304
  %v5408 = vpack.c.b16 %v5307, %v5306
  %v5409 = vpack.c.b16 %v5309, %v5308
  %v5410 = vpack.c.b16 %v5311, %v5310
  %v5411 = vpack.c.b16 %v5313, %v5312
  %v5412 = vpack.c.b16 %v5315, %v5314
  %v5413 = vpack.c.b16 %v5317, %v5316
  %v5414 = vpack.c.b16 %v5319, %v5318
  %v5415 = vpack.c.b16 %v5321, %v5320
  %v5416 = vpack.c.b16 %v5323, %v5322
  %v5417 = vpack.c.b16 %v5325, %v5324
  %v5418 = vpack.c.b16 %v5327, %v5326
  %v5419 = vpack.c.b16 %v5329, %v5328
  %v5420 = vpack.c.b16 %v5331, %v5330
  %v5421 = vpack.c.b16 %v5333, %v5332
  %v5422 = vpack.c.b16 %v5335, %v5334
  %v5423 = vpack.c.b16 %v5337, %v5336
  %v5424 = vpack.c.b16 %v5339, %v5338
  %v5425 = vpack.c.b16 %v5341, %v5340
  %v5426 = vpack.c.b16 %v5343, %v5342
  %v5427 = vpack.c.b16 %v5345, %v5344
  %v5428 = vpack.c.b16 %v5347, %v5346
  %v5429 = vpack.c.b16 %v5349, %v5348
  %v5430 = vpack.c.b16 %v5351, %v5350
  %v5431 = vpack.c.b16 %v5353, %v5352
  %v5432 = vpack.c.b16 %v5355, %v5354
  %v5433 = vpack.c.b16 %v5357, %v5356
  %v5434 = vpack.c.b16 %v5359, %v5358
  %v5435 = vpack.c.b16 %v5361, %v5360
  %v5436 = vpack.c.b16 %v5363, %v5362
  %v5437 = vpack.c.b16 %v5365, %v5364
  %5510 = vmatprep.subr.bf16.mxu0 0
  %5511 = vmatpush1.bf16.msra.mxu0 %v5373
  %5512 = vmatprep.subr.bf16.mxu0 0
  %5513 = vmatpush1.bf16.msra.mxu0 %v5372
  %5514 = vmatprep.subr.bf16.mxu0 0
  %5515 = vmatpush1.bf16.msra.mxu0 %v5371
  %5516 = vmatprep.subr.bf16.mxu0 0
  %5517 = vmatpush1.bf16.msra.mxu0 %v5370
  %5518 = vmatprep.subr.bf16.mxu0 0
  %5519 = vmatpush1.bf16.msra.mxu0 %v5369
  %5520 = vmatprep.subr.bf16.mxu0 0
  %5521 = vmatpush1.bf16.msra.mxu0 %v5368
  %5522 = vmatprep.subr.bf16.mxu0 0
  %5523 = vmatpush1.bf16.msra.mxu0 %v5367
  %5524 = vmatprep.subr.bf16.mxu0 0
  %5525 = vmatpush1.bf16.msra.mxu0 %v5366
  %5526 = vmatprep.subr.bf16.mxu0 0
  %5527 = vmatpush2.bf16.msra.mxu0 %v5381
  %5528 = vmatprep.subr.bf16.mxu0 0
  %5529 = vmatpush2.bf16.msra.mxu0 %v5380
  %5530 = vmatprep.subr.bf16.mxu0 0
  %5531 = vmatpush2.bf16.msra.mxu0 %v5379
  %5532 = vmatprep.subr.bf16.mxu0 0
  %5533 = vmatpush2.bf16.msra.mxu0 %v5378
  %5534 = vmatprep.subr.bf16.mxu0 0
  %5535 = vmatpush2.bf16.msra.mxu0 %v5377
  %5536 = vmatprep.subr.bf16.mxu0 0
  %5537 = vmatpush2.bf16.msra.mxu0 %v5376
  %5538 = vmatprep.subr.bf16.mxu0 0
  %5539 = vmatpush2.bf16.msra.mxu0 %v5375
  %5540 = vmatprep.subr.bf16.mxu0 0
  %5541 = vmatpush2.bf16.msra.mxu0 %v5374
  %5542 = vmatprep.mubr.bf16.mxu0 %v3910
  %5543 = vmatmul.mubr.bf16.gmra.mxu0 %v3782
  %v5544 = vpop.f32.mrf.mxu0
  %v5545 = vadd.f32 0.0, %v5544
  %v5546 = vpop.f32.mrf.mxu0
  %v5547 = vpop.f32.mrf.mxu0
  %v5548 = vadd.f32 0.0, %v5547
  %v5549 = vpop.f32.mrf.mxu0
  %5550 = vmatprep.mubr.bf16.mxu0 %v3911
  %5551 = vmatmul.mubr.bf16.gmra.mxu0 %v3783
  %v5552 = vpop.f32.mrf.mxu0
  %v5553 = vadd.f32 0.0, %v5552
  %v5554 = vpop.f32.mrf.mxu0
  %v5555 = vpop.f32.mrf.mxu0
  %v5556 = vadd.f32 0.0, %v5555
  %v5557 = vpop.f32.mrf.mxu0
  %5558 = vmatprep.mubr.bf16.mxu0 %v3912
  %5559 = vmatmul.mubr.bf16.gmra.mxu0 %v3784
  %v5560 = vpop.f32.mrf.mxu0
  %v5561 = vadd.f32 0.0, %v5560
  %v5562 = vpop.f32.mrf.mxu0
  %v5563 = vpop.f32.mrf.mxu0
  %v5564 = vadd.f32 0.0, %v5563
  %v5565 = vpop.f32.mrf.mxu0
  %5566 = vmatprep.mubr.bf16.mxu0 %v3913
  %5567 = vmatmul.mubr.bf16.gmra.mxu0 %v3785
  %v5568 = vpop.f32.mrf.mxu0
  %v5569 = vadd.f32 0.0, %v5568
  %v5570 = vpop.f32.mrf.mxu0
  %v5571 = vpop.f32.mrf.mxu0
  %v5572 = vadd.f32 0.0, %v5571
  %v5573 = vpop.f32.mrf.mxu0
  %5574 = vmatprep.mubr.bf16.mxu0 %v3914
  %5575 = vmatmul.mubr.bf16.gmra.mxu0 %v3786
  %v5576 = vpop.f32.mrf.mxu0
  %v5577 = vadd.f32 0.0, %v5576
  %v5578 = vpop.f32.mrf.mxu0
  %v5579 = vpop.f32.mrf.mxu0
  %v5580 = vadd.f32 0.0, %v5579
  %v5581 = vpop.f32.mrf.mxu0
  %5582 = vmatprep.mubr.bf16.mxu0 %v3915
  %5583 = vmatmul.mubr.bf16.gmra.mxu0 %v3787
  %v5584 = vpop.f32.mrf.mxu0
  %v5585 = vadd.f32 0.0, %v5584
  %v5586 = vpop.f32.mrf.mxu0
  %v5587 = vpop.f32.mrf.mxu0
  %v5588 = vadd.f32 0.0, %v5587
  %v5589 = vpop.f32.mrf.mxu0
  %5590 = vmatprep.mubr.bf16.mxu0 %v3916
  %5591 = vmatmul.mubr.bf16.gmra.mxu0 %v3788
  %v5592 = vpop.f32.mrf.mxu0
  %v5593 = vadd.f32 0.0, %v5592
  %v5594 = vpop.f32.mrf.mxu0
  %v5595 = vpop.f32.mrf.mxu0
  %v5596 = vadd.f32 0.0, %v5595
  %v5597 = vpop.f32.mrf.mxu0
  %5598 = vmatprep.mubr.bf16.mxu0 %v3917
  %5599 = vmatmul.mubr.bf16.gmra.mxu0 %v3789
  %v5600 = vpop.f32.mrf.mxu0
  %v5601 = vadd.f32 0.0, %v5600
  %v5602 = vpop.f32.mrf.mxu0
  %v5603 = vpop.f32.mrf.mxu0
  %v5604 = vadd.f32 0.0, %v5603
  %v5605 = vpop.f32.mrf.mxu0
  %5606 = vmatprep.mubr.bf16.mxu0 %v3918
  %5607 = vmatmul.mubr.bf16.gmra.mxu0 %v3790
  %v5608 = vpop.f32.mrf.mxu0
  %v5609 = vadd.f32 0.0, %v5608
  %v5610 = vpop.f32.mrf.mxu0
  %v5611 = vpop.f32.mrf.mxu0
  %v5612 = vadd.f32 0.0, %v5611
  %v5613 = vpop.f32.mrf.mxu0
  %5614 = vmatprep.mubr.bf16.mxu0 %v3919
  %5615 = vmatmul.mubr.bf16.gmra.mxu0 %v3791
  %v5616 = vpop.f32.mrf.mxu0
  %v5617 = vadd.f32 0.0, %v5616
  %v5618 = vpop.f32.mrf.mxu0
  %v5619 = vpop.f32.mrf.mxu0
  %v5620 = vadd.f32 0.0, %v5619
  %v5621 = vpop.f32.mrf.mxu0
  %5622 = vmatprep.mubr.bf16.mxu0 %v3920
  %5623 = vmatmul.mubr.bf16.gmra.mxu0 %v3792
  %v5624 = vpop.f32.mrf.mxu0
  %v5625 = vadd.f32 0.0, %v5624
  %v5626 = vpop.f32.mrf.mxu0
  %v5627 = vpop.f32.mrf.mxu0
  %v5628 = vadd.f32 0.0, %v5627
  %v5629 = vpop.f32.mrf.mxu0
  %5630 = vmatprep.mubr.bf16.mxu0 %v3921
  %5631 = vmatmul.mubr.bf16.gmra.mxu0 %v3793
  %v5632 = vpop.f32.mrf.mxu0
  %v5633 = vadd.f32 0.0, %v5632
  %v5634 = vpop.f32.mrf.mxu0
  %v5635 = vpop.f32.mrf.mxu0
  %v5636 = vadd.f32 0.0, %v5635
  %v5637 = vpop.f32.mrf.mxu0
  %5638 = vmatprep.mubr.bf16.mxu0 %v3922
  %5639 = vmatmul.mubr.bf16.gmra.mxu0 %v3794
  %v5640 = vpop.f32.mrf.mxu0
  %v5641 = vadd.f32 0.0, %v5640
  %v5642 = vpop.f32.mrf.mxu0
  %v5643 = vpop.f32.mrf.mxu0
  %v5644 = vadd.f32 0.0, %v5643
  %v5645 = vpop.f32.mrf.mxu0
  %5646 = vmatprep.mubr.bf16.mxu0 %v3923
  %5647 = vmatmul.mubr.bf16.gmra.mxu0 %v3795
  %v5648 = vpop.f32.mrf.mxu0
  %v5649 = vadd.f32 0.0, %v5648
  %v5650 = vpop.f32.mrf.mxu0
  %v5651 = vpop.f32.mrf.mxu0
  %v5652 = vadd.f32 0.0, %v5651
  %v5653 = vpop.f32.mrf.mxu0
  %5654 = vmatprep.mubr.bf16.mxu0 %v3924
  %5655 = vmatmul.mubr.bf16.gmra.mxu0 %v3796
  %v5656 = vpop.f32.mrf.mxu0
  %v5657 = vadd.f32 0.0, %v5656
  %v5658 = vpop.f32.mrf.mxu0
  %v5659 = vpop.f32.mrf.mxu0
  %v5660 = vadd.f32 0.0, %v5659
  %v5661 = vpop.f32.mrf.mxu0
  %5662 = vmatprep.mubr.bf16.mxu0 %v3925
  %5663 = vmatmul.mubr.bf16.gmra.mxu0 %v3797
  %v5664 = vpop.f32.mrf.mxu0
  %v5665 = vadd.f32 0.0, %v5664
  %v5666 = vpop.f32.mrf.mxu0
  %v5667 = vpop.f32.mrf.mxu0
  %v5668 = vadd.f32 0.0, %v5667
  %v5669 = vpop.f32.mrf.mxu0
  %5670 = vmatprep.mubr.bf16.mxu0 %v3926
  %5671 = vmatmul.mubr.bf16.gmra.mxu0 %v3798
  %v5672 = vpop.f32.mrf.mxu0
  %v5673 = vadd.f32 0.0, %v5672
  %v5674 = vpop.f32.mrf.mxu0
  %v5675 = vpop.f32.mrf.mxu0
  %v5676 = vadd.f32 0.0, %v5675
  %v5677 = vpop.f32.mrf.mxu0
  %5678 = vmatprep.mubr.bf16.mxu0 %v3927
  %5679 = vmatmul.mubr.bf16.gmra.mxu0 %v3799
  %v5680 = vpop.f32.mrf.mxu0
  %v5681 = vadd.f32 0.0, %v5680
  %v5682 = vpop.f32.mrf.mxu0
  %v5683 = vpop.f32.mrf.mxu0
  %v5684 = vadd.f32 0.0, %v5683
  %v5685 = vpop.f32.mrf.mxu0
  %5686 = vmatprep.mubr.bf16.mxu0 %v3928
  %5687 = vmatmul.mubr.bf16.gmra.mxu0 %v3800
  %v5688 = vpop.f32.mrf.mxu0
  %v5689 = vadd.f32 0.0, %v5688
  %v5690 = vpop.f32.mrf.mxu0
  %v5691 = vpop.f32.mrf.mxu0
  %v5692 = vadd.f32 0.0, %v5691
  %v5693 = vpop.f32.mrf.mxu0
  %5694 = vmatprep.mubr.bf16.mxu0 %v3929
  %5695 = vmatmul.mubr.bf16.gmra.mxu0 %v3801
  %v5696 = vpop.f32.mrf.mxu0
  %v5697 = vadd.f32 0.0, %v5696
  %v5698 = vpop.f32.mrf.mxu0
  %v5699 = vpop.f32.mrf.mxu0
  %v5700 = vadd.f32 0.0, %v5699
  %v5701 = vpop.f32.mrf.mxu0
  %5702 = vmatprep.mubr.bf16.mxu0 %v3930
  %5703 = vmatmul.mubr.bf16.gmra.mxu0 %v3802
  %v5704 = vpop.f32.mrf.mxu0
  %v5705 = vadd.f32 0.0, %v5704
  %v5706 = vpop.f32.mrf.mxu0
  %v5707 = vpop.f32.mrf.mxu0
  %v5708 = vadd.f32 0.0, %v5707
  %v5709 = vpop.f32.mrf.mxu0
  %5710 = vmatprep.mubr.bf16.mxu0 %v3931
  %5711 = vmatmul.mubr.bf16.gmra.mxu0 %v3803
  %v5712 = vpop.f32.mrf.mxu0
  %v5713 = vadd.f32 0.0, %v5712
  %v5714 = vpop.f32.mrf.mxu0
  %v5715 = vpop.f32.mrf.mxu0
  %v5716 = vadd.f32 0.0, %v5715
  %v5717 = vpop.f32.mrf.mxu0
  %5718 = vmatprep.mubr.bf16.mxu0 %v3932
  %5719 = vmatmul.mubr.bf16.gmra.mxu0 %v3804
  %v5720 = vpop.f32.mrf.mxu0
  %v5721 = vadd.f32 0.0, %v5720
  %v5722 = vpop.f32.mrf.mxu0
  %v5723 = vpop.f32.mrf.mxu0
  %v5724 = vadd.f32 0.0, %v5723
  %v5725 = vpop.f32.mrf.mxu0
  %5726 = vmatprep.mubr.bf16.mxu0 %v3933
  %5727 = vmatmul.mubr.bf16.gmra.mxu0 %v3805
  %v5728 = vpop.f32.mrf.mxu0
  %v5729 = vadd.f32 0.0, %v5728
  %v5730 = vpop.f32.mrf.mxu0
  %v5731 = vpop.f32.mrf.mxu0
  %v5732 = vadd.f32 0.0, %v5731
  %v5733 = vpop.f32.mrf.mxu0
  %5734 = vmatprep.mubr.bf16.mxu0 %v3934
  %5735 = vmatmul.mubr.bf16.gmra.mxu0 %v3806
  %v5736 = vpop.f32.mrf.mxu0
  %v5737 = vadd.f32 0.0, %v5736
  %v5738 = vpop.f32.mrf.mxu0
  %v5739 = vpop.f32.mrf.mxu0
  %v5740 = vadd.f32 0.0, %v5739
  %v5741 = vpop.f32.mrf.mxu0
  %5742 = vmatprep.mubr.bf16.mxu0 %v3935
  %5743 = vmatmul.mubr.bf16.gmra.mxu0 %v3807
  %v5744 = vpop.f32.mrf.mxu0
  %v5745 = vadd.f32 0.0, %v5744
  %v5746 = vpop.f32.mrf.mxu0
  %v5747 = vpop.f32.mrf.mxu0
  %v5748 = vadd.f32 0.0, %v5747
  %v5749 = vpop.f32.mrf.mxu0
  %5750 = vmatprep.mubr.bf16.mxu0 %v3936
  %5751 = vmatmul.mubr.bf16.gmra.mxu0 %v3808
  %v5752 = vpop.f32.mrf.mxu0
  %v5753 = vadd.f32 0.0, %v5752
  %v5754 = vpop.f32.mrf.mxu0
  %v5755 = vpop.f32.mrf.mxu0
  %v5756 = vadd.f32 0.0, %v5755
  %v5757 = vpop.f32.mrf.mxu0
  %5758 = vmatprep.mubr.bf16.mxu0 %v3937
  %5759 = vmatmul.mubr.bf16.gmra.mxu0 %v3809
  %v5760 = vpop.f32.mrf.mxu0
  %v5761 = vadd.f32 0.0, %v5760
  %v5762 = vpop.f32.mrf.mxu0
  %v5763 = vpop.f32.mrf.mxu0
  %v5764 = vadd.f32 0.0, %v5763
  %v5765 = vpop.f32.mrf.mxu0
  %5766 = vmatprep.mubr.bf16.mxu0 %v3938
  %5767 = vmatmul.mubr.bf16.gmra.mxu0 %v3810
  %v5768 = vpop.f32.mrf.mxu0
  %v5769 = vadd.f32 0.0, %v5768
  %v5770 = vpop.f32.mrf.mxu0
  %v5771 = vpop.f32.mrf.mxu0
  %v5772 = vadd.f32 0.0, %v5771
  %v5773 = vpop.f32.mrf.mxu0
  %5774 = vmatprep.mubr.bf16.mxu0 %v3939
  %5775 = vmatmul.mubr.bf16.gmra.mxu0 %v3811
  %v5776 = vpop.f32.mrf.mxu0
  %v5777 = vadd.f32 0.0, %v5776
  %v5778 = vpop.f32.mrf.mxu0
  %v5779 = vpop.f32.mrf.mxu0
  %v5780 = vadd.f32 0.0, %v5779
  %v5781 = vpop.f32.mrf.mxu0
  %5782 = vmatprep.mubr.bf16.mxu0 %v3940
  %5783 = vmatmul.mubr.bf16.gmra.mxu0 %v3812
  %v5784 = vpop.f32.mrf.mxu0
  %v5785 = vadd.f32 0.0, %v5784
  %v5786 = vpop.f32.mrf.mxu0
  %v5787 = vpop.f32.mrf.mxu0
  %v5788 = vadd.f32 0.0, %v5787
  %v5789 = vpop.f32.mrf.mxu0
  %5790 = vmatprep.mubr.bf16.mxu0 %v3941
  %5791 = vmatmul.mubr.bf16.gmra.mxu0 %v3813
  %v5792 = vpop.f32.mrf.mxu0
  %v5793 = vadd.f32 0.0, %v5792
  %v5794 = vpop.f32.mrf.mxu0
  %v5795 = vpop.f32.mrf.mxu0
  %v5796 = vadd.f32 0.0, %v5795
  %v5797 = vpop.f32.mrf.mxu0
  %5798 = vdwg.mxu0
  %5799 = vmatprep.subr.bf16.mxu0 0
  %5800 = vmatpush1.bf16.msra.mxu0 %v5389
  %5801 = vmatprep.subr.bf16.mxu0 0
  %5802 = vmatpush1.bf16.msra.mxu0 %v5388
  %5803 = vmatprep.subr.bf16.mxu0 0
  %5804 = vmatpush1.bf16.msra.mxu0 %v5387
  %5805 = vmatprep.subr.bf16.mxu0 0
  %5806 = vmatpush1.bf16.msra.mxu0 %v5386
  %5807 = vmatprep.subr.bf16.mxu0 0
  %5808 = vmatpush1.bf16.msra.mxu0 %v5385
  %5809 = vmatprep.subr.bf16.mxu0 0
  %5810 = vmatpush1.bf16.msra.mxu0 %v5384
  %5811 = vmatprep.subr.bf16.mxu0 0
  %5812 = vmatpush1.bf16.msra.mxu0 %v5383
  %5813 = vmatprep.subr.bf16.mxu0 0
  %5814 = vmatpush1.bf16.msra.mxu0 %v5382
  %5815 = vmatprep.subr.bf16.mxu0 0
  %5816 = vmatpush2.bf16.msra.mxu0 %v5397
  %5817 = vmatprep.subr.bf16.mxu0 0
  %5818 = vmatpush2.bf16.msra.mxu0 %v5396
  %5819 = vmatprep.subr.bf16.mxu0 0
  %5820 = vmatpush2.bf16.msra.mxu0 %v5395
  %5821 = vmatprep.subr.bf16.mxu0 0
  %5822 = vmatpush2.bf16.msra.mxu0 %v5394
  %5823 = vmatprep.subr.bf16.mxu0 0
  %5824 = vmatpush2.bf16.msra.mxu0 %v5393
  %5825 = vmatprep.subr.bf16.mxu0 0
  %5826 = vmatpush2.bf16.msra.mxu0 %v5392
  %5827 = vmatprep.subr.bf16.mxu0 0
  %5828 = vmatpush2.bf16.msra.mxu0 %v5391
  %5829 = vmatprep.subr.bf16.mxu0 0
  %5830 = vmatpush2.bf16.msra.mxu0 %v5390
  %5831 = vmatprep.mubr.bf16.mxu0 %v4198
  %5832 = vmatmul.mubr.bf16.gmra.mxu0 %v4038
  %v5833 = vpop.f32.mrf.mxu0
  %v5834 = vadd.f32 %v5545, %v5833
  %v5835 = vpop.f32.mrf.mxu0
  %v5836 = vpop.f32.mrf.mxu0
  %v5837 = vadd.f32 %v5548, %v5836
  %v5838 = vpop.f32.mrf.mxu0
  %5839 = vmatprep.mubr.bf16.mxu0 %v4199
  %5840 = vmatmul.mubr.bf16.gmra.mxu0 %v4039
  %v5841 = vpop.f32.mrf.mxu0
  %v5842 = vadd.f32 %v5553, %v5841
  %v5843 = vpop.f32.mrf.mxu0
  %v5844 = vpop.f32.mrf.mxu0
  %v5845 = vadd.f32 %v5556, %v5844
  %v5846 = vpop.f32.mrf.mxu0
  %5847 = vmatprep.mubr.bf16.mxu0 %v4200
  %5848 = vmatmul.mubr.bf16.gmra.mxu0 %v4040
  %v5849 = vpop.f32.mrf.mxu0
  %v5850 = vadd.f32 %v5561, %v5849
  %v5851 = vpop.f32.mrf.mxu0
  %v5852 = vpop.f32.mrf.mxu0
  %v5853 = vadd.f32 %v5564, %v5852
  %v5854 = vpop.f32.mrf.mxu0
  %5855 = vmatprep.mubr.bf16.mxu0 %v4201
  %5856 = vmatmul.mubr.bf16.gmra.mxu0 %v4041
  %v5857 = vpop.f32.mrf.mxu0
  %v5858 = vadd.f32 %v5569, %v5857
  %v5859 = vpop.f32.mrf.mxu0
  %v5860 = vpop.f32.mrf.mxu0
  %v5861 = vadd.f32 %v5572, %v5860
  %v5862 = vpop.f32.mrf.mxu0
  %5863 = vmatprep.mubr.bf16.mxu0 %v4202
  %5864 = vmatmul.mubr.bf16.gmra.mxu0 %v4042
  %v5865 = vpop.f32.mrf.mxu0
  %v5866 = vadd.f32 %v5577, %v5865
  %v5867 = vpop.f32.mrf.mxu0
  %v5868 = vpop.f32.mrf.mxu0
  %v5869 = vadd.f32 %v5580, %v5868
  %v5870 = vpop.f32.mrf.mxu0
  %5871 = vmatprep.mubr.bf16.mxu0 %v4203
  %5872 = vmatmul.mubr.bf16.gmra.mxu0 %v4043
  %v5873 = vpop.f32.mrf.mxu0
  %v5874 = vadd.f32 %v5585, %v5873
  %v5875 = vpop.f32.mrf.mxu0
  %v5876 = vpop.f32.mrf.mxu0
  %v5877 = vadd.f32 %v5588, %v5876
  %v5878 = vpop.f32.mrf.mxu0
  %5879 = vmatprep.mubr.bf16.mxu0 %v4204
  %5880 = vmatmul.mubr.bf16.gmra.mxu0 %v4044
  %v5881 = vpop.f32.mrf.mxu0
  %v5882 = vadd.f32 %v5593, %v5881
  %v5883 = vpop.f32.mrf.mxu0
  %v5884 = vpop.f32.mrf.mxu0
  %v5885 = vadd.f32 %v5596, %v5884
  %v5886 = vpop.f32.mrf.mxu0
  %5887 = vmatprep.mubr.bf16.mxu0 %v4205
  %5888 = vmatmul.mubr.bf16.gmra.mxu0 %v4045
  %v5889 = vpop.f32.mrf.mxu0
  %v5890 = vadd.f32 %v5601, %v5889
  %v5891 = vpop.f32.mrf.mxu0
  %v5892 = vpop.f32.mrf.mxu0
  %v5893 = vadd.f32 %v5604, %v5892
  %v5894 = vpop.f32.mrf.mxu0
  %5895 = vmatprep.mubr.bf16.mxu0 %v4206
  %5896 = vmatmul.mubr.bf16.gmra.mxu0 %v4046
  %v5897 = vpop.f32.mrf.mxu0
  %v5898 = vadd.f32 %v5609, %v5897
  %v5899 = vpop.f32.mrf.mxu0
  %v5900 = vpop.f32.mrf.mxu0
  %v5901 = vadd.f32 %v5612, %v5900
  %v5902 = vpop.f32.mrf.mxu0
  %5903 = vmatprep.mubr.bf16.mxu0 %v4207
  %5904 = vmatmul.mubr.bf16.gmra.mxu0 %v4047
  %v5905 = vpop.f32.mrf.mxu0
  %v5906 = vadd.f32 %v5617, %v5905
  %v5907 = vpop.f32.mrf.mxu0
  %v5908 = vpop.f32.mrf.mxu0
  %v5909 = vadd.f32 %v5620, %v5908
  %v5910 = vpop.f32.mrf.mxu0
  %5911 = vmatprep.mubr.bf16.mxu0 %v4208
  %5912 = vmatmul.mubr.bf16.gmra.mxu0 %v4048
  %v5913 = vpop.f32.mrf.mxu0
  %v5914 = vadd.f32 %v5625, %v5913
  %v5915 = vpop.f32.mrf.mxu0
  %v5916 = vpop.f32.mrf.mxu0
  %v5917 = vadd.f32 %v5628, %v5916
  %v5918 = vpop.f32.mrf.mxu0
  %5919 = vmatprep.mubr.bf16.mxu0 %v4209
  %5920 = vmatmul.mubr.bf16.gmra.mxu0 %v4049
  %v5921 = vpop.f32.mrf.mxu0
  %v5922 = vadd.f32 %v5633, %v5921
  %v5923 = vpop.f32.mrf.mxu0
  %v5924 = vpop.f32.mrf.mxu0
  %v5925 = vadd.f32 %v5636, %v5924
  %v5926 = vpop.f32.mrf.mxu0
  %5927 = vmatprep.mubr.bf16.mxu0 %v4210
  %5928 = vmatmul.mubr.bf16.gmra.mxu0 %v4050
  %v5929 = vpop.f32.mrf.mxu0
  %v5930 = vadd.f32 %v5641, %v5929
  %v5931 = vpop.f32.mrf.mxu0
  %v5932 = vpop.f32.mrf.mxu0
  %v5933 = vadd.f32 %v5644, %v5932
  %v5934 = vpop.f32.mrf.mxu0
  %5935 = vmatprep.mubr.bf16.mxu0 %v4211
  %5936 = vmatmul.mubr.bf16.gmra.mxu0 %v4051
  %v5937 = vpop.f32.mrf.mxu0
  %v5938 = vadd.f32 %v5649, %v5937
  %v5939 = vpop.f32.mrf.mxu0
  %v5940 = vpop.f32.mrf.mxu0
  %v5941 = vadd.f32 %v5652, %v5940
  %v5942 = vpop.f32.mrf.mxu0
  %5943 = vmatprep.mubr.bf16.mxu0 %v4212
  %5944 = vmatmul.mubr.bf16.gmra.mxu0 %v4052
  %v5945 = vpop.f32.mrf.mxu0
  %v5946 = vadd.f32 %v5657, %v5945
  %v5947 = vpop.f32.mrf.mxu0
  %v5948 = vpop.f32.mrf.mxu0
  %v5949 = vadd.f32 %v5660, %v5948
  %v5950 = vpop.f32.mrf.mxu0
  %5951 = vmatprep.mubr.bf16.mxu0 %v4213
  %5952 = vmatmul.mubr.bf16.gmra.mxu0 %v4053
  %v5953 = vpop.f32.mrf.mxu0
  %v5954 = vadd.f32 %v5665, %v5953
  %v5955 = vpop.f32.mrf.mxu0
  %v5956 = vpop.f32.mrf.mxu0
  %v5957 = vadd.f32 %v5668, %v5956
  %v5958 = vpop.f32.mrf.mxu0
  %5959 = vmatprep.mubr.bf16.mxu0 %v4214
  %5960 = vmatmul.mubr.bf16.gmra.mxu0 %v4054
  %v5961 = vpop.f32.mrf.mxu0
  %v5962 = vadd.f32 %v5673, %v5961
  %v5963 = vpop.f32.mrf.mxu0
  %v5964 = vpop.f32.mrf.mxu0
  %v5965 = vadd.f32 %v5676, %v5964
  %v5966 = vpop.f32.mrf.mxu0
  %5967 = vmatprep.mubr.bf16.mxu0 %v4215
  %5968 = vmatmul.mubr.bf16.gmra.mxu0 %v4055
  %v5969 = vpop.f32.mrf.mxu0
  %v5970 = vadd.f32 %v5681, %v5969
  %v5971 = vpop.f32.mrf.mxu0
  %v5972 = vpop.f32.mrf.mxu0
  %v5973 = vadd.f32 %v5684, %v5972
  %v5974 = vpop.f32.mrf.mxu0
  %5975 = vmatprep.mubr.bf16.mxu0 %v4216
  %5976 = vmatmul.mubr.bf16.gmra.mxu0 %v4056
  %v5977 = vpop.f32.mrf.mxu0
  %v5978 = vadd.f32 %v5689, %v5977
  %v5979 = vpop.f32.mrf.mxu0
  %v5980 = vpop.f32.mrf.mxu0
  %v5981 = vadd.f32 %v5692, %v5980
  %v5982 = vpop.f32.mrf.mxu0
  %5983 = vmatprep.mubr.bf16.mxu0 %v4217
  %5984 = vmatmul.mubr.bf16.gmra.mxu0 %v4057
  %v5985 = vpop.f32.mrf.mxu0
  %v5986 = vadd.f32 %v5697, %v5985
  %v5987 = vpop.f32.mrf.mxu0
  %v5988 = vpop.f32.mrf.mxu0
  %v5989 = vadd.f32 %v5700, %v5988
  %v5990 = vpop.f32.mrf.mxu0
  %5991 = vmatprep.mubr.bf16.mxu0 %v4218
  %5992 = vmatmul.mubr.bf16.gmra.mxu0 %v4058
  %v5993 = vpop.f32.mrf.mxu0
  %v5994 = vadd.f32 %v5705, %v5993
  %v5995 = vpop.f32.mrf.mxu0
  %v5996 = vpop.f32.mrf.mxu0
  %v5997 = vadd.f32 %v5708, %v5996
  %v5998 = vpop.f32.mrf.mxu0
  %5999 = vmatprep.mubr.bf16.mxu0 %v4219
  %6000 = vmatmul.mubr.bf16.gmra.mxu0 %v4059
  %v6001 = vpop.f32.mrf.mxu0
  %v6002 = vadd.f32 %v5713, %v6001
  %v6003 = vpop.f32.mrf.mxu0
  %v6004 = vpop.f32.mrf.mxu0
  %v6005 = vadd.f32 %v5716, %v6004
  %v6006 = vpop.f32.mrf.mxu0
  %6007 = vmatprep.mubr.bf16.mxu0 %v4220
  %6008 = vmatmul.mubr.bf16.gmra.mxu0 %v4060
  %v6009 = vpop.f32.mrf.mxu0
  %v6010 = vadd.f32 %v5721, %v6009
  %v6011 = vpop.f32.mrf.mxu0
  %v6012 = vpop.f32.mrf.mxu0
  %v6013 = vadd.f32 %v5724, %v6012
  %v6014 = vpop.f32.mrf.mxu0
  %6015 = vmatprep.mubr.bf16.mxu0 %v4221
  %6016 = vmatmul.mubr.bf16.gmra.mxu0 %v4061
  %v6017 = vpop.f32.mrf.mxu0
  %v6018 = vadd.f32 %v5729, %v6017
  %v6019 = vpop.f32.mrf.mxu0
  %v6020 = vpop.f32.mrf.mxu0
  %v6021 = vadd.f32 %v5732, %v6020
  %v6022 = vpop.f32.mrf.mxu0
  %6023 = vmatprep.mubr.bf16.mxu0 %v4222
  %6024 = vmatmul.mubr.bf16.gmra.mxu0 %v4062
  %v6025 = vpop.f32.mrf.mxu0
  %v6026 = vadd.f32 %v5737, %v6025
  %v6027 = vpop.f32.mrf.mxu0
  %v6028 = vpop.f32.mrf.mxu0
  %v6029 = vadd.f32 %v5740, %v6028
  %v6030 = vpop.f32.mrf.mxu0
  %6031 = vmatprep.mubr.bf16.mxu0 %v4223
  %6032 = vmatmul.mubr.bf16.gmra.mxu0 %v4063
  %v6033 = vpop.f32.mrf.mxu0
  %v6034 = vadd.f32 %v5745, %v6033
  %v6035 = vpop.f32.mrf.mxu0
  %v6036 = vpop.f32.mrf.mxu0
  %v6037 = vadd.f32 %v5748, %v6036
  %v6038 = vpop.f32.mrf.mxu0
  %6039 = vmatprep.mubr.bf16.mxu0 %v4224
  %6040 = vmatmul.mubr.bf16.gmra.mxu0 %v4064
  %v6041 = vpop.f32.mrf.mxu0
  %v6042 = vadd.f32 %v5753, %v6041
  %v6043 = vpop.f32.mrf.mxu0
  %v6044 = vpop.f32.mrf.mxu0
  %v6045 = vadd.f32 %v5756, %v6044
  %v6046 = vpop.f32.mrf.mxu0
  %6047 = vmatprep.mubr.bf16.mxu0 %v4225
  %6048 = vmatmul.mubr.bf16.gmra.mxu0 %v4065
  %v6049 = vpop.f32.mrf.mxu0
  %v6050 = vadd.f32 %v5761, %v6049
  %v6051 = vpop.f32.mrf.mxu0
  %v6052 = vpop.f32.mrf.mxu0
  %v6053 = vadd.f32 %v5764, %v6052
  %v6054 = vpop.f32.mrf.mxu0
  %6055 = vmatprep.mubr.bf16.mxu0 %v4226
  %6056 = vmatmul.mubr.bf16.gmra.mxu0 %v4066
  %v6057 = vpop.f32.mrf.mxu0
  %v6058 = vadd.f32 %v5769, %v6057
  %v6059 = vpop.f32.mrf.mxu0
  %v6060 = vpop.f32.mrf.mxu0
  %v6061 = vadd.f32 %v5772, %v6060
  %v6062 = vpop.f32.mrf.mxu0
  %6063 = vmatprep.mubr.bf16.mxu0 %v4227
  %6064 = vmatmul.mubr.bf16.gmra.mxu0 %v4067
  %v6065 = vpop.f32.mrf.mxu0
  %v6066 = vadd.f32 %v5777, %v6065
  %v6067 = vpop.f32.mrf.mxu0
  %v6068 = vpop.f32.mrf.mxu0
  %v6069 = vadd.f32 %v5780, %v6068
  %v6070 = vpop.f32.mrf.mxu0
  %6071 = vmatprep.mubr.bf16.mxu0 %v4228
  %6072 = vmatmul.mubr.bf16.gmra.mxu0 %v4068
  %v6073 = vpop.f32.mrf.mxu0
  %v6074 = vadd.f32 %v5785, %v6073
  %v6075 = vpop.f32.mrf.mxu0
  %v6076 = vpop.f32.mrf.mxu0
  %v6077 = vadd.f32 %v5788, %v6076
  %v6078 = vpop.f32.mrf.mxu0
  %6079 = vmatprep.mubr.bf16.mxu0 %v4229
  %6080 = vmatmul.mubr.bf16.gmra.mxu0 %v4069
  %v6081 = vpop.f32.mrf.mxu0
  %v6082 = vadd.f32 %v5793, %v6081
  %v6083 = vpop.f32.mrf.mxu0
  %v6084 = vpop.f32.mrf.mxu0
  %v6085 = vadd.f32 %v5796, %v6084
  %v6086 = vpop.f32.mrf.mxu0
  %6087 = vdwg.mxu0
  %6088 = vmatprep.subr.bf16.mxu0 0
  %6089 = vmatpush1.bf16.msra.mxu0 %v5405
  %6090 = vmatprep.subr.bf16.mxu0 0
  %6091 = vmatpush1.bf16.msra.mxu0 %v5404
  %6092 = vmatprep.subr.bf16.mxu0 0
  %6093 = vmatpush1.bf16.msra.mxu0 %v5403
  %6094 = vmatprep.subr.bf16.mxu0 0
  %6095 = vmatpush1.bf16.msra.mxu0 %v5402
  %6096 = vmatprep.subr.bf16.mxu0 0
  %6097 = vmatpush1.bf16.msra.mxu0 %v5401
  %6098 = vmatprep.subr.bf16.mxu0 0
  %6099 = vmatpush1.bf16.msra.mxu0 %v5400
  %6100 = vmatprep.subr.bf16.mxu0 0
  %6101 = vmatpush1.bf16.msra.mxu0 %v5399
  %6102 = vmatprep.subr.bf16.mxu0 0
  %6103 = vmatpush1.bf16.msra.mxu0 %v5398
  %6104 = vmatprep.subr.bf16.mxu0 0
  %6105 = vmatpush2.bf16.msra.mxu0 %v5413
  %6106 = vmatprep.subr.bf16.mxu0 0
  %6107 = vmatpush2.bf16.msra.mxu0 %v5412
  %6108 = vmatprep.subr.bf16.mxu0 0
  %6109 = vmatpush2.bf16.msra.mxu0 %v5411
  %6110 = vmatprep.subr.bf16.mxu0 0
  %6111 = vmatpush2.bf16.msra.mxu0 %v5410
  %6112 = vmatprep.subr.bf16.mxu0 0
  %6113 = vmatpush2.bf16.msra.mxu0 %v5409
  %6114 = vmatprep.subr.bf16.mxu0 0
  %6115 = vmatpush2.bf16.msra.mxu0 %v5408
  %6116 = vmatprep.subr.bf16.mxu0 0
  %6117 = vmatpush2.bf16.msra.mxu0 %v5407
  %6118 = vmatprep.subr.bf16.mxu0 0
  %6119 = vmatpush2.bf16.msra.mxu0 %v5406
  %6120 = vmatprep.mubr.bf16.mxu0 %v4454
  %6121 = vmatmul.mubr.bf16.gmra.mxu0 %v4326
  %v6122 = vpop.f32.mrf.mxu0
  %v6123 = vadd.f32 %v5834, %v6122
  %v6124 = vpop.f32.mrf.mxu0
  %v6125 = vpop.f32.mrf.mxu0
  %v6126 = vadd.f32 %v5837, %v6125
  %v6127 = vpop.f32.mrf.mxu0
  %6128 = vmatprep.mubr.bf16.mxu0 %v4455
  %6129 = vmatmul.mubr.bf16.gmra.mxu0 %v4327
  %v6130 = vpop.f32.mrf.mxu0
  %v6131 = vadd.f32 %v5842, %v6130
  %v6132 = vpop.f32.mrf.mxu0
  %v6133 = vpop.f32.mrf.mxu0
  %v6134 = vadd.f32 %v5845, %v6133
  %v6135 = vpop.f32.mrf.mxu0
  %6136 = vmatprep.mubr.bf16.mxu0 %v4456
  %6137 = vmatmul.mubr.bf16.gmra.mxu0 %v4328
  %v6138 = vpop.f32.mrf.mxu0
  %v6139 = vadd.f32 %v5850, %v6138
  %v6140 = vpop.f32.mrf.mxu0
  %v6141 = vpop.f32.mrf.mxu0
  %v6142 = vadd.f32 %v5853, %v6141
  %v6143 = vpop.f32.mrf.mxu0
  %6144 = vmatprep.mubr.bf16.mxu0 %v4457
  %6145 = vmatmul.mubr.bf16.gmra.mxu0 %v4329
  %v6146 = vpop.f32.mrf.mxu0
  %v6147 = vadd.f32 %v5858, %v6146
  %v6148 = vpop.f32.mrf.mxu0
  %v6149 = vpop.f32.mrf.mxu0
  %v6150 = vadd.f32 %v5861, %v6149
  %v6151 = vpop.f32.mrf.mxu0
  %6152 = vmatprep.mubr.bf16.mxu0 %v4458
  %6153 = vmatmul.mubr.bf16.gmra.mxu0 %v4330
  %v6154 = vpop.f32.mrf.mxu0
  %v6155 = vadd.f32 %v5866, %v6154
  %v6156 = vpop.f32.mrf.mxu0
  %v6157 = vpop.f32.mrf.mxu0
  %v6158 = vadd.f32 %v5869, %v6157
  %v6159 = vpop.f32.mrf.mxu0
  %6160 = vmatprep.mubr.bf16.mxu0 %v4459
  %6161 = vmatmul.mubr.bf16.gmra.mxu0 %v4331
  %v6162 = vpop.f32.mrf.mxu0
  %v6163 = vadd.f32 %v5874, %v6162
  %v6164 = vpop.f32.mrf.mxu0
  %v6165 = vpop.f32.mrf.mxu0
  %v6166 = vadd.f32 %v5877, %v6165
  %v6167 = vpop.f32.mrf.mxu0
  %6168 = vmatprep.mubr.bf16.mxu0 %v4460
  %6169 = vmatmul.mubr.bf16.gmra.mxu0 %v4332
  %v6170 = vpop.f32.mrf.mxu0
  %v6171 = vadd.f32 %v5882, %v6170
  %v6172 = vpop.f32.mrf.mxu0
  %v6173 = vpop.f32.mrf.mxu0
  %v6174 = vadd.f32 %v5885, %v6173
  %v6175 = vpop.f32.mrf.mxu0
  %6176 = vmatprep.mubr.bf16.mxu0 %v4461
  %6177 = vmatmul.mubr.bf16.gmra.mxu0 %v4333
  %v6178 = vpop.f32.mrf.mxu0
  %v6179 = vadd.f32 %v5890, %v6178
  %v6180 = vpop.f32.mrf.mxu0
  %v6181 = vpop.f32.mrf.mxu0
  %v6182 = vadd.f32 %v5893, %v6181
  %v6183 = vpop.f32.mrf.mxu0
  %6184 = vmatprep.mubr.bf16.mxu0 %v4462
  %6185 = vmatmul.mubr.bf16.gmra.mxu0 %v4334
  %v6186 = vpop.f32.mrf.mxu0
  %v6187 = vadd.f32 %v5898, %v6186
  %v6188 = vpop.f32.mrf.mxu0
  %v6189 = vpop.f32.mrf.mxu0
  %v6190 = vadd.f32 %v5901, %v6189
  %v6191 = vpop.f32.mrf.mxu0
  %6192 = vmatprep.mubr.bf16.mxu0 %v4463
  %6193 = vmatmul.mubr.bf16.gmra.mxu0 %v4335
  %v6194 = vpop.f32.mrf.mxu0
  %v6195 = vadd.f32 %v5906, %v6194
  %v6196 = vpop.f32.mrf.mxu0
  %v6197 = vpop.f32.mrf.mxu0
  %v6198 = vadd.f32 %v5909, %v6197
  %v6199 = vpop.f32.mrf.mxu0
  %6200 = vmatprep.mubr.bf16.mxu0 %v4464
  %6201 = vmatmul.mubr.bf16.gmra.mxu0 %v4336
  %v6202 = vpop.f32.mrf.mxu0
  %v6203 = vadd.f32 %v5914, %v6202
  %v6204 = vpop.f32.mrf.mxu0
  %v6205 = vpop.f32.mrf.mxu0
  %v6206 = vadd.f32 %v5917, %v6205
  %v6207 = vpop.f32.mrf.mxu0
  %6208 = vmatprep.mubr.bf16.mxu0 %v4465
  %6209 = vmatmul.mubr.bf16.gmra.mxu0 %v4337
  %v6210 = vpop.f32.mrf.mxu0
  %v6211 = vadd.f32 %v5922, %v6210
  %v6212 = vpop.f32.mrf.mxu0
  %v6213 = vpop.f32.mrf.mxu0
  %v6214 = vadd.f32 %v5925, %v6213
  %v6215 = vpop.f32.mrf.mxu0
  %6216 = vmatprep.mubr.bf16.mxu0 %v4466
  %6217 = vmatmul.mubr.bf16.gmra.mxu0 %v4338
  %v6218 = vpop.f32.mrf.mxu0
  %v6219 = vadd.f32 %v5930, %v6218
  %v6220 = vpop.f32.mrf.mxu0
  %v6221 = vpop.f32.mrf.mxu0
  %v6222 = vadd.f32 %v5933, %v6221
  %v6223 = vpop.f32.mrf.mxu0
  %6224 = vmatprep.mubr.bf16.mxu0 %v4467
  %6225 = vmatmul.mubr.bf16.gmra.mxu0 %v4339
  %v6226 = vpop.f32.mrf.mxu0
  %v6227 = vadd.f32 %v5938, %v6226
  %v6228 = vpop.f32.mrf.mxu0
  %v6229 = vpop.f32.mrf.mxu0
  %v6230 = vadd.f32 %v5941, %v6229
  %v6231 = vpop.f32.mrf.mxu0
  %6232 = vmatprep.mubr.bf16.mxu0 %v4468
  %6233 = vmatmul.mubr.bf16.gmra.mxu0 %v4340
  %v6234 = vpop.f32.mrf.mxu0
  %v6235 = vadd.f32 %v5946, %v6234
  %v6236 = vpop.f32.mrf.mxu0
  %v6237 = vpop.f32.mrf.mxu0
  %v6238 = vadd.f32 %v5949, %v6237
  %v6239 = vpop.f32.mrf.mxu0
  %6240 = vmatprep.mubr.bf16.mxu0 %v4469
  %6241 = vmatmul.mubr.bf16.gmra.mxu0 %v4341
  %v6242 = vpop.f32.mrf.mxu0
  %v6243 = vadd.f32 %v5954, %v6242
  %v6244 = vpop.f32.mrf.mxu0
  %v6245 = vpop.f32.mrf.mxu0
  %v6246 = vadd.f32 %v5957, %v6245
  %v6247 = vpop.f32.mrf.mxu0
  %6248 = vmatprep.mubr.bf16.mxu0 %v4470
  %6249 = vmatmul.mubr.bf16.gmra.mxu0 %v4342
  %v6250 = vpop.f32.mrf.mxu0
  %v6251 = vadd.f32 %v5962, %v6250
  %v6252 = vpop.f32.mrf.mxu0
  %v6253 = vpop.f32.mrf.mxu0
  %v6254 = vadd.f32 %v5965, %v6253
  %v6255 = vpop.f32.mrf.mxu0
  %6256 = vmatprep.mubr.bf16.mxu0 %v4471
  %6257 = vmatmul.mubr.bf16.gmra.mxu0 %v4343
  %v6258 = vpop.f32.mrf.mxu0
  %v6259 = vadd.f32 %v5970, %v6258
  %v6260 = vpop.f32.mrf.mxu0
  %v6261 = vpop.f32.mrf.mxu0
  %v6262 = vadd.f32 %v5973, %v6261
  %v6263 = vpop.f32.mrf.mxu0
  %6264 = vmatprep.mubr.bf16.mxu0 %v4472
  %6265 = vmatmul.mubr.bf16.gmra.mxu0 %v4344
  %v6266 = vpop.f32.mrf.mxu0
  %v6267 = vadd.f32 %v5978, %v6266
  %v6268 = vpop.f32.mrf.mxu0
  %v6269 = vpop.f32.mrf.mxu0
  %v6270 = vadd.f32 %v5981, %v6269
  %v6271 = vpop.f32.mrf.mxu0
  %6272 = vmatprep.mubr.bf16.mxu0 %v4473
  %6273 = vmatmul.mubr.bf16.gmra.mxu0 %v4345
  %v6274 = vpop.f32.mrf.mxu0
  %v6275 = vadd.f32 %v5986, %v6274
  %v6276 = vpop.f32.mrf.mxu0
  %v6277 = vpop.f32.mrf.mxu0
  %v6278 = vadd.f32 %v5989, %v6277
  %v6279 = vpop.f32.mrf.mxu0
  %6280 = vmatprep.mubr.bf16.mxu0 %v4474
  %6281 = vmatmul.mubr.bf16.gmra.mxu0 %v4346
  %v6282 = vpop.f32.mrf.mxu0
  %v6283 = vadd.f32 %v5994, %v6282
  %v6284 = vpop.f32.mrf.mxu0
  %v6285 = vpop.f32.mrf.mxu0
  %v6286 = vadd.f32 %v5997, %v6285
  %v6287 = vpop.f32.mrf.mxu0
  %6288 = vmatprep.mubr.bf16.mxu0 %v4475
  %6289 = vmatmul.mubr.bf16.gmra.mxu0 %v4347
  %v6290 = vpop.f32.mrf.mxu0
  %v6291 = vadd.f32 %v6002, %v6290
  %v6292 = vpop.f32.mrf.mxu0
  %v6293 = vpop.f32.mrf.mxu0
  %v6294 = vadd.f32 %v6005, %v6293
  %v6295 = vpop.f32.mrf.mxu0
  %6296 = vmatprep.mubr.bf16.mxu0 %v4476
  %6297 = vmatmul.mubr.bf16.gmra.mxu0 %v4348
  %v6298 = vpop.f32.mrf.mxu0
  %v6299 = vadd.f32 %v6010, %v6298
  %v6300 = vpop.f32.mrf.mxu0
  %v6301 = vpop.f32.mrf.mxu0
  %v6302 = vadd.f32 %v6013, %v6301
  %v6303 = vpop.f32.mrf.mxu0
  %6304 = vmatprep.mubr.bf16.mxu0 %v4477
  %6305 = vmatmul.mubr.bf16.gmra.mxu0 %v4349
  %v6306 = vpop.f32.mrf.mxu0
  %v6307 = vadd.f32 %v6018, %v6306
  %v6308 = vpop.f32.mrf.mxu0
  %v6309 = vpop.f32.mrf.mxu0
  %v6310 = vadd.f32 %v6021, %v6309
  %v6311 = vpop.f32.mrf.mxu0
  %6312 = vmatprep.mubr.bf16.mxu0 %v4478
  %6313 = vmatmul.mubr.bf16.gmra.mxu0 %v4350
  %v6314 = vpop.f32.mrf.mxu0
  %v6315 = vadd.f32 %v6026, %v6314
  %v6316 = vpop.f32.mrf.mxu0
  %v6317 = vpop.f32.mrf.mxu0
  %v6318 = vadd.f32 %v6029, %v6317
  %v6319 = vpop.f32.mrf.mxu0
  %6320 = vmatprep.mubr.bf16.mxu0 %v4479
  %6321 = vmatmul.mubr.bf16.gmra.mxu0 %v4351
  %v6322 = vpop.f32.mrf.mxu0
  %v6323 = vadd.f32 %v6034, %v6322
  %v6324 = vpop.f32.mrf.mxu0
  %v6325 = vpop.f32.mrf.mxu0
  %v6326 = vadd.f32 %v6037, %v6325
  %v6327 = vpop.f32.mrf.mxu0
  %6328 = vmatprep.mubr.bf16.mxu0 %v4480
  %6329 = vmatmul.mubr.bf16.gmra.mxu0 %v4352
  %v6330 = vpop.f32.mrf.mxu0
  %v6331 = vadd.f32 %v6042, %v6330
  %v6332 = vpop.f32.mrf.mxu0
  %v6333 = vpop.f32.mrf.mxu0
  %v6334 = vadd.f32 %v6045, %v6333
  %v6335 = vpop.f32.mrf.mxu0
  %6336 = vmatprep.mubr.bf16.mxu0 %v4481
  %6337 = vmatmul.mubr.bf16.gmra.mxu0 %v4353
  %v6338 = vpop.f32.mrf.mxu0
  %v6339 = vadd.f32 %v6050, %v6338
  %v6340 = vpop.f32.mrf.mxu0
  %v6341 = vpop.f32.mrf.mxu0
  %v6342 = vadd.f32 %v6053, %v6341
  %v6343 = vpop.f32.mrf.mxu0
  %6344 = vmatprep.mubr.bf16.mxu0 %v4482
  %6345 = vmatmul.mubr.bf16.gmra.mxu0 %v4354
  %v6346 = vpop.f32.mrf.mxu0
  %v6347 = vadd.f32 %v6058, %v6346
  %v6348 = vpop.f32.mrf.mxu0
  %v6349 = vpop.f32.mrf.mxu0
  %v6350 = vadd.f32 %v6061, %v6349
  %v6351 = vpop.f32.mrf.mxu0
  %6352 = vmatprep.mubr.bf16.mxu0 %v4483
  %6353 = vmatmul.mubr.bf16.gmra.mxu0 %v4355
  %v6354 = vpop.f32.mrf.mxu0
  %v6355 = vadd.f32 %v6066, %v6354
  %v6356 = vpop.f32.mrf.mxu0
  %v6357 = vpop.f32.mrf.mxu0
  %v6358 = vadd.f32 %v6069, %v6357
  %v6359 = vpop.f32.mrf.mxu0
  %6360 = vmatprep.mubr.bf16.mxu0 %v4484
  %6361 = vmatmul.mubr.bf16.gmra.mxu0 %v4356
  %v6362 = vpop.f32.mrf.mxu0
  %v6363 = vadd.f32 %v6074, %v6362
  %v6364 = vpop.f32.mrf.mxu0
  %v6365 = vpop.f32.mrf.mxu0
  %v6366 = vadd.f32 %v6077, %v6365
  %v6367 = vpop.f32.mrf.mxu0
  %6368 = vmatprep.mubr.bf16.mxu0 %v4485
  %6369 = vmatmul.mubr.bf16.gmra.mxu0 %v4357
  %v6370 = vpop.f32.mrf.mxu0
  %v6371 = vadd.f32 %v6082, %v6370
  %v6372 = vpop.f32.mrf.mxu0
  %v6373 = vpop.f32.mrf.mxu0
  %v6374 = vadd.f32 %v6085, %v6373
  %v6375 = vpop.f32.mrf.mxu0
  %6376 = vdwg.mxu0
  %6377 = vmatprep.subr.bf16.mxu0 0
  %6378 = vmatpush1.bf16.msra.mxu0 %v5421
  %6379 = vmatprep.subr.bf16.mxu0 0
  %6380 = vmatpush1.bf16.msra.mxu0 %v5420
  %6381 = vmatprep.subr.bf16.mxu0 0
  %6382 = vmatpush1.bf16.msra.mxu0 %v5419
  %6383 = vmatprep.subr.bf16.mxu0 0
  %6384 = vmatpush1.bf16.msra.mxu0 %v5418
  %6385 = vmatprep.subr.bf16.mxu0 0
  %6386 = vmatpush1.bf16.msra.mxu0 %v5417
  %6387 = vmatprep.subr.bf16.mxu0 0
  %6388 = vmatpush1.bf16.msra.mxu0 %v5416
  %6389 = vmatprep.subr.bf16.mxu0 0
  %6390 = vmatpush1.bf16.msra.mxu0 %v5415
  %6391 = vmatprep.subr.bf16.mxu0 0
  %6392 = vmatpush1.bf16.msra.mxu0 %v5414
  %6393 = vmatprep.subr.bf16.mxu0 0
  %6394 = vmatpush2.bf16.msra.mxu0 %v5429
  %6395 = vmatprep.subr.bf16.mxu0 0
  %6396 = vmatpush2.bf16.msra.mxu0 %v5428
  %6397 = vmatprep.subr.bf16.mxu0 0
  %6398 = vmatpush2.bf16.msra.mxu0 %v5427
  %6399 = vmatprep.subr.bf16.mxu0 0
  %6400 = vmatpush2.bf16.msra.mxu0 %v5426
  %6401 = vmatprep.subr.bf16.mxu0 0
  %6402 = vmatpush2.bf16.msra.mxu0 %v5425
  %6403 = vmatprep.subr.bf16.mxu0 0
  %6404 = vmatpush2.bf16.msra.mxu0 %v5424
  %6405 = vmatprep.subr.bf16.mxu0 0
  %6406 = vmatpush2.bf16.msra.mxu0 %v5423
  %6407 = vmatprep.subr.bf16.mxu0 0
  %6408 = vmatpush2.bf16.msra.mxu0 %v5422
  %6409 = vmatprep.mubr.bf16.mxu0 %v4742
  %6410 = vmatmul.mubr.bf16.gmra.mxu0 %v4614
  %v6411 = vpop.f32.mrf.mxu0
  %v6412 = vadd.f32 %v6123, %v6411
  %v6413 = vpop.f32.mrf.mxu0
  %v6414 = vpop.f32.mrf.mxu0
  %v6415 = vadd.f32 %v6126, %v6414
  %v6416 = vpop.f32.mrf.mxu0
  %6417 = vmatprep.mubr.bf16.mxu0 %v4743
  %6418 = vmatmul.mubr.bf16.gmra.mxu0 %v4615
  %v6419 = vpop.f32.mrf.mxu0
  %v6420 = vadd.f32 %v6131, %v6419
  %v6421 = vpop.f32.mrf.mxu0
  %v6422 = vpop.f32.mrf.mxu0
  %v6423 = vadd.f32 %v6134, %v6422
  %v6424 = vpop.f32.mrf.mxu0
  %6425 = vmatprep.mubr.bf16.mxu0 %v4744
  %6426 = vmatmul.mubr.bf16.gmra.mxu0 %v4616
  %v6427 = vpop.f32.mrf.mxu0
  %v6428 = vadd.f32 %v6139, %v6427
  %v6429 = vpop.f32.mrf.mxu0
  %v6430 = vpop.f32.mrf.mxu0
  %v6431 = vadd.f32 %v6142, %v6430
  %v6432 = vpop.f32.mrf.mxu0
  %6433 = vmatprep.mubr.bf16.mxu0 %v4745
  %6434 = vmatmul.mubr.bf16.gmra.mxu0 %v4617
  %v6435 = vpop.f32.mrf.mxu0
  %v6436 = vadd.f32 %v6147, %v6435
  %v6437 = vpop.f32.mrf.mxu0
  %v6438 = vpop.f32.mrf.mxu0
  %v6439 = vadd.f32 %v6150, %v6438
  %v6440 = vpop.f32.mrf.mxu0
  %6441 = vmatprep.mubr.bf16.mxu0 %v4746
  %6442 = vmatmul.mubr.bf16.gmra.mxu0 %v4618
  %v6443 = vpop.f32.mrf.mxu0
  %v6444 = vadd.f32 %v6155, %v6443
  %v6445 = vpop.f32.mrf.mxu0
  %v6446 = vpop.f32.mrf.mxu0
  %v6447 = vadd.f32 %v6158, %v6446
  %v6448 = vpop.f32.mrf.mxu0
  %6449 = vmatprep.mubr.bf16.mxu0 %v4747
  %6450 = vmatmul.mubr.bf16.gmra.mxu0 %v4619
  %v6451 = vpop.f32.mrf.mxu0
  %v6452 = vadd.f32 %v6163, %v6451
  %v6453 = vpop.f32.mrf.mxu0
  %v6454 = vpop.f32.mrf.mxu0
  %v6455 = vadd.f32 %v6166, %v6454
  %v6456 = vpop.f32.mrf.mxu0
  %6457 = vmatprep.mubr.bf16.mxu0 %v4748
  %6458 = vmatmul.mubr.bf16.gmra.mxu0 %v4620
  %v6459 = vpop.f32.mrf.mxu0
  %v6460 = vadd.f32 %v6171, %v6459
  %v6461 = vpop.f32.mrf.mxu0
  %v6462 = vpop.f32.mrf.mxu0
  %v6463 = vadd.f32 %v6174, %v6462
  %v6464 = vpop.f32.mrf.mxu0
  %6465 = vmatprep.mubr.bf16.mxu0 %v4749
  %6466 = vmatmul.mubr.bf16.gmra.mxu0 %v4621
  %v6467 = vpop.f32.mrf.mxu0
  %v6468 = vadd.f32 %v6179, %v6467
  %v6469 = vpop.f32.mrf.mxu0
  %v6470 = vpop.f32.mrf.mxu0
  %v6471 = vadd.f32 %v6182, %v6470
  %v6472 = vpop.f32.mrf.mxu0
  %6473 = vmatprep.mubr.bf16.mxu0 %v4750
  %6474 = vmatmul.mubr.bf16.gmra.mxu0 %v4622
  %v6475 = vpop.f32.mrf.mxu0
  %v6476 = vadd.f32 %v6187, %v6475
  %v6477 = vpop.f32.mrf.mxu0
  %v6478 = vpop.f32.mrf.mxu0
  %v6479 = vadd.f32 %v6190, %v6478
  %v6480 = vpop.f32.mrf.mxu0
  %6481 = vmatprep.mubr.bf16.mxu0 %v4751
  %6482 = vmatmul.mubr.bf16.gmra.mxu0 %v4623
  %v6483 = vpop.f32.mrf.mxu0
  %v6484 = vadd.f32 %v6195, %v6483
  %v6485 = vpop.f32.mrf.mxu0
  %v6486 = vpop.f32.mrf.mxu0
  %v6487 = vadd.f32 %v6198, %v6486
  %v6488 = vpop.f32.mrf.mxu0
  %6489 = vmatprep.mubr.bf16.mxu0 %v4752
  %6490 = vmatmul.mubr.bf16.gmra.mxu0 %v4624
  %v6491 = vpop.f32.mrf.mxu0
  %v6492 = vadd.f32 %v6203, %v6491
  %v6493 = vpop.f32.mrf.mxu0
  %v6494 = vpop.f32.mrf.mxu0
  %v6495 = vadd.f32 %v6206, %v6494
  %v6496 = vpop.f32.mrf.mxu0
  %6497 = vmatprep.mubr.bf16.mxu0 %v4753
  %6498 = vmatmul.mubr.bf16.gmra.mxu0 %v4625
  %v6499 = vpop.f32.mrf.mxu0
  %v6500 = vadd.f32 %v6211, %v6499
  %v6501 = vpop.f32.mrf.mxu0
  %v6502 = vpop.f32.mrf.mxu0
  %v6503 = vadd.f32 %v6214, %v6502
  %v6504 = vpop.f32.mrf.mxu0
  %6505 = vmatprep.mubr.bf16.mxu0 %v4754
  %6506 = vmatmul.mubr.bf16.gmra.mxu0 %v4626
  %v6507 = vpop.f32.mrf.mxu0
  %v6508 = vadd.f32 %v6219, %v6507
  %v6509 = vpop.f32.mrf.mxu0
  %v6510 = vpop.f32.mrf.mxu0
  %v6511 = vadd.f32 %v6222, %v6510
  %v6512 = vpop.f32.mrf.mxu0
  %6513 = vmatprep.mubr.bf16.mxu0 %v4755
  %6514 = vmatmul.mubr.bf16.gmra.mxu0 %v4627
  %v6515 = vpop.f32.mrf.mxu0
  %v6516 = vadd.f32 %v6227, %v6515
  %v6517 = vpop.f32.mrf.mxu0
  %v6518 = vpop.f32.mrf.mxu0
  %v6519 = vadd.f32 %v6230, %v6518
  %v6520 = vpop.f32.mrf.mxu0
  %6521 = vmatprep.mubr.bf16.mxu0 %v4756
  %6522 = vmatmul.mubr.bf16.gmra.mxu0 %v4628
  %v6523 = vpop.f32.mrf.mxu0
  %v6524 = vadd.f32 %v6235, %v6523
  %v6525 = vpop.f32.mrf.mxu0
  %v6526 = vpop.f32.mrf.mxu0
  %v6527 = vadd.f32 %v6238, %v6526
  %v6528 = vpop.f32.mrf.mxu0
  %6529 = vmatprep.mubr.bf16.mxu0 %v4757
  %6530 = vmatmul.mubr.bf16.gmra.mxu0 %v4629
  %v6531 = vpop.f32.mrf.mxu0
  %v6532 = vadd.f32 %v6243, %v6531
  %v6533 = vpop.f32.mrf.mxu0
  %v6534 = vpop.f32.mrf.mxu0
  %v6535 = vadd.f32 %v6246, %v6534
  %v6536 = vpop.f32.mrf.mxu0
  %6537 = vmatprep.mubr.bf16.mxu0 %v4758
  %6538 = vmatmul.mubr.bf16.gmra.mxu0 %v4630
  %v6539 = vpop.f32.mrf.mxu0
  %v6540 = vadd.f32 %v6251, %v6539
  %v6541 = vpop.f32.mrf.mxu0
  %v6542 = vpop.f32.mrf.mxu0
  %v6543 = vadd.f32 %v6254, %v6542
  %v6544 = vpop.f32.mrf.mxu0
  %6545 = vmatprep.mubr.bf16.mxu0 %v4759
  %6546 = vmatmul.mubr.bf16.gmra.mxu0 %v4631
  %v6547 = vpop.f32.mrf.mxu0
  %v6548 = vadd.f32 %v6259, %v6547
  %v6549 = vpop.f32.mrf.mxu0
  %v6550 = vpop.f32.mrf.mxu0
  %v6551 = vadd.f32 %v6262, %v6550
  %v6552 = vpop.f32.mrf.mxu0
  %6553 = vmatprep.mubr.bf16.mxu0 %v4760
  %6554 = vmatmul.mubr.bf16.gmra.mxu0 %v4632
  %v6555 = vpop.f32.mrf.mxu0
  %v6556 = vadd.f32 %v6267, %v6555
  %v6557 = vpop.f32.mrf.mxu0
  %v6558 = vpop.f32.mrf.mxu0
  %v6559 = vadd.f32 %v6270, %v6558
  %v6560 = vpop.f32.mrf.mxu0
  %6561 = vmatprep.mubr.bf16.mxu0 %v4761
  %6562 = vmatmul.mubr.bf16.gmra.mxu0 %v4633
  %v6563 = vpop.f32.mrf.mxu0
  %v6564 = vadd.f32 %v6275, %v6563
  %v6565 = vpop.f32.mrf.mxu0
  %v6566 = vpop.f32.mrf.mxu0
  %v6567 = vadd.f32 %v6278, %v6566
  %v6568 = vpop.f32.mrf.mxu0
  %6569 = vmatprep.mubr.bf16.mxu0 %v4762
  %6570 = vmatmul.mubr.bf16.gmra.mxu0 %v4634
  %v6571 = vpop.f32.mrf.mxu0
  %v6572 = vadd.f32 %v6283, %v6571
  %v6573 = vpop.f32.mrf.mxu0
  %v6574 = vpop.f32.mrf.mxu0
  %v6575 = vadd.f32 %v6286, %v6574
  %v6576 = vpop.f32.mrf.mxu0
  %6577 = vmatprep.mubr.bf16.mxu0 %v4763
  %6578 = vmatmul.mubr.bf16.gmra.mxu0 %v4635
  %v6579 = vpop.f32.mrf.mxu0
  %v6580 = vadd.f32 %v6291, %v6579
  %v6581 = vpop.f32.mrf.mxu0
  %v6582 = vpop.f32.mrf.mxu0
  %v6583 = vadd.f32 %v6294, %v6582
  %v6584 = vpop.f32.mrf.mxu0
  %6585 = vmatprep.mubr.bf16.mxu0 %v4764
  %6586 = vmatmul.mubr.bf16.gmra.mxu0 %v4636
  %v6587 = vpop.f32.mrf.mxu0
  %v6588 = vadd.f32 %v6299, %v6587
  %v6589 = vpop.f32.mrf.mxu0
  %v6590 = vpop.f32.mrf.mxu0
  %v6591 = vadd.f32 %v6302, %v6590
  %v6592 = vpop.f32.mrf.mxu0
  %6593 = vmatprep.mubr.bf16.mxu0 %v4765
  %6594 = vmatmul.mubr.bf16.gmra.mxu0 %v4637
  %v6595 = vpop.f32.mrf.mxu0
  %v6596 = vadd.f32 %v6307, %v6595
  %v6597 = vpop.f32.mrf.mxu0
  %v6598 = vpop.f32.mrf.mxu0
  %v6599 = vadd.f32 %v6310, %v6598
  %v6600 = vpop.f32.mrf.mxu0
  %6601 = vmatprep.mubr.bf16.mxu0 %v4766
  %6602 = vmatmul.mubr.bf16.gmra.mxu0 %v4638
  %v6603 = vpop.f32.mrf.mxu0
  %v6604 = vadd.f32 %v6315, %v6603
  %v6605 = vpop.f32.mrf.mxu0
  %v6606 = vpop.f32.mrf.mxu0
  %v6607 = vadd.f32 %v6318, %v6606
  %v6608 = vpop.f32.mrf.mxu0
  %6609 = vmatprep.mubr.bf16.mxu0 %v4767
  %6610 = vmatmul.mubr.bf16.gmra.mxu0 %v4639
  %v6611 = vpop.f32.mrf.mxu0
  %v6612 = vadd.f32 %v6323, %v6611
  %v6613 = vpop.f32.mrf.mxu0
  %v6614 = vpop.f32.mrf.mxu0
  %v6615 = vadd.f32 %v6326, %v6614
  %v6616 = vpop.f32.mrf.mxu0
  %6617 = vmatprep.mubr.bf16.mxu0 %v4768
  %6618 = vmatmul.mubr.bf16.gmra.mxu0 %v4640
  %v6619 = vpop.f32.mrf.mxu0
  %v6620 = vadd.f32 %v6331, %v6619
  %v6621 = vpop.f32.mrf.mxu0
  %v6622 = vpop.f32.mrf.mxu0
  %v6623 = vadd.f32 %v6334, %v6622
  %v6624 = vpop.f32.mrf.mxu0
  %6625 = vmatprep.mubr.bf16.mxu0 %v4769
  %6626 = vmatmul.mubr.bf16.gmra.mxu0 %v4641
  %v6627 = vpop.f32.mrf.mxu0
  %v6628 = vadd.f32 %v6339, %v6627
  %v6629 = vpop.f32.mrf.mxu0
  %v6630 = vpop.f32.mrf.mxu0
  %v6631 = vadd.f32 %v6342, %v6630
  %v6632 = vpop.f32.mrf.mxu0
  %6633 = vmatprep.mubr.bf16.mxu0 %v4770
  %6634 = vmatmul.mubr.bf16.gmra.mxu0 %v4642
  %v6635 = vpop.f32.mrf.mxu0
  %v6636 = vadd.f32 %v6347, %v6635
  %v6637 = vpop.f32.mrf.mxu0
  %v6638 = vpop.f32.mrf.mxu0
  %v6639 = vadd.f32 %v6350, %v6638
  %v6640 = vpop.f32.mrf.mxu0
  %6641 = vmatprep.mubr.bf16.mxu0 %v4771
  %6642 = vmatmul.mubr.bf16.gmra.mxu0 %v4643
  %v6643 = vpop.f32.mrf.mxu0
  %v6644 = vadd.f32 %v6355, %v6643
  %v6645 = vpop.f32.mrf.mxu0
  %v6646 = vpop.f32.mrf.mxu0
  %v6647 = vadd.f32 %v6358, %v6646
  %v6648 = vpop.f32.mrf.mxu0
  %6649 = vmatprep.mubr.bf16.mxu0 %v4772
  %6650 = vmatmul.mubr.bf16.gmra.mxu0 %v4644
  %v6651 = vpop.f32.mrf.mxu0
  %v6652 = vadd.f32 %v6363, %v6651
  %v6653 = vpop.f32.mrf.mxu0
  %v6654 = vpop.f32.mrf.mxu0
  %v6655 = vadd.f32 %v6366, %v6654
  %v6656 = vpop.f32.mrf.mxu0
  %6657 = vmatprep.mubr.bf16.mxu0 %v4773
  %6658 = vmatmul.mubr.bf16.gmra.mxu0 %v4645
  %v6659 = vpop.f32.mrf.mxu0
  %v6660 = vadd.f32 %v6371, %v6659
  %v6661 = vpop.f32.mrf.mxu0
  %v6662 = vpop.f32.mrf.mxu0
  %v6663 = vadd.f32 %v6374, %v6662
  %v6664 = vpop.f32.mrf.mxu0
  %6665 = vdwg.mxu0
  %6666 = vmatprep.subr.bf16.mxu0 0
  %6667 = vmatpush1.bf16.msra.mxu0 %v5437
  %6668 = vmatprep.subr.bf16.mxu0 0
  %6669 = vmatpush1.bf16.msra.mxu0 %v5436
  %6670 = vmatprep.subr.bf16.mxu0 0
  %6671 = vmatpush1.bf16.msra.mxu0 %v5435
  %6672 = vmatprep.subr.bf16.mxu0 0
  %6673 = vmatpush1.bf16.msra.mxu0 %v5434
  %6674 = vmatprep.subr.bf16.mxu0 0
  %6675 = vmatpush1.bf16.msra.mxu0 %v5433
  %6676 = vmatprep.subr.bf16.mxu0 0
  %6677 = vmatpush1.bf16.msra.mxu0 %v5432
  %6678 = vmatprep.subr.bf16.mxu0 0
  %6679 = vmatpush1.bf16.msra.mxu0 %v5431
  %6680 = vmatprep.subr.bf16.mxu0 0
  %6681 = vmatpush1.bf16.msra.mxu0 %v5430
  %6682 = vmatprep.subr.bf16.mxu0 0
  %6683 = vmatpush2.bf16.msra.mxu0 0
  %6684 = vmatprep.subr.bf16.mxu0 0
  %6685 = vmatpush2.bf16.msra.mxu0 0
  %6686 = vmatprep.subr.bf16.mxu0 0
  %6687 = vmatpush2.bf16.msra.mxu0 0
  %6688 = vmatprep.subr.bf16.mxu0 0
  %6689 = vmatpush2.bf16.msra.mxu0 0
  %6690 = vmatprep.subr.bf16.mxu0 0
  %6691 = vmatpush2.bf16.msra.mxu0 0
  %6692 = vmatprep.subr.bf16.mxu0 0
  %6693 = vmatpush2.bf16.msra.mxu0 0
  %6694 = vmatprep.subr.bf16.mxu0 0
  %6695 = vmatpush2.bf16.msra.mxu0 0
  %6696 = vmatprep.subr.bf16.mxu0 0
  %6697 = vmatpush2.bf16.msra.mxu0 0
  %6698 = vmatprep.mubr.bf16.mxu0 0
  %6699 = vmatmul.mubr.bf16.gmra.mxu0 %v4870
  %v6700 = vpop.f32.mrf.mxu0
  %v6701 = vadd.f32 %v6412, %v6700
  %v6702 = vpop.f32.mrf.mxu0
  %v6703 = vpop.f32.mrf.mxu0
  %v6704 = vadd.f32 %v6415, %v6703
  %v6705 = vpop.f32.mrf.mxu0
  %6706 = vmatprep.mubr.bf16.mxu0 0
  %6707 = vmatmul.mubr.bf16.gmra.mxu0 %v4871
  %v6708 = vpop.f32.mrf.mxu0
  %v6709 = vadd.f32 %v6420, %v6708
  %v6710 = vpop.f32.mrf.mxu0
  %v6711 = vpop.f32.mrf.mxu0
  %v6712 = vadd.f32 %v6423, %v6711
  %v6713 = vpop.f32.mrf.mxu0
  %6714 = vmatprep.mubr.bf16.mxu0 0
  %6715 = vmatmul.mubr.bf16.gmra.mxu0 %v4872
  %v6716 = vpop.f32.mrf.mxu0
  %v6717 = vadd.f32 %v6428, %v6716
  %v6718 = vpop.f32.mrf.mxu0
  %v6719 = vpop.f32.mrf.mxu0
  %v6720 = vadd.f32 %v6431, %v6719
  %v6721 = vpop.f32.mrf.mxu0
  %6722 = vmatprep.mubr.bf16.mxu0 0
  %6723 = vmatmul.mubr.bf16.gmra.mxu0 %v4873
  %v6724 = vpop.f32.mrf.mxu0
  %v6725 = vadd.f32 %v6436, %v6724
  %v6726 = vpop.f32.mrf.mxu0
  %v6727 = vpop.f32.mrf.mxu0
  %v6728 = vadd.f32 %v6439, %v6727
  %v6729 = vpop.f32.mrf.mxu0
  %6730 = vmatprep.mubr.bf16.mxu0 0
  %6731 = vmatmul.mubr.bf16.gmra.mxu0 %v4874
  %v6732 = vpop.f32.mrf.mxu0
  %v6733 = vadd.f32 %v6444, %v6732
  %v6734 = vpop.f32.mrf.mxu0
  %v6735 = vpop.f32.mrf.mxu0
  %v6736 = vadd.f32 %v6447, %v6735
  %v6737 = vpop.f32.mrf.mxu0
  %6738 = vmatprep.mubr.bf16.mxu0 0
  %6739 = vmatmul.mubr.bf16.gmra.mxu0 %v4875
  %v6740 = vpop.f32.mrf.mxu0
  %v6741 = vadd.f32 %v6452, %v6740
  %v6742 = vpop.f32.mrf.mxu0
  %v6743 = vpop.f32.mrf.mxu0
  %v6744 = vadd.f32 %v6455, %v6743
  %v6745 = vpop.f32.mrf.mxu0
  %6746 = vmatprep.mubr.bf16.mxu0 0
  %6747 = vmatmul.mubr.bf16.gmra.mxu0 %v4876
  %v6748 = vpop.f32.mrf.mxu0
  %v6749 = vadd.f32 %v6460, %v6748
  %v6750 = vpop.f32.mrf.mxu0
  %v6751 = vpop.f32.mrf.mxu0
  %v6752 = vadd.f32 %v6463, %v6751
  %v6753 = vpop.f32.mrf.mxu0
  %6754 = vmatprep.mubr.bf16.mxu0 0
  %6755 = vmatmul.mubr.bf16.gmra.mxu0 %v4877
  %v6756 = vpop.f32.mrf.mxu0
  %v6757 = vadd.f32 %v6468, %v6756
  %v6758 = vpop.f32.mrf.mxu0
  %v6759 = vpop.f32.mrf.mxu0
  %v6760 = vadd.f32 %v6471, %v6759
  %v6761 = vpop.f32.mrf.mxu0
  %6762 = vmatprep.mubr.bf16.mxu0 0
  %6763 = vmatmul.mubr.bf16.gmra.mxu0 %v4878
  %v6764 = vpop.f32.mrf.mxu0
  %v6765 = vadd.f32 %v6476, %v6764
  %v6766 = vpop.f32.mrf.mxu0
  %v6767 = vpop.f32.mrf.mxu0
  %v6768 = vadd.f32 %v6479, %v6767
  %v6769 = vpop.f32.mrf.mxu0
  %6770 = vmatprep.mubr.bf16.mxu0 0
  %6771 = vmatmul.mubr.bf16.gmra.mxu0 %v4879
  %v6772 = vpop.f32.mrf.mxu0
  %v6773 = vadd.f32 %v6484, %v6772
  %v6774 = vpop.f32.mrf.mxu0
  %v6775 = vpop.f32.mrf.mxu0
  %v6776 = vadd.f32 %v6487, %v6775
  %v6777 = vpop.f32.mrf.mxu0
  %6778 = vmatprep.mubr.bf16.mxu0 0
  %6779 = vmatmul.mubr.bf16.gmra.mxu0 %v4880
  %v6780 = vpop.f32.mrf.mxu0
  %v6781 = vadd.f32 %v6492, %v6780
  %v6782 = vpop.f32.mrf.mxu0
  %v6783 = vpop.f32.mrf.mxu0
  %v6784 = vadd.f32 %v6495, %v6783
  %v6785 = vpop.f32.mrf.mxu0
  %6786 = vmatprep.mubr.bf16.mxu0 0
  %6787 = vmatmul.mubr.bf16.gmra.mxu0 %v4881
  %v6788 = vpop.f32.mrf.mxu0
  %v6789 = vadd.f32 %v6500, %v6788
  %v6790 = vpop.f32.mrf.mxu0
  %v6791 = vpop.f32.mrf.mxu0
  %v6792 = vadd.f32 %v6503, %v6791
  %v6793 = vpop.f32.mrf.mxu0
  %6794 = vmatprep.mubr.bf16.mxu0 0
  %6795 = vmatmul.mubr.bf16.gmra.mxu0 %v4882
  %v6796 = vpop.f32.mrf.mxu0
  %v6797 = vadd.f32 %v6508, %v6796
  %v6798 = vpop.f32.mrf.mxu0
  %v6799 = vpop.f32.mrf.mxu0
  %v6800 = vadd.f32 %v6511, %v6799
  %v6801 = vpop.f32.mrf.mxu0
  %6802 = vmatprep.mubr.bf16.mxu0 0
  %6803 = vmatmul.mubr.bf16.gmra.mxu0 %v4883
  %v6804 = vpop.f32.mrf.mxu0
  %v6805 = vadd.f32 %v6516, %v6804
  %v6806 = vpop.f32.mrf.mxu0
  %v6807 = vpop.f32.mrf.mxu0
  %v6808 = vadd.f32 %v6519, %v6807
  %v6809 = vpop.f32.mrf.mxu0
  %6810 = vmatprep.mubr.bf16.mxu0 0
  %6811 = vmatmul.mubr.bf16.gmra.mxu0 %v4884
  %v6812 = vpop.f32.mrf.mxu0
  %v6813 = vadd.f32 %v6524, %v6812
  %v6814 = vpop.f32.mrf.mxu0
  %v6815 = vpop.f32.mrf.mxu0
  %v6816 = vadd.f32 %v6527, %v6815
  %v6817 = vpop.f32.mrf.mxu0
  %6818 = vmatprep.mubr.bf16.mxu0 0
  %6819 = vmatmul.mubr.bf16.gmra.mxu0 %v4885
  %v6820 = vpop.f32.mrf.mxu0
  %v6821 = vadd.f32 %v6532, %v6820
  %v6822 = vpop.f32.mrf.mxu0
  %v6823 = vpop.f32.mrf.mxu0
  %v6824 = vadd.f32 %v6535, %v6823
  %v6825 = vpop.f32.mrf.mxu0
  %6826 = vmatprep.mubr.bf16.mxu0 0
  %6827 = vmatmul.mubr.bf16.gmra.mxu0 %v4886
  %v6828 = vpop.f32.mrf.mxu0
  %v6829 = vadd.f32 %v6540, %v6828
  %v6830 = vpop.f32.mrf.mxu0
  %v6831 = vpop.f32.mrf.mxu0
  %v6832 = vadd.f32 %v6543, %v6831
  %v6833 = vpop.f32.mrf.mxu0
  %6834 = vmatprep.mubr.bf16.mxu0 0
  %6835 = vmatmul.mubr.bf16.gmra.mxu0 %v4887
  %v6836 = vpop.f32.mrf.mxu0
  %v6837 = vadd.f32 %v6548, %v6836
  %v6838 = vpop.f32.mrf.mxu0
  %v6839 = vpop.f32.mrf.mxu0
  %v6840 = vadd.f32 %v6551, %v6839
  %v6841 = vpop.f32.mrf.mxu0
  %6842 = vmatprep.mubr.bf16.mxu0 0
  %6843 = vmatmul.mubr.bf16.gmra.mxu0 %v4888
  %v6844 = vpop.f32.mrf.mxu0
  %v6845 = vadd.f32 %v6556, %v6844
  %v6846 = vpop.f32.mrf.mxu0
  %v6847 = vpop.f32.mrf.mxu0
  %v6848 = vadd.f32 %v6559, %v6847
  %v6849 = vpop.f32.mrf.mxu0
  %6850 = vmatprep.mubr.bf16.mxu0 0
  %6851 = vmatmul.mubr.bf16.gmra.mxu0 %v4889
  %v6852 = vpop.f32.mrf.mxu0
  %v6853 = vadd.f32 %v6564, %v6852
  %v6854 = vpop.f32.mrf.mxu0
  %v6855 = vpop.f32.mrf.mxu0
  %v6856 = vadd.f32 %v6567, %v6855
  %v6857 = vpop.f32.mrf.mxu0
  %6858 = vmatprep.mubr.bf16.mxu0 0
  %6859 = vmatmul.mubr.bf16.gmra.mxu0 %v4890
  %v6860 = vpop.f32.mrf.mxu0
  %v6861 = vadd.f32 %v6572, %v6860
  %v6862 = vpop.f32.mrf.mxu0
  %v6863 = vpop.f32.mrf.mxu0
  %v6864 = vadd.f32 %v6575, %v6863
  %v6865 = vpop.f32.mrf.mxu0
  %6866 = vmatprep.mubr.bf16.mxu0 0
  %6867 = vmatmul.mubr.bf16.gmra.mxu0 %v4891
  %v6868 = vpop.f32.mrf.mxu0
  %v6869 = vadd.f32 %v6580, %v6868
  %v6870 = vpop.f32.mrf.mxu0
  %v6871 = vpop.f32.mrf.mxu0
  %v6872 = vadd.f32 %v6583, %v6871
  %v6873 = vpop.f32.mrf.mxu0
  %6874 = vmatprep.mubr.bf16.mxu0 0
  %6875 = vmatmul.mubr.bf16.gmra.mxu0 %v4892
  %v6876 = vpop.f32.mrf.mxu0
  %v6877 = vadd.f32 %v6588, %v6876
  %v6878 = vpop.f32.mrf.mxu0
  %v6879 = vpop.f32.mrf.mxu0
  %v6880 = vadd.f32 %v6591, %v6879
  %v6881 = vpop.f32.mrf.mxu0
  %6882 = vmatprep.mubr.bf16.mxu0 0
  %6883 = vmatmul.mubr.bf16.gmra.mxu0 %v4893
  %v6884 = vpop.f32.mrf.mxu0
  %v6885 = vadd.f32 %v6596, %v6884
  %v6886 = vpop.f32.mrf.mxu0
  %v6887 = vpop.f32.mrf.mxu0
  %v6888 = vadd.f32 %v6599, %v6887
  %v6889 = vpop.f32.mrf.mxu0
  %6890 = vmatprep.mubr.bf16.mxu0 0
  %6891 = vmatmul.mubr.bf16.gmra.mxu0 %v4894
  %v6892 = vpop.f32.mrf.mxu0
  %v6893 = vadd.f32 %v6604, %v6892
  %v6894 = vpop.f32.mrf.mxu0
  %v6895 = vpop.f32.mrf.mxu0
  %v6896 = vadd.f32 %v6607, %v6895
  %v6897 = vpop.f32.mrf.mxu0
  %6898 = vmatprep.mubr.bf16.mxu0 0
  %6899 = vmatmul.mubr.bf16.gmra.mxu0 %v4895
  %v6900 = vpop.f32.mrf.mxu0
  %v6901 = vadd.f32 %v6612, %v6900
  %v6902 = vpop.f32.mrf.mxu0
  %v6903 = vpop.f32.mrf.mxu0
  %v6904 = vadd.f32 %v6615, %v6903
  %v6905 = vpop.f32.mrf.mxu0
  %6906 = vmatprep.mubr.bf16.mxu0 0
  %6907 = vmatmul.mubr.bf16.gmra.mxu0 %v4896
  %v6908 = vpop.f32.mrf.mxu0
  %v6909 = vadd.f32 %v6620, %v6908
  %v6910 = vpop.f32.mrf.mxu0
  %v6911 = vpop.f32.mrf.mxu0
  %v6912 = vadd.f32 %v6623, %v6911
  %v6913 = vpop.f32.mrf.mxu0
  %6914 = vmatprep.mubr.bf16.mxu0 0
  %6915 = vmatmul.mubr.bf16.gmra.mxu0 %v4897
  %v6916 = vpop.f32.mrf.mxu0
  %v6917 = vadd.f32 %v6628, %v6916
  %v6918 = vpop.f32.mrf.mxu0
  %v6919 = vpop.f32.mrf.mxu0
  %v6920 = vadd.f32 %v6631, %v6919
  %v6921 = vpop.f32.mrf.mxu0
  %6922 = vmatprep.mubr.bf16.mxu0 0
  %6923 = vmatmul.mubr.bf16.gmra.mxu0 %v4898
  %v6924 = vpop.f32.mrf.mxu0
  %v6925 = vadd.f32 %v6636, %v6924
  %v6926 = vpop.f32.mrf.mxu0
  %v6927 = vpop.f32.mrf.mxu0
  %v6928 = vadd.f32 %v6639, %v6927
  %v6929 = vpop.f32.mrf.mxu0
  %6930 = vmatprep.mubr.bf16.mxu0 0
  %6931 = vmatmul.mubr.bf16.gmra.mxu0 %v4899
  %v6932 = vpop.f32.mrf.mxu0
  %v6933 = vadd.f32 %v6644, %v6932
  %v6934 = vpop.f32.mrf.mxu0
  %v6935 = vpop.f32.mrf.mxu0
  %v6936 = vadd.f32 %v6647, %v6935
  %v6937 = vpop.f32.mrf.mxu0
  %6938 = vmatprep.mubr.bf16.mxu0 0
  %6939 = vmatmul.mubr.bf16.gmra.mxu0 %v4900
  %v6940 = vpop.f32.mrf.mxu0
  %v6941 = vadd.f32 %v6652, %v6940
  %v6942 = vpop.f32.mrf.mxu0
  %v6943 = vpop.f32.mrf.mxu0
  %v6944 = vadd.f32 %v6655, %v6943
  %v6945 = vpop.f32.mrf.mxu0
  %6946 = vmatprep.mubr.bf16.mxu0 0
  %6947 = vmatmul.mubr.bf16.gmra.mxu0 %v4901
  %v6948 = vpop.f32.mrf.mxu0
  %v6949 = vadd.f32 %v6660, %v6948
  %v6950 = vpop.f32.mrf.mxu0
  %v6951 = vpop.f32.mrf.mxu0
  %v6952 = vadd.f32 %v6663, %v6951
  %v6953 = vpop.f32.mrf.mxu0
  %6954 = vdwg.mxu0
  %v6955 = vadd.f32 %v6701, %v6704
  %v6956 = vadd.f32 %v6955, %v6709
  %v6957 = vadd.f32 %v6956, %v6712
  %v6958 = vadd.f32 %v6957, %v6717
  %v6959 = vadd.f32 %v6958, %v6720
  %v6960 = vadd.f32 %v6959, %v6725
  %v6961 = vadd.f32 %v6960, %v6728
  %v6962 = vadd.f32 %v6961, %v6733
  %v6963 = vadd.f32 %v6962, %v6736
  %v6964 = vadd.f32 %v6963, %v6741
  %v6965 = vadd.f32 %v6964, %v6744
  %v6966 = vadd.f32 %v6965, %v6749
  %v6967 = vadd.f32 %v6966, %v6752
  %v6968 = vadd.f32 %v6967, %v6757
  %v6969 = vadd.f32 %v6968, %v6760
  %v6970 = vadd.f32 %v6969, %v6765
  %v6971 = vadd.f32 %v6970, %v6768
  %v6972 = vadd.f32 %v6971, %v6773
  %v6973 = vadd.f32 %v6972, %v6776
  %v6974 = vadd.f32 %v6973, %v6781
  %v6975 = vadd.f32 %v6974, %v6784
  %v6976 = vadd.f32 %v6975, %v6789
  %v6977 = vadd.f32 %v6976, %v6792
  %v6978 = vadd.f32 %v6977, %v6797
  %v6979 = vadd.f32 %v6978, %v6800
  %v6980 = vadd.f32 %v6979, %v6805
  %v6981 = vadd.f32 %v6980, %v6808
  %v6982 = vadd.f32 %v6981, %v6813
  %v6983 = vadd.f32 %v6982, %v6816
  %v6984 = vadd.f32 %v6983, %v6821
  %v6985 = vadd.f32 %v6984, %v6824
  %v6986 = vadd.f32 %v6985, %v6829
  %v6987 = vadd.f32 %v6986, %v6832
  %v6988 = vadd.f32 %v6987, %v6837
  %v6989 = vadd.f32 %v6988, %v6840
  %v6990 = vadd.f32 %v6989, %v6845
  %v6991 = vadd.f32 %v6990, %v6848
  %v6992 = vadd.f32 %v6991, %v6853
  %v6993 = vadd.f32 %v6992, %v6856
  %v6994 = vadd.f32 %v6993, %v6861
  %v6995 = vadd.f32 %v6994, %v6864
  %v6996 = vadd.f32 %v6995, %v6869
  %v6997 = vadd.f32 %v6996, %v6872
  %v6998 = vadd.f32 %v6997, %v6877
  %v6999 = vadd.f32 %v6998, %v6880
  %v7000 = vadd.f32 %v6999, %v6885
  %v7001 = vadd.f32 %v7000, %v6888
  %v7002 = vadd.f32 %v7001, %v6893
  %v7003 = vadd.f32 %v7002, %v6896
  %v7004 = vadd.f32 %v7003, %v6901
  %v7005 = vadd.f32 %v7004, %v6904
  %v7006 = vadd.f32 %v7005, %v6909
  %v7007 = vadd.f32 %v7006, %v6912
  %v7008 = vadd.f32 %v7007, %v6917
  %v7009 = vadd.f32 %v7008, %v6920
  %v7010 = vadd.f32 %v7009, %v6925
  %v7011 = vadd.f32 %v7010, %v6928
  %v7012 = vadd.f32 %v7011, %v6933
  %v7013 = vadd.f32 %v7012, %v6936
  %v7014 = vadd.f32 %v7013, %v6941
  %v7015 = vadd.f32 %v7014, %v6944
  %v7016 = vadd.f32 %v7015, %v6949
  %v7017 = vadd.f32 %v7016, %v6952
  %v7018 = vrot.slane %v7017, 4
  %v7019 = vadd.f32 %v7017, %v7018
  %v7020 = vrot.slane %v7019, 2
  %v7021 = vadd.f32 %v7019, %v7020
  %v7022 = vrot.slane %v7021, 1
  %v7023 = vadd.f32 %v7021, %v7022
  %v7024 = vmul.f32 %v7023, 0.001953125
  %v7025 = vmul.f32 %v6701, %v6701
  %v7026 = vmul.f32 %v6704, %v6704
  %v7027 = vmul.f32 %v6709, %v6709
  %v7028 = vmul.f32 %v6712, %v6712
  %v7029 = vmul.f32 %v6717, %v6717
  %v7030 = vmul.f32 %v6720, %v6720
  %v7031 = vmul.f32 %v6725, %v6725
  %v7032 = vmul.f32 %v6728, %v6728
  %v7033 = vmul.f32 %v6733, %v6733
  %v7034 = vmul.f32 %v6736, %v6736
  %v7035 = vmul.f32 %v6741, %v6741
  %v7036 = vmul.f32 %v6744, %v6744
  %v7037 = vmul.f32 %v6749, %v6749
  %v7038 = vmul.f32 %v6752, %v6752
  %v7039 = vmul.f32 %v6757, %v6757
  %v7040 = vmul.f32 %v6760, %v6760
  %v7041 = vmul.f32 %v6765, %v6765
  %v7042 = vmul.f32 %v6768, %v6768
  %v7043 = vmul.f32 %v6773, %v6773
  %v7044 = vmul.f32 %v6776, %v6776
  %v7045 = vmul.f32 %v6781, %v6781
  %v7046 = vmul.f32 %v6784, %v6784
  %v7047 = vmul.f32 %v6789, %v6789
  %v7048 = vmul.f32 %v6792, %v6792
  %v7049 = vmul.f32 %v6797, %v6797
  %v7050 = vmul.f32 %v6800, %v6800
  %v7051 = vmul.f32 %v6805, %v6805
  %v7052 = vmul.f32 %v6808, %v6808
  %v7053 = vmul.f32 %v6813, %v6813
  %v7054 = vmul.f32 %v6816, %v6816
  %v7055 = vmul.f32 %v6821, %v6821
  %v7056 = vmul.f32 %v6824, %v6824
  %v7057 = vmul.f32 %v6829, %v6829
  %v7058 = vmul.f32 %v6832, %v6832
  %v7059 = vmul.f32 %v6837, %v6837
  %v7060 = vmul.f32 %v6840, %v6840
  %v7061 = vmul.f32 %v6845, %v6845
  %v7062 = vmul.f32 %v6848, %v6848
  %v7063 = vmul.f32 %v6853, %v6853
  %v7064 = vmul.f32 %v6856, %v6856
  %v7065 = vmul.f32 %v6861, %v6861
  %v7066 = vmul.f32 %v6864, %v6864
  %v7067 = vmul.f32 %v6869, %v6869
  %v7068 = vmul.f32 %v6872, %v6872
  %v7069 = vmul.f32 %v6877, %v6877
  %v7070 = vmul.f32 %v6880, %v6880
  %v7071 = vmul.f32 %v6885, %v6885
  %v7072 = vmul.f32 %v6888, %v6888
  %v7073 = vmul.f32 %v6893, %v6893
  %v7074 = vmul.f32 %v6896, %v6896
  %v7075 = vmul.f32 %v6901, %v6901
  %v7076 = vmul.f32 %v6904, %v6904
  %v7077 = vmul.f32 %v6909, %v6909
  %v7078 = vmul.f32 %v6912, %v6912
  %v7079 = vmul.f32 %v6917, %v6917
  %v7080 = vmul.f32 %v6920, %v6920
  %v7081 = vmul.f32 %v6925, %v6925
  %v7082 = vmul.f32 %v6928, %v6928
  %v7083 = vmul.f32 %v6933, %v6933
  %v7084 = vmul.f32 %v6936, %v6936
  %v7085 = vmul.f32 %v6941, %v6941
  %v7086 = vmul.f32 %v6944, %v6944
  %v7087 = vmul.f32 %v6949, %v6949
  %v7088 = vmul.f32 %v6952, %v6952
  %v7089 = vadd.f32 %v7025, %v7026
  %v7090 = vadd.f32 %v7089, %v7027
  %v7091 = vadd.f32 %v7090, %v7028
  %v7092 = vadd.f32 %v7091, %v7029
  %v7093 = vadd.f32 %v7092, %v7030
  %v7094 = vadd.f32 %v7093, %v7031
  %v7095 = vadd.f32 %v7094, %v7032
  %v7096 = vadd.f32 %v7095, %v7033
  %v7097 = vadd.f32 %v7096, %v7034
  %v7098 = vadd.f32 %v7097, %v7035
  %v7099 = vadd.f32 %v7098, %v7036
  %v7100 = vadd.f32 %v7099, %v7037
  %v7101 = vadd.f32 %v7100, %v7038
  %v7102 = vadd.f32 %v7101, %v7039
  %v7103 = vadd.f32 %v7102, %v7040
  %v7104 = vadd.f32 %v7103, %v7041
  %v7105 = vadd.f32 %v7104, %v7042
  %v7106 = vadd.f32 %v7105, %v7043
  %v7107 = vadd.f32 %v7106, %v7044
  %v7108 = vadd.f32 %v7107, %v7045
  %v7109 = vadd.f32 %v7108, %v7046
  %v7110 = vadd.f32 %v7109, %v7047
  %v7111 = vadd.f32 %v7110, %v7048
  %v7112 = vadd.f32 %v7111, %v7049
  %v7113 = vadd.f32 %v7112, %v7050
  %v7114 = vadd.f32 %v7113, %v7051
  %v7115 = vadd.f32 %v7114, %v7052
  %v7116 = vadd.f32 %v7115, %v7053
  %v7117 = vadd.f32 %v7116, %v7054
  %v7118 = vadd.f32 %v7117, %v7055
  %v7119 = vadd.f32 %v7118, %v7056
  %v7120 = vadd.f32 %v7119, %v7057
  %v7121 = vadd.f32 %v7120, %v7058
  %v7122 = vadd.f32 %v7121, %v7059
  %v7123 = vadd.f32 %v7122, %v7060
  %v7124 = vadd.f32 %v7123, %v7061
  %v7125 = vadd.f32 %v7124, %v7062
  %v7126 = vadd.f32 %v7125, %v7063
  %v7127 = vadd.f32 %v7126, %v7064
  %v7128 = vadd.f32 %v7127, %v7065
  %v7129 = vadd.f32 %v7128, %v7066
  %v7130 = vadd.f32 %v7129, %v7067
  %v7131 = vadd.f32 %v7130, %v7068
  %v7132 = vadd.f32 %v7131, %v7069
  %v7133 = vadd.f32 %v7132, %v7070
  %v7134 = vadd.f32 %v7133, %v7071
  %v7135 = vadd.f32 %v7134, %v7072
  %v7136 = vadd.f32 %v7135, %v7073
  %v7137 = vadd.f32 %v7136, %v7074
  %v7138 = vadd.f32 %v7137, %v7075
  %v7139 = vadd.f32 %v7138, %v7076
  %v7140 = vadd.f32 %v7139, %v7077
  %v7141 = vadd.f32 %v7140, %v7078
  %v7142 = vadd.f32 %v7141, %v7079
  %v7143 = vadd.f32 %v7142, %v7080
  %v7144 = vadd.f32 %v7143, %v7081
  %v7145 = vadd.f32 %v7144, %v7082
  %v7146 = vadd.f32 %v7145, %v7083
  %v7147 = vadd.f32 %v7146, %v7084
  %v7148 = vadd.f32 %v7147, %v7085
  %v7149 = vadd.f32 %v7148, %v7086
  %v7150 = vadd.f32 %v7149, %v7087
  %v7151 = vadd.f32 %v7150, %v7088
  %v7152 = vrot.slane %v7151, 4
  %v7153 = vadd.f32 %v7151, %v7152
  %v7154 = vrot.slane %v7153, 2
  %v7155 = vadd.f32 %v7153, %v7154
  %v7156 = vrot.slane %v7155, 1
  %v7157 = vadd.f32 %v7155, %v7156
  %v7158 = vmul.f32 %v7157, 0.001953125
  %v7159 = vmul.f32 %v7024, %v7024
  %v7160 = vsub.f32 %v7158, %v7159
  %v7161 = vld [vmem:[%s3] sm:$0x1]
  %v7162 = vadd.f32 %v7160, 1e-05
  %v7163 = vrsqrt.pop %v7162
  %v7164 = vmul.f32 %v7161, %v7163
  %v7165 = vld [vmem:[%s4] sm:$0x1]
  %v7166 = vmul.f32 %v7024, %v7164
  %v7167 = vsub.f32 %v7165, %v7166
  %v7169 = vlaneseq
  %v7170 = vshrl.u32 %v7169, 7
  %v7171 = vsub.s32 0, %v7170
  %v7172 = vrot.slane %v7164, %v7171
  %v7174 = vmul.f32 %v6701, %v7172
  %v7175 = vmul.f32 %v6704, %v7172
  %v7176 = vmul.f32 %v6709, %v7172
  %v7177 = vmul.f32 %v6712, %v7172
  %v7178 = vmul.f32 %v6717, %v7172
  %v7179 = vmul.f32 %v6720, %v7172
  %v7180 = vmul.f32 %v6725, %v7172
  %v7181 = vmul.f32 %v6728, %v7172
  %v7182 = vmul.f32 %v6733, %v7172
  %v7183 = vmul.f32 %v6736, %v7172
  %v7184 = vmul.f32 %v6741, %v7172
  %v7185 = vmul.f32 %v6744, %v7172
  %v7186 = vmul.f32 %v6749, %v7172
  %v7187 = vmul.f32 %v6752, %v7172
  %v7188 = vmul.f32 %v6757, %v7172
  %v7189 = vmul.f32 %v6760, %v7172
  %v7190 = vmul.f32 %v6765, %v7172
  %v7191 = vmul.f32 %v6768, %v7172
  %v7192 = vmul.f32 %v6773, %v7172
  %v7193 = vmul.f32 %v6776, %v7172
  %v7194 = vmul.f32 %v6781, %v7172
  %v7195 = vmul.f32 %v6784, %v7172
  %v7196 = vmul.f32 %v6789, %v7172
  %v7197 = vmul.f32 %v6792, %v7172
  %v7198 = vmul.f32 %v6797, %v7172
  %v7199 = vmul.f32 %v6800, %v7172
  %v7200 = vmul.f32 %v6805, %v7172
  %v7201 = vmul.f32 %v6808, %v7172
  %v7202 = vmul.f32 %v6813, %v7172
  %v7203 = vmul.f32 %v6816, %v7172
  %v7204 = vmul.f32 %v6821, %v7172
  %v7205 = vmul.f32 %v6824, %v7172
  %v7206 = vmul.f32 %v6829, %v7172
  %v7207 = vmul.f32 %v6832, %v7172
  %v7208 = vmul.f32 %v6837, %v7172
  %v7209 = vmul.f32 %v6840, %v7172
  %v7210 = vmul.f32 %v6845, %v7172
  %v7211 = vmul.f32 %v6848, %v7172
  %v7212 = vmul.f32 %v6853, %v7172
  %v7213 = vmul.f32 %v6856, %v7172
  %v7214 = vmul.f32 %v6861, %v7172
  %v7215 = vmul.f32 %v6864, %v7172
  %v7216 = vmul.f32 %v6869, %v7172
  %v7217 = vmul.f32 %v6872, %v7172
  %v7218 = vmul.f32 %v6877, %v7172
  %v7219 = vmul.f32 %v6880, %v7172
  %v7220 = vmul.f32 %v6885, %v7172
  %v7221 = vmul.f32 %v6888, %v7172
  %v7222 = vmul.f32 %v6893, %v7172
  %v7223 = vmul.f32 %v6896, %v7172
  %v7224 = vmul.f32 %v6901, %v7172
  %v7225 = vmul.f32 %v6904, %v7172
  %v7226 = vmul.f32 %v6909, %v7172
  %v7227 = vmul.f32 %v6912, %v7172
  %v7228 = vmul.f32 %v6917, %v7172
  %v7229 = vmul.f32 %v6920, %v7172
  %v7230 = vmul.f32 %v6925, %v7172
  %v7231 = vmul.f32 %v6928, %v7172
  %v7232 = vmul.f32 %v6933, %v7172
  %v7233 = vmul.f32 %v6936, %v7172
  %v7234 = vmul.f32 %v6941, %v7172
  %v7235 = vmul.f32 %v6944, %v7172
  %v7236 = vmul.f32 %v6949, %v7172
  %v7237 = vmul.f32 %v6952, %v7172
  %v7239 = vlaneseq
  %v7240 = vshrl.u32 %v7239, 7
  %v7241 = vsub.s32 0, %v7240
  %v7242 = vrot.slane %v7167, %v7241
  %v7244 = vadd.f32 %v7174, %v7242
  %v7245 = vadd.f32 %v7175, %v7242
  %v7246 = vadd.f32 %v7176, %v7242
  %v7247 = vadd.f32 %v7177, %v7242
  %v7248 = vadd.f32 %v7178, %v7242
  %v7249 = vadd.f32 %v7179, %v7242
  %v7250 = vadd.f32 %v7180, %v7242
  %v7251 = vadd.f32 %v7181, %v7242
  %v7252 = vadd.f32 %v7182, %v7242
  %v7253 = vadd.f32 %v7183, %v7242
  %v7254 = vadd.f32 %v7184, %v7242
  %v7255 = vadd.f32 %v7185, %v7242
  %v7256 = vadd.f32 %v7186, %v7242
  %v7257 = vadd.f32 %v7187, %v7242
  %v7258 = vadd.f32 %v7188, %v7242
  %v7259 = vadd.f32 %v7189, %v7242
  %v7260 = vadd.f32 %v7190, %v7242
  %v7261 = vadd.f32 %v7191, %v7242
  %v7262 = vadd.f32 %v7192, %v7242
  %v7263 = vadd.f32 %v7193, %v7242
  %v7264 = vadd.f32 %v7194, %v7242
  %v7265 = vadd.f32 %v7195, %v7242
  %v7266 = vadd.f32 %v7196, %v7242
  %v7267 = vadd.f32 %v7197, %v7242
  %v7268 = vadd.f32 %v7198, %v7242
  %v7269 = vadd.f32 %v7199, %v7242
  %v7270 = vadd.f32 %v7200, %v7242
  %v7271 = vadd.f32 %v7201, %v7242
  %v7272 = vadd.f32 %v7202, %v7242
  %v7273 = vadd.f32 %v7203, %v7242
  %v7274 = vadd.f32 %v7204, %v7242
  %v7275 = vadd.f32 %v7205, %v7242
  %v7276 = vadd.f32 %v7206, %v7242
  %v7277 = vadd.f32 %v7207, %v7242
  %v7278 = vadd.f32 %v7208, %v7242
  %v7279 = vadd.f32 %v7209, %v7242
  %v7280 = vadd.f32 %v7210, %v7242
  %v7281 = vadd.f32 %v7211, %v7242
  %v7282 = vadd.f32 %v7212, %v7242
  %v7283 = vadd.f32 %v7213, %v7242
  %v7284 = vadd.f32 %v7214, %v7242
  %v7285 = vadd.f32 %v7215, %v7242
  %v7286 = vadd.f32 %v7216, %v7242
  %v7287 = vadd.f32 %v7217, %v7242
  %v7288 = vadd.f32 %v7218, %v7242
  %v7289 = vadd.f32 %v7219, %v7242
  %v7290 = vadd.f32 %v7220, %v7242
  %v7291 = vadd.f32 %v7221, %v7242
  %v7292 = vadd.f32 %v7222, %v7242
  %v7293 = vadd.f32 %v7223, %v7242
  %v7294 = vadd.f32 %v7224, %v7242
  %v7295 = vadd.f32 %v7225, %v7242
  %v7296 = vadd.f32 %v7226, %v7242
  %v7297 = vadd.f32 %v7227, %v7242
  %v7298 = vadd.f32 %v7228, %v7242
  %v7299 = vadd.f32 %v7229, %v7242
  %v7300 = vadd.f32 %v7230, %v7242
  %v7301 = vadd.f32 %v7231, %v7242
  %v7302 = vadd.f32 %v7232, %v7242
  %v7303 = vadd.f32 %v7233, %v7242
  %v7304 = vadd.f32 %v7234, %v7242
  %v7305 = vadd.f32 %v7235, %v7242
  %v7306 = vadd.f32 %v7236, %v7242
  %v7307 = vadd.f32 %v7237, %v7242
  %v7308 = vmax.f32 %v7244, 0.0
  %v7309 = vmax.f32 %v7245, 0.0
  %v7310 = vmax.f32 %v7246, 0.0
  %v7311 = vmax.f32 %v7247, 0.0
  %v7312 = vmax.f32 %v7248, 0.0
  %v7313 = vmax.f32 %v7249, 0.0
  %v7314 = vmax.f32 %v7250, 0.0
  %v7315 = vmax.f32 %v7251, 0.0
  %v7316 = vmax.f32 %v7252, 0.0
  %v7317 = vmax.f32 %v7253, 0.0
  %v7318 = vmax.f32 %v7254, 0.0
  %v7319 = vmax.f32 %v7255, 0.0
  %v7320 = vmax.f32 %v7256, 0.0
  %v7321 = vmax.f32 %v7257, 0.0
  %v7322 = vmax.f32 %v7258, 0.0
  %v7323 = vmax.f32 %v7259, 0.0
  %v7324 = vmax.f32 %v7260, 0.0
  %v7325 = vmax.f32 %v7261, 0.0
  %v7326 = vmax.f32 %v7262, 0.0
  %v7327 = vmax.f32 %v7263, 0.0
  %v7328 = vmax.f32 %v7264, 0.0
  %v7329 = vmax.f32 %v7265, 0.0
  %v7330 = vmax.f32 %v7266, 0.0
  %v7331 = vmax.f32 %v7267, 0.0
  %v7332 = vmax.f32 %v7268, 0.0
  %v7333 = vmax.f32 %v7269, 0.0
  %v7334 = vmax.f32 %v7270, 0.0
  %v7335 = vmax.f32 %v7271, 0.0
  %v7336 = vmax.f32 %v7272, 0.0
  %v7337 = vmax.f32 %v7273, 0.0
  %v7338 = vmax.f32 %v7274, 0.0
  %v7339 = vmax.f32 %v7275, 0.0
  %v7340 = vmax.f32 %v7276, 0.0
  %v7341 = vmax.f32 %v7277, 0.0
  %v7342 = vmax.f32 %v7278, 0.0
  %v7343 = vmax.f32 %v7279, 0.0
  %v7344 = vmax.f32 %v7280, 0.0
  %v7345 = vmax.f32 %v7281, 0.0
  %v7346 = vmax.f32 %v7282, 0.0
  %v7347 = vmax.f32 %v7283, 0.0
  %v7348 = vmax.f32 %v7284, 0.0
  %v7349 = vmax.f32 %v7285, 0.0
  %v7350 = vmax.f32 %v7286, 0.0
  %v7351 = vmax.f32 %v7287, 0.0
  %v7352 = vmax.f32 %v7288, 0.0
  %v7353 = vmax.f32 %v7289, 0.0
  %v7354 = vmax.f32 %v7290, 0.0
  %v7355 = vmax.f32 %v7291, 0.0
  %v7356 = vmax.f32 %v7292, 0.0
  %v7357 = vmax.f32 %v7293, 0.0
  %v7358 = vmax.f32 %v7294, 0.0
  %v7359 = vmax.f32 %v7295, 0.0
  %v7360 = vmax.f32 %v7296, 0.0
  %v7361 = vmax.f32 %v7297, 0.0
  %v7362 = vmax.f32 %v7298, 0.0
  %v7363 = vmax.f32 %v7299, 0.0
  %v7364 = vmax.f32 %v7300, 0.0
  %v7365 = vmax.f32 %v7301, 0.0
  %v7366 = vmax.f32 %v7302, 0.0
  %v7367 = vmax.f32 %v7303, 0.0
  %v7368 = vmax.f32 %v7304, 0.0
  %v7369 = vmax.f32 %v7305, 0.0
  %v7370 = vmax.f32 %v7306, 0.0
  %v7371 = vmax.f32 %v7307, 0.0
  %v7372 = vpack.c.bf16 %v7309, %v7308
  %v7373 = vpack.c.bf16 %v7311, %v7310
  %v7374 = vpack.c.bf16 %v7313, %v7312
  %v7375 = vpack.c.bf16 %v7315, %v7314
  %v7376 = vpack.c.bf16 %v7317, %v7316
  %v7377 = vpack.c.bf16 %v7319, %v7318
  %v7378 = vpack.c.bf16 %v7321, %v7320
  %v7379 = vpack.c.bf16 %v7323, %v7322
  %v7380 = vpack.c.bf16 %v7325, %v7324
  %v7381 = vpack.c.bf16 %v7327, %v7326
  %v7382 = vpack.c.bf16 %v7329, %v7328
  %v7383 = vpack.c.bf16 %v7331, %v7330
  %v7384 = vpack.c.bf16 %v7333, %v7332
  %v7385 = vpack.c.bf16 %v7335, %v7334
  %v7386 = vpack.c.bf16 %v7337, %v7336
  %v7387 = vpack.c.bf16 %v7339, %v7338
  %v7388 = vpack.c.bf16 %v7341, %v7340
  %v7389 = vpack.c.bf16 %v7343, %v7342
  %v7390 = vpack.c.bf16 %v7345, %v7344
  %v7391 = vpack.c.bf16 %v7347, %v7346
  %v7392 = vpack.c.bf16 %v7349, %v7348
  %v7393 = vpack.c.bf16 %v7351, %v7350
  %v7394 = vpack.c.bf16 %v7353, %v7352
  %v7395 = vpack.c.bf16 %v7355, %v7354
  %v7396 = vpack.c.bf16 %v7357, %v7356
  %v7397 = vpack.c.bf16 %v7359, %v7358
  %v7398 = vpack.c.bf16 %v7361, %v7360
  %v7399 = vpack.c.bf16 %v7363, %v7362
  %v7400 = vpack.c.bf16 %v7365, %v7364
  %v7401 = vpack.c.bf16 %v7367, %v7366
  %v7402 = vpack.c.bf16 %v7369, %v7368
  %v7403 = vpack.c.bf16 %v7371, %v7370
  %7404 = vst [vmem:[#allocation2] sm:$0xf] 0
  %7405 = vst [vmem:[#allocation2 + $0x4] sm:$0xf] 0
  %7406 = vst [vmem:[#allocation2 + $0x8] sm:$0x1] 0
  %7407 = vst [vmem:[#allocation2 + $0xd8] sm:$0xf] 0
  %7408 = vst [vmem:[#allocation2 + $0xdc] sm:$0xf] 0
  %7409 = vst [vmem:[#allocation2 + $0xe0] sm:$0x1] 0
  %s7410 = scalar_lea.vmem [#allocation2], 204
  %7411 = vst [vmem:[%s7410] sm:$0xf] 0
  %7412 = vst [vmem:[%s7410 + $0x4] sm:$0xf] 0
  %7413 = vst [vmem:[%s7410 + $0x8] sm:$0x1] 0
  %7414 = vst [vmem:[%s7410 + $0xd8] sm:$0xf] 0
  %7415 = vst [vmem:[%s7410 + $0xdc] sm:$0xf] 0
  %7416 = vst [vmem:[%s7410 + $0xe0] sm:$0x1] 0
  %s7417 = scalar_lea.vmem [#allocation2], 12
  %vm7418 = vcmask 1040384
  %vm7419 = vsmask.f32 256
  %vm7420 = vmand %vm7418, %vm7419
  %v7421 = vld [vmem:[%s7417] sm:$0x1]
  %v7422 = vsel %vm7420, 0, %v7421
  %7423 = vst [vmem:[%s7417] sm:$0x1] %v7422
  %v7424 = vld [vmem:[%s7417 + $0xc] sm:$0x1]
  %v7425 = vsel %vm7420, 0, %v7424
  %7426 = vst [vmem:[%s7417 + $0xc] sm:$0x1] %v7425
  %v7427 = vld [vmem:[%s7417 + $0x18] sm:$0x1]
  %v7428 = vsel %vm7420, 0, %v7427
  %7429 = vst [vmem:[%s7417 + $0x18] sm:$0x1] %v7428
  %v7430 = vld [vmem:[%s7417 + $0x24] sm:$0x1]
  %v7431 = vsel %vm7420, 0, %v7430
  %7432 = vst [vmem:[%s7417 + $0x24] sm:$0x1] %v7431
  %v7433 = vld [vmem:[%s7417 + $0x30] sm:$0x1]
  %v7434 = vsel %vm7420, 0, %v7433
  %7435 = vst [vmem:[%s7417 + $0x30] sm:$0x1] %v7434
  %v7436 = vld [vmem:[%s7417 + $0x3c] sm:$0x1]
  %v7437 = vsel %vm7420, 0, %v7436
  %7438 = vst [vmem:[%s7417 + $0x3c] sm:$0x1] %v7437
  %v7439 = vld [vmem:[%s7417 + $0x48] sm:$0x1]
  %v7440 = vsel %vm7420, 0, %v7439
  %7441 = vst [vmem:[%s7417 + $0x48] sm:$0x1] %v7440
  %v7442 = vld [vmem:[%s7417 + $0x54] sm:$0x1]
  %v7443 = vsel %vm7420, 0, %v7442
  %7444 = vst [vmem:[%s7417 + $0x54] sm:$0x1] %v7443
  %v7445 = vld [vmem:[%s7417 + $0x60] sm:$0x1]
  %v7446 = vsel %vm7420, 0, %v7445
  %7447 = vst [vmem:[%s7417 + $0x60] sm:$0x1] %v7446
  %v7448 = vld [vmem:[%s7417 + $0x6c] sm:$0x1]
  %v7449 = vsel %vm7420, 0, %v7448
  %7450 = vst [vmem:[%s7417 + $0x6c] sm:$0x1] %v7449
  %v7451 = vld [vmem:[%s7417 + $0x78] sm:$0x1]
  %v7452 = vsel %vm7420, 0, %v7451
  %7453 = vst [vmem:[%s7417 + $0x78] sm:$0x1] %v7452
  %v7454 = vld [vmem:[%s7417 + $0x84] sm:$0x1]
  %v7455 = vsel %vm7420, 0, %v7454
  %7456 = vst [vmem:[%s7417 + $0x84] sm:$0x1] %v7455
  %v7457 = vld [vmem:[%s7417 + $0x90] sm:$0x1]
  %v7458 = vsel %vm7420, 0, %v7457
  %7459 = vst [vmem:[%s7417 + $0x90] sm:$0x1] %v7458
  %v7460 = vld [vmem:[%s7417 + $0x9c] sm:$0x1]
  %v7461 = vsel %vm7420, 0, %v7460
  %7462 = vst [vmem:[%s7417 + $0x9c] sm:$0x1] %v7461
  %v7463 = vld [vmem:[%s7417 + $0xa8] sm:$0x1]
  %v7464 = vsel %vm7420, 0, %v7463
  %7465 = vst [vmem:[%s7417 + $0xa8] sm:$0x1] %v7464
  %v7466 = vld [vmem:[%s7417 + $0xb4] sm:$0x1]
  %v7467 = vsel %vm7420, 0, %v7466
  %7468 = vst [vmem:[%s7417 + $0xb4] sm:$0x1] %v7467
  %v7469 = vld [vmem:[%s7417 + $0xd8] sm:$0x1]
  %v7470 = vsel %vm7420, 0, %v7469
  %7471 = vst [vmem:[%s7417 + $0xd8] sm:$0x1] %v7470
  %v7472 = vld [vmem:[%s7417 + $0xe4] sm:$0x1]
  %v7473 = vsel %vm7420, 0, %v7472
  %7474 = vst [vmem:[%s7417 + $0xe4] sm:$0x1] %v7473
  %v7475 = vld [vmem:[%s7417 + $0xf0] sm:$0x1]
  %v7476 = vsel %vm7420, 0, %v7475
  %7477 = vst [vmem:[%s7417 + $0xf0] sm:$0x1] %v7476
  %v7478 = vld [vmem:[%s7417 + $0xfc] sm:$0x1]
  %v7479 = vsel %vm7420, 0, %v7478
  %7480 = vst [vmem:[%s7417 + $0xfc] sm:$0x1] %v7479
  %v7481 = vld [vmem:[%s7417 + $0x108] sm:$0x1]
  %v7482 = vsel %vm7420, 0, %v7481
  %7483 = vst [vmem:[%s7417 + $0x108] sm:$0x1] %v7482
  %v7484 = vld [vmem:[%s7417 + $0x114] sm:$0x1]
  %v7485 = vsel %vm7420, 0, %v7484
  %7486 = vst [vmem:[%s7417 + $0x114] sm:$0x1] %v7485
  %v7487 = vld [vmem:[%s7417 + $0x120] sm:$0x1]
  %v7488 = vsel %vm7420, 0, %v7487
  %7489 = vst [vmem:[%s7417 + $0x120] sm:$0x1] %v7488
  %v7490 = vld [vmem:[%s7417 + $0x12c] sm:$0x1]
  %v7491 = vsel %vm7420, 0, %v7490
  %7492 = vst [vmem:[%s7417 + $0x12c] sm:$0x1] %v7491
  %v7493 = vld [vmem:[%s7417 + $0x138] sm:$0x1]
  %v7494 = vsel %vm7420, 0, %v7493
  %7495 = vst [vmem:[%s7417 + $0x138] sm:$0x1] %v7494
  %v7496 = vld [vmem:[%s7417 + $0x144] sm:$0x1]
  %v7497 = vsel %vm7420, 0, %v7496
  %7498 = vst [vmem:[%s7417 + $0x144] sm:$0x1] %v7497
  %v7499 = vld [vmem:[%s7417 + $0x150] sm:$0x1]
  %v7500 = vsel %vm7420, 0, %v7499
  %7501 = vst [vmem:[%s7417 + $0x150] sm:$0x1] %v7500
  %v7502 = vld [vmem:[%s7417 + $0x15c] sm:$0x1]
  %v7503 = vsel %vm7420, 0, %v7502
  %7504 = vst [vmem:[%s7417 + $0x15c] sm:$0x1] %v7503
  %v7505 = vld [vmem:[%s7417 + $0x168] sm:$0x1]
  %v7506 = vsel %vm7420, 0, %v7505
  %7507 = vst [vmem:[%s7417 + $0x168] sm:$0x1] %v7506
  %v7508 = vld [vmem:[%s7417 + $0x174] sm:$0x1]
  %v7509 = vsel %vm7420, 0, %v7508
  %7510 = vst [vmem:[%s7417 + $0x174] sm:$0x1] %v7509
  %v7511 = vld [vmem:[%s7417 + $0x180] sm:$0x1]
  %v7512 = vsel %vm7420, 0, %v7511
  %7513 = vst [vmem:[%s7417 + $0x180] sm:$0x1] %v7512
  %v7514 = vld [vmem:[%s7417 + $0x18c] sm:$0x1]
  %v7515 = vsel %vm7420, 0, %v7514
  %7516 = vst [vmem:[%s7417 + $0x18c] sm:$0x1] %v7515
  %vm7517 = vsmask.f32 7938
  %vm7518 = vmand %vm7418, %vm7517
  %v7519 = vld [vmem:[%s7417 + $0x8] sm:$0x1]
  %v7520 = vsel %vm7518, 0, %v7519
  %7521 = vst [vmem:[%s7417 + $0x8] sm:$0x1] %v7520
  %v7522 = vld [vmem:[%s7417 + $0x14] sm:$0x1]
  %v7523 = vsel %vm7518, 0, %v7522
  %7524 = vst [vmem:[%s7417 + $0x14] sm:$0x1] %v7523
  %v7525 = vld [vmem:[%s7417 + $0x20] sm:$0x1]
  %v7526 = vsel %vm7518, 0, %v7525
  %7527 = vst [vmem:[%s7417 + $0x20] sm:$0x1] %v7526
  %v7528 = vld [vmem:[%s7417 + $0x2c] sm:$0x1]
  %v7529 = vsel %vm7518, 0, %v7528
  %7530 = vst [vmem:[%s7417 + $0x2c] sm:$0x1] %v7529
  %v7531 = vld [vmem:[%s7417 + $0x38] sm:$0x1]
  %v7532 = vsel %vm7518, 0, %v7531
  %7533 = vst [vmem:[%s7417 + $0x38] sm:$0x1] %v7532
  %v7534 = vld [vmem:[%s7417 + $0x44] sm:$0x1]
  %v7535 = vsel %vm7518, 0, %v7534
  %7536 = vst [vmem:[%s7417 + $0x44] sm:$0x1] %v7535
  %v7537 = vld [vmem:[%s7417 + $0x50] sm:$0x1]
  %v7538 = vsel %vm7518, 0, %v7537
  %7539 = vst [vmem:[%s7417 + $0x50] sm:$0x1] %v7538
  %v7540 = vld [vmem:[%s7417 + $0x5c] sm:$0x1]
  %v7541 = vsel %vm7518, 0, %v7540
  %7542 = vst [vmem:[%s7417 + $0x5c] sm:$0x1] %v7541
  %v7543 = vld [vmem:[%s7417 + $0x68] sm:$0x1]
  %v7544 = vsel %vm7518, 0, %v7543
  %7545 = vst [vmem:[%s7417 + $0x68] sm:$0x1] %v7544
  %v7546 = vld [vmem:[%s7417 + $0x74] sm:$0x1]
  %v7547 = vsel %vm7518, 0, %v7546
  %7548 = vst [vmem:[%s7417 + $0x74] sm:$0x1] %v7547
  %v7549 = vld [vmem:[%s7417 + $0x80] sm:$0x1]
  %v7550 = vsel %vm7518, 0, %v7549
  %7551 = vst [vmem:[%s7417 + $0x80] sm:$0x1] %v7550
  %v7552 = vld [vmem:[%s7417 + $0x8c] sm:$0x1]
  %v7553 = vsel %vm7518, 0, %v7552
  %7554 = vst [vmem:[%s7417 + $0x8c] sm:$0x1] %v7553
  %v7555 = vld [vmem:[%s7417 + $0x98] sm:$0x1]
  %v7556 = vsel %vm7518, 0, %v7555
  %7557 = vst [vmem:[%s7417 + $0x98] sm:$0x1] %v7556
  %v7558 = vld [vmem:[%s7417 + $0xa4] sm:$0x1]
  %v7559 = vsel %vm7518, 0, %v7558
  %7560 = vst [vmem:[%s7417 + $0xa4] sm:$0x1] %v7559
  %v7561 = vld [vmem:[%s7417 + $0xb0] sm:$0x1]
  %v7562 = vsel %vm7518, 0, %v7561
  %7563 = vst [vmem:[%s7417 + $0xb0] sm:$0x1] %v7562
  %v7564 = vld [vmem:[%s7417 + $0xbc] sm:$0x1]
  %v7565 = vsel %vm7518, 0, %v7564
  %7566 = vst [vmem:[%s7417 + $0xbc] sm:$0x1] %v7565
  %v7567 = vld [vmem:[%s7417 + $0xe0] sm:$0x1]
  %v7568 = vsel %vm7518, 0, %v7567
  %7569 = vst [vmem:[%s7417 + $0xe0] sm:$0x1] %v7568
  %v7570 = vld [vmem:[%s7417 + $0xec] sm:$0x1]
  %v7571 = vsel %vm7518, 0, %v7570
  %7572 = vst [vmem:[%s7417 + $0xec] sm:$0x1] %v7571
  %v7573 = vld [vmem:[%s7417 + $0xf8] sm:$0x1]
  %v7574 = vsel %vm7518, 0, %v7573
  %7575 = vst [vmem:[%s7417 + $0xf8] sm:$0x1] %v7574
  %v7576 = vld [vmem:[%s7417 + $0x104] sm:$0x1]
  %v7577 = vsel %vm7518, 0, %v7576
  %7578 = vst [vmem:[%s7417 + $0x104] sm:$0x1] %v7577
  %v7579 = vld [vmem:[%s7417 + $0x110] sm:$0x1]
  %v7580 = vsel %vm7518, 0, %v7579
  %7581 = vst [vmem:[%s7417 + $0x110] sm:$0x1] %v7580
  %v7582 = vld [vmem:[%s7417 + $0x11c] sm:$0x1]
  %v7583 = vsel %vm7518, 0, %v7582
  %7584 = vst [vmem:[%s7417 + $0x11c] sm:$0x1] %v7583
  %v7585 = vld [vmem:[%s7417 + $0x128] sm:$0x1]
  %v7586 = vsel %vm7518, 0, %v7585
  %7587 = vst [vmem:[%s7417 + $0x128] sm:$0x1] %v7586
  %v7588 = vld [vmem:[%s7417 + $0x134] sm:$0x1]
  %v7589 = vsel %vm7518, 0, %v7588
  %7590 = vst [vmem:[%s7417 + $0x134] sm:$0x1] %v7589
  %v7591 = vld [vmem:[%s7417 + $0x140] sm:$0x1]
  %v7592 = vsel %vm7518, 0, %v7591
  %7593 = vst [vmem:[%s7417 + $0x140] sm:$0x1] %v7592
  %v7594 = vld [vmem:[%s7417 + $0x14c] sm:$0x1]
  %v7595 = vsel %vm7518, 0, %v7594
  %7596 = vst [vmem:[%s7417 + $0x14c] sm:$0x1] %v7595
  %v7597 = vld [vmem:[%s7417 + $0x158] sm:$0x1]
  %v7598 = vsel %vm7518, 0, %v7597
  %7599 = vst [vmem:[%s7417 + $0x158] sm:$0x1] %v7598
  %v7600 = vld [vmem:[%s7417 + $0x164] sm:$0x1]
  %v7601 = vsel %vm7518, 0, %v7600
  %7602 = vst [vmem:[%s7417 + $0x164] sm:$0x1] %v7601
  %v7603 = vld [vmem:[%s7417 + $0x170] sm:$0x1]
  %v7604 = vsel %vm7518, 0, %v7603
  %7605 = vst [vmem:[%s7417 + $0x170] sm:$0x1] %v7604
  %v7606 = vld [vmem:[%s7417 + $0x17c] sm:$0x1]
  %v7607 = vsel %vm7518, 0, %v7606
  %7608 = vst [vmem:[%s7417 + $0x17c] sm:$0x1] %v7607
  %v7609 = vld [vmem:[%s7417 + $0x188] sm:$0x1]
  %v7610 = vsel %vm7518, 0, %v7609
  %7611 = vst [vmem:[%s7417 + $0x188] sm:$0x1] %v7610
  %v7612 = vld [vmem:[%s7417 + $0x194] sm:$0x1]
  %v7613 = vsel %vm7518, 0, %v7612
  %7614 = vst [vmem:[%s7417 + $0x194] sm:$0x1] %v7613
  %v7647 = vunpack.c.l.b16 %v7372
  %v7648 = vunpack.c.h.b16 %v7372
  %v7649 = vunpack.c.l.b16 %v7373
  %v7650 = vunpack.c.h.b16 %v7373
  %v7651 = vunpack.c.l.b16 %v7374
  %v7652 = vunpack.c.h.b16 %v7374
  %v7653 = vunpack.c.l.b16 %v7375
  %v7654 = vunpack.c.h.b16 %v7375
  %v7655 = vunpack.c.l.b16 %v7376
  %v7656 = vunpack.c.h.b16 %v7376
  %v7657 = vunpack.c.l.b16 %v7377
  %v7658 = vunpack.c.h.b16 %v7377
  %v7659 = vunpack.c.l.b16 %v7378
  %v7660 = vunpack.c.h.b16 %v7378
  %v7661 = vunpack.c.l.b16 %v7379
  %v7662 = vunpack.c.h.b16 %v7379
  %v7663 = vunpack.c.l.b16 %v7380
  %v7664 = vunpack.c.h.b16 %v7380
  %v7665 = vunpack.c.l.b16 %v7381
  %v7666 = vunpack.c.h.b16 %v7381
  %v7667 = vunpack.c.l.b16 %v7382
  %v7668 = vunpack.c.h.b16 %v7382
  %v7669 = vunpack.c.l.b16 %v7383
  %v7670 = vunpack.c.h.b16 %v7383
  %v7671 = vunpack.c.l.b16 %v7384
  %v7672 = vunpack.c.h.b16 %v7384
  %v7673 = vunpack.c.l.b16 %v7385
  %v7674 = vunpack.c.h.b16 %v7385
  %v7675 = vunpack.c.l.b16 %v7386
  %v7676 = vunpack.c.h.b16 %v7386
  %v7677 = vunpack.c.l.b16 %v7387
  %v7678 = vunpack.c.h.b16 %v7387
  %v7679 = vunpack.c.l.b16 %v7388
  %v7680 = vunpack.c.h.b16 %v7388
  %v7681 = vunpack.c.l.b16 %v7389
  %v7682 = vunpack.c.h.b16 %v7389
  %v7683 = vunpack.c.l.b16 %v7390
  %v7684 = vunpack.c.h.b16 %v7390
  %v7685 = vunpack.c.l.b16 %v7391
  %v7686 = vunpack.c.h.b16 %v7391
  %v7687 = vunpack.c.l.b16 %v7392
  %v7688 = vunpack.c.h.b16 %v7392
  %v7689 = vunpack.c.l.b16 %v7393
  %v7690 = vunpack.c.h.b16 %v7393
  %v7691 = vunpack.c.l.b16 %v7394
  %v7692 = vunpack.c.h.b16 %v7394
  %v7693 = vunpack.c.l.b16 %v7395
  %v7694 = vunpack.c.h.b16 %v7395
  %v7695 = vunpack.c.l.b16 %v7396
  %v7696 = vunpack.c.h.b16 %v7396
  %v7697 = vunpack.c.l.b16 %v7397
  %v7698 = vunpack.c.h.b16 %v7397
  %v7699 = vunpack.c.l.b16 %v7398
  %v7700 = vunpack.c.h.b16 %v7398
  %v7701 = vunpack.c.l.b16 %v7399
  %v7702 = vunpack.c.h.b16 %v7399
  %v7703 = vunpack.c.l.b16 %v7400
  %v7704 = vunpack.c.h.b16 %v7400
  %v7705 = vunpack.c.l.b16 %v7401
  %v7706 = vunpack.c.h.b16 %v7401
  %v7707 = vunpack.c.l.b16 %v7402
  %v7708 = vunpack.c.h.b16 %v7402
  %v7709 = vunpack.c.l.b16 %v7403
  %v7710 = vunpack.c.h.b16 %v7403
  %v7711 = vpack.c.b16 %v7647, %v7647
  %v7712 = vpack.c.b16 %v7648, %v7648
  %v7713 = vpack.c.b16 %v7649, %v7649
  %v7714 = vpack.c.b16 %v7650, %v7650
  %v7715 = vpack.c.b16 %v7651, %v7651
  %v7716 = vpack.c.b16 %v7652, %v7652
  %v7717 = vpack.c.b16 %v7653, %v7653
  %v7718 = vpack.c.b16 %v7654, %v7654
  %v7719 = vpack.c.b16 %v7655, %v7655
  %v7720 = vpack.c.b16 %v7656, %v7656
  %v7721 = vpack.c.b16 %v7657, %v7657
  %v7722 = vpack.c.b16 %v7658, %v7658
  %v7723 = vpack.c.b16 %v7659, %v7659
  %v7724 = vpack.c.b16 %v7660, %v7660
  %v7725 = vpack.c.b16 %v7661, %v7661
  %v7726 = vpack.c.b16 %v7662, %v7662
  %v7727 = vpack.c.b16 %v7663, %v7663
  %v7728 = vpack.c.b16 %v7664, %v7664
  %v7729 = vpack.c.b16 %v7665, %v7665
  %v7730 = vpack.c.b16 %v7666, %v7666
  %v7731 = vpack.c.b16 %v7667, %v7667
  %v7732 = vpack.c.b16 %v7668, %v7668
  %v7733 = vpack.c.b16 %v7669, %v7669
  %v7734 = vpack.c.b16 %v7670, %v7670
  %v7735 = vpack.c.b16 %v7671, %v7671
  %v7736 = vpack.c.b16 %v7672, %v7672
  %v7737 = vpack.c.b16 %v7673, %v7673
  %v7738 = vpack.c.b16 %v7674, %v7674
  %v7739 = vpack.c.b16 %v7675, %v7675
  %v7740 = vpack.c.b16 %v7676, %v7676
  %v7741 = vpack.c.b16 %v7677, %v7677
  %v7742 = vpack.c.b16 %v7678, %v7678
  %v7743 = vpack.c.b16 %v7679, %v7679
  %v7744 = vpack.c.b16 %v7680, %v7680
  %v7745 = vpack.c.b16 %v7681, %v7681
  %v7746 = vpack.c.b16 %v7682, %v7682
  %v7747 = vpack.c.b16 %v7683, %v7683
  %v7748 = vpack.c.b16 %v7684, %v7684
  %v7749 = vpack.c.b16 %v7685, %v7685
  %v7750 = vpack.c.b16 %v7686, %v7686
  %v7751 = vpack.c.b16 %v7687, %v7687
  %v7752 = vpack.c.b16 %v7688, %v7688
  %v7753 = vpack.c.b16 %v7689, %v7689
  %v7754 = vpack.c.b16 %v7690, %v7690
  %v7755 = vpack.c.b16 %v7691, %v7691
  %v7756 = vpack.c.b16 %v7692, %v7692
  %v7757 = vpack.c.b16 %v7693, %v7693
  %v7758 = vpack.c.b16 %v7694, %v7694
  %v7759 = vpack.c.b16 %v7695, %v7695
  %v7760 = vpack.c.b16 %v7696, %v7696
  %v7761 = vpack.c.b16 %v7697, %v7697
  %v7762 = vpack.c.b16 %v7698, %v7698
  %v7763 = vpack.c.b16 %v7699, %v7699
  %v7764 = vpack.c.b16 %v7700, %v7700
  %v7765 = vpack.c.b16 %v7701, %v7701
  %v7766 = vpack.c.b16 %v7702, %v7702
  %v7767 = vpack.c.b16 %v7703, %v7703
  %v7768 = vpack.c.b16 %v7704, %v7704
  %v7769 = vpack.c.b16 %v7705, %v7705
  %v7770 = vpack.c.b16 %v7706, %v7706
  %v7771 = vpack.c.b16 %v7707, %v7707
  %v7772 = vpack.c.b16 %v7708, %v7708
  %v7773 = vpack.c.b16 %v7709, %v7709
  %v7774 = vpack.c.b16 %v7710, %v7710
  %vm7775 = vsmask.f32 4368
  %vm7776 = vmor %vm7419, %vm7775
  %v7778 = vshrl.u32 %v7711, 16
  %v7780 = vrot.slane %v7778, 7
  %v7781 = vshll.u32 %v7711, 16
  %v7783 = vor.u32 %v7780, %v7781
  %v7784 = vrot.slane %v7780, 4
  %v7786 = vshrl.u32 %v7712, 16
  %v7788 = vrot.slane %v7786, 7
  %v7789 = vshll.u32 %v7712, 16
  %v7791 = vor.u32 %v7788, %v7789
  %v7792 = vsel %vm7776, %v7784, %v7791
  %v7793 = vrot.slane %v7788, 4
  %v7795 = vshrl.u32 %v7713, 16
  %v7797 = vrot.slane %v7795, 7
  %v7798 = vshll.u32 %v7713, 16
  %v7800 = vor.u32 %v7797, %v7798
  %v7801 = vrot.slane %v7797, 4
  %v7803 = vshrl.u32 %v7714, 16
  %v7805 = vrot.slane %v7803, 7
  %v7806 = vshll.u32 %v7714, 16
  %v7808 = vor.u32 %v7805, %v7806
  %v7809 = vsel %vm7776, %v7801, %v7808
  %v7810 = vrot.slane %v7805, 4
  %v7812 = vshrl.u32 %v7715, 16
  %v7814 = vrot.slane %v7812, 7
  %v7815 = vshll.u32 %v7715, 16
  %v7817 = vor.u32 %v7814, %v7815
  %v7818 = vrot.slane %v7814, 4
  %v7820 = vshrl.u32 %v7716, 16
  %v7822 = vrot.slane %v7820, 7
  %v7823 = vshll.u32 %v7716, 16
  %v7825 = vor.u32 %v7822, %v7823
  %v7826 = vsel %vm7776, %v7818, %v7825
  %v7827 = vrot.slane %v7822, 4
  %v7829 = vshrl.u32 %v7717, 16
  %v7831 = vrot.slane %v7829, 7
  %v7832 = vshll.u32 %v7717, 16
  %v7834 = vor.u32 %v7831, %v7832
  %v7835 = vrot.slane %v7831, 4
  %v7837 = vshrl.u32 %v7718, 16
  %v7839 = vrot.slane %v7837, 7
  %v7840 = vshll.u32 %v7718, 16
  %v7842 = vor.u32 %v7839, %v7840
  %v7843 = vsel %vm7776, %v7835, %v7842
  %v7844 = vrot.slane %v7839, 4
  %v7846 = vshrl.u32 %v7719, 16
  %v7848 = vrot.slane %v7846, 7
  %v7849 = vshll.u32 %v7719, 16
  %v7851 = vor.u32 %v7848, %v7849
  %v7852 = vrot.slane %v7848, 4
  %v7854 = vshrl.u32 %v7720, 16
  %v7856 = vrot.slane %v7854, 7
  %v7857 = vshll.u32 %v7720, 16
  %v7859 = vor.u32 %v7856, %v7857
  %v7860 = vsel %vm7776, %v7852, %v7859
  %v7861 = vrot.slane %v7856, 4
  %v7863 = vshrl.u32 %v7721, 16
  %v7865 = vrot.slane %v7863, 7
  %v7866 = vshll.u32 %v7721, 16
  %v7868 = vor.u32 %v7865, %v7866
  %v7869 = vrot.slane %v7865, 4
  %v7871 = vshrl.u32 %v7722, 16
  %v7873 = vrot.slane %v7871, 7
  %v7874 = vshll.u32 %v7722, 16
  %v7876 = vor.u32 %v7873, %v7874
  %v7877 = vsel %vm7776, %v7869, %v7876
  %v7878 = vrot.slane %v7873, 4
  %v7880 = vshrl.u32 %v7723, 16
  %v7882 = vrot.slane %v7880, 7
  %v7883 = vshll.u32 %v7723, 16
  %v7885 = vor.u32 %v7882, %v7883
  %v7886 = vrot.slane %v7882, 4
  %v7888 = vshrl.u32 %v7724, 16
  %v7890 = vrot.slane %v7888, 7
  %v7891 = vshll.u32 %v7724, 16
  %v7893 = vor.u32 %v7890, %v7891
  %v7894 = vsel %vm7776, %v7886, %v7893
  %v7895 = vrot.slane %v7890, 4
  %v7897 = vshrl.u32 %v7725, 16
  %v7899 = vrot.slane %v7897, 7
  %v7900 = vshll.u32 %v7725, 16
  %v7902 = vor.u32 %v7899, %v7900
  %v7903 = vrot.slane %v7899, 4
  %v7905 = vshrl.u32 %v7726, 16
  %v7907 = vrot.slane %v7905, 7
  %v7908 = vshll.u32 %v7726, 16
  %v7910 = vor.u32 %v7907, %v7908
  %v7911 = vsel %vm7776, %v7903, %v7910
  %v7912 = vrot.slane %v7907, 4
  %v7914 = vshrl.u32 %v7727, 16
  %v7916 = vrot.slane %v7914, 7
  %v7917 = vshll.u32 %v7727, 16
  %v7919 = vor.u32 %v7916, %v7917
  %v7920 = vrot.slane %v7916, 4
  %v7922 = vshrl.u32 %v7728, 16
  %v7924 = vrot.slane %v7922, 7
  %v7925 = vshll.u32 %v7728, 16
  %v7927 = vor.u32 %v7924, %v7925
  %v7928 = vsel %vm7776, %v7920, %v7927
  %v7929 = vrot.slane %v7924, 4
  %v7931 = vshrl.u32 %v7729, 16
  %v7933 = vrot.slane %v7931, 7
  %v7934 = vshll.u32 %v7729, 16
  %v7936 = vor.u32 %v7933, %v7934
  %v7937 = vrot.slane %v7933, 4
  %v7939 = vshrl.u32 %v7730, 16
  %v7941 = vrot.slane %v7939, 7
  %v7942 = vshll.u32 %v7730, 16
  %v7944 = vor.u32 %v7941, %v7942
  %v7945 = vsel %vm7776, %v7937, %v7944
  %v7946 = vrot.slane %v7941, 4
  %v7948 = vshrl.u32 %v7731, 16
  %v7950 = vrot.slane %v7948, 7
  %v7951 = vshll.u32 %v7731, 16
  %v7953 = vor.u32 %v7950, %v7951
  %v7954 = vrot.slane %v7950, 4
  %v7956 = vshrl.u32 %v7732, 16
  %v7958 = vrot.slane %v7956, 7
  %v7959 = vshll.u32 %v7732, 16
  %v7961 = vor.u32 %v7958, %v7959
  %v7962 = vsel %vm7776, %v7954, %v7961
  %v7963 = vrot.slane %v7958, 4
  %v7965 = vshrl.u32 %v7733, 16
  %v7967 = vrot.slane %v7965, 7
  %v7968 = vshll.u32 %v7733, 16
  %v7970 = vor.u32 %v7967, %v7968
  %v7971 = vrot.slane %v7967, 4
  %v7973 = vshrl.u32 %v7734, 16
  %v7975 = vrot.slane %v7973, 7
  %v7976 = vshll.u32 %v7734, 16
  %v7978 = vor.u32 %v7975, %v7976
  %v7979 = vsel %vm7776, %v7971, %v7978
  %v7980 = vrot.slane %v7975, 4
  %v7982 = vshrl.u32 %v7735, 16
  %v7984 = vrot.slane %v7982, 7
  %v7985 = vshll.u32 %v7735, 16
  %v7987 = vor.u32 %v7984, %v7985
  %v7988 = vrot.slane %v7984, 4
  %v7990 = vshrl.u32 %v7736, 16
  %v7992 = vrot.slane %v7990, 7
  %v7993 = vshll.u32 %v7736, 16
  %v7995 = vor.u32 %v7992, %v7993
  %v7996 = vsel %vm7776, %v7988, %v7995
  %v7997 = vrot.slane %v7992, 4
  %v7999 = vshrl.u32 %v7737, 16
  %v8001 = vrot.slane %v7999, 7
  %v8002 = vshll.u32 %v7737, 16
  %v8004 = vor.u32 %v8001, %v8002
  %v8005 = vrot.slane %v8001, 4
  %v8007 = vshrl.u32 %v7738, 16
  %v8009 = vrot.slane %v8007, 7
  %v8010 = vshll.u32 %v7738, 16
  %v8012 = vor.u32 %v8009, %v8010
  %v8013 = vsel %vm7776, %v8005, %v8012
  %v8014 = vrot.slane %v8009, 4
  %v8016 = vshrl.u32 %v7739, 16
  %v8018 = vrot.slane %v8016, 7
  %v8019 = vshll.u32 %v7739, 16
  %v8021 = vor.u32 %v8018, %v8019
  %v8022 = vrot.slane %v8018, 4
  %v8024 = vshrl.u32 %v7740, 16
  %v8026 = vrot.slane %v8024, 7
  %v8027 = vshll.u32 %v7740, 16
  %v8029 = vor.u32 %v8026, %v8027
  %v8030 = vsel %vm7776, %v8022, %v8029
  %v8031 = vrot.slane %v8026, 4
  %v8033 = vshrl.u32 %v7741, 16
  %v8035 = vrot.slane %v8033, 7
  %v8036 = vshll.u32 %v7741, 16
  %v8038 = vor.u32 %v8035, %v8036
  %v8039 = vrot.slane %v8035, 4
  %v8041 = vshrl.u32 %v7742, 16
  %v8043 = vrot.slane %v8041, 7
  %v8044 = vshll.u32 %v7742, 16
  %v8046 = vor.u32 %v8043, %v8044
  %v8047 = vsel %vm7776, %v8039, %v8046
  %v8048 = vrot.slane %v8043, 4
  %v8050 = vshrl.u32 %v7743, 16
  %v8052 = vrot.slane %v8050, 7
  %v8053 = vshll.u32 %v7743, 16
  %v8055 = vor.u32 %v8052, %v8053
  %v8056 = vrot.slane %v8052, 4
  %v8058 = vshrl.u32 %v7744, 16
  %v8060 = vrot.slane %v8058, 7
  %v8061 = vshll.u32 %v7744, 16
  %v8063 = vor.u32 %v8060, %v8061
  %v8064 = vsel %vm7776, %v8056, %v8063
  %v8065 = vrot.slane %v8060, 4
  %v8067 = vshrl.u32 %v7745, 16
  %v8069 = vrot.slane %v8067, 7
  %v8070 = vshll.u32 %v7745, 16
  %v8072 = vor.u32 %v8069, %v8070
  %v8073 = vrot.slane %v8069, 4
  %v8075 = vshrl.u32 %v7746, 16
  %v8077 = vrot.slane %v8075, 7
  %v8078 = vshll.u32 %v7746, 16
  %v8080 = vor.u32 %v8077, %v8078
  %v8081 = vsel %vm7776, %v8073, %v8080
  %v8082 = vrot.slane %v8077, 4
  %v8084 = vshrl.u32 %v7747, 16
  %v8086 = vrot.slane %v8084, 7
  %v8087 = vshll.u32 %v7747, 16
  %v8089 = vor.u32 %v8086, %v8087
  %v8090 = vrot.slane %v8086, 4
  %v8092 = vshrl.u32 %v7748, 16
  %v8094 = vrot.slane %v8092, 7
  %v8095 = vshll.u32 %v7748, 16
  %v8097 = vor.u32 %v8094, %v8095
  %v8098 = vsel %vm7776, %v8090, %v8097
  %v8099 = vrot.slane %v8094, 4
  %v8101 = vshrl.u32 %v7749, 16
  %v8103 = vrot.slane %v8101, 7
  %v8104 = vshll.u32 %v7749, 16
  %v8106 = vor.u32 %v8103, %v8104
  %v8107 = vrot.slane %v8103, 4
  %v8109 = vshrl.u32 %v7750, 16
  %v8111 = vrot.slane %v8109, 7
  %v8112 = vshll.u32 %v7750, 16
  %v8114 = vor.u32 %v8111, %v8112
  %v8115 = vsel %vm7776, %v8107, %v8114
  %v8116 = vrot.slane %v8111, 4
  %v8118 = vshrl.u32 %v7751, 16
  %v8120 = vrot.slane %v8118, 7
  %v8121 = vshll.u32 %v7751, 16
  %v8123 = vor.u32 %v8120, %v8121
  %v8124 = vrot.slane %v8120, 4
  %v8126 = vshrl.u32 %v7752, 16
  %v8128 = vrot.slane %v8126, 7
  %v8129 = vshll.u32 %v7752, 16
  %v8131 = vor.u32 %v8128, %v8129
  %v8132 = vsel %vm7776, %v8124, %v8131
  %v8133 = vrot.slane %v8128, 4
  %v8135 = vshrl.u32 %v7753, 16
  %v8137 = vrot.slane %v8135, 7
  %v8138 = vshll.u32 %v7753, 16
  %v8140 = vor.u32 %v8137, %v8138
  %v8141 = vrot.slane %v8137, 4
  %v8143 = vshrl.u32 %v7754, 16
  %v8145 = vrot.slane %v8143, 7
  %v8146 = vshll.u32 %v7754, 16
  %v8148 = vor.u32 %v8145, %v8146
  %v8149 = vsel %vm7776, %v8141, %v8148
  %v8150 = vrot.slane %v8145, 4
  %v8152 = vshrl.u32 %v7755, 16
  %v8154 = vrot.slane %v8152, 7
  %v8155 = vshll.u32 %v7755, 16
  %v8157 = vor.u32 %v8154, %v8155
  %v8158 = vrot.slane %v8154, 4
  %v8160 = vshrl.u32 %v7756, 16
  %v8162 = vrot.slane %v8160, 7
  %v8163 = vshll.u32 %v7756, 16
  %v8165 = vor.u32 %v8162, %v8163
  %v8166 = vsel %vm7776, %v8158, %v8165
  %v8167 = vrot.slane %v8162, 4
  %v8169 = vshrl.u32 %v7757, 16
  %v8171 = vrot.slane %v8169, 7
  %v8172 = vshll.u32 %v7757, 16
  %v8174 = vor.u32 %v8171, %v8172
  %v8175 = vrot.slane %v8171, 4
  %v8177 = vshrl.u32 %v7758, 16
  %v8179 = vrot.slane %v8177, 7
  %v8180 = vshll.u32 %v7758, 16
  %v8182 = vor.u32 %v8179, %v8180
  %v8183 = vsel %vm7776, %v8175, %v8182
  %v8184 = vrot.slane %v8179, 4
  %v8186 = vshrl.u32 %v7759, 16
  %v8188 = vrot.slane %v8186, 7
  %v8189 = vshll.u32 %v7759, 16
  %v8191 = vor.u32 %v8188, %v8189
  %v8192 = vrot.slane %v8188, 4
  %v8194 = vshrl.u32 %v7760, 16
  %v8196 = vrot.slane %v8194, 7
  %v8197 = vshll.u32 %v7760, 16
  %v8199 = vor.u32 %v8196, %v8197
  %v8200 = vsel %vm7776, %v8192, %v8199
  %v8201 = vrot.slane %v8196, 4
  %v8203 = vshrl.u32 %v7761, 16
  %v8205 = vrot.slane %v8203, 7
  %v8206 = vshll.u32 %v7761, 16
  %v8208 = vor.u32 %v8205, %v8206
  %v8209 = vrot.slane %v8205, 4
  %v8211 = vshrl.u32 %v7762, 16
  %v8213 = vrot.slane %v8211, 7
  %v8214 = vshll.u32 %v7762, 16
  %v8216 = vor.u32 %v8213, %v8214
  %v8217 = vsel %vm7776, %v8209, %v8216
  %v8218 = vrot.slane %v8213, 4
  %v8220 = vshrl.u32 %v7763, 16
  %v8222 = vrot.slane %v8220, 7
  %v8223 = vshll.u32 %v7763, 16
  %v8225 = vor.u32 %v8222, %v8223
  %v8226 = vrot.slane %v8222, 4
  %v8228 = vshrl.u32 %v7764, 16
  %v8230 = vrot.slane %v8228, 7
  %v8231 = vshll.u32 %v7764, 16
  %v8233 = vor.u32 %v8230, %v8231
  %v8234 = vsel %vm7776, %v8226, %v8233
  %v8235 = vrot.slane %v8230, 4
  %v8237 = vshrl.u32 %v7765, 16
  %v8239 = vrot.slane %v8237, 7
  %v8240 = vshll.u32 %v7765, 16
  %v8242 = vor.u32 %v8239, %v8240
  %v8243 = vrot.slane %v8239, 4
  %v8245 = vshrl.u32 %v7766, 16
  %v8247 = vrot.slane %v8245, 7
  %v8248 = vshll.u32 %v7766, 16
  %v8250 = vor.u32 %v8247, %v8248
  %v8251 = vsel %vm7776, %v8243, %v8250
  %v8252 = vrot.slane %v8247, 4
  %v8254 = vshrl.u32 %v7767, 16
  %v8256 = vrot.slane %v8254, 7
  %v8257 = vshll.u32 %v7767, 16
  %v8259 = vor.u32 %v8256, %v8257
  %v8260 = vrot.slane %v8256, 4
  %v8262 = vshrl.u32 %v7768, 16
  %v8264 = vrot.slane %v8262, 7
  %v8265 = vshll.u32 %v7768, 16
  %v8267 = vor.u32 %v8264, %v8265
  %v8268 = vsel %vm7776, %v8260, %v8267
  %v8269 = vrot.slane %v8264, 4
  %v8271 = vshrl.u32 %v7769, 16
  %v8273 = vrot.slane %v8271, 7
  %v8274 = vshll.u32 %v7769, 16
  %v8276 = vor.u32 %v8273, %v8274
  %v8277 = vrot.slane %v8273, 4
  %v8279 = vshrl.u32 %v7770, 16
  %v8281 = vrot.slane %v8279, 7
  %v8282 = vshll.u32 %v7770, 16
  %v8284 = vor.u32 %v8281, %v8282
  %v8285 = vsel %vm7776, %v8277, %v8284
  %v8286 = vrot.slane %v8281, 4
  %v8288 = vshrl.u32 %v7771, 16
  %v8290 = vrot.slane %v8288, 7
  %v8291 = vshll.u32 %v7771, 16
  %v8293 = vor.u32 %v8290, %v8291
  %v8294 = vrot.slane %v8290, 4
  %v8296 = vshrl.u32 %v7772, 16
  %v8298 = vrot.slane %v8296, 7
  %v8299 = vshll.u32 %v7772, 16
  %v8301 = vor.u32 %v8298, %v8299
  %v8302 = vsel %vm7776, %v8294, %v8301
  %v8303 = vrot.slane %v8298, 4
  %v8305 = vshrl.u32 %v7773, 16
  %v8307 = vrot.slane %v8305, 7
  %v8308 = vshll.u32 %v7773, 16
  %v8310 = vor.u32 %v8307, %v8308
  %v8311 = vrot.slane %v8307, 4
  %v8313 = vshrl.u32 %v7774, 16
  %v8315 = vrot.slane %v8313, 7
  %v8316 = vshll.u32 %v7774, 16
  %v8318 = vor.u32 %v8315, %v8316
  %v8319 = vsel %vm7776, %v8311, %v8318
  %v8320 = vrot.slane %v8315, 4
  %vm8417 = vcmask 1043456
  %vm8418 = vmand %vm8417, %vm7517
  %v8419 = vld [vmem:[%s7417] sm:$0xf]
  %v8420 = vsel %vm8418, %v7783, %v8419
  %8421 = vst [vmem:[%s7417] sm:$0xf] %v8420
  %8422 = vst [vmem:[%s7417 + $0x4] sm:$0xf] %v7792
  %v8423 = vld [vmem:[%s7417 + $0x8] sm:$0x1]
  %v8424 = vsel %vm7420, %v7793, %v8423
  %8425 = vst [vmem:[%s7417 + $0x8] sm:$0x1] %v8424
  %v8426 = vld [vmem:[%s7417 + $0xc] sm:$0xf]
  %v8427 = vsel %vm8418, %v7800, %v8426
  %8428 = vst [vmem:[%s7417 + $0xc] sm:$0xf] %v8427
  %8429 = vst [vmem:[%s7417 + $0x10] sm:$0xf] %v7809
  %v8430 = vld [vmem:[%s7417 + $0x14] sm:$0x1]
  %v8431 = vsel %vm7420, %v7810, %v8430
  %8432 = vst [vmem:[%s7417 + $0x14] sm:$0x1] %v8431
  %v8433 = vld [vmem:[%s7417 + $0x18] sm:$0xf]
  %v8434 = vsel %vm8418, %v7817, %v8433
  %8435 = vst [vmem:[%s7417 + $0x18] sm:$0xf] %v8434
  %8436 = vst [vmem:[%s7417 + $0x1c] sm:$0xf] %v7826
  %v8437 = vld [vmem:[%s7417 + $0x20] sm:$0x1]
  %v8438 = vsel %vm7420, %v7827, %v8437
  %8439 = vst [vmem:[%s7417 + $0x20] sm:$0x1] %v8438
  %v8440 = vld [vmem:[%s7417 + $0x24] sm:$0xf]
  %v8441 = vsel %vm8418, %v7834, %v8440
  %8442 = vst [vmem:[%s7417 + $0x24] sm:$0xf] %v8441
  %8443 = vst [vmem:[%s7417 + $0x28] sm:$0xf] %v7843
  %v8444 = vld [vmem:[%s7417 + $0x2c] sm:$0x1]
  %v8445 = vsel %vm7420, %v7844, %v8444
  %8446 = vst [vmem:[%s7417 + $0x2c] sm:$0x1] %v8445
  %v8447 = vld [vmem:[%s7417 + $0x30] sm:$0xf]
  %v8448 = vsel %vm8418, %v7851, %v8447
  %8449 = vst [vmem:[%s7417 + $0x30] sm:$0xf] %v8448
  %8450 = vst [vmem:[%s7417 + $0x34] sm:$0xf] %v7860
  %v8451 = vld [vmem:[%s7417 + $0x38] sm:$0x1]
  %v8452 = vsel %vm7420, %v7861, %v8451
  %8453 = vst [vmem:[%s7417 + $0x38] sm:$0x1] %v8452
  %v8454 = vld [vmem:[%s7417 + $0x3c] sm:$0xf]
  %v8455 = vsel %vm8418, %v7868, %v8454
  %8456 = vst [vmem:[%s7417 + $0x3c] sm:$0xf] %v8455
  %8457 = vst [vmem:[%s7417 + $0x40] sm:$0xf] %v7877
  %v8458 = vld [vmem:[%s7417 + $0x44] sm:$0x1]
  %v8459 = vsel %vm7420, %v7878, %v8458
  %8460 = vst [vmem:[%s7417 + $0x44] sm:$0x1] %v8459
  %v8461 = vld [vmem:[%s7417 + $0x48] sm:$0xf]
  %v8462 = vsel %vm8418, %v7885, %v8461
  %8463 = vst [vmem:[%s7417 + $0x48] sm:$0xf] %v8462
  %8464 = vst [vmem:[%s7417 + $0x4c] sm:$0xf] %v7894
  %v8465 = vld [vmem:[%s7417 + $0x50] sm:$0x1]
  %v8466 = vsel %vm7420, %v7895, %v8465
  %8467 = vst [vmem:[%s7417 + $0x50] sm:$0x1] %v8466
  %v8468 = vld [vmem:[%s7417 + $0x54] sm:$0xf]
  %v8469 = vsel %vm8418, %v7902, %v8468
  %8470 = vst [vmem:[%s7417 + $0x54] sm:$0xf] %v8469
  %8471 = vst [vmem:[%s7417 + $0x58] sm:$0xf] %v7911
  %v8472 = vld [vmem:[%s7417 + $0x5c] sm:$0x1]
  %v8473 = vsel %vm7420, %v7912, %v8472
  %8474 = vst [vmem:[%s7417 + $0x5c] sm:$0x1] %v8473
  %v8475 = vld [vmem:[%s7417 + $0x60] sm:$0xf]
  %v8476 = vsel %vm8418, %v7919, %v8475
  %8477 = vst [vmem:[%s7417 + $0x60] sm:$0xf] %v8476
  %8478 = vst [vmem:[%s7417 + $0x64] sm:$0xf] %v7928
  %v8479 = vld [vmem:[%s7417 + $0x68] sm:$0x1]
  %v8480 = vsel %vm7420, %v7929, %v8479
  %8481 = vst [vmem:[%s7417 + $0x68] sm:$0x1] %v8480
  %v8482 = vld [vmem:[%s7417 + $0x6c] sm:$0xf]
  %v8483 = vsel %vm8418, %v7936, %v8482
  %8484 = vst [vmem:[%s7417 + $0x6c] sm:$0xf] %v8483
  %8485 = vst [vmem:[%s7417 + $0x70] sm:$0xf] %v7945
  %v8486 = vld [vmem:[%s7417 + $0x74] sm:$0x1]
  %v8487 = vsel %vm7420, %v7946, %v8486
  %8488 = vst [vmem:[%s7417 + $0x74] sm:$0x1] %v8487
  %v8489 = vld [vmem:[%s7417 + $0x78] sm:$0xf]
  %v8490 = vsel %vm8418, %v7953, %v8489
  %8491 = vst [vmem:[%s7417 + $0x78] sm:$0xf] %v8490
  %8492 = vst [vmem:[%s7417 + $0x7c] sm:$0xf] %v7962
  %v8493 = vld [vmem:[%s7417 + $0x80] sm:$0x1]
  %v8494 = vsel %vm7420, %v7963, %v8493
  %8495 = vst [vmem:[%s7417 + $0x80] sm:$0x1] %v8494
  %v8496 = vld [vmem:[%s7417 + $0x84] sm:$0xf]
  %v8497 = vsel %vm8418, %v7970, %v8496
  %8498 = vst [vmem:[%s7417 + $0x84] sm:$0xf] %v8497
  %8499 = vst [vmem:[%s7417 + $0x88] sm:$0xf] %v7979
  %v8500 = vld [vmem:[%s7417 + $0x8c] sm:$0x1]
  %v8501 = vsel %vm7420, %v7980, %v8500
  %8502 = vst [vmem:[%s7417 + $0x8c] sm:$0x1] %v8501
  %v8503 = vld [vmem:[%s7417 + $0x90] sm:$0xf]
  %v8504 = vsel %vm8418, %v7987, %v8503
  %8505 = vst [vmem:[%s7417 + $0x90] sm:$0xf] %v8504
  %8506 = vst [vmem:[%s7417 + $0x94] sm:$0xf] %v7996
  %v8507 = vld [vmem:[%s7417 + $0x98] sm:$0x1]
  %v8508 = vsel %vm7420, %v7997, %v8507
  %8509 = vst [vmem:[%s7417 + $0x98] sm:$0x1] %v8508
  %v8510 = vld [vmem:[%s7417 + $0x9c] sm:$0xf]
  %v8511 = vsel %vm8418, %v8004, %v8510
  %8512 = vst [vmem:[%s7417 + $0x9c] sm:$0xf] %v8511
  %8513 = vst [vmem:[%s7417 + $0xa0] sm:$0xf] %v8013
  %v8514 = vld [vmem:[%s7417 + $0xa4] sm:$0x1]
  %v8515 = vsel %vm7420, %v8014, %v8514
  %8516 = vst [vmem:[%s7417 + $0xa4] sm:$0x1] %v8515
  %v8517 = vld [vmem:[%s7417 + $0xa8] sm:$0xf]
  %v8518 = vsel %vm8418, %v8021, %v8517
  %8519 = vst [vmem:[%s7417 + $0xa8] sm:$0xf] %v8518
  %8520 = vst [vmem:[%s7417 + $0xac] sm:$0xf] %v8030
  %v8521 = vld [vmem:[%s7417 + $0xb0] sm:$0x1]
  %v8522 = vsel %vm7420, %v8031, %v8521
  %8523 = vst [vmem:[%s7417 + $0xb0] sm:$0x1] %v8522
  %v8524 = vld [vmem:[%s7417 + $0xb4] sm:$0xf]
  %v8525 = vsel %vm8418, %v8038, %v8524
  %8526 = vst [vmem:[%s7417 + $0xb4] sm:$0xf] %v8525
  %8527 = vst [vmem:[%s7417 + $0xb8] sm:$0xf] %v8047
  %v8528 = vld [vmem:[%s7417 + $0xbc] sm:$0x1]
  %v8529 = vsel %vm7420, %v8048, %v8528
  %8530 = vst [vmem:[%s7417 + $0xbc] sm:$0x1] %v8529
  %v8531 = vld [vmem:[%s7417 + $0xd8] sm:$0xf]
  %v8532 = vsel %vm8418, %v8055, %v8531
  %8533 = vst [vmem:[%s7417 + $0xd8] sm:$0xf] %v8532
  %8534 = vst [vmem:[%s7417 + $0xdc] sm:$0xf] %v8064
  %v8535 = vld [vmem:[%s7417 + $0xe0] sm:$0x1]
  %v8536 = vsel %vm7420, %v8065, %v8535
  %8537 = vst [vmem:[%s7417 + $0xe0] sm:$0x1] %v8536
  %v8538 = vld [vmem:[%s7417 + $0xe4] sm:$0xf]
  %v8539 = vsel %vm8418, %v8072, %v8538
  %8540 = vst [vmem:[%s7417 + $0xe4] sm:$0xf] %v8539
  %8541 = vst [vmem:[%s7417 + $0xe8] sm:$0xf] %v8081
  %v8542 = vld [vmem:[%s7417 + $0xec] sm:$0x1]
  %v8543 = vsel %vm7420, %v8082, %v8542
  %8544 = vst [vmem:[%s7417 + $0xec] sm:$0x1] %v8543
  %v8545 = vld [vmem:[%s7417 + $0xf0] sm:$0xf]
  %v8546 = vsel %vm8418, %v8089, %v8545
  %8547 = vst [vmem:[%s7417 + $0xf0] sm:$0xf] %v8546
  %8548 = vst [vmem:[%s7417 + $0xf4] sm:$0xf] %v8098
  %v8549 = vld [vmem:[%s7417 + $0xf8] sm:$0x1]
  %v8550 = vsel %vm7420, %v8099, %v8549
  %8551 = vst [vmem:[%s7417 + $0xf8] sm:$0x1] %v8550
  %v8552 = vld [vmem:[%s7417 + $0xfc] sm:$0xf]
  %v8553 = vsel %vm8418, %v8106, %v8552
  %8554 = vst [vmem:[%s7417 + $0xfc] sm:$0xf] %v8553
  %8555 = vst [vmem:[%s7417 + $0x100] sm:$0xf] %v8115
  %v8556 = vld [vmem:[%s7417 + $0x104] sm:$0x1]
  %v8557 = vsel %vm7420, %v8116, %v8556
  %8558 = vst [vmem:[%s7417 + $0x104] sm:$0x1] %v8557
  %v8559 = vld [vmem:[%s7417 + $0x108] sm:$0xf]
  %v8560 = vsel %vm8418, %v8123, %v8559
  %8561 = vst [vmem:[%s7417 + $0x108] sm:$0xf] %v8560
  %8562 = vst [vmem:[%s7417 + $0x10c] sm:$0xf] %v8132
  %v8563 = vld [vmem:[%s7417 + $0x110] sm:$0x1]
  %v8564 = vsel %vm7420, %v8133, %v8563
  %8565 = vst [vmem:[%s7417 + $0x110] sm:$0x1] %v8564
  %v8566 = vld [vmem:[%s7417 + $0x114] sm:$0xf]
  %v8567 = vsel %vm8418, %v8140, %v8566
  %8568 = vst [vmem:[%s7417 + $0x114] sm:$0xf] %v8567
  %8569 = vst [vmem:[%s7417 + $0x118] sm:$0xf] %v8149
  %v8570 = vld [vmem:[%s7417 + $0x11c] sm:$0x1]
  %v8571 = vsel %vm7420, %v8150, %v8570
  %8572 = vst [vmem:[%s7417 + $0x11c] sm:$0x1] %v8571
  %v8573 = vld [vmem:[%s7417 + $0x120] sm:$0xf]
  %v8574 = vsel %vm8418, %v8157, %v8573
  %8575 = vst [vmem:[%s7417 + $0x120] sm:$0xf] %v8574
  %8576 = vst [vmem:[%s7417 + $0x124] sm:$0xf] %v8166
  %v8577 = vld [vmem:[%s7417 + $0x128] sm:$0x1]
  %v8578 = vsel %vm7420, %v8167, %v8577
  %8579 = vst [vmem:[%s7417 + $0x128] sm:$0x1] %v8578
  %v8580 = vld [vmem:[%s7417 + $0x12c] sm:$0xf]
  %v8581 = vsel %vm8418, %v8174, %v8580
  %8582 = vst [vmem:[%s7417 + $0x12c] sm:$0xf] %v8581
  %8583 = vst [vmem:[%s7417 + $0x130] sm:$0xf] %v8183
  %v8584 = vld [vmem:[%s7417 + $0x134] sm:$0x1]
  %v8585 = vsel %vm7420, %v8184, %v8584
  %8586 = vst [vmem:[%s7417 + $0x134] sm:$0x1] %v8585
  %v8587 = vld [vmem:[%s7417 + $0x138] sm:$0xf]
  %v8588 = vsel %vm8418, %v8191, %v8587
  %8589 = vst [vmem:[%s7417 + $0x138] sm:$0xf] %v8588
  %8590 = vst [vmem:[%s7417 + $0x13c] sm:$0xf] %v8200
  %v8591 = vld [vmem:[%s7417 + $0x140] sm:$0x1]
  %v8592 = vsel %vm7420, %v8201, %v8591
  %8593 = vst [vmem:[%s7417 + $0x140] sm:$0x1] %v8592
  %v8594 = vld [vmem:[%s7417 + $0x144] sm:$0xf]
  %v8595 = vsel %vm8418, %v8208, %v8594
  %8596 = vst [vmem:[%s7417 + $0x144] sm:$0xf] %v8595
  %8597 = vst [vmem:[%s7417 + $0x148] sm:$0xf] %v8217
  %v8598 = vld [vmem:[%s7417 + $0x14c] sm:$0x1]
  %v8599 = vsel %vm7420, %v8218, %v8598
  %8600 = vst [vmem:[%s7417 + $0x14c] sm:$0x1] %v8599
  %v8601 = vld [vmem:[%s7417 + $0x150] sm:$0xf]
  %v8602 = vsel %vm8418, %v8225, %v8601
  %8603 = vst [vmem:[%s7417 + $0x150] sm:$0xf] %v8602
  %8604 = vst [vmem:[%s7417 + $0x154] sm:$0xf] %v8234
  %v8605 = vld [vmem:[%s7417 + $0x158] sm:$0x1]
  %v8606 = vsel %vm7420, %v8235, %v8605
  %8607 = vst [vmem:[%s7417 + $0x158] sm:$0x1] %v8606
  %v8608 = vld [vmem:[%s7417 + $0x15c] sm:$0xf]
  %v8609 = vsel %vm8418, %v8242, %v8608
  %8610 = vst [vmem:[%s7417 + $0x15c] sm:$0xf] %v8609
  %8611 = vst [vmem:[%s7417 + $0x160] sm:$0xf] %v8251
  %v8612 = vld [vmem:[%s7417 + $0x164] sm:$0x1]
  %v8613 = vsel %vm7420, %v8252, %v8612
  %8614 = vst [vmem:[%s7417 + $0x164] sm:$0x1] %v8613
  %v8615 = vld [vmem:[%s7417 + $0x168] sm:$0xf]
  %v8616 = vsel %vm8418, %v8259, %v8615
  %8617 = vst [vmem:[%s7417 + $0x168] sm:$0xf] %v8616
  %8618 = vst [vmem:[%s7417 + $0x16c] sm:$0xf] %v8268
  %v8619 = vld [vmem:[%s7417 + $0x170] sm:$0x1]
  %v8620 = vsel %vm7420, %v8269, %v8619
  %8621 = vst [vmem:[%s7417 + $0x170] sm:$0x1] %v8620
  %v8622 = vld [vmem:[%s7417 + $0x174] sm:$0xf]
  %v8623 = vsel %vm8418, %v8276, %v8622
  %8624 = vst [vmem:[%s7417 + $0x174] sm:$0xf] %v8623
  %8625 = vst [vmem:[%s7417 + $0x178] sm:$0xf] %v8285
  %v8626 = vld [vmem:[%s7417 + $0x17c] sm:$0x1]
  %v8627 = vsel %vm7420, %v8286, %v8626
  %8628 = vst [vmem:[%s7417 + $0x17c] sm:$0x1] %v8627
  %v8629 = vld [vmem:[%s7417 + $0x180] sm:$0xf]
  %v8630 = vsel %vm8418, %v8293, %v8629
  %8631 = vst [vmem:[%s7417 + $0x180] sm:$0xf] %v8630
  %8632 = vst [vmem:[%s7417 + $0x184] sm:$0xf] %v8302
  %v8633 = vld [vmem:[%s7417 + $0x188] sm:$0x1]
  %v8634 = vsel %vm7420, %v8303, %v8633
  %8635 = vst [vmem:[%s7417 + $0x188] sm:$0x1] %v8634
  %v8636 = vld [vmem:[%s7417 + $0x18c] sm:$0xf]
  %v8637 = vsel %vm8418, %v8310, %v8636
  %8638 = vst [vmem:[%s7417 + $0x18c] sm:$0xf] %v8637
  %8639 = vst [vmem:[%s7417 + $0x190] sm:$0xf] %v8319
  %v8640 = vld [vmem:[%s7417 + $0x194] sm:$0x1]
  %v8641 = vsel %vm7420, %v8320, %v8640
  %8642 = vst [vmem:[%s7417 + $0x194] sm:$0x1] %v8641
  %v8643 = vld [vmem:[#allocation2] sm:$0xf]
  %v8644 = vld [vmem:[#allocation2 + $0x4] sm:$0xf]
  %v8645 = vld [vmem:[#allocation2 + $0xc] sm:$0xf]
  %v8646 = vld [vmem:[#allocation2 + $0x10] sm:$0xf]
  %v8647 = vld [vmem:[#allocation2 + $0x18] sm:$0xf]
  %v8648 = vld [vmem:[#allocation2 + $0x1c] sm:$0xf]
  %v8649 = vld [vmem:[#allocation2 + $0x24] sm:$0xf]
  %v8650 = vld [vmem:[#allocation2 + $0x28] sm:$0xf]
  %v8651 = vld [vmem:[#allocation2 + $0x30] sm:$0xf]
  %v8652 = vld [vmem:[#allocation2 + $0x34] sm:$0xf]
  %v8653 = vld [vmem:[#allocation2 + $0x3c] sm:$0xf]
  %v8654 = vld [vmem:[#allocation2 + $0x40] sm:$0xf]
  %v8655 = vld [vmem:[#allocation2 + $0x48] sm:$0xf]
  %v8656 = vld [vmem:[#allocation2 + $0x4c] sm:$0xf]
  %v8657 = vld [vmem:[#allocation2 + $0x54] sm:$0xf]
  %v8658 = vld [vmem:[#allocation2 + $0x58] sm:$0xf]
  %v8659 = vld [vmem:[#allocation2 + $0x60] sm:$0xf]
  %v8660 = vld [vmem:[#allocation2 + $0x64] sm:$0xf]
  %v8661 = vld [vmem:[#allocation2 + $0x6c] sm:$0xf]
  %v8662 = vld [vmem:[#allocation2 + $0x70] sm:$0xf]
  %v8663 = vld [vmem:[#allocation2 + $0x78] sm:$0xf]
  %v8664 = vld [vmem:[#allocation2 + $0x7c] sm:$0xf]
  %v8665 = vld [vmem:[#allocation2 + $0x84] sm:$0xf]
  %v8666 = vld [vmem:[#allocation2 + $0x88] sm:$0xf]
  %v8667 = vld [vmem:[#allocation2 + $0x90] sm:$0xf]
  %v8668 = vld [vmem:[#allocation2 + $0x94] sm:$0xf]
  %v8669 = vld [vmem:[#allocation2 + $0x9c] sm:$0xf]
  %v8670 = vld [vmem:[#allocation2 + $0xa0] sm:$0xf]
  %v8671 = vld [vmem:[#allocation2 + $0xa8] sm:$0xf]
  %v8672 = vld [vmem:[#allocation2 + $0xac] sm:$0xf]
  %v8673 = vld [vmem:[#allocation2 + $0xb4] sm:$0xf]
  %v8674 = vld [vmem:[#allocation2 + $0xb8] sm:$0xf]
  %v8675 = vld [vmem:[#allocation2 + $0xd8] sm:$0xf]
  %v8676 = vld [vmem:[#allocation2 + $0xdc] sm:$0xf]
  %v8677 = vld [vmem:[#allocation2 + $0xe4] sm:$0xf]
  %v8678 = vld [vmem:[#allocation2 + $0xe8] sm:$0xf]
  %v8679 = vld [vmem:[#allocation2 + $0xf0] sm:$0xf]
  %v8680 = vld [vmem:[#allocation2 + $0xf4] sm:$0xf]
  %v8681 = vld [vmem:[#allocation2 + $0xfc] sm:$0xf]
  %v8682 = vld [vmem:[#allocation2 + $0x100] sm:$0xf]
  %v8683 = vld [vmem:[#allocation2 + $0x108] sm:$0xf]
  %v8684 = vld [vmem:[#allocation2 + $0x10c] sm:$0xf]
  %v8685 = vld [vmem:[#allocation2 + $0x114] sm:$0xf]
  %v8686 = vld [vmem:[#allocation2 + $0x118] sm:$0xf]
  %v8687 = vld [vmem:[#allocation2 + $0x120] sm:$0xf]
  %v8688 = vld [vmem:[#allocation2 + $0x124] sm:$0xf]
  %v8689 = vld [vmem:[#allocation2 + $0x12c] sm:$0xf]
  %v8690 = vld [vmem:[#allocation2 + $0x130] sm:$0xf]
  %v8691 = vld [vmem:[#allocation2 + $0x138] sm:$0xf]
  %v8692 = vld [vmem:[#allocation2 + $0x13c] sm:$0xf]
  %v8693 = vld [vmem:[#allocation2 + $0x144] sm:$0xf]
  %v8694 = vld [vmem:[#allocation2 + $0x148] sm:$0xf]
  %v8695 = vld [vmem:[#allocation2 + $0x150] sm:$0xf]
  %v8696 = vld [vmem:[#allocation2 + $0x154] sm:$0xf]
  %v8697 = vld [vmem:[#allocation2 + $0x15c] sm:$0xf]
  %v8698 = vld [vmem:[#allocation2 + $0x160] sm:$0xf]
  %v8699 = vld [vmem:[#allocation2 + $0x168] sm:$0xf]
  %v8700 = vld [vmem:[#allocation2 + $0x16c] sm:$0xf]
  %v8701 = vld [vmem:[#allocation2 + $0x174] sm:$0xf]
  %v8702 = vld [vmem:[#allocation2 + $0x178] sm:$0xf]
  %v8703 = vld [vmem:[#allocation2 + $0x180] sm:$0xf]
  %v8704 = vld [vmem:[#allocation2 + $0x184] sm:$0xf]
  %v8705 = vld [vmem:[#allocation2 + $0x18c] sm:$0xf]
  %v8706 = vld [vmem:[#allocation2 + $0x190] sm:$0xf]
  %v8707 = vld [vmem:[#allocation2 + $0x8] sm:$0x1]
  %v8708 = vld [vmem:[#allocation2 + $0x14] sm:$0x1]
  %v8709 = vld [vmem:[#allocation2 + $0x20] sm:$0x1]
  %v8710 = vld [vmem:[#allocation2 + $0x2c] sm:$0x1]
  %v8711 = vld [vmem:[#allocation2 + $0x38] sm:$0x1]
  %v8712 = vld [vmem:[#allocation2 + $0x44] sm:$0x1]
  %v8713 = vld [vmem:[#allocation2 + $0x50] sm:$0x1]
  %v8714 = vld [vmem:[#allocation2 + $0x5c] sm:$0x1]
  %v8715 = vld [vmem:[#allocation2 + $0x68] sm:$0x1]
  %v8716 = vld [vmem:[#allocation2 + $0x74] sm:$0x1]
  %v8717 = vld [vmem:[#allocation2 + $0x80] sm:$0x1]
  %v8718 = vld [vmem:[#allocation2 + $0x8c] sm:$0x1]
  %v8719 = vld [vmem:[#allocation2 + $0x98] sm:$0x1]
  %v8720 = vld [vmem:[#allocation2 + $0xa4] sm:$0x1]
  %v8721 = vld [vmem:[#allocation2 + $0xb0] sm:$0x1]
  %v8722 = vld [vmem:[#allocation2 + $0xbc] sm:$0x1]
  %v8723 = vld [vmem:[#allocation2 + $0xe0] sm:$0x1]
  %v8724 = vld [vmem:[#allocation2 + $0xec] sm:$0x1]
  %v8725 = vld [vmem:[#allocation2 + $0xf8] sm:$0x1]
  %v8726 = vld [vmem:[#allocation2 + $0x104] sm:$0x1]
  %v8727 = vld [vmem:[#allocation2 + $0x110] sm:$0x1]
  %v8728 = vld [vmem:[#allocation2 + $0x11c] sm:$0x1]
  %v8729 = vld [vmem:[#allocation2 + $0x128] sm:$0x1]
  %v8730 = vld [vmem:[#allocation2 + $0x134] sm:$0x1]
  %v8731 = vld [vmem:[#allocation2 + $0x140] sm:$0x1]
  %v8732 = vld [vmem:[#allocation2 + $0x14c] sm:$0x1]
  %v8733 = vld [vmem:[#allocation2 + $0x158] sm:$0x1]
  %v8734 = vld [vmem:[#allocation2 + $0x164] sm:$0x1]
  %v8735 = vld [vmem:[#allocation2 + $0x170] sm:$0x1]
  %v8736 = vld [vmem:[#allocation2 + $0x17c] sm:$0x1]
  %v8737 = vld [vmem:[#allocation2 + $0x188] sm:$0x1]
  %v8738 = vld [vmem:[#allocation2 + $0x194] sm:$0x1]
  %v8740 = vshrl.u32 %v8643, 16
  %v8742 = vrot.slane %v8740, 4
  %v8743 = vshll.u32 %v8643, 16
  %v8745 = vrot.slane %v8743, 5
  %v8746 = vor.u32 %v8742, %v8745
  %v8747 = vrot.slane %v8746, 4
  %v8749 = vshll.u32 %v8644, 16
  %v8751 = vrot.slane %v8749, 5
  %v8752 = vsel %vm128, %v8747, %v8751
  %v8753 = vshrl.u32 %v8644, 16
  %v8755 = vrot.slane %v8753, 4
  %v8756 = vor.u32 %v8755, %v8751
  %v8757 = vrot.slane %v8756, 4
  %v8759 = vshll.u32 %v8707, 16
  %v8761 = vrot.slane %v8759, 5
  %v8762 = vsel %vm128, %v8757, %v8761
  %v8764 = vshrl.u32 %v8645, 16
  %v8766 = vrot.slane %v8764, 4
  %v8767 = vshll.u32 %v8645, 16
  %v8769 = vrot.slane %v8767, 5
  %v8770 = vor.u32 %v8766, %v8769
  %v8771 = vrot.slane %v8770, 4
  %v8773 = vshll.u32 %v8646, 16
  %v8775 = vrot.slane %v8773, 5
  %v8776 = vsel %vm128, %v8771, %v8775
  %v8777 = vshrl.u32 %v8646, 16
  %v8779 = vrot.slane %v8777, 4
  %v8780 = vor.u32 %v8779, %v8775
  %v8781 = vrot.slane %v8780, 4
  %v8783 = vshll.u32 %v8708, 16
  %v8785 = vrot.slane %v8783, 5
  %v8786 = vsel %vm128, %v8781, %v8785
  %v8788 = vshrl.u32 %v8647, 16
  %v8790 = vrot.slane %v8788, 4
  %v8791 = vshll.u32 %v8647, 16
  %v8793 = vrot.slane %v8791, 5
  %v8794 = vor.u32 %v8790, %v8793
  %v8795 = vrot.slane %v8794, 4
  %v8797 = vshll.u32 %v8648, 16
  %v8799 = vrot.slane %v8797, 5
  %v8800 = vsel %vm128, %v8795, %v8799
  %v8801 = vshrl.u32 %v8648, 16
  %v8803 = vrot.slane %v8801, 4
  %v8804 = vor.u32 %v8803, %v8799
  %v8805 = vrot.slane %v8804, 4
  %v8807 = vshll.u32 %v8709, 16
  %v8809 = vrot.slane %v8807, 5
  %v8810 = vsel %vm128, %v8805, %v8809
  %v8812 = vshrl.u32 %v8649, 16
  %v8814 = vrot.slane %v8812, 4
  %v8815 = vshll.u32 %v8649, 16
  %v8817 = vrot.slane %v8815, 5
  %v8818 = vor.u32 %v8814, %v8817
  %v8819 = vrot.slane %v8818, 4
  %v8821 = vshll.u32 %v8650, 16
  %v8823 = vrot.slane %v8821, 5
  %v8824 = vsel %vm128, %v8819, %v8823
  %v8825 = vshrl.u32 %v8650, 16
  %v8827 = vrot.slane %v8825, 4
  %v8828 = vor.u32 %v8827, %v8823
  %v8829 = vrot.slane %v8828, 4
  %v8831 = vshll.u32 %v8710, 16
  %v8833 = vrot.slane %v8831, 5
  %v8834 = vsel %vm128, %v8829, %v8833
  %v8836 = vshrl.u32 %v8651, 16
  %v8838 = vrot.slane %v8836, 4
  %v8839 = vshll.u32 %v8651, 16
  %v8841 = vrot.slane %v8839, 5
  %v8842 = vor.u32 %v8838, %v8841
  %v8843 = vrot.slane %v8842, 4
  %v8845 = vshll.u32 %v8652, 16
  %v8847 = vrot.slane %v8845, 5
  %v8848 = vsel %vm128, %v8843, %v8847
  %v8849 = vshrl.u32 %v8652, 16
  %v8851 = vrot.slane %v8849, 4
  %v8852 = vor.u32 %v8851, %v8847
  %v8853 = vrot.slane %v8852, 4
  %v8855 = vshll.u32 %v8711, 16
  %v8857 = vrot.slane %v8855, 5
  %v8858 = vsel %vm128, %v8853, %v8857
  %v8860 = vshrl.u32 %v8653, 16
  %v8862 = vrot.slane %v8860, 4
  %v8863 = vshll.u32 %v8653, 16
  %v8865 = vrot.slane %v8863, 5
  %v8866 = vor.u32 %v8862, %v8865
  %v8867 = vrot.slane %v8866, 4
  %v8869 = vshll.u32 %v8654, 16
  %v8871 = vrot.slane %v8869, 5
  %v8872 = vsel %vm128, %v8867, %v8871
  %v8873 = vshrl.u32 %v8654, 16
  %v8875 = vrot.slane %v8873, 4
  %v8876 = vor.u32 %v8875, %v8871
  %v8877 = vrot.slane %v8876, 4
  %v8879 = vshll.u32 %v8712, 16
  %v8881 = vrot.slane %v8879, 5
  %v8882 = vsel %vm128, %v8877, %v8881
  %v8884 = vshrl.u32 %v8655, 16
  %v8886 = vrot.slane %v8884, 4
  %v8887 = vshll.u32 %v8655, 16
  %v8889 = vrot.slane %v8887, 5
  %v8890 = vor.u32 %v8886, %v8889
  %v8891 = vrot.slane %v8890, 4
  %v8893 = vshll.u32 %v8656, 16
  %v8895 = vrot.slane %v8893, 5
  %v8896 = vsel %vm128, %v8891, %v8895
  %v8897 = vshrl.u32 %v8656, 16
  %v8899 = vrot.slane %v8897, 4
  %v8900 = vor.u32 %v8899, %v8895
  %v8901 = vrot.slane %v8900, 4
  %v8903 = vshll.u32 %v8713, 16
  %v8905 = vrot.slane %v8903, 5
  %v8906 = vsel %vm128, %v8901, %v8905
  %v8908 = vshrl.u32 %v8657, 16
  %v8910 = vrot.slane %v8908, 4
  %v8911 = vshll.u32 %v8657, 16
  %v8913 = vrot.slane %v8911, 5
  %v8914 = vor.u32 %v8910, %v8913
  %v8915 = vrot.slane %v8914, 4
  %v8917 = vshll.u32 %v8658, 16
  %v8919 = vrot.slane %v8917, 5
  %v8920 = vsel %vm128, %v8915, %v8919
  %v8921 = vshrl.u32 %v8658, 16
  %v8923 = vrot.slane %v8921, 4
  %v8924 = vor.u32 %v8923, %v8919
  %v8925 = vrot.slane %v8924, 4
  %v8927 = vshll.u32 %v8714, 16
  %v8929 = vrot.slane %v8927, 5
  %v8930 = vsel %vm128, %v8925, %v8929
  %v8932 = vshrl.u32 %v8659, 16
  %v8934 = vrot.slane %v8932, 4
  %v8935 = vshll.u32 %v8659, 16
  %v8937 = vrot.slane %v8935, 5
  %v8938 = vor.u32 %v8934, %v8937
  %v8939 = vrot.slane %v8938, 4
  %v8941 = vshll.u32 %v8660, 16
  %v8943 = vrot.slane %v8941, 5
  %v8944 = vsel %vm128, %v8939, %v8943
  %v8945 = vshrl.u32 %v8660, 16
  %v8947 = vrot.slane %v8945, 4
  %v8948 = vor.u32 %v8947, %v8943
  %v8949 = vrot.slane %v8948, 4
  %v8951 = vshll.u32 %v8715, 16
  %v8953 = vrot.slane %v8951, 5
  %v8954 = vsel %vm128, %v8949, %v8953
  %v8956 = vshrl.u32 %v8661, 16
  %v8958 = vrot.slane %v8956, 4
  %v8959 = vshll.u32 %v8661, 16
  %v8961 = vrot.slane %v8959, 5
  %v8962 = vor.u32 %v8958, %v8961
  %v8963 = vrot.slane %v8962, 4
  %v8965 = vshll.u32 %v8662, 16
  %v8967 = vrot.slane %v8965, 5
  %v8968 = vsel %vm128, %v8963, %v8967
  %v8969 = vshrl.u32 %v8662, 16
  %v8971 = vrot.slane %v8969, 4
  %v8972 = vor.u32 %v8971, %v8967
  %v8973 = vrot.slane %v8972, 4
  %v8975 = vshll.u32 %v8716, 16
  %v8977 = vrot.slane %v8975, 5
  %v8978 = vsel %vm128, %v8973, %v8977
  %v8980 = vshrl.u32 %v8663, 16
  %v8982 = vrot.slane %v8980, 4
  %v8983 = vshll.u32 %v8663, 16
  %v8985 = vrot.slane %v8983, 5
  %v8986 = vor.u32 %v8982, %v8985
  %v8987 = vrot.slane %v8986, 4
  %v8989 = vshll.u32 %v8664, 16
  %v8991 = vrot.slane %v8989, 5
  %v8992 = vsel %vm128, %v8987, %v8991
  %v8993 = vshrl.u32 %v8664, 16
  %v8995 = vrot.slane %v8993, 4
  %v8996 = vor.u32 %v8995, %v8991
  %v8997 = vrot.slane %v8996, 4
  %v8999 = vshll.u32 %v8717, 16
  %v9001 = vrot.slane %v8999, 5
  %v9002 = vsel %vm128, %v8997, %v9001
  %v9004 = vshrl.u32 %v8665, 16
  %v9006 = vrot.slane %v9004, 4
  %v9007 = vshll.u32 %v8665, 16
  %v9009 = vrot.slane %v9007, 5
  %v9010 = vor.u32 %v9006, %v9009
  %v9011 = vrot.slane %v9010, 4
  %v9013 = vshll.u32 %v8666, 16
  %v9015 = vrot.slane %v9013, 5
  %v9016 = vsel %vm128, %v9011, %v9015
  %v9017 = vshrl.u32 %v8666, 16
  %v9019 = vrot.slane %v9017, 4
  %v9020 = vor.u32 %v9019, %v9015
  %v9021 = vrot.slane %v9020, 4
  %v9023 = vshll.u32 %v8718, 16
  %v9025 = vrot.slane %v9023, 5
  %v9026 = vsel %vm128, %v9021, %v9025
  %v9028 = vshrl.u32 %v8667, 16
  %v9030 = vrot.slane %v9028, 4
  %v9031 = vshll.u32 %v8667, 16
  %v9033 = vrot.slane %v9031, 5
  %v9034 = vor.u32 %v9030, %v9033
  %v9035 = vrot.slane %v9034, 4
  %v9037 = vshll.u32 %v8668, 16
  %v9039 = vrot.slane %v9037, 5
  %v9040 = vsel %vm128, %v9035, %v9039
  %v9041 = vshrl.u32 %v8668, 16
  %v9043 = vrot.slane %v9041, 4
  %v9044 = vor.u32 %v9043, %v9039
  %v9045 = vrot.slane %v9044, 4
  %v9047 = vshll.u32 %v8719, 16
  %v9049 = vrot.slane %v9047, 5
  %v9050 = vsel %vm128, %v9045, %v9049
  %v9052 = vshrl.u32 %v8669, 16
  %v9054 = vrot.slane %v9052, 4
  %v9055 = vshll.u32 %v8669, 16
  %v9057 = vrot.slane %v9055, 5
  %v9058 = vor.u32 %v9054, %v9057
  %v9059 = vrot.slane %v9058, 4
  %v9061 = vshll.u32 %v8670, 16
  %v9063 = vrot.slane %v9061, 5
  %v9064 = vsel %vm128, %v9059, %v9063
  %v9065 = vshrl.u32 %v8670, 16
  %v9067 = vrot.slane %v9065, 4
  %v9068 = vor.u32 %v9067, %v9063
  %v9069 = vrot.slane %v9068, 4
  %v9071 = vshll.u32 %v8720, 16
  %v9073 = vrot.slane %v9071, 5
  %v9074 = vsel %vm128, %v9069, %v9073
  %v9076 = vshrl.u32 %v8671, 16
  %v9078 = vrot.slane %v9076, 4
  %v9079 = vshll.u32 %v8671, 16
  %v9081 = vrot.slane %v9079, 5
  %v9082 = vor.u32 %v9078, %v9081
  %v9083 = vrot.slane %v9082, 4
  %v9085 = vshll.u32 %v8672, 16
  %v9087 = vrot.slane %v9085, 5
  %v9088 = vsel %vm128, %v9083, %v9087
  %v9089 = vshrl.u32 %v8672, 16
  %v9091 = vrot.slane %v9089, 4
  %v9092 = vor.u32 %v9091, %v9087
  %v9093 = vrot.slane %v9092, 4
  %v9095 = vshll.u32 %v8721, 16
  %v9097 = vrot.slane %v9095, 5
  %v9098 = vsel %vm128, %v9093, %v9097
  %v9100 = vshrl.u32 %v8673, 16
  %v9102 = vrot.slane %v9100, 4
  %v9103 = vshll.u32 %v8673, 16
  %v9105 = vrot.slane %v9103, 5
  %v9106 = vor.u32 %v9102, %v9105
  %v9107 = vrot.slane %v9106, 4
  %v9109 = vshll.u32 %v8674, 16
  %v9111 = vrot.slane %v9109, 5
  %v9112 = vsel %vm128, %v9107, %v9111
  %v9113 = vshrl.u32 %v8674, 16
  %v9115 = vrot.slane %v9113, 4
  %v9116 = vor.u32 %v9115, %v9111
  %v9117 = vrot.slane %v9116, 4
  %v9119 = vshll.u32 %v8722, 16
  %v9121 = vrot.slane %v9119, 5
  %v9122 = vsel %vm128, %v9117, %v9121
  %v9124 = vshrl.u32 %v8675, 16
  %v9126 = vrot.slane %v9124, 4
  %v9127 = vshll.u32 %v8675, 16
  %v9129 = vrot.slane %v9127, 5
  %v9130 = vor.u32 %v9126, %v9129
  %v9131 = vrot.slane %v9130, 4
  %v9133 = vshll.u32 %v8676, 16
  %v9135 = vrot.slane %v9133, 5
  %v9136 = vsel %vm128, %v9131, %v9135
  %v9137 = vshrl.u32 %v8676, 16
  %v9139 = vrot.slane %v9137, 4
  %v9140 = vor.u32 %v9139, %v9135
  %v9141 = vrot.slane %v9140, 4
  %v9143 = vshll.u32 %v8723, 16
  %v9145 = vrot.slane %v9143, 5
  %v9146 = vsel %vm128, %v9141, %v9145
  %v9148 = vshrl.u32 %v8677, 16
  %v9150 = vrot.slane %v9148, 4
  %v9151 = vshll.u32 %v8677, 16
  %v9153 = vrot.slane %v9151, 5
  %v9154 = vor.u32 %v9150, %v9153
  %v9155 = vrot.slane %v9154, 4
  %v9157 = vshll.u32 %v8678, 16
  %v9159 = vrot.slane %v9157, 5
  %v9160 = vsel %vm128, %v9155, %v9159
  %v9161 = vshrl.u32 %v8678, 16
  %v9163 = vrot.slane %v9161, 4
  %v9164 = vor.u32 %v9163, %v9159
  %v9165 = vrot.slane %v9164, 4
  %v9167 = vshll.u32 %v8724, 16
  %v9169 = vrot.slane %v9167, 5
  %v9170 = vsel %vm128, %v9165, %v9169
  %v9172 = vshrl.u32 %v8679, 16
  %v9174 = vrot.slane %v9172, 4
  %v9175 = vshll.u32 %v8679, 16
  %v9177 = vrot.slane %v9175, 5
  %v9178 = vor.u32 %v9174, %v9177
  %v9179 = vrot.slane %v9178, 4
  %v9181 = vshll.u32 %v8680, 16
  %v9183 = vrot.slane %v9181, 5
  %v9184 = vsel %vm128, %v9179, %v9183
  %v9185 = vshrl.u32 %v8680, 16
  %v9187 = vrot.slane %v9185, 4
  %v9188 = vor.u32 %v9187, %v9183
  %v9189 = vrot.slane %v9188, 4
  %v9191 = vshll.u32 %v8725, 16
  %v9193 = vrot.slane %v9191, 5
  %v9194 = vsel %vm128, %v9189, %v9193
  %v9196 = vshrl.u32 %v8681, 16
  %v9198 = vrot.slane %v9196, 4
  %v9199 = vshll.u32 %v8681, 16
  %v9201 = vrot.slane %v9199, 5
  %v9202 = vor.u32 %v9198, %v9201
  %v9203 = vrot.slane %v9202, 4
  %v9205 = vshll.u32 %v8682, 16
  %v9207 = vrot.slane %v9205, 5
  %v9208 = vsel %vm128, %v9203, %v9207
  %v9209 = vshrl.u32 %v8682, 16
  %v9211 = vrot.slane %v9209, 4
  %v9212 = vor.u32 %v9211, %v9207
  %v9213 = vrot.slane %v9212, 4
  %v9215 = vshll.u32 %v8726, 16
  %v9217 = vrot.slane %v9215, 5
  %v9218 = vsel %vm128, %v9213, %v9217
  %v9220 = vshrl.u32 %v8683, 16
  %v9222 = vrot.slane %v9220, 4
  %v9223 = vshll.u32 %v8683, 16
  %v9225 = vrot.slane %v9223, 5
  %v9226 = vor.u32 %v9222, %v9225
  %v9227 = vrot.slane %v9226, 4
  %v9229 = vshll.u32 %v8684, 16
  %v9231 = vrot.slane %v9229, 5
  %v9232 = vsel %vm128, %v9227, %v9231
  %v9233 = vshrl.u32 %v8684, 16
  %v9235 = vrot.slane %v9233, 4
  %v9236 = vor.u32 %v9235, %v9231
  %v9237 = vrot.slane %v9236, 4
  %v9239 = vshll.u32 %v8727, 16
  %v9241 = vrot.slane %v9239, 5
  %v9242 = vsel %vm128, %v9237, %v9241
  %v9244 = vshrl.u32 %v8685, 16
  %v9246 = vrot.slane %v9244, 4
  %v9247 = vshll.u32 %v8685, 16
  %v9249 = vrot.slane %v9247, 5
  %v9250 = vor.u32 %v9246, %v9249
  %v9251 = vrot.slane %v9250, 4
  %v9253 = vshll.u32 %v8686, 16
  %v9255 = vrot.slane %v9253, 5
  %v9256 = vsel %vm128, %v9251, %v9255
  %v9257 = vshrl.u32 %v8686, 16
  %v9259 = vrot.slane %v9257, 4
  %v9260 = vor.u32 %v9259, %v9255
  %v9261 = vrot.slane %v9260, 4
  %v9263 = vshll.u32 %v8728, 16
  %v9265 = vrot.slane %v9263, 5
  %v9266 = vsel %vm128, %v9261, %v9265
  %v9268 = vshrl.u32 %v8687, 16
  %v9270 = vrot.slane %v9268, 4
  %v9271 = vshll.u32 %v8687, 16
  %v9273 = vrot.slane %v9271, 5
  %v9274 = vor.u32 %v9270, %v9273
  %v9275 = vrot.slane %v9274, 4
  %v9277 = vshll.u32 %v8688, 16
  %v9279 = vrot.slane %v9277, 5
  %v9280 = vsel %vm128, %v9275, %v9279
  %v9281 = vshrl.u32 %v8688, 16
  %v9283 = vrot.slane %v9281, 4
  %v9284 = vor.u32 %v9283, %v9279
  %v9285 = vrot.slane %v9284, 4
  %v9287 = vshll.u32 %v8729, 16
  %v9289 = vrot.slane %v9287, 5
  %v9290 = vsel %vm128, %v9285, %v9289
  %v9292 = vshrl.u32 %v8689, 16
  %v9294 = vrot.slane %v9292, 4
  %v9295 = vshll.u32 %v8689, 16
  %v9297 = vrot.slane %v9295, 5
  %v9298 = vor.u32 %v9294, %v9297
  %v9299 = vrot.slane %v9298, 4
  %v9301 = vshll.u32 %v8690, 16
  %v9303 = vrot.slane %v9301, 5
  %v9304 = vsel %vm128, %v9299, %v9303
  %v9305 = vshrl.u32 %v8690, 16
  %v9307 = vrot.slane %v9305, 4
  %v9308 = vor.u32 %v9307, %v9303
  %v9309 = vrot.slane %v9308, 4
  %v9311 = vshll.u32 %v8730, 16
  %v9313 = vrot.slane %v9311, 5
  %v9314 = vsel %vm128, %v9309, %v9313
  %v9316 = vshrl.u32 %v8691, 16
  %v9318 = vrot.slane %v9316, 4
  %v9319 = vshll.u32 %v8691, 16
  %v9321 = vrot.slane %v9319, 5
  %v9322 = vor.u32 %v9318, %v9321
  %v9323 = vrot.slane %v9322, 4
  %v9325 = vshll.u32 %v8692, 16
  %v9327 = vrot.slane %v9325, 5
  %v9328 = vsel %vm128, %v9323, %v9327
  %v9329 = vshrl.u32 %v8692, 16
  %v9331 = vrot.slane %v9329, 4
  %v9332 = vor.u32 %v9331, %v9327
  %v9333 = vrot.slane %v9332, 4
  %v9335 = vshll.u32 %v8731, 16
  %v9337 = vrot.slane %v9335, 5
  %v9338 = vsel %vm128, %v9333, %v9337
  %v9340 = vshrl.u32 %v8693, 16
  %v9342 = vrot.slane %v9340, 4
  %v9343 = vshll.u32 %v8693, 16
  %v9345 = vrot.slane %v9343, 5
  %v9346 = vor.u32 %v9342, %v9345
  %v9347 = vrot.slane %v9346, 4
  %v9349 = vshll.u32 %v8694, 16
  %v9351 = vrot.slane %v9349, 5
  %v9352 = vsel %vm128, %v9347, %v9351
  %v9353 = vshrl.u32 %v8694, 16
  %v9355 = vrot.slane %v9353, 4
  %v9356 = vor.u32 %v9355, %v9351
  %v9357 = vrot.slane %v9356, 4
  %v9359 = vshll.u32 %v8732, 16
  %v9361 = vrot.slane %v9359, 5
  %v9362 = vsel %vm128, %v9357, %v9361
  %v9364 = vshrl.u32 %v8695, 16
  %v9366 = vrot.slane %v9364, 4
  %v9367 = vshll.u32 %v8695, 16
  %v9369 = vrot.slane %v9367, 5
  %v9370 = vor.u32 %v9366, %v9369
  %v9371 = vrot.slane %v9370, 4
  %v9373 = vshll.u32 %v8696, 16
  %v9375 = vrot.slane %v9373, 5
  %v9376 = vsel %vm128, %v9371, %v9375
  %v9377 = vshrl.u32 %v8696, 16
  %v9379 = vrot.slane %v9377, 4
  %v9380 = vor.u32 %v9379, %v9375
  %v9381 = vrot.slane %v9380, 4
  %v9383 = vshll.u32 %v8733, 16
  %v9385 = vrot.slane %v9383, 5
  %v9386 = vsel %vm128, %v9381, %v9385
  %v9388 = vshrl.u32 %v8697, 16
  %v9390 = vrot.slane %v9388, 4
  %v9391 = vshll.u32 %v8697, 16
  %v9393 = vrot.slane %v9391, 5
  %v9394 = vor.u32 %v9390, %v9393
  %v9395 = vrot.slane %v9394, 4
  %v9397 = vshll.u32 %v8698, 16
  %v9399 = vrot.slane %v9397, 5
  %v9400 = vsel %vm128, %v9395, %v9399
  %v9401 = vshrl.u32 %v8698, 16
  %v9403 = vrot.slane %v9401, 4
  %v9404 = vor.u32 %v9403, %v9399
  %v9405 = vrot.slane %v9404, 4
  %v9407 = vshll.u32 %v8734, 16
  %v9409 = vrot.slane %v9407, 5
  %v9410 = vsel %vm128, %v9405, %v9409
  %v9412 = vshrl.u32 %v8699, 16
  %v9414 = vrot.slane %v9412, 4
  %v9415 = vshll.u32 %v8699, 16
  %v9417 = vrot.slane %v9415, 5
  %v9418 = vor.u32 %v9414, %v9417
  %v9419 = vrot.slane %v9418, 4
  %v9421 = vshll.u32 %v8700, 16
  %v9423 = vrot.slane %v9421, 5
  %v9424 = vsel %vm128, %v9419, %v9423
  %v9425 = vshrl.u32 %v8700, 16
  %v9427 = vrot.slane %v9425, 4
  %v9428 = vor.u32 %v9427, %v9423
  %v9429 = vrot.slane %v9428, 4
  %v9431 = vshll.u32 %v8735, 16
  %v9433 = vrot.slane %v9431, 5
  %v9434 = vsel %vm128, %v9429, %v9433
  %v9436 = vshrl.u32 %v8701, 16
  %v9438 = vrot.slane %v9436, 4
  %v9439 = vshll.u32 %v8701, 16
  %v9441 = vrot.slane %v9439, 5
  %v9442 = vor.u32 %v9438, %v9441
  %v9443 = vrot.slane %v9442, 4
  %v9445 = vshll.u32 %v8702, 16
  %v9447 = vrot.slane %v9445, 5
  %v9448 = vsel %vm128, %v9443, %v9447
  %v9449 = vshrl.u32 %v8702, 16
  %v9451 = vrot.slane %v9449, 4
  %v9452 = vor.u32 %v9451, %v9447
  %v9453 = vrot.slane %v9452, 4
  %v9455 = vshll.u32 %v8736, 16
  %v9457 = vrot.slane %v9455, 5
  %v9458 = vsel %vm128, %v9453, %v9457
  %v9460 = vshrl.u32 %v8703, 16
  %v9462 = vrot.slane %v9460, 4
  %v9463 = vshll.u32 %v8703, 16
  %v9465 = vrot.slane %v9463, 5
  %v9466 = vor.u32 %v9462, %v9465
  %v9467 = vrot.slane %v9466, 4
  %v9469 = vshll.u32 %v8704, 16
  %v9471 = vrot.slane %v9469, 5
  %v9472 = vsel %vm128, %v9467, %v9471
  %v9473 = vshrl.u32 %v8704, 16
  %v9475 = vrot.slane %v9473, 4
  %v9476 = vor.u32 %v9475, %v9471
  %v9477 = vrot.slane %v9476, 4
  %v9479 = vshll.u32 %v8737, 16
  %v9481 = vrot.slane %v9479, 5
  %v9482 = vsel %vm128, %v9477, %v9481
  %v9484 = vshrl.u32 %v8705, 16
  %v9486 = vrot.slane %v9484, 4
  %v9487 = vshll.u32 %v8705, 16
  %v9489 = vrot.slane %v9487, 5
  %v9490 = vor.u32 %v9486, %v9489
  %v9491 = vrot.slane %v9490, 4
  %v9493 = vshll.u32 %v8706, 16
  %v9495 = vrot.slane %v9493, 5
  %v9496 = vsel %vm128, %v9491, %v9495
  %v9497 = vshrl.u32 %v8706, 16
  %v9499 = vrot.slane %v9497, 4
  %v9500 = vor.u32 %v9499, %v9495
  %v9501 = vrot.slane %v9500, 4
  %v9503 = vshll.u32 %v8738, 16
  %v9505 = vrot.slane %v9503, 5
  %v9506 = vsel %vm128, %v9501, %v9505
  %v9507 = vld [vmem:[#allocation2] sm:$0xe]
  %v9508 = vld [vmem:[#allocation2 + $0xc] sm:$0xe]
  %v9509 = vld [vmem:[#allocation2 + $0x18] sm:$0xe]
  %v9510 = vld [vmem:[#allocation2 + $0x24] sm:$0xe]
  %v9511 = vld [vmem:[#allocation2 + $0x30] sm:$0xe]
  %v9512 = vld [vmem:[#allocation2 + $0x3c] sm:$0xe]
  %v9513 = vld [vmem:[#allocation2 + $0x48] sm:$0xe]
  %v9514 = vld [vmem:[#allocation2 + $0x54] sm:$0xe]
  %v9515 = vld [vmem:[#allocation2 + $0x60] sm:$0xe]
  %v9516 = vld [vmem:[#allocation2 + $0x6c] sm:$0xe]
  %v9517 = vld [vmem:[#allocation2 + $0x78] sm:$0xe]
  %v9518 = vld [vmem:[#allocation2 + $0x84] sm:$0xe]
  %v9519 = vld [vmem:[#allocation2 + $0x90] sm:$0xe]
  %v9520 = vld [vmem:[#allocation2 + $0x9c] sm:$0xe]
  %v9521 = vld [vmem:[#allocation2 + $0xa8] sm:$0xe]
  %v9522 = vld [vmem:[#allocation2 + $0xb4] sm:$0xe]
  %v9523 = vld [vmem:[#allocation2 + $0xd8] sm:$0xe]
  %v9524 = vld [vmem:[#allocation2 + $0xe4] sm:$0xe]
  %v9525 = vld [vmem:[#allocation2 + $0xf0] sm:$0xe]
  %v9526 = vld [vmem:[#allocation2 + $0xfc] sm:$0xe]
  %v9527 = vld [vmem:[#allocation2 + $0x108] sm:$0xe]
  %v9528 = vld [vmem:[#allocation2 + $0x114] sm:$0xe]
  %v9529 = vld [vmem:[#allocation2 + $0x120] sm:$0xe]
  %v9530 = vld [vmem:[#allocation2 + $0x12c] sm:$0xe]
  %v9531 = vld [vmem:[#allocation2 + $0x138] sm:$0xe]
  %v9532 = vld [vmem:[#allocation2 + $0x144] sm:$0xe]
  %v9533 = vld [vmem:[#allocation2 + $0x150] sm:$0xe]
  %v9534 = vld [vmem:[#allocation2 + $0x15c] sm:$0xe]
  %v9535 = vld [vmem:[#allocation2 + $0x168] sm:$0xe]
  %v9536 = vld [vmem:[#allocation2 + $0x174] sm:$0xe]
  %v9537 = vld [vmem:[#allocation2 + $0x180] sm:$0xe]
  %v9538 = vld [vmem:[#allocation2 + $0x18c] sm:$0xe]
  %v9635 = vrot.slane %v9507, 5
  %v9636 = vrot.slane %v9635, 4
  %v9637 = vrot.slane %v8644, 5
  %v9638 = vsel %vm1027, %v9636, %v9637
  %v9639 = vrot.slane %v9637, 4
  %v9640 = vrot.slane %v8707, 5
  %v9641 = vsel %vm1027, %v9639, %v9640
  %v9642 = vrot.slane %v9508, 5
  %v9643 = vrot.slane %v9642, 4
  %v9644 = vrot.slane %v8646, 5
  %v9645 = vsel %vm1027, %v9643, %v9644
  %v9646 = vrot.slane %v9644, 4
  %v9647 = vrot.slane %v8708, 5
  %v9648 = vsel %vm1027, %v9646, %v9647
  %v9649 = vrot.slane %v9509, 5
  %v9650 = vrot.slane %v9649, 4
  %v9651 = vrot.slane %v8648, 5
  %v9652 = vsel %vm1027, %v9650, %v9651
  %v9653 = vrot.slane %v9651, 4
  %v9654 = vrot.slane %v8709, 5
  %v9655 = vsel %vm1027, %v9653, %v9654
  %v9656 = vrot.slane %v9510, 5
  %v9657 = vrot.slane %v9656, 4
  %v9658 = vrot.slane %v8650, 5
  %v9659 = vsel %vm1027, %v9657, %v9658
  %v9660 = vrot.slane %v9658, 4
  %v9661 = vrot.slane %v8710, 5
  %v9662 = vsel %vm1027, %v9660, %v9661
  %v9663 = vrot.slane %v9511, 5
  %v9664 = vrot.slane %v9663, 4
  %v9665 = vrot.slane %v8652, 5
  %v9666 = vsel %vm1027, %v9664, %v9665
  %v9667 = vrot.slane %v9665, 4
  %v9668 = vrot.slane %v8711, 5
  %v9669 = vsel %vm1027, %v9667, %v9668
  %v9670 = vrot.slane %v9512, 5
  %v9671 = vrot.slane %v9670, 4
  %v9672 = vrot.slane %v8654, 5
  %v9673 = vsel %vm1027, %v9671, %v9672
  %v9674 = vrot.slane %v9672, 4
  %v9675 = vrot.slane %v8712, 5
  %v9676 = vsel %vm1027, %v9674, %v9675
  %v9677 = vrot.slane %v9513, 5
  %v9678 = vrot.slane %v9677, 4
  %v9679 = vrot.slane %v8656, 5
  %v9680 = vsel %vm1027, %v9678, %v9679
  %v9681 = vrot.slane %v9679, 4
  %v9682 = vrot.slane %v8713, 5
  %v9683 = vsel %vm1027, %v9681, %v9682
  %v9684 = vrot.slane %v9514, 5
  %v9685 = vrot.slane %v9684, 4
  %v9686 = vrot.slane %v8658, 5
  %v9687 = vsel %vm1027, %v9685, %v9686
  %v9688 = vrot.slane %v9686, 4
  %v9689 = vrot.slane %v8714, 5
  %v9690 = vsel %vm1027, %v9688, %v9689
  %v9691 = vrot.slane %v9515, 5
  %v9692 = vrot.slane %v9691, 4
  %v9693 = vrot.slane %v8660, 5
  %v9694 = vsel %vm1027, %v9692, %v9693
  %v9695 = vrot.slane %v9693, 4
  %v9696 = vrot.slane %v8715, 5
  %v9697 = vsel %vm1027, %v9695, %v9696
  %v9698 = vrot.slane %v9516, 5
  %v9699 = vrot.slane %v9698, 4
  %v9700 = vrot.slane %v8662, 5
  %v9701 = vsel %vm1027, %v9699, %v9700
  %v9702 = vrot.slane %v9700, 4
  %v9703 = vrot.slane %v8716, 5
  %v9704 = vsel %vm1027, %v9702, %v9703
  %v9705 = vrot.slane %v9517, 5
  %v9706 = vrot.slane %v9705, 4
  %v9707 = vrot.slane %v8664, 5
  %v9708 = vsel %vm1027, %v9706, %v9707
  %v9709 = vrot.slane %v9707, 4
  %v9710 = vrot.slane %v8717, 5
  %v9711 = vsel %vm1027, %v9709, %v9710
  %v9712 = vrot.slane %v9518, 5
  %v9713 = vrot.slane %v9712, 4
  %v9714 = vrot.slane %v8666, 5
  %v9715 = vsel %vm1027, %v9713, %v9714
  %v9716 = vrot.slane %v9714, 4
  %v9717 = vrot.slane %v8718, 5
  %v9718 = vsel %vm1027, %v9716, %v9717
  %v9719 = vrot.slane %v9519, 5
  %v9720 = vrot.slane %v9719, 4
  %v9721 = vrot.slane %v8668, 5
  %v9722 = vsel %vm1027, %v9720, %v9721
  %v9723 = vrot.slane %v9721, 4
  %v9724 = vrot.slane %v8719, 5
  %v9725 = vsel %vm1027, %v9723, %v9724
  %v9726 = vrot.slane %v9520, 5
  %v9727 = vrot.slane %v9726, 4
  %v9728 = vrot.slane %v8670, 5
  %v9729 = vsel %vm1027, %v9727, %v9728
  %v9730 = vrot.slane %v9728, 4
  %v9731 = vrot.slane %v8720, 5
  %v9732 = vsel %vm1027, %v9730, %v9731
  %v9733 = vrot.slane %v9521, 5
  %v9734 = vrot.slane %v9733, 4
  %v9735 = vrot.slane %v8672, 5
  %v9736 = vsel %vm1027, %v9734, %v9735
  %v9737 = vrot.slane %v9735, 4
  %v9738 = vrot.slane %v8721, 5
  %v9739 = vsel %vm1027, %v9737, %v9738
  %v9740 = vrot.slane %v9522, 5
  %v9741 = vrot.slane %v9740, 4
  %v9742 = vrot.slane %v8674, 5
  %v9743 = vsel %vm1027, %v9741, %v9742
  %v9744 = vrot.slane %v9742, 4
  %v9745 = vrot.slane %v8722, 5
  %v9746 = vsel %vm1027, %v9744, %v9745
  %v9747 = vrot.slane %v9523, 5
  %v9748 = vrot.slane %v9747, 4
  %v9749 = vrot.slane %v8676, 5
  %v9750 = vsel %vm1027, %v9748, %v9749
  %v9751 = vrot.slane %v9749, 4
  %v9752 = vrot.slane %v8723, 5
  %v9753 = vsel %vm1027, %v9751, %v9752
  %v9754 = vrot.slane %v9524, 5
  %v9755 = vrot.slane %v9754, 4
  %v9756 = vrot.slane %v8678, 5
  %v9757 = vsel %vm1027, %v9755, %v9756
  %v9758 = vrot.slane %v9756, 4
  %v9759 = vrot.slane %v8724, 5
  %v9760 = vsel %vm1027, %v9758, %v9759
  %v9761 = vrot.slane %v9525, 5
  %v9762 = vrot.slane %v9761, 4
  %v9763 = vrot.slane %v8680, 5
  %v9764 = vsel %vm1027, %v9762, %v9763
  %v9765 = vrot.slane %v9763, 4
  %v9766 = vrot.slane %v8725, 5
  %v9767 = vsel %vm1027, %v9765, %v9766
  %v9768 = vrot.slane %v9526, 5
  %v9769 = vrot.slane %v9768, 4
  %v9770 = vrot.slane %v8682, 5
  %v9771 = vsel %vm1027, %v9769, %v9770
  %v9772 = vrot.slane %v9770, 4
  %v9773 = vrot.slane %v8726, 5
  %v9774 = vsel %vm1027, %v9772, %v9773
  %v9775 = vrot.slane %v9527, 5
  %v9776 = vrot.slane %v9775, 4
  %v9777 = vrot.slane %v8684, 5
  %v9778 = vsel %vm1027, %v9776, %v9777
  %v9779 = vrot.slane %v9777, 4
  %v9780 = vrot.slane %v8727, 5
  %v9781 = vsel %vm1027, %v9779, %v9780
  %v9782 = vrot.slane %v9528, 5
  %v9783 = vrot.slane %v9782, 4
  %v9784 = vrot.slane %v8686, 5
  %v9785 = vsel %vm1027, %v9783, %v9784
  %v9786 = vrot.slane %v9784, 4
  %v9787 = vrot.slane %v8728, 5
  %v9788 = vsel %vm1027, %v9786, %v9787
  %v9789 = vrot.slane %v9529, 5
  %v9790 = vrot.slane %v9789, 4
  %v9791 = vrot.slane %v8688, 5
  %v9792 = vsel %vm1027, %v9790, %v9791
  %v9793 = vrot.slane %v9791, 4
  %v9794 = vrot.slane %v8729, 5
  %v9795 = vsel %vm1027, %v9793, %v9794
  %v9796 = vrot.slane %v9530, 5
  %v9797 = vrot.slane %v9796, 4
  %v9798 = vrot.slane %v8690, 5
  %v9799 = vsel %vm1027, %v9797, %v9798
  %v9800 = vrot.slane %v9798, 4
  %v9801 = vrot.slane %v8730, 5
  %v9802 = vsel %vm1027, %v9800, %v9801
  %v9803 = vrot.slane %v9531, 5
  %v9804 = vrot.slane %v9803, 4
  %v9805 = vrot.slane %v8692, 5
  %v9806 = vsel %vm1027, %v9804, %v9805
  %v9807 = vrot.slane %v9805, 4
  %v9808 = vrot.slane %v8731, 5
  %v9809 = vsel %vm1027, %v9807, %v9808
  %v9810 = vrot.slane %v9532, 5
  %v9811 = vrot.slane %v9810, 4
  %v9812 = vrot.slane %v8694, 5
  %v9813 = vsel %vm1027, %v9811, %v9812
  %v9814 = vrot.slane %v9812, 4
  %v9815 = vrot.slane %v8732, 5
  %v9816 = vsel %vm1027, %v9814, %v9815
  %v9817 = vrot.slane %v9533, 5
  %v9818 = vrot.slane %v9817, 4
  %v9819 = vrot.slane %v8696, 5
  %v9820 = vsel %vm1027, %v9818, %v9819
  %v9821 = vrot.slane %v9819, 4
  %v9822 = vrot.slane %v8733, 5
  %v9823 = vsel %vm1027, %v9821, %v9822
  %v9824 = vrot.slane %v9534, 5
  %v9825 = vrot.slane %v9824, 4
  %v9826 = vrot.slane %v8698, 5
  %v9827 = vsel %vm1027, %v9825, %v9826
  %v9828 = vrot.slane %v9826, 4
  %v9829 = vrot.slane %v8734, 5
  %v9830 = vsel %vm1027, %v9828, %v9829
  %v9831 = vrot.slane %v9535, 5
  %v9832 = vrot.slane %v9831, 4
  %v9833 = vrot.slane %v8700, 5
  %v9834 = vsel %vm1027, %v9832, %v9833
  %v9835 = vrot.slane %v9833, 4
  %v9836 = vrot.slane %v8735, 5
  %v9837 = vsel %vm1027, %v9835, %v9836
  %v9838 = vrot.slane %v9536, 5
  %v9839 = vrot.slane %v9838, 4
  %v9840 = vrot.slane %v8702, 5
  %v9841 = vsel %vm1027, %v9839, %v9840
  %v9842 = vrot.slane %v9840, 4
  %v9843 = vrot.slane %v8736, 5
  %v9844 = vsel %vm1027, %v9842, %v9843
  %v9845 = vrot.slane %v9537, 5
  %v9846 = vrot.slane %v9845, 4
  %v9847 = vrot.slane %v8704, 5
  %v9848 = vsel %vm1027, %v9846, %v9847
  %v9849 = vrot.slane %v9847, 4
  %v9850 = vrot.slane %v8737, 5
  %v9851 = vsel %vm1027, %v9849, %v9850
  %v9852 = vrot.slane %v9538, 5
  %v9853 = vrot.slane %v9852, 4
  %v9854 = vrot.slane %v8706, 5
  %v9855 = vsel %vm1027, %v9853, %v9854
  %v9856 = vrot.slane %v9854, 4
  %v9857 = vrot.slane %v8738, 5
  %v9858 = vsel %vm1027, %v9856, %v9857
  %v9859 = vld [vmem:[%s7417] sm:$0xf]
  %v9860 = vld [vmem:[%s7417 + $0x4] sm:$0xf]
  %v9861 = vld [vmem:[%s7417 + $0xc] sm:$0xf]
  %v9862 = vld [vmem:[%s7417 + $0x10] sm:$0xf]
  %v9863 = vld [vmem:[%s7417 + $0x18] sm:$0xf]
  %v9864 = vld [vmem:[%s7417 + $0x1c] sm:$0xf]
  %v9865 = vld [vmem:[%s7417 + $0x24] sm:$0xf]
  %v9866 = vld [vmem:[%s7417 + $0x28] sm:$0xf]
  %v9867 = vld [vmem:[%s7417 + $0x30] sm:$0xf]
  %v9868 = vld [vmem:[%s7417 + $0x34] sm:$0xf]
  %v9869 = vld [vmem:[%s7417 + $0x3c] sm:$0xf]
  %v9870 = vld [vmem:[%s7417 + $0x40] sm:$0xf]
  %v9871 = vld [vmem:[%s7417 + $0x48] sm:$0xf]
  %v9872 = vld [vmem:[%s7417 + $0x4c] sm:$0xf]
  %v9873 = vld [vmem:[%s7417 + $0x54] sm:$0xf]
  %v9874 = vld [vmem:[%s7417 + $0x58] sm:$0xf]
  %v9875 = vld [vmem:[%s7417 + $0x60] sm:$0xf]
  %v9876 = vld [vmem:[%s7417 + $0x64] sm:$0xf]
  %v9877 = vld [vmem:[%s7417 + $0x6c] sm:$0xf]
  %v9878 = vld [vmem:[%s7417 + $0x70] sm:$0xf]
  %v9879 = vld [vmem:[%s7417 + $0x78] sm:$0xf]
  %v9880 = vld [vmem:[%s7417 + $0x7c] sm:$0xf]
  %v9881 = vld [vmem:[%s7417 + $0x84] sm:$0xf]
  %v9882 = vld [vmem:[%s7417 + $0x88] sm:$0xf]
  %v9883 = vld [vmem:[%s7417 + $0x90] sm:$0xf]
  %v9884 = vld [vmem:[%s7417 + $0x94] sm:$0xf]
  %v9885 = vld [vmem:[%s7417 + $0x9c] sm:$0xf]
  %v9886 = vld [vmem:[%s7417 + $0xa0] sm:$0xf]
  %v9887 = vld [vmem:[%s7417 + $0xa8] sm:$0xf]
  %v9888 = vld [vmem:[%s7417 + $0xac] sm:$0xf]
  %v9889 = vld [vmem:[%s7417 + $0xb4] sm:$0xf]
  %v9890 = vld [vmem:[%s7417 + $0xb8] sm:$0xf]
  %v9891 = vld [vmem:[%s7417 + $0xd8] sm:$0xf]
  %v9892 = vld [vmem:[%s7417 + $0xdc] sm:$0xf]
  %v9893 = vld [vmem:[%s7417 + $0xe4] sm:$0xf]
  %v9894 = vld [vmem:[%s7417 + $0xe8] sm:$0xf]
  %v9895 = vld [vmem:[%s7417 + $0xf0] sm:$0xf]
  %v9896 = vld [vmem:[%s7417 + $0xf4] sm:$0xf]
  %v9897 = vld [vmem:[%s7417 + $0xfc] sm:$0xf]
  %v9898 = vld [vmem:[%s7417 + $0x100] sm:$0xf]
  %v9899 = vld [vmem:[%s7417 + $0x108] sm:$0xf]
  %v9900 = vld [vmem:[%s7417 + $0x10c] sm:$0xf]
  %v9901 = vld [vmem:[%s7417 + $0x114] sm:$0xf]
  %v9902 = vld [vmem:[%s7417 + $0x118] sm:$0xf]
  %v9903 = vld [vmem:[%s7417 + $0x120] sm:$0xf]
  %v9904 = vld [vmem:[%s7417 + $0x124] sm:$0xf]
  %v9905 = vld [vmem:[%s7417 + $0x12c] sm:$0xf]
  %v9906 = vld [vmem:[%s7417 + $0x130] sm:$0xf]
  %v9907 = vld [vmem:[%s7417 + $0x138] sm:$0xf]
  %v9908 = vld [vmem:[%s7417 + $0x13c] sm:$0xf]
  %v9909 = vld [vmem:[%s7417 + $0x144] sm:$0xf]
  %v9910 = vld [vmem:[%s7417 + $0x148] sm:$0xf]
  %v9911 = vld [vmem:[%s7417 + $0x150] sm:$0xf]
  %v9912 = vld [vmem:[%s7417 + $0x154] sm:$0xf]
  %v9913 = vld [vmem:[%s7417 + $0x15c] sm:$0xf]
  %v9914 = vld [vmem:[%s7417 + $0x160] sm:$0xf]
  %v9915 = vld [vmem:[%s7417 + $0x168] sm:$0xf]
  %v9916 = vld [vmem:[%s7417 + $0x16c] sm:$0xf]
  %v9917 = vld [vmem:[%s7417 + $0x174] sm:$0xf]
  %v9918 = vld [vmem:[%s7417 + $0x178] sm:$0xf]
  %v9919 = vld [vmem:[%s7417 + $0x180] sm:$0xf]
  %v9920 = vld [vmem:[%s7417 + $0x184] sm:$0xf]
  %v9921 = vld [vmem:[%s7417 + $0x18c] sm:$0xf]
  %v9922 = vld [vmem:[%s7417 + $0x190] sm:$0xf]
  %v9923 = vld [vmem:[%s7417 + $0x8] sm:$0x1]
  %v9924 = vld [vmem:[%s7417 + $0x14] sm:$0x1]
  %v9925 = vld [vmem:[%s7417 + $0x20] sm:$0x1]
  %v9926 = vld [vmem:[%s7417 + $0x2c] sm:$0x1]
  %v9927 = vld [vmem:[%s7417 + $0x38] sm:$0x1]
  %v9928 = vld [vmem:[%s7417 + $0x44] sm:$0x1]
  %v9929 = vld [vmem:[%s7417 + $0x50] sm:$0x1]
  %v9930 = vld [vmem:[%s7417 + $0x5c] sm:$0x1]
  %v9931 = vld [vmem:[%s7417 + $0x68] sm:$0x1]
  %v9932 = vld [vmem:[%s7417 + $0x74] sm:$0x1]
  %v9933 = vld [vmem:[%s7417 + $0x80] sm:$0x1]
  %v9934 = vld [vmem:[%s7417 + $0x8c] sm:$0x1]
  %v9935 = vld [vmem:[%s7417 + $0x98] sm:$0x1]
  %v9936 = vld [vmem:[%s7417 + $0xa4] sm:$0x1]
  %v9937 = vld [vmem:[%s7417 + $0xb0] sm:$0x1]
  %v9938 = vld [vmem:[%s7417 + $0xbc] sm:$0x1]
  %v9939 = vld [vmem:[%s7417 + $0xe0] sm:$0x1]
  %v9940 = vld [vmem:[%s7417 + $0xec] sm:$0x1]
  %v9941 = vld [vmem:[%s7417 + $0xf8] sm:$0x1]
  %v9942 = vld [vmem:[%s7417 + $0x104] sm:$0x1]
  %v9943 = vld [vmem:[%s7417 + $0x110] sm:$0x1]
  %v9944 = vld [vmem:[%s7417 + $0x11c] sm:$0x1]
  %v9945 = vld [vmem:[%s7417 + $0x128] sm:$0x1]
  %v9946 = vld [vmem:[%s7417 + $0x134] sm:$0x1]
  %v9947 = vld [vmem:[%s7417 + $0x140] sm:$0x1]
  %v9948 = vld [vmem:[%s7417 + $0x14c] sm:$0x1]
  %v9949 = vld [vmem:[%s7417 + $0x158] sm:$0x1]
  %v9950 = vld [vmem:[%s7417 + $0x164] sm:$0x1]
  %v9951 = vld [vmem:[%s7417 + $0x170] sm:$0x1]
  %v9952 = vld [vmem:[%s7417 + $0x17c] sm:$0x1]
  %v9953 = vld [vmem:[%s7417 + $0x188] sm:$0x1]
  %v9954 = vld [vmem:[%s7417 + $0x194] sm:$0x1]
  %v9956 = vshrl.u32 %v9859, 16
  %v9958 = vrot.slane %v9956, 4
  %v9959 = vshll.u32 %v9859, 16
  %v9961 = vrot.slane %v9959, 5
  %v9962 = vor.u32 %v9958, %v9961
  %v9963 = vrot.slane %v9962, 4
  %v9965 = vshll.u32 %v9860, 16
  %v9967 = vrot.slane %v9965, 5
  %v9968 = vsel %vm128, %v9963, %v9967
  %v9969 = vshrl.u32 %v9860, 16
  %v9971 = vrot.slane %v9969, 4
  %v9972 = vor.u32 %v9971, %v9967
  %v9973 = vrot.slane %v9972, 4
  %v9975 = vshll.u32 %v9923, 16
  %v9977 = vrot.slane %v9975, 5
  %v9978 = vsel %vm128, %v9973, %v9977
  %v9980 = vshrl.u32 %v9861, 16
  %v9982 = vrot.slane %v9980, 4
  %v9983 = vshll.u32 %v9861, 16
  %v9985 = vrot.slane %v9983, 5
  %v9986 = vor.u32 %v9982, %v9985
  %v9987 = vrot.slane %v9986, 4
  %v9989 = vshll.u32 %v9862, 16
  %v9991 = vrot.slane %v9989, 5
  %v9992 = vsel %vm128, %v9987, %v9991
  %v9993 = vshrl.u32 %v9862, 16
  %v9995 = vrot.slane %v9993, 4
  %v9996 = vor.u32 %v9995, %v9991
  %v9997 = vrot.slane %v9996, 4
  %v9999 = vshll.u32 %v9924, 16
  %v10001 = vrot.slane %v9999, 5
  %v10002 = vsel %vm128, %v9997, %v10001
  %v10004 = vshrl.u32 %v9863, 16
  %v10006 = vrot.slane %v10004, 4
  %v10007 = vshll.u32 %v9863, 16
  %v10009 = vrot.slane %v10007, 5
  %v10010 = vor.u32 %v10006, %v10009
  %v10011 = vrot.slane %v10010, 4
  %v10013 = vshll.u32 %v9864, 16
  %v10015 = vrot.slane %v10013, 5
  %v10016 = vsel %vm128, %v10011, %v10015
  %v10017 = vshrl.u32 %v9864, 16
  %v10019 = vrot.slane %v10017, 4
  %v10020 = vor.u32 %v10019, %v10015
  %v10021 = vrot.slane %v10020, 4
  %v10023 = vshll.u32 %v9925, 16
  %v10025 = vrot.slane %v10023, 5
  %v10026 = vsel %vm128, %v10021, %v10025
  %v10028 = vshrl.u32 %v9865, 16
  %v10030 = vrot.slane %v10028, 4
  %v10031 = vshll.u32 %v9865, 16
  %v10033 = vrot.slane %v10031, 5
  %v10034 = vor.u32 %v10030, %v10033
  %v10035 = vrot.slane %v10034, 4
  %v10037 = vshll.u32 %v9866, 16
  %v10039 = vrot.slane %v10037, 5
  %v10040 = vsel %vm128, %v10035, %v10039
  %v10041 = vshrl.u32 %v9866, 16
  %v10043 = vrot.slane %v10041, 4
  %v10044 = vor.u32 %v10043, %v10039
  %v10045 = vrot.slane %v10044, 4
  %v10047 = vshll.u32 %v9926, 16
  %v10049 = vrot.slane %v10047, 5
  %v10050 = vsel %vm128, %v10045, %v10049
  %v10052 = vshrl.u32 %v9867, 16
  %v10054 = vrot.slane %v10052, 4
  %v10055 = vshll.u32 %v9867, 16
  %v10057 = vrot.slane %v10055, 5
  %v10058 = vor.u32 %v10054, %v10057
  %v10059 = vrot.slane %v10058, 4
  %v10061 = vshll.u32 %v9868, 16
  %v10063 = vrot.slane %v10061, 5
  %v10064 = vsel %vm128, %v10059, %v10063
  %v10065 = vshrl.u32 %v9868, 16
  %v10067 = vrot.slane %v10065, 4
  %v10068 = vor.u32 %v10067, %v10063
  %v10069 = vrot.slane %v10068, 4
  %v10071 = vshll.u32 %v9927, 16
  %v10073 = vrot.slane %v10071, 5
  %v10074 = vsel %vm128, %v10069, %v10073
  %v10076 = vshrl.u32 %v9869, 16
  %v10078 = vrot.slane %v10076, 4
  %v10079 = vshll.u32 %v9869, 16
  %v10081 = vrot.slane %v10079, 5
  %v10082 = vor.u32 %v10078, %v10081
  %v10083 = vrot.slane %v10082, 4
  %v10085 = vshll.u32 %v9870, 16
  %v10087 = vrot.slane %v10085, 5
  %v10088 = vsel %vm128, %v10083, %v10087
  %v10089 = vshrl.u32 %v9870, 16
  %v10091 = vrot.slane %v10089, 4
  %v10092 = vor.u32 %v10091, %v10087
  %v10093 = vrot.slane %v10092, 4
  %v10095 = vshll.u32 %v9928, 16
  %v10097 = vrot.slane %v10095, 5
  %v10098 = vsel %vm128, %v10093, %v10097
  %v10100 = vshrl.u32 %v9871, 16
  %v10102 = vrot.slane %v10100, 4
  %v10103 = vshll.u32 %v9871, 16
  %v10105 = vrot.slane %v10103, 5
  %v10106 = vor.u32 %v10102, %v10105
  %v10107 = vrot.slane %v10106, 4
  %v10109 = vshll.u32 %v9872, 16
  %v10111 = vrot.slane %v10109, 5
  %v10112 = vsel %vm128, %v10107, %v10111
  %v10113 = vshrl.u32 %v9872, 16
  %v10115 = vrot.slane %v10113, 4
  %v10116 = vor.u32 %v10115, %v10111
  %v10117 = vrot.slane %v10116, 4
  %v10119 = vshll.u32 %v9929, 16
  %v10121 = vrot.slane %v10119, 5
  %v10122 = vsel %vm128, %v10117, %v10121
  %v10124 = vshrl.u32 %v9873, 16
  %v10126 = vrot.slane %v10124, 4
  %v10127 = vshll.u32 %v9873, 16
  %v10129 = vrot.slane %v10127, 5
  %v10130 = vor.u32 %v10126, %v10129
  %v10131 = vrot.slane %v10130, 4
  %v10133 = vshll.u32 %v9874, 16
  %v10135 = vrot.slane %v10133, 5
  %v10136 = vsel %vm128, %v10131, %v10135
  %v10137 = vshrl.u32 %v9874, 16
  %v10139 = vrot.slane %v10137, 4
  %v10140 = vor.u32 %v10139, %v10135
  %v10141 = vrot.slane %v10140, 4
  %v10143 = vshll.u32 %v9930, 16
  %v10145 = vrot.slane %v10143, 5
  %v10146 = vsel %vm128, %v10141, %v10145
  %v10148 = vshrl.u32 %v9875, 16
  %v10150 = vrot.slane %v10148, 4
  %v10151 = vshll.u32 %v9875, 16
  %v10153 = vrot.slane %v10151, 5
  %v10154 = vor.u32 %v10150, %v10153
  %v10155 = vrot.slane %v10154, 4
  %v10157 = vshll.u32 %v9876, 16
  %v10159 = vrot.slane %v10157, 5
  %v10160 = vsel %vm128, %v10155, %v10159
  %v10161 = vshrl.u32 %v9876, 16
  %v10163 = vrot.slane %v10161, 4
  %v10164 = vor.u32 %v10163, %v10159
  %v10165 = vrot.slane %v10164, 4
  %v10167 = vshll.u32 %v9931, 16
  %v10169 = vrot.slane %v10167, 5
  %v10170 = vsel %vm128, %v10165, %v10169
  %v10172 = vshrl.u32 %v9877, 16
  %v10174 = vrot.slane %v10172, 4
  %v10175 = vshll.u32 %v9877, 16
  %v10177 = vrot.slane %v10175, 5
  %v10178 = vor.u32 %v10174, %v10177
  %v10179 = vrot.slane %v10178, 4
  %v10181 = vshll.u32 %v9878, 16
  %v10183 = vrot.slane %v10181, 5
  %v10184 = vsel %vm128, %v10179, %v10183
  %v10185 = vshrl.u32 %v9878, 16
  %v10187 = vrot.slane %v10185, 4
  %v10188 = vor.u32 %v10187, %v10183
  %v10189 = vrot.slane %v10188, 4
  %v10191 = vshll.u32 %v9932, 16
  %v10193 = vrot.slane %v10191, 5
  %v10194 = vsel %vm128, %v10189, %v10193
  %v10196 = vshrl.u32 %v9879, 16
  %v10198 = vrot.slane %v10196, 4
  %v10199 = vshll.u32 %v9879, 16
  %v10201 = vrot.slane %v10199, 5
  %v10202 = vor.u32 %v10198, %v10201
  %v10203 = vrot.slane %v10202, 4
  %v10205 = vshll.u32 %v9880, 16
  %v10207 = vrot.slane %v10205, 5
  %v10208 = vsel %vm128, %v10203, %v10207
  %v10209 = vshrl.u32 %v9880, 16
  %v10211 = vrot.slane %v10209, 4
  %v10212 = vor.u32 %v10211, %v10207
  %v10213 = vrot.slane %v10212, 4
  %v10215 = vshll.u32 %v9933, 16
  %v10217 = vrot.slane %v10215, 5
  %v10218 = vsel %vm128, %v10213, %v10217
  %v10220 = vshrl.u32 %v9881, 16
  %v10222 = vrot.slane %v10220, 4
  %v10223 = vshll.u32 %v9881, 16
  %v10225 = vrot.slane %v10223, 5
  %v10226 = vor.u32 %v10222, %v10225
  %v10227 = vrot.slane %v10226, 4
  %v10229 = vshll.u32 %v9882, 16
  %v10231 = vrot.slane %v10229, 5
  %v10232 = vsel %vm128, %v10227, %v10231
  %v10233 = vshrl.u32 %v9882, 16
  %v10235 = vrot.slane %v10233, 4
  %v10236 = vor.u32 %v10235, %v10231
  %v10237 = vrot.slane %v10236, 4
  %v10239 = vshll.u32 %v9934, 16
  %v10241 = vrot.slane %v10239, 5
  %v10242 = vsel %vm128, %v10237, %v10241
  %v10244 = vshrl.u32 %v9883, 16
  %v10246 = vrot.slane %v10244, 4
  %v10247 = vshll.u32 %v9883, 16
  %v10249 = vrot.slane %v10247, 5
  %v10250 = vor.u32 %v10246, %v10249
  %v10251 = vrot.slane %v10250, 4
  %v10253 = vshll.u32 %v9884, 16
  %v10255 = vrot.slane %v10253, 5
  %v10256 = vsel %vm128, %v10251, %v10255
  %v10257 = vshrl.u32 %v9884, 16
  %v10259 = vrot.slane %v10257, 4
  %v10260 = vor.u32 %v10259, %v10255
  %v10261 = vrot.slane %v10260, 4
  %v10263 = vshll.u32 %v9935, 16
  %v10265 = vrot.slane %v10263, 5
  %v10266 = vsel %vm128, %v10261, %v10265
  %v10268 = vshrl.u32 %v9885, 16
  %v10270 = vrot.slane %v10268, 4
  %v10271 = vshll.u32 %v9885, 16
  %v10273 = vrot.slane %v10271, 5
  %v10274 = vor.u32 %v10270, %v10273
  %v10275 = vrot.slane %v10274, 4
  %v10277 = vshll.u32 %v9886, 16
  %v10279 = vrot.slane %v10277, 5
  %v10280 = vsel %vm128, %v10275, %v10279
  %v10281 = vshrl.u32 %v9886, 16
  %v10283 = vrot.slane %v10281, 4
  %v10284 = vor.u32 %v10283, %v10279
  %v10285 = vrot.slane %v10284, 4
  %v10287 = vshll.u32 %v9936, 16
  %v10289 = vrot.slane %v10287, 5
  %v10290 = vsel %vm128, %v10285, %v10289
  %v10292 = vshrl.u32 %v9887, 16
  %v10294 = vrot.slane %v10292, 4
  %v10295 = vshll.u32 %v9887, 16
  %v10297 = vrot.slane %v10295, 5
  %v10298 = vor.u32 %v10294, %v10297
  %v10299 = vrot.slane %v10298, 4
  %v10301 = vshll.u32 %v9888, 16
  %v10303 = vrot.slane %v10301, 5
  %v10304 = vsel %vm128, %v10299, %v10303
  %v10305 = vshrl.u32 %v9888, 16
  %v10307 = vrot.slane %v10305, 4
  %v10308 = vor.u32 %v10307, %v10303
  %v10309 = vrot.slane %v10308, 4
  %v10311 = vshll.u32 %v9937, 16
  %v10313 = vrot.slane %v10311, 5
  %v10314 = vsel %vm128, %v10309, %v10313
  %v10316 = vshrl.u32 %v9889, 16
  %v10318 = vrot.slane %v10316, 4
  %v10319 = vshll.u32 %v9889, 16
  %v10321 = vrot.slane %v10319, 5
  %v10322 = vor.u32 %v10318, %v10321
  %v10323 = vrot.slane %v10322, 4
  %v10325 = vshll.u32 %v9890, 16
  %v10327 = vrot.slane %v10325, 5
  %v10328 = vsel %vm128, %v10323, %v10327
  %v10329 = vshrl.u32 %v9890, 16
  %v10331 = vrot.slane %v10329, 4
  %v10332 = vor.u32 %v10331, %v10327
  %v10333 = vrot.slane %v10332, 4
  %v10335 = vshll.u32 %v9938, 16
  %v10337 = vrot.slane %v10335, 5
  %v10338 = vsel %vm128, %v10333, %v10337
  %v10340 = vshrl.u32 %v9891, 16
  %v10342 = vrot.slane %v10340, 4
  %v10343 = vshll.u32 %v9891, 16
  %v10345 = vrot.slane %v10343, 5
  %v10346 = vor.u32 %v10342, %v10345
  %v10347 = vrot.slane %v10346, 4
  %v10349 = vshll.u32 %v9892, 16
  %v10351 = vrot.slane %v10349, 5
  %v10352 = vsel %vm128, %v10347, %v10351
  %v10353 = vshrl.u32 %v9892, 16
  %v10355 = vrot.slane %v10353, 4
  %v10356 = vor.u32 %v10355, %v10351
  %v10357 = vrot.slane %v10356, 4
  %v10359 = vshll.u32 %v9939, 16
  %v10361 = vrot.slane %v10359, 5
  %v10362 = vsel %vm128, %v10357, %v10361
  %v10364 = vshrl.u32 %v9893, 16
  %v10366 = vrot.slane %v10364, 4
  %v10367 = vshll.u32 %v9893, 16
  %v10369 = vrot.slane %v10367, 5
  %v10370 = vor.u32 %v10366, %v10369
  %v10371 = vrot.slane %v10370, 4
  %v10373 = vshll.u32 %v9894, 16
  %v10375 = vrot.slane %v10373, 5
  %v10376 = vsel %vm128, %v10371, %v10375
  %v10377 = vshrl.u32 %v9894, 16
  %v10379 = vrot.slane %v10377, 4
  %v10380 = vor.u32 %v10379, %v10375
  %v10381 = vrot.slane %v10380, 4
  %v10383 = vshll.u32 %v9940, 16
  %v10385 = vrot.slane %v10383, 5
  %v10386 = vsel %vm128, %v10381, %v10385
  %v10388 = vshrl.u32 %v9895, 16
  %v10390 = vrot.slane %v10388, 4
  %v10391 = vshll.u32 %v9895, 16
  %v10393 = vrot.slane %v10391, 5
  %v10394 = vor.u32 %v10390, %v10393
  %v10395 = vrot.slane %v10394, 4
  %v10397 = vshll.u32 %v9896, 16
  %v10399 = vrot.slane %v10397, 5
  %v10400 = vsel %vm128, %v10395, %v10399
  %v10401 = vshrl.u32 %v9896, 16
  %v10403 = vrot.slane %v10401, 4
  %v10404 = vor.u32 %v10403, %v10399
  %v10405 = vrot.slane %v10404, 4
  %v10407 = vshll.u32 %v9941, 16
  %v10409 = vrot.slane %v10407, 5
  %v10410 = vsel %vm128, %v10405, %v10409
  %v10412 = vshrl.u32 %v9897, 16
  %v10414 = vrot.slane %v10412, 4
  %v10415 = vshll.u32 %v9897, 16
  %v10417 = vrot.slane %v10415, 5
  %v10418 = vor.u32 %v10414, %v10417
  %v10419 = vrot.slane %v10418, 4
  %v10421 = vshll.u32 %v9898, 16
  %v10423 = vrot.slane %v10421, 5
  %v10424 = vsel %vm128, %v10419, %v10423
  %v10425 = vshrl.u32 %v9898, 16
  %v10427 = vrot.slane %v10425, 4
  %v10428 = vor.u32 %v10427, %v10423
  %v10429 = vrot.slane %v10428, 4
  %v10431 = vshll.u32 %v9942, 16
  %v10433 = vrot.slane %v10431, 5
  %v10434 = vsel %vm128, %v10429, %v10433
  %v10436 = vshrl.u32 %v9899, 16
  %v10438 = vrot.slane %v10436, 4
  %v10439 = vshll.u32 %v9899, 16
  %v10441 = vrot.slane %v10439, 5
  %v10442 = vor.u32 %v10438, %v10441
  %v10443 = vrot.slane %v10442, 4
  %v10445 = vshll.u32 %v9900, 16
  %v10447 = vrot.slane %v10445, 5
  %v10448 = vsel %vm128, %v10443, %v10447
  %v10449 = vshrl.u32 %v9900, 16
  %v10451 = vrot.slane %v10449, 4
  %v10452 = vor.u32 %v10451, %v10447
  %v10453 = vrot.slane %v10452, 4
  %v10455 = vshll.u32 %v9943, 16
  %v10457 = vrot.slane %v10455, 5
  %v10458 = vsel %vm128, %v10453, %v10457
  %v10460 = vshrl.u32 %v9901, 16
  %v10462 = vrot.slane %v10460, 4
  %v10463 = vshll.u32 %v9901, 16
  %v10465 = vrot.slane %v10463, 5
  %v10466 = vor.u32 %v10462, %v10465
  %v10467 = vrot.slane %v10466, 4
  %v10469 = vshll.u32 %v9902, 16
  %v10471 = vrot.slane %v10469, 5
  %v10472 = vsel %vm128, %v10467, %v10471
  %v10473 = vshrl.u32 %v9902, 16
  %v10475 = vrot.slane %v10473, 4
  %v10476 = vor.u32 %v10475, %v10471
  %v10477 = vrot.slane %v10476, 4
  %v10479 = vshll.u32 %v9944, 16
  %v10481 = vrot.slane %v10479, 5
  %v10482 = vsel %vm128, %v10477, %v10481
  %v10484 = vshrl.u32 %v9903, 16
  %v10486 = vrot.slane %v10484, 4
  %v10487 = vshll.u32 %v9903, 16
  %v10489 = vrot.slane %v10487, 5
  %v10490 = vor.u32 %v10486, %v10489
  %v10491 = vrot.slane %v10490, 4
  %v10493 = vshll.u32 %v9904, 16
  %v10495 = vrot.slane %v10493, 5
  %v10496 = vsel %vm128, %v10491, %v10495
  %v10497 = vshrl.u32 %v9904, 16
  %v10499 = vrot.slane %v10497, 4
  %v10500 = vor.u32 %v10499, %v10495
  %v10501 = vrot.slane %v10500, 4
  %v10503 = vshll.u32 %v9945, 16
  %v10505 = vrot.slane %v10503, 5
  %v10506 = vsel %vm128, %v10501, %v10505
  %v10508 = vshrl.u32 %v9905, 16
  %v10510 = vrot.slane %v10508, 4
  %v10511 = vshll.u32 %v9905, 16
  %v10513 = vrot.slane %v10511, 5
  %v10514 = vor.u32 %v10510, %v10513
  %v10515 = vrot.slane %v10514, 4
  %v10517 = vshll.u32 %v9906, 16
  %v10519 = vrot.slane %v10517, 5
  %v10520 = vsel %vm128, %v10515, %v10519
  %v10521 = vshrl.u32 %v9906, 16
  %v10523 = vrot.slane %v10521, 4
  %v10524 = vor.u32 %v10523, %v10519
  %v10525 = vrot.slane %v10524, 4
  %v10527 = vshll.u32 %v9946, 16
  %v10529 = vrot.slane %v10527, 5
  %v10530 = vsel %vm128, %v10525, %v10529
  %v10532 = vshrl.u32 %v9907, 16
  %v10534 = vrot.slane %v10532, 4
  %v10535 = vshll.u32 %v9907, 16
  %v10537 = vrot.slane %v10535, 5
  %v10538 = vor.u32 %v10534, %v10537
  %v10539 = vrot.slane %v10538, 4
  %v10541 = vshll.u32 %v9908, 16
  %v10543 = vrot.slane %v10541, 5
  %v10544 = vsel %vm128, %v10539, %v10543
  %v10545 = vshrl.u32 %v9908, 16
  %v10547 = vrot.slane %v10545, 4
  %v10548 = vor.u32 %v10547, %v10543
  %v10549 = vrot.slane %v10548, 4
  %v10551 = vshll.u32 %v9947, 16
  %v10553 = vrot.slane %v10551, 5
  %v10554 = vsel %vm128, %v10549, %v10553
  %v10556 = vshrl.u32 %v9909, 16
  %v10558 = vrot.slane %v10556, 4
  %v10559 = vshll.u32 %v9909, 16
  %v10561 = vrot.slane %v10559, 5
  %v10562 = vor.u32 %v10558, %v10561
  %v10563 = vrot.slane %v10562, 4
  %v10565 = vshll.u32 %v9910, 16
  %v10567 = vrot.slane %v10565, 5
  %v10568 = vsel %vm128, %v10563, %v10567
  %v10569 = vshrl.u32 %v9910, 16
  %v10571 = vrot.slane %v10569, 4
  %v10572 = vor.u32 %v10571, %v10567
  %v10573 = vrot.slane %v10572, 4
  %v10575 = vshll.u32 %v9948, 16
  %v10577 = vrot.slane %v10575, 5
  %v10578 = vsel %vm128, %v10573, %v10577
  %v10580 = vshrl.u32 %v9911, 16
  %v10582 = vrot.slane %v10580, 4
  %v10583 = vshll.u32 %v9911, 16
  %v10585 = vrot.slane %v10583, 5
  %v10586 = vor.u32 %v10582, %v10585
  %v10587 = vrot.slane %v10586, 4
  %v10589 = vshll.u32 %v9912, 16
  %v10591 = vrot.slane %v10589, 5
  %v10592 = vsel %vm128, %v10587, %v10591
  %v10593 = vshrl.u32 %v9912, 16
  %v10595 = vrot.slane %v10593, 4
  %v10596 = vor.u32 %v10595, %v10591
  %v10597 = vrot.slane %v10596, 4
  %v10599 = vshll.u32 %v9949, 16
  %v10601 = vrot.slane %v10599, 5
  %v10602 = vsel %vm128, %v10597, %v10601
  %v10604 = vshrl.u32 %v9913, 16
  %v10606 = vrot.slane %v10604, 4
  %v10607 = vshll.u32 %v9913, 16
  %v10609 = vrot.slane %v10607, 5
  %v10610 = vor.u32 %v10606, %v10609
  %v10611 = vrot.slane %v10610, 4
  %v10613 = vshll.u32 %v9914, 16
  %v10615 = vrot.slane %v10613, 5
  %v10616 = vsel %vm128, %v10611, %v10615
  %v10617 = vshrl.u32 %v9914, 16
  %v10619 = vrot.slane %v10617, 4
  %v10620 = vor.u32 %v10619, %v10615
  %v10621 = vrot.slane %v10620, 4
  %v10623 = vshll.u32 %v9950, 16
  %v10625 = vrot.slane %v10623, 5
  %v10626 = vsel %vm128, %v10621, %v10625
  %v10628 = vshrl.u32 %v9915, 16
  %v10630 = vrot.slane %v10628, 4
  %v10631 = vshll.u32 %v9915, 16
  %v10633 = vrot.slane %v10631, 5
  %v10634 = vor.u32 %v10630, %v10633
  %v10635 = vrot.slane %v10634, 4
  %v10637 = vshll.u32 %v9916, 16
  %v10639 = vrot.slane %v10637, 5
  %v10640 = vsel %vm128, %v10635, %v10639
  %v10641 = vshrl.u32 %v9916, 16
  %v10643 = vrot.slane %v10641, 4
  %v10644 = vor.u32 %v10643, %v10639
  %v10645 = vrot.slane %v10644, 4
  %v10647 = vshll.u32 %v9951, 16
  %v10649 = vrot.slane %v10647, 5
  %v10650 = vsel %vm128, %v10645, %v10649
  %v10652 = vshrl.u32 %v9917, 16
  %v10654 = vrot.slane %v10652, 4
  %v10655 = vshll.u32 %v9917, 16
  %v10657 = vrot.slane %v10655, 5
  %v10658 = vor.u32 %v10654, %v10657
  %v10659 = vrot.slane %v10658, 4
  %v10661 = vshll.u32 %v9918, 16
  %v10663 = vrot.slane %v10661, 5
  %v10664 = vsel %vm128, %v10659, %v10663
  %v10665 = vshrl.u32 %v9918, 16
  %v10667 = vrot.slane %v10665, 4
  %v10668 = vor.u32 %v10667, %v10663
  %v10669 = vrot.slane %v10668, 4
  %v10671 = vshll.u32 %v9952, 16
  %v10673 = vrot.slane %v10671, 5
  %v10674 = vsel %vm128, %v10669, %v10673
  %v10676 = vshrl.u32 %v9919, 16
  %v10678 = vrot.slane %v10676, 4
  %v10679 = vshll.u32 %v9919, 16
  %v10681 = vrot.slane %v10679, 5
  %v10682 = vor.u32 %v10678, %v10681
  %v10683 = vrot.slane %v10682, 4
  %v10685 = vshll.u32 %v9920, 16
  %v10687 = vrot.slane %v10685, 5
  %v10688 = vsel %vm128, %v10683, %v10687
  %v10689 = vshrl.u32 %v9920, 16
  %v10691 = vrot.slane %v10689, 4
  %v10692 = vor.u32 %v10691, %v10687
  %v10693 = vrot.slane %v10692, 4
  %v10695 = vshll.u32 %v9953, 16
  %v10697 = vrot.slane %v10695, 5
  %v10698 = vsel %vm128, %v10693, %v10697
  %v10700 = vshrl.u32 %v9921, 16
  %v10702 = vrot.slane %v10700, 4
  %v10703 = vshll.u32 %v9921, 16
  %v10705 = vrot.slane %v10703, 5
  %v10706 = vor.u32 %v10702, %v10705
  %v10707 = vrot.slane %v10706, 4
  %v10709 = vshll.u32 %v9922, 16
  %v10711 = vrot.slane %v10709, 5
  %v10712 = vsel %vm128, %v10707, %v10711
  %v10713 = vshrl.u32 %v9922, 16
  %v10715 = vrot.slane %v10713, 4
  %v10716 = vor.u32 %v10715, %v10711
  %v10717 = vrot.slane %v10716, 4
  %v10719 = vshll.u32 %v9954, 16
  %v10721 = vrot.slane %v10719, 5
  %v10722 = vsel %vm128, %v10717, %v10721
  %v10723 = vld [vmem:[%s7417] sm:$0xe]
  %v10724 = vld [vmem:[%s7417 + $0xc] sm:$0xe]
  %v10725 = vld [vmem:[%s7417 + $0x18] sm:$0xe]
  %v10726 = vld [vmem:[%s7417 + $0x24] sm:$0xe]
  %v10727 = vld [vmem:[%s7417 + $0x30] sm:$0xe]
  %v10728 = vld [vmem:[%s7417 + $0x3c] sm:$0xe]
  %v10729 = vld [vmem:[%s7417 + $0x48] sm:$0xe]
  %v10730 = vld [vmem:[%s7417 + $0x54] sm:$0xe]
  %v10731 = vld [vmem:[%s7417 + $0x60] sm:$0xe]
  %v10732 = vld [vmem:[%s7417 + $0x6c] sm:$0xe]
  %v10733 = vld [vmem:[%s7417 + $0x78] sm:$0xe]
  %v10734 = vld [vmem:[%s7417 + $0x84] sm:$0xe]
  %v10735 = vld [vmem:[%s7417 + $0x90] sm:$0xe]
  %v10736 = vld [vmem:[%s7417 + $0x9c] sm:$0xe]
  %v10737 = vld [vmem:[%s7417 + $0xa8] sm:$0xe]
  %v10738 = vld [vmem:[%s7417 + $0xb4] sm:$0xe]
  %v10739 = vld [vmem:[%s7417 + $0xd8] sm:$0xe]
  %v10740 = vld [vmem:[%s7417 + $0xe4] sm:$0xe]
  %v10741 = vld [vmem:[%s7417 + $0xf0] sm:$0xe]
  %v10742 = vld [vmem:[%s7417 + $0xfc] sm:$0xe]
  %v10743 = vld [vmem:[%s7417 + $0x108] sm:$0xe]
  %v10744 = vld [vmem:[%s7417 + $0x114] sm:$0xe]
  %v10745 = vld [vmem:[%s7417 + $0x120] sm:$0xe]
  %v10746 = vld [vmem:[%s7417 + $0x12c] sm:$0xe]
  %v10747 = vld [vmem:[%s7417 + $0x138] sm:$0xe]
  %v10748 = vld [vmem:[%s7417 + $0x144] sm:$0xe]
  %v10749 = vld [vmem:[%s7417 + $0x150] sm:$0xe]
  %v10750 = vld [vmem:[%s7417 + $0x15c] sm:$0xe]
  %v10751 = vld [vmem:[%s7417 + $0x168] sm:$0xe]
  %v10752 = vld [vmem:[%s7417 + $0x174] sm:$0xe]
  %v10753 = vld [vmem:[%s7417 + $0x180] sm:$0xe]
  %v10754 = vld [vmem:[%s7417 + $0x18c] sm:$0xe]
  %v10851 = vrot.slane %v10723, 5
  %v10852 = vrot.slane %v10851, 4
  %v10853 = vrot.slane %v9860, 5
  %v10854 = vsel %vm1027, %v10852, %v10853
  %v10855 = vrot.slane %v10853, 4
  %v10856 = vrot.slane %v9923, 5
  %v10857 = vsel %vm1027, %v10855, %v10856
  %v10858 = vrot.slane %v10724, 5
  %v10859 = vrot.slane %v10858, 4
  %v10860 = vrot.slane %v9862, 5
  %v10861 = vsel %vm1027, %v10859, %v10860
  %v10862 = vrot.slane %v10860, 4
  %v10863 = vrot.slane %v9924, 5
  %v10864 = vsel %vm1027, %v10862, %v10863
  %v10865 = vrot.slane %v10725, 5
  %v10866 = vrot.slane %v10865, 4
  %v10867 = vrot.slane %v9864, 5
  %v10868 = vsel %vm1027, %v10866, %v10867
  %v10869 = vrot.slane %v10867, 4
  %v10870 = vrot.slane %v9925, 5
  %v10871 = vsel %vm1027, %v10869, %v10870
  %v10872 = vrot.slane %v10726, 5
  %v10873 = vrot.slane %v10872, 4
  %v10874 = vrot.slane %v9866, 5
  %v10875 = vsel %vm1027, %v10873, %v10874
  %v10876 = vrot.slane %v10874, 4
  %v10877 = vrot.slane %v9926, 5
  %v10878 = vsel %vm1027, %v10876, %v10877
  %v10879 = vrot.slane %v10727, 5
  %v10880 = vrot.slane %v10879, 4
  %v10881 = vrot.slane %v9868, 5
  %v10882 = vsel %vm1027, %v10880, %v10881
  %v10883 = vrot.slane %v10881, 4
  %v10884 = vrot.slane %v9927, 5
  %v10885 = vsel %vm1027, %v10883, %v10884
  %v10886 = vrot.slane %v10728, 5
  %v10887 = vrot.slane %v10886, 4
  %v10888 = vrot.slane %v9870, 5
  %v10889 = vsel %vm1027, %v10887, %v10888
  %v10890 = vrot.slane %v10888, 4
  %v10891 = vrot.slane %v9928, 5
  %v10892 = vsel %vm1027, %v10890, %v10891
  %v10893 = vrot.slane %v10729, 5
  %v10894 = vrot.slane %v10893, 4
  %v10895 = vrot.slane %v9872, 5
  %v10896 = vsel %vm1027, %v10894, %v10895
  %v10897 = vrot.slane %v10895, 4
  %v10898 = vrot.slane %v9929, 5
  %v10899 = vsel %vm1027, %v10897, %v10898
  %v10900 = vrot.slane %v10730, 5
  %v10901 = vrot.slane %v10900, 4
  %v10902 = vrot.slane %v9874, 5
  %v10903 = vsel %vm1027, %v10901, %v10902
  %v10904 = vrot.slane %v10902, 4
  %v10905 = vrot.slane %v9930, 5
  %v10906 = vsel %vm1027, %v10904, %v10905
  %v10907 = vrot.slane %v10731, 5
  %v10908 = vrot.slane %v10907, 4
  %v10909 = vrot.slane %v9876, 5
  %v10910 = vsel %vm1027, %v10908, %v10909
  %v10911 = vrot.slane %v10909, 4
  %v10912 = vrot.slane %v9931, 5
  %v10913 = vsel %vm1027, %v10911, %v10912
  %v10914 = vrot.slane %v10732, 5
  %v10915 = vrot.slane %v10914, 4
  %v10916 = vrot.slane %v9878, 5
  %v10917 = vsel %vm1027, %v10915, %v10916
  %v10918 = vrot.slane %v10916, 4
  %v10919 = vrot.slane %v9932, 5
  %v10920 = vsel %vm1027, %v10918, %v10919
  %v10921 = vrot.slane %v10733, 5
  %v10922 = vrot.slane %v10921, 4
  %v10923 = vrot.slane %v9880, 5
  %v10924 = vsel %vm1027, %v10922, %v10923
  %v10925 = vrot.slane %v10923, 4
  %v10926 = vrot.slane %v9933, 5
  %v10927 = vsel %vm1027, %v10925, %v10926
  %v10928 = vrot.slane %v10734, 5
  %v10929 = vrot.slane %v10928, 4
  %v10930 = vrot.slane %v9882, 5
  %v10931 = vsel %vm1027, %v10929, %v10930
  %v10932 = vrot.slane %v10930, 4
  %v10933 = vrot.slane %v9934, 5
  %v10934 = vsel %vm1027, %v10932, %v10933
  %v10935 = vrot.slane %v10735, 5
  %v10936 = vrot.slane %v10935, 4
  %v10937 = vrot.slane %v9884, 5
  %v10938 = vsel %vm1027, %v10936, %v10937
  %v10939 = vrot.slane %v10937, 4
  %v10940 = vrot.slane %v9935, 5
  %v10941 = vsel %vm1027, %v10939, %v10940
  %v10942 = vrot.slane %v10736, 5
  %v10943 = vrot.slane %v10942, 4
  %v10944 = vrot.slane %v9886, 5
  %v10945 = vsel %vm1027, %v10943, %v10944
  %v10946 = vrot.slane %v10944, 4
  %v10947 = vrot.slane %v9936, 5
  %v10948 = vsel %vm1027, %v10946, %v10947
  %v10949 = vrot.slane %v10737, 5
  %v10950 = vrot.slane %v10949, 4
  %v10951 = vrot.slane %v9888, 5
  %v10952 = vsel %vm1027, %v10950, %v10951
  %v10953 = vrot.slane %v10951, 4
  %v10954 = vrot.slane %v9937, 5
  %v10955 = vsel %vm1027, %v10953, %v10954
  %v10956 = vrot.slane %v10738, 5
  %v10957 = vrot.slane %v10956, 4
  %v10958 = vrot.slane %v9890, 5
  %v10959 = vsel %vm1027, %v10957, %v10958
  %v10960 = vrot.slane %v10958, 4
  %v10961 = vrot.slane %v9938, 5
  %v10962 = vsel %vm1027, %v10960, %v10961
  %v10963 = vrot.slane %v10739, 5
  %v10964 = vrot.slane %v10963, 4
  %v10965 = vrot.slane %v9892, 5
  %v10966 = vsel %vm1027, %v10964, %v10965
  %v10967 = vrot.slane %v10965, 4
  %v10968 = vrot.slane %v9939, 5
  %v10969 = vsel %vm1027, %v10967, %v10968
  %v10970 = vrot.slane %v10740, 5
  %v10971 = vrot.slane %v10970, 4
  %v10972 = vrot.slane %v9894, 5
  %v10973 = vsel %vm1027, %v10971, %v10972
  %v10974 = vrot.slane %v10972, 4
  %v10975 = vrot.slane %v9940, 5
  %v10976 = vsel %vm1027, %v10974, %v10975
  %v10977 = vrot.slane %v10741, 5
  %v10978 = vrot.slane %v10977, 4
  %v10979 = vrot.slane %v9896, 5
  %v10980 = vsel %vm1027, %v10978, %v10979
  %v10981 = vrot.slane %v10979, 4
  %v10982 = vrot.slane %v9941, 5
  %v10983 = vsel %vm1027, %v10981, %v10982
  %v10984 = vrot.slane %v10742, 5
  %v10985 = vrot.slane %v10984, 4
  %v10986 = vrot.slane %v9898, 5
  %v10987 = vsel %vm1027, %v10985, %v10986
  %v10988 = vrot.slane %v10986, 4
  %v10989 = vrot.slane %v9942, 5
  %v10990 = vsel %vm1027, %v10988, %v10989
  %v10991 = vrot.slane %v10743, 5
  %v10992 = vrot.slane %v10991, 4
  %v10993 = vrot.slane %v9900, 5
  %v10994 = vsel %vm1027, %v10992, %v10993
  %v10995 = vrot.slane %v10993, 4
  %v10996 = vrot.slane %v9943, 5
  %v10997 = vsel %vm1027, %v10995, %v10996
  %v10998 = vrot.slane %v10744, 5
  %v10999 = vrot.slane %v10998, 4
  %v11000 = vrot.slane %v9902, 5
  %v11001 = vsel %vm1027, %v10999, %v11000
  %v11002 = vrot.slane %v11000, 4
  %v11003 = vrot.slane %v9944, 5
  %v11004 = vsel %vm1027, %v11002, %v11003
  %v11005 = vrot.slane %v10745, 5
  %v11006 = vrot.slane %v11005, 4
  %v11007 = vrot.slane %v9904, 5
  %v11008 = vsel %vm1027, %v11006, %v11007
  %v11009 = vrot.slane %v11007, 4
  %v11010 = vrot.slane %v9945, 5
  %v11011 = vsel %vm1027, %v11009, %v11010
  %v11012 = vrot.slane %v10746, 5
  %v11013 = vrot.slane %v11012, 4
  %v11014 = vrot.slane %v9906, 5
  %v11015 = vsel %vm1027, %v11013, %v11014
  %v11016 = vrot.slane %v11014, 4
  %v11017 = vrot.slane %v9946, 5
  %v11018 = vsel %vm1027, %v11016, %v11017
  %v11019 = vrot.slane %v10747, 5
  %v11020 = vrot.slane %v11019, 4
  %v11021 = vrot.slane %v9908, 5
  %v11022 = vsel %vm1027, %v11020, %v11021
  %v11023 = vrot.slane %v11021, 4
  %v11024 = vrot.slane %v9947, 5
  %v11025 = vsel %vm1027, %v11023, %v11024
  %v11026 = vrot.slane %v10748, 5
  %v11027 = vrot.slane %v11026, 4
  %v11028 = vrot.slane %v9910, 5
  %v11029 = vsel %vm1027, %v11027, %v11028
  %v11030 = vrot.slane %v11028, 4
  %v11031 = vrot.slane %v9948, 5
  %v11032 = vsel %vm1027, %v11030, %v11031
  %v11033 = vrot.slane %v10749, 5
  %v11034 = vrot.slane %v11033, 4
  %v11035 = vrot.slane %v9912, 5
  %v11036 = vsel %vm1027, %v11034, %v11035
  %v11037 = vrot.slane %v11035, 4
  %v11038 = vrot.slane %v9949, 5
  %v11039 = vsel %vm1027, %v11037, %v11038
  %v11040 = vrot.slane %v10750, 5
  %v11041 = vrot.slane %v11040, 4
  %v11042 = vrot.slane %v9914, 5
  %v11043 = vsel %vm1027, %v11041, %v11042
  %v11044 = vrot.slane %v11042, 4
  %v11045 = vrot.slane %v9950, 5
  %v11046 = vsel %vm1027, %v11044, %v11045
  %v11047 = vrot.slane %v10751, 5
  %v11048 = vrot.slane %v11047, 4
  %v11049 = vrot.slane %v9916, 5
  %v11050 = vsel %vm1027, %v11048, %v11049
  %v11051 = vrot.slane %v11049, 4
  %v11052 = vrot.slane %v9951, 5
  %v11053 = vsel %vm1027, %v11051, %v11052
  %v11054 = vrot.slane %v10752, 5
  %v11055 = vrot.slane %v11054, 4
  %v11056 = vrot.slane %v9918, 5
  %v11057 = vsel %vm1027, %v11055, %v11056
  %v11058 = vrot.slane %v11056, 4
  %v11059 = vrot.slane %v9952, 5
  %v11060 = vsel %vm1027, %v11058, %v11059
  %v11061 = vrot.slane %v10753, 5
  %v11062 = vrot.slane %v11061, 4
  %v11063 = vrot.slane %v9920, 5
  %v11064 = vsel %vm1027, %v11062, %v11063
  %v11065 = vrot.slane %v11063, 4
  %v11066 = vrot.slane %v9953, 5
  %v11067 = vsel %vm1027, %v11065, %v11066
  %v11068 = vrot.slane %v10754, 5
  %v11069 = vrot.slane %v11068, 4
  %v11070 = vrot.slane %v9922, 5
  %v11071 = vsel %vm1027, %v11069, %v11070
  %v11072 = vrot.slane %v11070, 4
  %v11073 = vrot.slane %v9954, 5
  %v11074 = vsel %vm1027, %v11072, %v11073
  %s11075 = scalar_lea.vmem [#allocation2], 24
  %v11076 = vld [vmem:[%s11075] sm:$0xf]
  %v11077 = vld [vmem:[%s11075 + $0x4] sm:$0xf]
  %v11078 = vld [vmem:[%s11075 + $0xc] sm:$0xf]
  %v11079 = vld [vmem:[%s11075 + $0x10] sm:$0xf]
  %v11080 = vld [vmem:[%s11075 + $0x18] sm:$0xf]
  %v11081 = vld [vmem:[%s11075 + $0x1c] sm:$0xf]
  %v11082 = vld [vmem:[%s11075 + $0x24] sm:$0xf]
  %v11083 = vld [vmem:[%s11075 + $0x28] sm:$0xf]
  %v11084 = vld [vmem:[%s11075 + $0x30] sm:$0xf]
  %v11085 = vld [vmem:[%s11075 + $0x34] sm:$0xf]
  %v11086 = vld [vmem:[%s11075 + $0x3c] sm:$0xf]
  %v11087 = vld [vmem:[%s11075 + $0x40] sm:$0xf]
  %v11088 = vld [vmem:[%s11075 + $0x48] sm:$0xf]
  %v11089 = vld [vmem:[%s11075 + $0x4c] sm:$0xf]
  %v11090 = vld [vmem:[%s11075 + $0x54] sm:$0xf]
  %v11091 = vld [vmem:[%s11075 + $0x58] sm:$0xf]
  %v11092 = vld [vmem:[%s11075 + $0x60] sm:$0xf]
  %v11093 = vld [vmem:[%s11075 + $0x64] sm:$0xf]
  %v11094 = vld [vmem:[%s11075 + $0x6c] sm:$0xf]
  %v11095 = vld [vmem:[%s11075 + $0x70] sm:$0xf]
  %v11096 = vld [vmem:[%s11075 + $0x78] sm:$0xf]
  %v11097 = vld [vmem:[%s11075 + $0x7c] sm:$0xf]
  %v11098 = vld [vmem:[%s11075 + $0x84] sm:$0xf]
  %v11099 = vld [vmem:[%s11075 + $0x88] sm:$0xf]
  %v11100 = vld [vmem:[%s11075 + $0x90] sm:$0xf]
  %v11101 = vld [vmem:[%s11075 + $0x94] sm:$0xf]
  %v11102 = vld [vmem:[%s11075 + $0x9c] sm:$0xf]
  %v11103 = vld [vmem:[%s11075 + $0xa0] sm:$0xf]
  %v11104 = vld [vmem:[%s11075 + $0xa8] sm:$0xf]
  %v11105 = vld [vmem:[%s11075 + $0xac] sm:$0xf]
  %v11106 = vld [vmem:[%s11075 + $0xb4] sm:$0xf]
  %v11107 = vld [vmem:[%s11075 + $0xb8] sm:$0xf]
  %v11108 = vld [vmem:[%s11075 + $0xd8] sm:$0xf]
  %v11109 = vld [vmem:[%s11075 + $0xdc] sm:$0xf]
  %v11110 = vld [vmem:[%s11075 + $0xe4] sm:$0xf]
  %v11111 = vld [vmem:[%s11075 + $0xe8] sm:$0xf]
  %v11112 = vld [vmem:[%s11075 + $0xf0] sm:$0xf]
  %v11113 = vld [vmem:[%s11075 + $0xf4] sm:$0xf]
  %v11114 = vld [vmem:[%s11075 + $0xfc] sm:$0xf]
  %v11115 = vld [vmem:[%s11075 + $0x100] sm:$0xf]
  %v11116 = vld [vmem:[%s11075 + $0x108] sm:$0xf]
  %v11117 = vld [vmem:[%s11075 + $0x10c] sm:$0xf]
  %v11118 = vld [vmem:[%s11075 + $0x114] sm:$0xf]
  %v11119 = vld [vmem:[%s11075 + $0x118] sm:$0xf]
  %v11120 = vld [vmem:[%s11075 + $0x120] sm:$0xf]
  %v11121 = vld [vmem:[%s11075 + $0x124] sm:$0xf]
  %v11122 = vld [vmem:[%s11075 + $0x12c] sm:$0xf]
  %v11123 = vld [vmem:[%s11075 + $0x130] sm:$0xf]
  %v11124 = vld [vmem:[%s11075 + $0x138] sm:$0xf]
  %v11125 = vld [vmem:[%s11075 + $0x13c] sm:$0xf]
  %v11126 = vld [vmem:[%s11075 + $0x144] sm:$0xf]
  %v11127 = vld [vmem:[%s11075 + $0x148] sm:$0xf]
  %v11128 = vld [vmem:[%s11075 + $0x150] sm:$0xf]
  %v11129 = vld [vmem:[%s11075 + $0x154] sm:$0xf]
  %v11130 = vld [vmem:[%s11075 + $0x15c] sm:$0xf]
  %v11131 = vld [vmem:[%s11075 + $0x160] sm:$0xf]
  %v11132 = vld [vmem:[%s11075 + $0x168] sm:$0xf]
  %v11133 = vld [vmem:[%s11075 + $0x16c] sm:$0xf]
  %v11134 = vld [vmem:[%s11075 + $0x174] sm:$0xf]
  %v11135 = vld [vmem:[%s11075 + $0x178] sm:$0xf]
  %v11136 = vld [vmem:[%s11075 + $0x180] sm:$0xf]
  %v11137 = vld [vmem:[%s11075 + $0x184] sm:$0xf]
  %v11138 = vld [vmem:[%s11075 + $0x18c] sm:$0xf]
  %v11139 = vld [vmem:[%s11075 + $0x190] sm:$0xf]
  %v11140 = vld [vmem:[%s11075 + $0x8] sm:$0x1]
  %v11141 = vld [vmem:[%s11075 + $0x14] sm:$0x1]
  %v11142 = vld [vmem:[%s11075 + $0x20] sm:$0x1]
  %v11143 = vld [vmem:[%s11075 + $0x2c] sm:$0x1]
  %v11144 = vld [vmem:[%s11075 + $0x38] sm:$0x1]
  %v11145 = vld [vmem:[%s11075 + $0x44] sm:$0x1]
  %v11146 = vld [vmem:[%s11075 + $0x50] sm:$0x1]
  %v11147 = vld [vmem:[%s11075 + $0x5c] sm:$0x1]
  %v11148 = vld [vmem:[%s11075 + $0x68] sm:$0x1]
  %v11149 = vld [vmem:[%s11075 + $0x74] sm:$0x1]
  %v11150 = vld [vmem:[%s11075 + $0x80] sm:$0x1]
  %v11151 = vld [vmem:[%s11075 + $0x8c] sm:$0x1]
  %v11152 = vld [vmem:[%s11075 + $0x98] sm:$0x1]
  %v11153 = vld [vmem:[%s11075 + $0xa4] sm:$0x1]
  %v11154 = vld [vmem:[%s11075 + $0xb0] sm:$0x1]
  %v11155 = vld [vmem:[%s11075 + $0xbc] sm:$0x1]
  %v11156 = vld [vmem:[%s11075 + $0xe0] sm:$0x1]
  %v11157 = vld [vmem:[%s11075 + $0xec] sm:$0x1]
  %v11158 = vld [vmem:[%s11075 + $0xf8] sm:$0x1]
  %v11159 = vld [vmem:[%s11075 + $0x104] sm:$0x1]
  %v11160 = vld [vmem:[%s11075 + $0x110] sm:$0x1]
  %v11161 = vld [vmem:[%s11075 + $0x11c] sm:$0x1]
  %v11162 = vld [vmem:[%s11075 + $0x128] sm:$0x1]
  %v11163 = vld [vmem:[%s11075 + $0x134] sm:$0x1]
  %v11164 = vld [vmem:[%s11075 + $0x140] sm:$0x1]
  %v11165 = vld [vmem:[%s11075 + $0x14c] sm:$0x1]
  %v11166 = vld [vmem:[%s11075 + $0x158] sm:$0x1]
  %v11167 = vld [vmem:[%s11075 + $0x164] sm:$0x1]
  %v11168 = vld [vmem:[%s11075 + $0x170] sm:$0x1]
  %v11169 = vld [vmem:[%s11075 + $0x17c] sm:$0x1]
  %v11170 = vld [vmem:[%s11075 + $0x188] sm:$0x1]
  %v11171 = vld [vmem:[%s11075 + $0x194] sm:$0x1]
  %v11173 = vshrl.u32 %v11076, 16
  %v11175 = vrot.slane %v11173, 4
  %v11176 = vshll.u32 %v11076, 16
  %v11178 = vrot.slane %v11176, 5
  %v11179 = vor.u32 %v11175, %v11178
  %v11180 = vrot.slane %v11179, 4
  %v11182 = vshll.u32 %v11077, 16
  %v11184 = vrot.slane %v11182, 5
  %v11185 = vsel %vm128, %v11180, %v11184
  %v11186 = vshrl.u32 %v11077, 16
  %v11188 = vrot.slane %v11186, 4
  %v11189 = vor.u32 %v11188, %v11184
  %v11190 = vrot.slane %v11189, 4
  %v11192 = vshll.u32 %v11140, 16
  %v11194 = vrot.slane %v11192, 5
  %v11195 = vsel %vm128, %v11190, %v11194
  %v11197 = vshrl.u32 %v11078, 16
  %v11199 = vrot.slane %v11197, 4
  %v11200 = vshll.u32 %v11078, 16
  %v11202 = vrot.slane %v11200, 5
  %v11203 = vor.u32 %v11199, %v11202
  %v11204 = vrot.slane %v11203, 4
  %v11206 = vshll.u32 %v11079, 16
  %v11208 = vrot.slane %v11206, 5
  %v11209 = vsel %vm128, %v11204, %v11208
  %v11210 = vshrl.u32 %v11079, 16
  %v11212 = vrot.slane %v11210, 4
  %v11213 = vor.u32 %v11212, %v11208
  %v11214 = vrot.slane %v11213, 4
  %v11216 = vshll.u32 %v11141, 16
  %v11218 = vrot.slane %v11216, 5
  %v11219 = vsel %vm128, %v11214, %v11218
  %v11221 = vshrl.u32 %v11080, 16
  %v11223 = vrot.slane %v11221, 4
  %v11224 = vshll.u32 %v11080, 16
  %v11226 = vrot.slane %v11224, 5
  %v11227 = vor.u32 %v11223, %v11226
  %v11228 = vrot.slane %v11227, 4
  %v11230 = vshll.u32 %v11081, 16
  %v11232 = vrot.slane %v11230, 5
  %v11233 = vsel %vm128, %v11228, %v11232
  %v11234 = vshrl.u32 %v11081, 16
  %v11236 = vrot.slane %v11234, 4
  %v11237 = vor.u32 %v11236, %v11232
  %v11238 = vrot.slane %v11237, 4
  %v11240 = vshll.u32 %v11142, 16
  %v11242 = vrot.slane %v11240, 5
  %v11243 = vsel %vm128, %v11238, %v11242
  %v11245 = vshrl.u32 %v11082, 16
  %v11247 = vrot.slane %v11245, 4
  %v11248 = vshll.u32 %v11082, 16
  %v11250 = vrot.slane %v11248, 5
  %v11251 = vor.u32 %v11247, %v11250
  %v11252 = vrot.slane %v11251, 4
  %v11254 = vshll.u32 %v11083, 16
  %v11256 = vrot.slane %v11254, 5
  %v11257 = vsel %vm128, %v11252, %v11256
  %v11258 = vshrl.u32 %v11083, 16
  %v11260 = vrot.slane %v11258, 4
  %v11261 = vor.u32 %v11260, %v11256
  %v11262 = vrot.slane %v11261, 4
  %v11264 = vshll.u32 %v11143, 16
  %v11266 = vrot.slane %v11264, 5
  %v11267 = vsel %vm128, %v11262, %v11266
  %v11269 = vshrl.u32 %v11084, 16
  %v11271 = vrot.slane %v11269, 4
  %v11272 = vshll.u32 %v11084, 16
  %v11274 = vrot.slane %v11272, 5
  %v11275 = vor.u32 %v11271, %v11274
  %v11276 = vrot.slane %v11275, 4
  %v11278 = vshll.u32 %v11085, 16
  %v11280 = vrot.slane %v11278, 5
  %v11281 = vsel %vm128, %v11276, %v11280
  %v11282 = vshrl.u32 %v11085, 16
  %v11284 = vrot.slane %v11282, 4
  %v11285 = vor.u32 %v11284, %v11280
  %v11286 = vrot.slane %v11285, 4
  %v11288 = vshll.u32 %v11144, 16
  %v11290 = vrot.slane %v11288, 5
  %v11291 = vsel %vm128, %v11286, %v11290
  %v11293 = vshrl.u32 %v11086, 16
  %v11295 = vrot.slane %v11293, 4
  %v11296 = vshll.u32 %v11086, 16
  %v11298 = vrot.slane %v11296, 5
  %v11299 = vor.u32 %v11295, %v11298
  %v11300 = vrot.slane %v11299, 4
  %v11302 = vshll.u32 %v11087, 16
  %v11304 = vrot.slane %v11302, 5
  %v11305 = vsel %vm128, %v11300, %v11304
  %v11306 = vshrl.u32 %v11087, 16
  %v11308 = vrot.slane %v11306, 4
  %v11309 = vor.u32 %v11308, %v11304
  %v11310 = vrot.slane %v11309, 4
  %v11312 = vshll.u32 %v11145, 16
  %v11314 = vrot.slane %v11312, 5
  %v11315 = vsel %vm128, %v11310, %v11314
  %v11317 = vshrl.u32 %v11088, 16
  %v11319 = vrot.slane %v11317, 4
  %v11320 = vshll.u32 %v11088, 16
  %v11322 = vrot.slane %v11320, 5
  %v11323 = vor.u32 %v11319, %v11322
  %v11324 = vrot.slane %v11323, 4
  %v11326 = vshll.u32 %v11089, 16
  %v11328 = vrot.slane %v11326, 5
  %v11329 = vsel %vm128, %v11324, %v11328
  %v11330 = vshrl.u32 %v11089, 16
  %v11332 = vrot.slane %v11330, 4
  %v11333 = vor.u32 %v11332, %v11328
  %v11334 = vrot.slane %v11333, 4
  %v11336 = vshll.u32 %v11146, 16
  %v11338 = vrot.slane %v11336, 5
  %v11339 = vsel %vm128, %v11334, %v11338
  %v11341 = vshrl.u32 %v11090, 16
  %v11343 = vrot.slane %v11341, 4
  %v11344 = vshll.u32 %v11090, 16
  %v11346 = vrot.slane %v11344, 5
  %v11347 = vor.u32 %v11343, %v11346
  %v11348 = vrot.slane %v11347, 4
  %v11350 = vshll.u32 %v11091, 16
  %v11352 = vrot.slane %v11350, 5
  %v11353 = vsel %vm128, %v11348, %v11352
  %v11354 = vshrl.u32 %v11091, 16
  %v11356 = vrot.slane %v11354, 4
  %v11357 = vor.u32 %v11356, %v11352
  %v11358 = vrot.slane %v11357, 4
  %v11360 = vshll.u32 %v11147, 16
  %v11362 = vrot.slane %v11360, 5
  %v11363 = vsel %vm128, %v11358, %v11362
  %v11365 = vshrl.u32 %v11092, 16
  %v11367 = vrot.slane %v11365, 4
  %v11368 = vshll.u32 %v11092, 16
  %v11370 = vrot.slane %v11368, 5
  %v11371 = vor.u32 %v11367, %v11370
  %v11372 = vrot.slane %v11371, 4
  %v11374 = vshll.u32 %v11093, 16
  %v11376 = vrot.slane %v11374, 5
  %v11377 = vsel %vm128, %v11372, %v11376
  %v11378 = vshrl.u32 %v11093, 16
  %v11380 = vrot.slane %v11378, 4
  %v11381 = vor.u32 %v11380, %v11376
  %v11382 = vrot.slane %v11381, 4
  %v11384 = vshll.u32 %v11148, 16
  %v11386 = vrot.slane %v11384, 5
  %v11387 = vsel %vm128, %v11382, %v11386
  %v11389 = vshrl.u32 %v11094, 16
  %v11391 = vrot.slane %v11389, 4
  %v11392 = vshll.u32 %v11094, 16
  %v11394 = vrot.slane %v11392, 5
  %v11395 = vor.u32 %v11391, %v11394
  %v11396 = vrot.slane %v11395, 4
  %v11398 = vshll.u32 %v11095, 16
  %v11400 = vrot.slane %v11398, 5
  %v11401 = vsel %vm128, %v11396, %v11400
  %v11402 = vshrl.u32 %v11095, 16
  %v11404 = vrot.slane %v11402, 4
  %v11405 = vor.u32 %v11404, %v11400
  %v11406 = vrot.slane %v11405, 4
  %v11408 = vshll.u32 %v11149, 16
  %v11410 = vrot.slane %v11408, 5
  %v11411 = vsel %vm128, %v11406, %v11410
  %v11413 = vshrl.u32 %v11096, 16
  %v11415 = vrot.slane %v11413, 4
  %v11416 = vshll.u32 %v11096, 16
  %v11418 = vrot.slane %v11416, 5
  %v11419 = vor.u32 %v11415, %v11418
  %v11420 = vrot.slane %v11419, 4
  %v11422 = vshll.u32 %v11097, 16
  %v11424 = vrot.slane %v11422, 5
  %v11425 = vsel %vm128, %v11420, %v11424
  %v11426 = vshrl.u32 %v11097, 16
  %v11428 = vrot.slane %v11426, 4
  %v11429 = vor.u32 %v11428, %v11424
  %v11430 = vrot.slane %v11429, 4
  %v11432 = vshll.u32 %v11150, 16
  %v11434 = vrot.slane %v11432, 5
  %v11435 = vsel %vm128, %v11430, %v11434
  %v11437 = vshrl.u32 %v11098, 16
  %v11439 = vrot.slane %v11437, 4
  %v11440 = vshll.u32 %v11098, 16
  %v11442 = vrot.slane %v11440, 5
  %v11443 = vor.u32 %v11439, %v11442
  %v11444 = vrot.slane %v11443, 4
  %v11446 = vshll.u32 %v11099, 16
  %v11448 = vrot.slane %v11446, 5
  %v11449 = vsel %vm128, %v11444, %v11448
  %v11450 = vshrl.u32 %v11099, 16
  %v11452 = vrot.slane %v11450, 4
  %v11453 = vor.u32 %v11452, %v11448
  %v11454 = vrot.slane %v11453, 4
  %v11456 = vshll.u32 %v11151, 16
  %v11458 = vrot.slane %v11456, 5
  %v11459 = vsel %vm128, %v11454, %v11458
  %v11461 = vshrl.u32 %v11100, 16
  %v11463 = vrot.slane %v11461, 4
  %v11464 = vshll.u32 %v11100, 16
  %v11466 = vrot.slane %v11464, 5
  %v11467 = vor.u32 %v11463, %v11466
  %v11468 = vrot.slane %v11467, 4
  %v11470 = vshll.u32 %v11101, 16
  %v11472 = vrot.slane %v11470, 5
  %v11473 = vsel %vm128, %v11468, %v11472
  %v11474 = vshrl.u32 %v11101, 16
  %v11476 = vrot.slane %v11474, 4
  %v11477 = vor.u32 %v11476, %v11472
  %v11478 = vrot.slane %v11477, 4
  %v11480 = vshll.u32 %v11152, 16
  %v11482 = vrot.slane %v11480, 5
  %v11483 = vsel %vm128, %v11478, %v11482
  %v11485 = vshrl.u32 %v11102, 16
  %v11487 = vrot.slane %v11485, 4
  %v11488 = vshll.u32 %v11102, 16
  %v11490 = vrot.slane %v11488, 5
  %v11491 = vor.u32 %v11487, %v11490
  %v11492 = vrot.slane %v11491, 4
  %v11494 = vshll.u32 %v11103, 16
  %v11496 = vrot.slane %v11494, 5
  %v11497 = vsel %vm128, %v11492, %v11496
  %v11498 = vshrl.u32 %v11103, 16
  %v11500 = vrot.slane %v11498, 4
  %v11501 = vor.u32 %v11500, %v11496
  %v11502 = vrot.slane %v11501, 4
  %v11504 = vshll.u32 %v11153, 16
  %v11506 = vrot.slane %v11504, 5
  %v11507 = vsel %vm128, %v11502, %v11506
  %v11509 = vshrl.u32 %v11104, 16
  %v11511 = vrot.slane %v11509, 4
  %v11512 = vshll.u32 %v11104, 16
  %v11514 = vrot.slane %v11512, 5
  %v11515 = vor.u32 %v11511, %v11514
  %v11516 = vrot.slane %v11515, 4
  %v11518 = vshll.u32 %v11105, 16
  %v11520 = vrot.slane %v11518, 5
  %v11521 = vsel %vm128, %v11516, %v11520
  %v11522 = vshrl.u32 %v11105, 16
  %v11524 = vrot.slane %v11522, 4
  %v11525 = vor.u32 %v11524, %v11520
  %v11526 = vrot.slane %v11525, 4
  %v11528 = vshll.u32 %v11154, 16
  %v11530 = vrot.slane %v11528, 5
  %v11531 = vsel %vm128, %v11526, %v11530
  %v11533 = vshrl.u32 %v11106, 16
  %v11535 = vrot.slane %v11533, 4
  %v11536 = vshll.u32 %v11106, 16
  %v11538 = vrot.slane %v11536, 5
  %v11539 = vor.u32 %v11535, %v11538
  %v11540 = vrot.slane %v11539, 4
  %v11542 = vshll.u32 %v11107, 16
  %v11544 = vrot.slane %v11542, 5
  %v11545 = vsel %vm128, %v11540, %v11544
  %v11546 = vshrl.u32 %v11107, 16
  %v11548 = vrot.slane %v11546, 4
  %v11549 = vor.u32 %v11548, %v11544
  %v11550 = vrot.slane %v11549, 4
  %v11552 = vshll.u32 %v11155, 16
  %v11554 = vrot.slane %v11552, 5
  %v11555 = vsel %vm128, %v11550, %v11554
  %v11557 = vshrl.u32 %v11108, 16
  %v11559 = vrot.slane %v11557, 4
  %v11560 = vshll.u32 %v11108, 16
  %v11562 = vrot.slane %v11560, 5
  %v11563 = vor.u32 %v11559, %v11562
  %v11564 = vrot.slane %v11563, 4
  %v11566 = vshll.u32 %v11109, 16
  %v11568 = vrot.slane %v11566, 5
  %v11569 = vsel %vm128, %v11564, %v11568
  %v11570 = vshrl.u32 %v11109, 16
  %v11572 = vrot.slane %v11570, 4
  %v11573 = vor.u32 %v11572, %v11568
  %v11574 = vrot.slane %v11573, 4
  %v11576 = vshll.u32 %v11156, 16
  %v11578 = vrot.slane %v11576, 5
  %v11579 = vsel %vm128, %v11574, %v11578
  %v11581 = vshrl.u32 %v11110, 16
  %v11583 = vrot.slane %v11581, 4
  %v11584 = vshll.u32 %v11110, 16
  %v11586 = vrot.slane %v11584, 5
  %v11587 = vor.u32 %v11583, %v11586
  %v11588 = vrot.slane %v11587, 4
  %v11590 = vshll.u32 %v11111, 16
  %v11592 = vrot.slane %v11590, 5
  %v11593 = vsel %vm128, %v11588, %v11592
  %v11594 = vshrl.u32 %v11111, 16
  %v11596 = vrot.slane %v11594, 4
  %v11597 = vor.u32 %v11596, %v11592
  %v11598 = vrot.slane %v11597, 4
  %v11600 = vshll.u32 %v11157, 16
  %v11602 = vrot.slane %v11600, 5
  %v11603 = vsel %vm128, %v11598, %v11602
  %v11605 = vshrl.u32 %v11112, 16
  %v11607 = vrot.slane %v11605, 4
  %v11608 = vshll.u32 %v11112, 16
  %v11610 = vrot.slane %v11608, 5
  %v11611 = vor.u32 %v11607, %v11610
  %v11612 = vrot.slane %v11611, 4
  %v11614 = vshll.u32 %v11113, 16
  %v11616 = vrot.slane %v11614, 5
  %v11617 = vsel %vm128, %v11612, %v11616
  %v11618 = vshrl.u32 %v11113, 16
  %v11620 = vrot.slane %v11618, 4
  %v11621 = vor.u32 %v11620, %v11616
  %v11622 = vrot.slane %v11621, 4
  %v11624 = vshll.u32 %v11158, 16
  %v11626 = vrot.slane %v11624, 5
  %v11627 = vsel %vm128, %v11622, %v11626
  %v11629 = vshrl.u32 %v11114, 16
  %v11631 = vrot.slane %v11629, 4
  %v11632 = vshll.u32 %v11114, 16
  %v11634 = vrot.slane %v11632, 5
  %v11635 = vor.u32 %v11631, %v11634
  %v11636 = vrot.slane %v11635, 4
  %v11638 = vshll.u32 %v11115, 16
  %v11640 = vrot.slane %v11638, 5
  %v11641 = vsel %vm128, %v11636, %v11640
  %v11642 = vshrl.u32 %v11115, 16
  %v11644 = vrot.slane %v11642, 4
  %v11645 = vor.u32 %v11644, %v11640
  %v11646 = vrot.slane %v11645, 4
  %v11648 = vshll.u32 %v11159, 16
  %v11650 = vrot.slane %v11648, 5
  %v11651 = vsel %vm128, %v11646, %v11650
  %v11653 = vshrl.u32 %v11116, 16
  %v11655 = vrot.slane %v11653, 4
  %v11656 = vshll.u32 %v11116, 16
  %v11658 = vrot.slane %v11656, 5
  %v11659 = vor.u32 %v11655, %v11658
  %v11660 = vrot.slane %v11659, 4
  %v11662 = vshll.u32 %v11117, 16
  %v11664 = vrot.slane %v11662, 5
  %v11665 = vsel %vm128, %v11660, %v11664
  %v11666 = vshrl.u32 %v11117, 16
  %v11668 = vrot.slane %v11666, 4
  %v11669 = vor.u32 %v11668, %v11664
  %v11670 = vrot.slane %v11669, 4
  %v11672 = vshll.u32 %v11160, 16
  %v11674 = vrot.slane %v11672, 5
  %v11675 = vsel %vm128, %v11670, %v11674
  %v11677 = vshrl.u32 %v11118, 16
  %v11679 = vrot.slane %v11677, 4
  %v11680 = vshll.u32 %v11118, 16
  %v11682 = vrot.slane %v11680, 5
  %v11683 = vor.u32 %v11679, %v11682
  %v11684 = vrot.slane %v11683, 4
  %v11686 = vshll.u32 %v11119, 16
  %v11688 = vrot.slane %v11686, 5
  %v11689 = vsel %vm128, %v11684, %v11688
  %v11690 = vshrl.u32 %v11119, 16
  %v11692 = vrot.slane %v11690, 4
  %v11693 = vor.u32 %v11692, %v11688
  %v11694 = vrot.slane %v11693, 4
  %v11696 = vshll.u32 %v11161, 16
  %v11698 = vrot.slane %v11696, 5
  %v11699 = vsel %vm128, %v11694, %v11698
  %v11701 = vshrl.u32 %v11120, 16
  %v11703 = vrot.slane %v11701, 4
  %v11704 = vshll.u32 %v11120, 16
  %v11706 = vrot.slane %v11704, 5
  %v11707 = vor.u32 %v11703, %v11706
  %v11708 = vrot.slane %v11707, 4
  %v11710 = vshll.u32 %v11121, 16
  %v11712 = vrot.slane %v11710, 5
  %v11713 = vsel %vm128, %v11708, %v11712
  %v11714 = vshrl.u32 %v11121, 16
  %v11716 = vrot.slane %v11714, 4
  %v11717 = vor.u32 %v11716, %v11712
  %v11718 = vrot.slane %v11717, 4
  %v11720 = vshll.u32 %v11162, 16
  %v11722 = vrot.slane %v11720, 5
  %v11723 = vsel %vm128, %v11718, %v11722
  %v11725 = vshrl.u32 %v11122, 16
  %v11727 = vrot.slane %v11725, 4
  %v11728 = vshll.u32 %v11122, 16
  %v11730 = vrot.slane %v11728, 5
  %v11731 = vor.u32 %v11727, %v11730
  %v11732 = vrot.slane %v11731, 4
  %v11734 = vshll.u32 %v11123, 16
  %v11736 = vrot.slane %v11734, 5
  %v11737 = vsel %vm128, %v11732, %v11736
  %v11738 = vshrl.u32 %v11123, 16
  %v11740 = vrot.slane %v11738, 4
  %v11741 = vor.u32 %v11740, %v11736
  %v11742 = vrot.slane %v11741, 4
  %v11744 = vshll.u32 %v11163, 16
  %v11746 = vrot.slane %v11744, 5
  %v11747 = vsel %vm128, %v11742, %v11746
  %v11749 = vshrl.u32 %v11124, 16
  %v11751 = vrot.slane %v11749, 4
  %v11752 = vshll.u32 %v11124, 16
  %v11754 = vrot.slane %v11752, 5
  %v11755 = vor.u32 %v11751, %v11754
  %v11756 = vrot.slane %v11755, 4
  %v11758 = vshll.u32 %v11125, 16
  %v11760 = vrot.slane %v11758, 5
  %v11761 = vsel %vm128, %v11756, %v11760
  %v11762 = vshrl.u32 %v11125, 16
  %v11764 = vrot.slane %v11762, 4
  %v11765 = vor.u32 %v11764, %v11760
  %v11766 = vrot.slane %v11765, 4
  %v11768 = vshll.u32 %v11164, 16
  %v11770 = vrot.slane %v11768, 5
  %v11771 = vsel %vm128, %v11766, %v11770
  %v11773 = vshrl.u32 %v11126, 16
  %v11775 = vrot.slane %v11773, 4
  %v11776 = vshll.u32 %v11126, 16
  %v11778 = vrot.slane %v11776, 5
  %v11779 = vor.u32 %v11775, %v11778
  %v11780 = vrot.slane %v11779, 4
  %v11782 = vshll.u32 %v11127, 16
  %v11784 = vrot.slane %v11782, 5
  %v11785 = vsel %vm128, %v11780, %v11784
  %v11786 = vshrl.u32 %v11127, 16
  %v11788 = vrot.slane %v11786, 4
  %v11789 = vor.u32 %v11788, %v11784
  %v11790 = vrot.slane %v11789, 4
  %v11792 = vshll.u32 %v11165, 16
  %v11794 = vrot.slane %v11792, 5
  %v11795 = vsel %vm128, %v11790, %v11794
  %v11797 = vshrl.u32 %v11128, 16
  %v11799 = vrot.slane %v11797, 4
  %v11800 = vshll.u32 %v11128, 16
  %v11802 = vrot.slane %v11800, 5
  %v11803 = vor.u32 %v11799, %v11802
  %v11804 = vrot.slane %v11803, 4
  %v11806 = vshll.u32 %v11129, 16
  %v11808 = vrot.slane %v11806, 5
  %v11809 = vsel %vm128, %v11804, %v11808
  %v11810 = vshrl.u32 %v11129, 16
  %v11812 = vrot.slane %v11810, 4
  %v11813 = vor.u32 %v11812, %v11808
  %v11814 = vrot.slane %v11813, 4
  %v11816 = vshll.u32 %v11166, 16
  %v11818 = vrot.slane %v11816, 5
  %v11819 = vsel %vm128, %v11814, %v11818
  %v11821 = vshrl.u32 %v11130, 16
  %v11823 = vrot.slane %v11821, 4
  %v11824 = vshll.u32 %v11130, 16
  %v11826 = vrot.slane %v11824, 5
  %v11827 = vor.u32 %v11823, %v11826
  %v11828 = vrot.slane %v11827, 4
  %v11830 = vshll.u32 %v11131, 16
  %v11832 = vrot.slane %v11830, 5
  %v11833 = vsel %vm128, %v11828, %v11832
  %v11834 = vshrl.u32 %v11131, 16
  %v11836 = vrot.slane %v11834, 4
  %v11837 = vor.u32 %v11836, %v11832
  %v11838 = vrot.slane %v11837, 4
  %v11840 = vshll.u32 %v11167, 16
  %v11842 = vrot.slane %v11840, 5
  %v11843 = vsel %vm128, %v11838, %v11842
  %v11845 = vshrl.u32 %v11132, 16
  %v11847 = vrot.slane %v11845, 4
  %v11848 = vshll.u32 %v11132, 16
  %v11850 = vrot.slane %v11848, 5
  %v11851 = vor.u32 %v11847, %v11850
  %v11852 = vrot.slane %v11851, 4
  %v11854 = vshll.u32 %v11133, 16
  %v11856 = vrot.slane %v11854, 5
  %v11857 = vsel %vm128, %v11852, %v11856
  %v11858 = vshrl.u32 %v11133, 16
  %v11860 = vrot.slane %v11858, 4
  %v11861 = vor.u32 %v11860, %v11856
  %v11862 = vrot.slane %v11861, 4
  %v11864 = vshll.u32 %v11168, 16
  %v11866 = vrot.slane %v11864, 5
  %v11867 = vsel %vm128, %v11862, %v11866
  %v11869 = vshrl.u32 %v11134, 16
  %v11871 = vrot.slane %v11869, 4
  %v11872 = vshll.u32 %v11134, 16
  %v11874 = vrot.slane %v11872, 5
  %v11875 = vor.u32 %v11871, %v11874
  %v11876 = vrot.slane %v11875, 4
  %v11878 = vshll.u32 %v11135, 16
  %v11880 = vrot.slane %v11878, 5
  %v11881 = vsel %vm128, %v11876, %v11880
  %v11882 = vshrl.u32 %v11135, 16
  %v11884 = vrot.slane %v11882, 4
  %v11885 = vor.u32 %v11884, %v11880
  %v11886 = vrot.slane %v11885, 4
  %v11888 = vshll.u32 %v11169, 16
  %v11890 = vrot.slane %v11888, 5
  %v11891 = vsel %vm128, %v11886, %v11890
  %v11893 = vshrl.u32 %v11136, 16
  %v11895 = vrot.slane %v11893, 4
  %v11896 = vshll.u32 %v11136, 16
  %v11898 = vrot.slane %v11896, 5
  %v11899 = vor.u32 %v11895, %v11898
  %v11900 = vrot.slane %v11899, 4
  %v11902 = vshll.u32 %v11137, 16
  %v11904 = vrot.slane %v11902, 5
  %v11905 = vsel %vm128, %v11900, %v11904
  %v11906 = vshrl.u32 %v11137, 16
  %v11908 = vrot.slane %v11906, 4
  %v11909 = vor.u32 %v11908, %v11904
  %v11910 = vrot.slane %v11909, 4
  %v11912 = vshll.u32 %v11170, 16
  %v11914 = vrot.slane %v11912, 5
  %v11915 = vsel %vm128, %v11910, %v11914
  %v11917 = vshrl.u32 %v11138, 16
  %v11919 = vrot.slane %v11917, 4
  %v11920 = vshll.u32 %v11138, 16
  %v11922 = vrot.slane %v11920, 5
  %v11923 = vor.u32 %v11919, %v11922
  %v11924 = vrot.slane %v11923, 4
  %v11926 = vshll.u32 %v11139, 16
  %v11928 = vrot.slane %v11926, 5
  %v11929 = vsel %vm128, %v11924, %v11928
  %v11930 = vshrl.u32 %v11139, 16
  %v11932 = vrot.slane %v11930, 4
  %v11933 = vor.u32 %v11932, %v11928
  %v11934 = vrot.slane %v11933, 4
  %v11936 = vshll.u32 %v11171, 16
  %v11938 = vrot.slane %v11936, 5
  %v11939 = vsel %vm128, %v11934, %v11938
  %v11940 = vld [vmem:[%s11075] sm:$0xe]
  %v11941 = vld [vmem:[%s11075 + $0xc] sm:$0xe]
  %v11942 = vld [vmem:[%s11075 + $0x18] sm:$0xe]
  %v11943 = vld [vmem:[%s11075 + $0x24] sm:$0xe]
  %v11944 = vld [vmem:[%s11075 + $0x30] sm:$0xe]
  %v11945 = vld [vmem:[%s11075 + $0x3c] sm:$0xe]
  %v11946 = vld [vmem:[%s11075 + $0x48] sm:$0xe]
  %v11947 = vld [vmem:[%s11075 + $0x54] sm:$0xe]
  %v11948 = vld [vmem:[%s11075 + $0x60] sm:$0xe]
  %v11949 = vld [vmem:[%s11075 + $0x6c] sm:$0xe]
  %v11950 = vld [vmem:[%s11075 + $0x78] sm:$0xe]
  %v11951 = vld [vmem:[%s11075 + $0x84] sm:$0xe]
  %v11952 = vld [vmem:[%s11075 + $0x90] sm:$0xe]
  %v11953 = vld [vmem:[%s11075 + $0x9c] sm:$0xe]
  %v11954 = vld [vmem:[%s11075 + $0xa8] sm:$0xe]
  %v11955 = vld [vmem:[%s11075 + $0xb4] sm:$0xe]
  %v11956 = vld [vmem:[%s11075 + $0xd8] sm:$0xe]
  %v11957 = vld [vmem:[%s11075 + $0xe4] sm:$0xe]
  %v11958 = vld [vmem:[%s11075 + $0xf0] sm:$0xe]
  %v11959 = vld [vmem:[%s11075 + $0xfc] sm:$0xe]
  %v11960 = vld [vmem:[%s11075 + $0x108] sm:$0xe]
  %v11961 = vld [vmem:[%s11075 + $0x114] sm:$0xe]
  %v11962 = vld [vmem:[%s11075 + $0x120] sm:$0xe]
  %v11963 = vld [vmem:[%s11075 + $0x12c] sm:$0xe]
  %v11964 = vld [vmem:[%s11075 + $0x138] sm:$0xe]
  %v11965 = vld [vmem:[%s11075 + $0x144] sm:$0xe]
  %v11966 = vld [vmem:[%s11075 + $0x150] sm:$0xe]
  %v11967 = vld [vmem:[%s11075 + $0x15c] sm:$0xe]
  %v11968 = vld [vmem:[%s11075 + $0x168] sm:$0xe]
  %v11969 = vld [vmem:[%s11075 + $0x174] sm:$0xe]
  %v11970 = vld [vmem:[%s11075 + $0x180] sm:$0xe]
  %v11971 = vld [vmem:[%s11075 + $0x18c] sm:$0xe]
  %v12068 = vrot.slane %v11940, 5
  %v12069 = vrot.slane %v12068, 4
  %v12070 = vrot.slane %v11077, 5
  %v12071 = vsel %vm1027, %v12069, %v12070
  %v12072 = vrot.slane %v12070, 4
  %v12073 = vrot.slane %v11140, 5
  %v12074 = vsel %vm1027, %v12072, %v12073
  %v12075 = vrot.slane %v11941, 5
  %v12076 = vrot.slane %v12075, 4
  %v12077 = vrot.slane %v11079, 5
  %v12078 = vsel %vm1027, %v12076, %v12077
  %v12079 = vrot.slane %v12077, 4
  %v12080 = vrot.slane %v11141, 5
  %v12081 = vsel %vm1027, %v12079, %v12080
  %v12082 = vrot.slane %v11942, 5
  %v12083 = vrot.slane %v12082, 4
  %v12084 = vrot.slane %v11081, 5
  %v12085 = vsel %vm1027, %v12083, %v12084
  %v12086 = vrot.slane %v12084, 4
  %v12087 = vrot.slane %v11142, 5
  %v12088 = vsel %vm1027, %v12086, %v12087
  %v12089 = vrot.slane %v11943, 5
  %v12090 = vrot.slane %v12089, 4
  %v12091 = vrot.slane %v11083, 5
  %v12092 = vsel %vm1027, %v12090, %v12091
  %v12093 = vrot.slane %v12091, 4
  %v12094 = vrot.slane %v11143, 5
  %v12095 = vsel %vm1027, %v12093, %v12094
  %v12096 = vrot.slane %v11944, 5
  %v12097 = vrot.slane %v12096, 4
  %v12098 = vrot.slane %v11085, 5
  %v12099 = vsel %vm1027, %v12097, %v12098
  %v12100 = vrot.slane %v12098, 4
  %v12101 = vrot.slane %v11144, 5
  %v12102 = vsel %vm1027, %v12100, %v12101
  %v12103 = vrot.slane %v11945, 5
  %v12104 = vrot.slane %v12103, 4
  %v12105 = vrot.slane %v11087, 5
  %v12106 = vsel %vm1027, %v12104, %v12105
  %v12107 = vrot.slane %v12105, 4
  %v12108 = vrot.slane %v11145, 5
  %v12109 = vsel %vm1027, %v12107, %v12108
  %v12110 = vrot.slane %v11946, 5
  %v12111 = vrot.slane %v12110, 4
  %v12112 = vrot.slane %v11089, 5
  %v12113 = vsel %vm1027, %v12111, %v12112
  %v12114 = vrot.slane %v12112, 4
  %v12115 = vrot.slane %v11146, 5
  %v12116 = vsel %vm1027, %v12114, %v12115
  %v12117 = vrot.slane %v11947, 5
  %v12118 = vrot.slane %v12117, 4
  %v12119 = vrot.slane %v11091, 5
  %v12120 = vsel %vm1027, %v12118, %v12119
  %v12121 = vrot.slane %v12119, 4
  %v12122 = vrot.slane %v11147, 5
  %v12123 = vsel %vm1027, %v12121, %v12122
  %v12124 = vrot.slane %v11948, 5
  %v12125 = vrot.slane %v12124, 4
  %v12126 = vrot.slane %v11093, 5
  %v12127 = vsel %vm1027, %v12125, %v12126
  %v12128 = vrot.slane %v12126, 4
  %v12129 = vrot.slane %v11148, 5
  %v12130 = vsel %vm1027, %v12128, %v12129
  %v12131 = vrot.slane %v11949, 5
  %v12132 = vrot.slane %v12131, 4
  %v12133 = vrot.slane %v11095, 5
  %v12134 = vsel %vm1027, %v12132, %v12133
  %v12135 = vrot.slane %v12133, 4
  %v12136 = vrot.slane %v11149, 5
  %v12137 = vsel %vm1027, %v12135, %v12136
  %v12138 = vrot.slane %v11950, 5
  %v12139 = vrot.slane %v12138, 4
  %v12140 = vrot.slane %v11097, 5
  %v12141 = vsel %vm1027, %v12139, %v12140
  %v12142 = vrot.slane %v12140, 4
  %v12143 = vrot.slane %v11150, 5
  %v12144 = vsel %vm1027, %v12142, %v12143
  %v12145 = vrot.slane %v11951, 5
  %v12146 = vrot.slane %v12145, 4
  %v12147 = vrot.slane %v11099, 5
  %v12148 = vsel %vm1027, %v12146, %v12147
  %v12149 = vrot.slane %v12147, 4
  %v12150 = vrot.slane %v11151, 5
  %v12151 = vsel %vm1027, %v12149, %v12150
  %v12152 = vrot.slane %v11952, 5
  %v12153 = vrot.slane %v12152, 4
  %v12154 = vrot.slane %v11101, 5
  %v12155 = vsel %vm1027, %v12153, %v12154
  %v12156 = vrot.slane %v12154, 4
  %v12157 = vrot.slane %v11152, 5
  %v12158 = vsel %vm1027, %v12156, %v12157
  %v12159 = vrot.slane %v11953, 5
  %v12160 = vrot.slane %v12159, 4
  %v12161 = vrot.slane %v11103, 5
  %v12162 = vsel %vm1027, %v12160, %v12161
  %v12163 = vrot.slane %v12161, 4
  %v12164 = vrot.slane %v11153, 5
  %v12165 = vsel %vm1027, %v12163, %v12164
  %v12166 = vrot.slane %v11954, 5
  %v12167 = vrot.slane %v12166, 4
  %v12168 = vrot.slane %v11105, 5
  %v12169 = vsel %vm1027, %v12167, %v12168
  %v12170 = vrot.slane %v12168, 4
  %v12171 = vrot.slane %v11154, 5
  %v12172 = vsel %vm1027, %v12170, %v12171
  %v12173 = vrot.slane %v11955, 5
  %v12174 = vrot.slane %v12173, 4
  %v12175 = vrot.slane %v11107, 5
  %v12176 = vsel %vm1027, %v12174, %v12175
  %v12177 = vrot.slane %v12175, 4
  %v12178 = vrot.slane %v11155, 5
  %v12179 = vsel %vm1027, %v12177, %v12178
  %v12180 = vrot.slane %v11956, 5
  %v12181 = vrot.slane %v12180, 4
  %v12182 = vrot.slane %v11109, 5
  %v12183 = vsel %vm1027, %v12181, %v12182
  %v12184 = vrot.slane %v12182, 4
  %v12185 = vrot.slane %v11156, 5
  %v12186 = vsel %vm1027, %v12184, %v12185
  %v12187 = vrot.slane %v11957, 5
  %v12188 = vrot.slane %v12187, 4
  %v12189 = vrot.slane %v11111, 5
  %v12190 = vsel %vm1027, %v12188, %v12189
  %v12191 = vrot.slane %v12189, 4
  %v12192 = vrot.slane %v11157, 5
  %v12193 = vsel %vm1027, %v12191, %v12192
  %v12194 = vrot.slane %v11958, 5
  %v12195 = vrot.slane %v12194, 4
  %v12196 = vrot.slane %v11113, 5
  %v12197 = vsel %vm1027, %v12195, %v12196
  %v12198 = vrot.slane %v12196, 4
  %v12199 = vrot.slane %v11158, 5
  %v12200 = vsel %vm1027, %v12198, %v12199
  %v12201 = vrot.slane %v11959, 5
  %v12202 = vrot.slane %v12201, 4
  %v12203 = vrot.slane %v11115, 5
  %v12204 = vsel %vm1027, %v12202, %v12203
  %v12205 = vrot.slane %v12203, 4
  %v12206 = vrot.slane %v11159, 5
  %v12207 = vsel %vm1027, %v12205, %v12206
  %v12208 = vrot.slane %v11960, 5
  %v12209 = vrot.slane %v12208, 4
  %v12210 = vrot.slane %v11117, 5
  %v12211 = vsel %vm1027, %v12209, %v12210
  %v12212 = vrot.slane %v12210, 4
  %v12213 = vrot.slane %v11160, 5
  %v12214 = vsel %vm1027, %v12212, %v12213
  %v12215 = vrot.slane %v11961, 5
  %v12216 = vrot.slane %v12215, 4
  %v12217 = vrot.slane %v11119, 5
  %v12218 = vsel %vm1027, %v12216, %v12217
  %v12219 = vrot.slane %v12217, 4
  %v12220 = vrot.slane %v11161, 5
  %v12221 = vsel %vm1027, %v12219, %v12220
  %v12222 = vrot.slane %v11962, 5
  %v12223 = vrot.slane %v12222, 4
  %v12224 = vrot.slane %v11121, 5
  %v12225 = vsel %vm1027, %v12223, %v12224
  %v12226 = vrot.slane %v12224, 4
  %v12227 = vrot.slane %v11162, 5
  %v12228 = vsel %vm1027, %v12226, %v12227
  %v12229 = vrot.slane %v11963, 5
  %v12230 = vrot.slane %v12229, 4
  %v12231 = vrot.slane %v11123, 5
  %v12232 = vsel %vm1027, %v12230, %v12231
  %v12233 = vrot.slane %v12231, 4
  %v12234 = vrot.slane %v11163, 5
  %v12235 = vsel %vm1027, %v12233, %v12234
  %v12236 = vrot.slane %v11964, 5
  %v12237 = vrot.slane %v12236, 4
  %v12238 = vrot.slane %v11125, 5
  %v12239 = vsel %vm1027, %v12237, %v12238
  %v12240 = vrot.slane %v12238, 4
  %v12241 = vrot.slane %v11164, 5
  %v12242 = vsel %vm1027, %v12240, %v12241
  %v12243 = vrot.slane %v11965, 5
  %v12244 = vrot.slane %v12243, 4
  %v12245 = vrot.slane %v11127, 5
  %v12246 = vsel %vm1027, %v12244, %v12245
  %v12247 = vrot.slane %v12245, 4
  %v12248 = vrot.slane %v11165, 5
  %v12249 = vsel %vm1027, %v12247, %v12248
  %v12250 = vrot.slane %v11966, 5
  %v12251 = vrot.slane %v12250, 4
  %v12252 = vrot.slane %v11129, 5
  %v12253 = vsel %vm1027, %v12251, %v12252
  %v12254 = vrot.slane %v12252, 4
  %v12255 = vrot.slane %v11166, 5
  %v12256 = vsel %vm1027, %v12254, %v12255
  %v12257 = vrot.slane %v11967, 5
  %v12258 = vrot.slane %v12257, 4
  %v12259 = vrot.slane %v11131, 5
  %v12260 = vsel %vm1027, %v12258, %v12259
  %v12261 = vrot.slane %v12259, 4
  %v12262 = vrot.slane %v11167, 5
  %v12263 = vsel %vm1027, %v12261, %v12262
  %v12264 = vrot.slane %v11968, 5
  %v12265 = vrot.slane %v12264, 4
  %v12266 = vrot.slane %v11133, 5
  %v12267 = vsel %vm1027, %v12265, %v12266
  %v12268 = vrot.slane %v12266, 4
  %v12269 = vrot.slane %v11168, 5
  %v12270 = vsel %vm1027, %v12268, %v12269
  %v12271 = vrot.slane %v11969, 5
  %v12272 = vrot.slane %v12271, 4
  %v12273 = vrot.slane %v11135, 5
  %v12274 = vsel %vm1027, %v12272, %v12273
  %v12275 = vrot.slane %v12273, 4
  %v12276 = vrot.slane %v11169, 5
  %v12277 = vsel %vm1027, %v12275, %v12276
  %v12278 = vrot.slane %v11970, 5
  %v12279 = vrot.slane %v12278, 4
  %v12280 = vrot.slane %v11137, 5
  %v12281 = vsel %vm1027, %v12279, %v12280
  %v12282 = vrot.slane %v12280, 4
  %v12283 = vrot.slane %v11170, 5
  %v12284 = vsel %vm1027, %v12282, %v12283
  %v12285 = vrot.slane %v11971, 5
  %v12286 = vrot.slane %v12285, 4
  %v12287 = vrot.slane %v11139, 5
  %v12288 = vsel %vm1027, %v12286, %v12287
  %v12289 = vrot.slane %v12287, 4
  %v12290 = vrot.slane %v11171, 5
  %v12291 = vsel %vm1027, %v12289, %v12290
  %v12324 = vunpack.c.l.b16 %v8643
  %v12325 = vunpack.c.l.b16 %v8644
  %v12326 = vunpack.c.l.b16 %v8645
  %v12327 = vunpack.c.l.b16 %v8646
  %v12328 = vunpack.c.l.b16 %v8647
  %v12329 = vunpack.c.l.b16 %v8648
  %v12330 = vunpack.c.l.b16 %v8649
  %v12331 = vunpack.c.l.b16 %v8650
  %v12332 = vunpack.c.l.b16 %v8651
  %v12333 = vunpack.c.l.b16 %v8652
  %v12334 = vunpack.c.l.b16 %v8653
  %v12335 = vunpack.c.l.b16 %v8654
  %v12336 = vunpack.c.l.b16 %v8655
  %v12337 = vunpack.c.l.b16 %v8656
  %v12338 = vunpack.c.l.b16 %v8657
  %v12339 = vunpack.c.l.b16 %v8658
  %v12340 = vunpack.c.l.b16 %v8659
  %v12341 = vunpack.c.l.b16 %v8660
  %v12342 = vunpack.c.l.b16 %v8661
  %v12343 = vunpack.c.l.b16 %v8662
  %v12344 = vunpack.c.l.b16 %v8663
  %v12345 = vunpack.c.l.b16 %v8664
  %v12346 = vunpack.c.l.b16 %v8665
  %v12347 = vunpack.c.l.b16 %v8666
  %v12348 = vunpack.c.l.b16 %v8667
  %v12349 = vunpack.c.l.b16 %v8668
  %v12350 = vunpack.c.l.b16 %v8669
  %v12351 = vunpack.c.l.b16 %v8670
  %v12352 = vunpack.c.l.b16 %v8671
  %v12353 = vunpack.c.l.b16 %v8672
  %v12354 = vunpack.c.l.b16 %v8673
  %v12355 = vunpack.c.l.b16 %v8674
  %v12356 = vunpack.c.l.b16 %v8675
  %v12357 = vunpack.c.l.b16 %v8676
  %v12358 = vunpack.c.l.b16 %v8677
  %v12359 = vunpack.c.l.b16 %v8678
  %v12360 = vunpack.c.l.b16 %v8679
  %v12361 = vunpack.c.l.b16 %v8680
  %v12362 = vunpack.c.l.b16 %v8681
  %v12363 = vunpack.c.l.b16 %v8682
  %v12364 = vunpack.c.l.b16 %v8683
  %v12365 = vunpack.c.l.b16 %v8684
  %v12366 = vunpack.c.l.b16 %v8685
  %v12367 = vunpack.c.l.b16 %v8686
  %v12368 = vunpack.c.l.b16 %v8687
  %v12369 = vunpack.c.l.b16 %v8688
  %v12370 = vunpack.c.l.b16 %v8689
  %v12371 = vunpack.c.l.b16 %v8690
  %v12372 = vunpack.c.l.b16 %v8691
  %v12373 = vunpack.c.l.b16 %v8692
  %v12374 = vunpack.c.l.b16 %v8693
  %v12375 = vunpack.c.l.b16 %v8694
  %v12376 = vunpack.c.l.b16 %v8695
  %v12377 = vunpack.c.l.b16 %v8696
  %v12378 = vunpack.c.l.b16 %v8697
  %v12379 = vunpack.c.l.b16 %v8698
  %v12380 = vunpack.c.l.b16 %v8699
  %v12381 = vunpack.c.l.b16 %v8700
  %v12382 = vunpack.c.l.b16 %v8701
  %v12383 = vunpack.c.l.b16 %v8702
  %v12384 = vunpack.c.l.b16 %v8703
  %v12385 = vunpack.c.l.b16 %v8704
  %v12386 = vunpack.c.l.b16 %v8705
  %v12387 = vunpack.c.l.b16 %v8706
  %v12388 = vpack.c.b16 %v12325, %v12324
  %v12389 = vpack.c.b16 %v12327, %v12326
  %v12390 = vpack.c.b16 %v12329, %v12328
  %v12391 = vpack.c.b16 %v12331, %v12330
  %v12392 = vpack.c.b16 %v12333, %v12332
  %v12393 = vpack.c.b16 %v12335, %v12334
  %v12394 = vpack.c.b16 %v12337, %v12336
  %v12395 = vpack.c.b16 %v12339, %v12338
  %v12396 = vpack.c.b16 %v12341, %v12340
  %v12397 = vpack.c.b16 %v12343, %v12342
  %v12398 = vpack.c.b16 %v12345, %v12344
  %v12399 = vpack.c.b16 %v12347, %v12346
  %v12400 = vpack.c.b16 %v12349, %v12348
  %v12401 = vpack.c.b16 %v12351, %v12350
  %v12402 = vpack.c.b16 %v12353, %v12352
  %v12403 = vpack.c.b16 %v12355, %v12354
  %v12404 = vpack.c.b16 %v12357, %v12356
  %v12405 = vpack.c.b16 %v12359, %v12358
  %v12406 = vpack.c.b16 %v12361, %v12360
  %v12407 = vpack.c.b16 %v12363, %v12362
  %v12408 = vpack.c.b16 %v12365, %v12364
  %v12409 = vpack.c.b16 %v12367, %v12366
  %v12410 = vpack.c.b16 %v12369, %v12368
  %v12411 = vpack.c.b16 %v12371, %v12370
  %v12412 = vpack.c.b16 %v12373, %v12372
  %v12413 = vpack.c.b16 %v12375, %v12374
  %v12414 = vpack.c.b16 %v12377, %v12376
  %v12415 = vpack.c.b16 %v12379, %v12378
  %v12416 = vpack.c.b16 %v12381, %v12380
  %v12417 = vpack.c.b16 %v12383, %v12382
  %v12418 = vpack.c.b16 %v12385, %v12384
  %v12419 = vpack.c.b16 %v12387, %v12386
  %v12452 = vunpack.c.l.b16 %v8752
  %v12453 = vunpack.c.l.b16 %v8762
  %v12454 = vunpack.c.l.b16 %v8776
  %v12455 = vunpack.c.l.b16 %v8786
  %v12456 = vunpack.c.l.b16 %v8800
  %v12457 = vunpack.c.l.b16 %v8810
  %v12458 = vunpack.c.l.b16 %v8824
  %v12459 = vunpack.c.l.b16 %v8834
  %v12460 = vunpack.c.l.b16 %v8848
  %v12461 = vunpack.c.l.b16 %v8858
  %v12462 = vunpack.c.l.b16 %v8872
  %v12463 = vunpack.c.l.b16 %v8882
  %v12464 = vunpack.c.l.b16 %v8896
  %v12465 = vunpack.c.l.b16 %v8906
  %v12466 = vunpack.c.l.b16 %v8920
  %v12467 = vunpack.c.l.b16 %v8930
  %v12468 = vunpack.c.l.b16 %v8944
  %v12469 = vunpack.c.l.b16 %v8954
  %v12470 = vunpack.c.l.b16 %v8968
  %v12471 = vunpack.c.l.b16 %v8978
  %v12472 = vunpack.c.l.b16 %v8992
  %v12473 = vunpack.c.l.b16 %v9002
  %v12474 = vunpack.c.l.b16 %v9016
  %v12475 = vunpack.c.l.b16 %v9026
  %v12476 = vunpack.c.l.b16 %v9040
  %v12477 = vunpack.c.l.b16 %v9050
  %v12478 = vunpack.c.l.b16 %v9064
  %v12479 = vunpack.c.l.b16 %v9074
  %v12480 = vunpack.c.l.b16 %v9088
  %v12481 = vunpack.c.l.b16 %v9098
  %v12482 = vunpack.c.l.b16 %v9112
  %v12483 = vunpack.c.l.b16 %v9122
  %v12484 = vunpack.c.l.b16 %v9136
  %v12485 = vunpack.c.l.b16 %v9146
  %v12486 = vunpack.c.l.b16 %v9160
  %v12487 = vunpack.c.l.b16 %v9170
  %v12488 = vunpack.c.l.b16 %v9184
  %v12489 = vunpack.c.l.b16 %v9194
  %v12490 = vunpack.c.l.b16 %v9208
  %v12491 = vunpack.c.l.b16 %v9218
  %v12492 = vunpack.c.l.b16 %v9232
  %v12493 = vunpack.c.l.b16 %v9242
  %v12494 = vunpack.c.l.b16 %v9256
  %v12495 = vunpack.c.l.b16 %v9266
  %v12496 = vunpack.c.l.b16 %v9280
  %v12497 = vunpack.c.l.b16 %v9290
  %v12498 = vunpack.c.l.b16 %v9304
  %v12499 = vunpack.c.l.b16 %v9314
  %v12500 = vunpack.c.l.b16 %v9328
  %v12501 = vunpack.c.l.b16 %v9338
  %v12502 = vunpack.c.l.b16 %v9352
  %v12503 = vunpack.c.l.b16 %v9362
  %v12504 = vunpack.c.l.b16 %v9376
  %v12505 = vunpack.c.l.b16 %v9386
  %v12506 = vunpack.c.l.b16 %v9400
  %v12507 = vunpack.c.l.b16 %v9410
  %v12508 = vunpack.c.l.b16 %v9424
  %v12509 = vunpack.c.l.b16 %v9434
  %v12510 = vunpack.c.l.b16 %v9448
  %v12511 = vunpack.c.l.b16 %v9458
  %v12512 = vunpack.c.l.b16 %v9472
  %v12513 = vunpack.c.l.b16 %v9482
  %v12514 = vunpack.c.l.b16 %v9496
  %v12515 = vunpack.c.l.b16 %v9506
  %v12516 = vpack.c.b16 %v12453, %v12452
  %v12517 = vpack.c.b16 %v12455, %v12454
  %v12518 = vpack.c.b16 %v12457, %v12456
  %v12519 = vpack.c.b16 %v12459, %v12458
  %v12520 = vpack.c.b16 %v12461, %v12460
  %v12521 = vpack.c.b16 %v12463, %v12462
  %v12522 = vpack.c.b16 %v12465, %v12464
  %v12523 = vpack.c.b16 %v12467, %v12466
  %v12524 = vpack.c.b16 %v12469, %v12468
  %v12525 = vpack.c.b16 %v12471, %v12470
  %v12526 = vpack.c.b16 %v12473, %v12472
  %v12527 = vpack.c.b16 %v12475, %v12474
  %v12528 = vpack.c.b16 %v12477, %v12476
  %v12529 = vpack.c.b16 %v12479, %v12478
  %v12530 = vpack.c.b16 %v12481, %v12480
  %v12531 = vpack.c.b16 %v12483, %v12482
  %v12532 = vpack.c.b16 %v12485, %v12484
  %v12533 = vpack.c.b16 %v12487, %v12486
  %v12534 = vpack.c.b16 %v12489, %v12488
  %v12535 = vpack.c.b16 %v12491, %v12490
  %v12536 = vpack.c.b16 %v12493, %v12492
  %v12537 = vpack.c.b16 %v12495, %v12494
  %v12538 = vpack.c.b16 %v12497, %v12496
  %v12539 = vpack.c.b16 %v12499, %v12498
  %v12540 = vpack.c.b16 %v12501, %v12500
  %v12541 = vpack.c.b16 %v12503, %v12502
  %v12542 = vpack.c.b16 %v12505, %v12504
  %v12543 = vpack.c.b16 %v12507, %v12506
  %v12544 = vpack.c.b16 %v12509, %v12508
  %v12545 = vpack.c.b16 %v12511, %v12510
  %v12546 = vpack.c.b16 %v12513, %v12512
  %v12547 = vpack.c.b16 %v12515, %v12514
  %v12580 = vunpack.c.l.b16 %v9638
  %v12581 = vunpack.c.l.b16 %v9641
  %v12582 = vunpack.c.l.b16 %v9645
  %v12583 = vunpack.c.l.b16 %v9648
  %v12584 = vunpack.c.l.b16 %v9652
  %v12585 = vunpack.c.l.b16 %v9655
  %v12586 = vunpack.c.l.b16 %v9659
  %v12587 = vunpack.c.l.b16 %v9662
  %v12588 = vunpack.c.l.b16 %v9666
  %v12589 = vunpack.c.l.b16 %v9669
  %v12590 = vunpack.c.l.b16 %v9673
  %v12591 = vunpack.c.l.b16 %v9676
  %v12592 = vunpack.c.l.b16 %v9680
  %v12593 = vunpack.c.l.b16 %v9683
  %v12594 = vunpack.c.l.b16 %v9687
  %v12595 = vunpack.c.l.b16 %v9690
  %v12596 = vunpack.c.l.b16 %v9694
  %v12597 = vunpack.c.l.b16 %v9697
  %v12598 = vunpack.c.l.b16 %v9701
  %v12599 = vunpack.c.l.b16 %v9704
  %v12600 = vunpack.c.l.b16 %v9708
  %v12601 = vunpack.c.l.b16 %v9711
  %v12602 = vunpack.c.l.b16 %v9715
  %v12603 = vunpack.c.l.b16 %v9718
  %v12604 = vunpack.c.l.b16 %v9722
  %v12605 = vunpack.c.l.b16 %v9725
  %v12606 = vunpack.c.l.b16 %v9729
  %v12607 = vunpack.c.l.b16 %v9732
  %v12608 = vunpack.c.l.b16 %v9736
  %v12609 = vunpack.c.l.b16 %v9739
  %v12610 = vunpack.c.l.b16 %v9743
  %v12611 = vunpack.c.l.b16 %v9746
  %v12612 = vunpack.c.l.b16 %v9750
  %v12613 = vunpack.c.l.b16 %v9753
  %v12614 = vunpack.c.l.b16 %v9757
  %v12615 = vunpack.c.l.b16 %v9760
  %v12616 = vunpack.c.l.b16 %v9764
  %v12617 = vunpack.c.l.b16 %v9767
  %v12618 = vunpack.c.l.b16 %v9771
  %v12619 = vunpack.c.l.b16 %v9774
  %v12620 = vunpack.c.l.b16 %v9778
  %v12621 = vunpack.c.l.b16 %v9781
  %v12622 = vunpack.c.l.b16 %v9785
  %v12623 = vunpack.c.l.b16 %v9788
  %v12624 = vunpack.c.l.b16 %v9792
  %v12625 = vunpack.c.l.b16 %v9795
  %v12626 = vunpack.c.l.b16 %v9799
  %v12627 = vunpack.c.l.b16 %v9802
  %v12628 = vunpack.c.l.b16 %v9806
  %v12629 = vunpack.c.l.b16 %v9809
  %v12630 = vunpack.c.l.b16 %v9813
  %v12631 = vunpack.c.l.b16 %v9816
  %v12632 = vunpack.c.l.b16 %v9820
  %v12633 = vunpack.c.l.b16 %v9823
  %v12634 = vunpack.c.l.b16 %v9827
  %v12635 = vunpack.c.l.b16 %v9830
  %v12636 = vunpack.c.l.b16 %v9834
  %v12637 = vunpack.c.l.b16 %v9837
  %v12638 = vunpack.c.l.b16 %v9841
  %v12639 = vunpack.c.l.b16 %v9844
  %v12640 = vunpack.c.l.b16 %v9848
  %v12641 = vunpack.c.l.b16 %v9851
  %v12642 = vunpack.c.l.b16 %v9855
  %v12643 = vunpack.c.l.b16 %v9858
  %v12644 = vpack.c.b16 %v12581, %v12580
  %v12645 = vpack.c.b16 %v12583, %v12582
  %v12646 = vpack.c.b16 %v12585, %v12584
  %v12647 = vpack.c.b16 %v12587, %v12586
  %v12648 = vpack.c.b16 %v12589, %v12588
  %v12649 = vpack.c.b16 %v12591, %v12590
  %v12650 = vpack.c.b16 %v12593, %v12592
  %v12651 = vpack.c.b16 %v12595, %v12594
  %v12652 = vpack.c.b16 %v12597, %v12596
  %v12653 = vpack.c.b16 %v12599, %v12598
  %v12654 = vpack.c.b16 %v12601, %v12600
  %v12655 = vpack.c.b16 %v12603, %v12602
  %v12656 = vpack.c.b16 %v12605, %v12604
  %v12657 = vpack.c.b16 %v12607, %v12606
  %v12658 = vpack.c.b16 %v12609, %v12608
  %v12659 = vpack.c.b16 %v12611, %v12610
  %v12660 = vpack.c.b16 %v12613, %v12612
  %v12661 = vpack.c.b16 %v12615, %v12614
  %v12662 = vpack.c.b16 %v12617, %v12616
  %v12663 = vpack.c.b16 %v12619, %v12618
  %v12664 = vpack.c.b16 %v12621, %v12620
  %v12665 = vpack.c.b16 %v12623, %v12622
  %v12666 = vpack.c.b16 %v12625, %v12624
  %v12667 = vpack.c.b16 %v12627, %v12626
  %v12668 = vpack.c.b16 %v12629, %v12628
  %v12669 = vpack.c.b16 %v12631, %v12630
  %v12670 = vpack.c.b16 %v12633, %v12632
  %v12671 = vpack.c.b16 %v12635, %v12634
  %v12672 = vpack.c.b16 %v12637, %v12636
  %v12673 = vpack.c.b16 %v12639, %v12638
  %v12674 = vpack.c.b16 %v12641, %v12640
  %v12675 = vpack.c.b16 %v12643, %v12642
  %v12740 = vunpack.c.l.b16 %v9859
  %v12741 = vunpack.c.l.b16 %v9860
  %v12742 = vunpack.c.l.b16 %v9861
  %v12743 = vunpack.c.l.b16 %v9862
  %v12744 = vunpack.c.l.b16 %v9863
  %v12745 = vunpack.c.l.b16 %v9864
  %v12746 = vunpack.c.l.b16 %v9865
  %v12747 = vunpack.c.l.b16 %v9866
  %v12748 = vunpack.c.l.b16 %v9867
  %v12749 = vunpack.c.l.b16 %v9868
  %v12750 = vunpack.c.l.b16 %v9869
  %v12751 = vunpack.c.l.b16 %v9870
  %v12752 = vunpack.c.l.b16 %v9871
  %v12753 = vunpack.c.l.b16 %v9872
  %v12754 = vunpack.c.l.b16 %v9873
  %v12755 = vunpack.c.l.b16 %v9874
  %v12756 = vunpack.c.l.b16 %v9875
  %v12757 = vunpack.c.l.b16 %v9876
  %v12758 = vunpack.c.l.b16 %v9877
  %v12759 = vunpack.c.l.b16 %v9878
  %v12760 = vunpack.c.l.b16 %v9879
  %v12761 = vunpack.c.l.b16 %v9880
  %v12762 = vunpack.c.l.b16 %v9881
  %v12763 = vunpack.c.l.b16 %v9882
  %v12764 = vunpack.c.l.b16 %v9883
  %v12765 = vunpack.c.l.b16 %v9884
  %v12766 = vunpack.c.l.b16 %v9885
  %v12767 = vunpack.c.l.b16 %v9886
  %v12768 = vunpack.c.l.b16 %v9887
  %v12769 = vunpack.c.l.b16 %v9888
  %v12770 = vunpack.c.l.b16 %v9889
  %v12771 = vunpack.c.l.b16 %v9890
  %v12772 = vunpack.c.l.b16 %v9891
  %v12773 = vunpack.c.l.b16 %v9892
  %v12774 = vunpack.c.l.b16 %v9893
  %v12775 = vunpack.c.l.b16 %v9894
  %v12776 = vunpack.c.l.b16 %v9895
  %v12777 = vunpack.c.l.b16 %v9896
  %v12778 = vunpack.c.l.b16 %v9897
  %v12779 = vunpack.c.l.b16 %v9898
  %v12780 = vunpack.c.l.b16 %v9899
  %v12781 = vunpack.c.l.b16 %v9900
  %v12782 = vunpack.c.l.b16 %v9901
  %v12783 = vunpack.c.l.b16 %v9902
  %v12784 = vunpack.c.l.b16 %v9903
  %v12785 = vunpack.c.l.b16 %v9904
  %v12786 = vunpack.c.l.b16 %v9905
  %v12787 = vunpack.c.l.b16 %v9906
  %v12788 = vunpack.c.l.b16 %v9907
  %v12789 = vunpack.c.l.b16 %v9908
  %v12790 = vunpack.c.l.b16 %v9909
  %v12791 = vunpack.c.l.b16 %v9910
  %v12792 = vunpack.c.l.b16 %v9911
  %v12793 = vunpack.c.l.b16 %v9912
  %v12794 = vunpack.c.l.b16 %v9913
  %v12795 = vunpack.c.l.b16 %v9914
  %v12796 = vunpack.c.l.b16 %v9915
  %v12797 = vunpack.c.l.b16 %v9916
  %v12798 = vunpack.c.l.b16 %v9917
  %v12799 = vunpack.c.l.b16 %v9918
  %v12800 = vunpack.c.l.b16 %v9919
  %v12801 = vunpack.c.l.b16 %v9920
  %v12802 = vunpack.c.l.b16 %v9921
  %v12803 = vunpack.c.l.b16 %v9922
  %v12804 = vpack.c.b16 %v12741, %v12740
  %v12805 = vpack.c.b16 %v12743, %v12742
  %v12806 = vpack.c.b16 %v12745, %v12744
  %v12807 = vpack.c.b16 %v12747, %v12746
  %v12808 = vpack.c.b16 %v12749, %v12748
  %v12809 = vpack.c.b16 %v12751, %v12750
  %v12810 = vpack.c.b16 %v12753, %v12752
  %v12811 = vpack.c.b16 %v12755, %v12754
  %v12812 = vpack.c.b16 %v12757, %v12756
  %v12813 = vpack.c.b16 %v12759, %v12758
  %v12814 = vpack.c.b16 %v12761, %v12760
  %v12815 = vpack.c.b16 %v12763, %v12762
  %v12816 = vpack.c.b16 %v12765, %v12764
  %v12817 = vpack.c.b16 %v12767, %v12766
  %v12818 = vpack.c.b16 %v12769, %v12768
  %v12819 = vpack.c.b16 %v12771, %v12770
  %v12820 = vpack.c.b16 %v12773, %v12772
  %v12821 = vpack.c.b16 %v12775, %v12774
  %v12822 = vpack.c.b16 %v12777, %v12776
  %v12823 = vpack.c.b16 %v12779, %v12778
  %v12824 = vpack.c.b16 %v12781, %v12780
  %v12825 = vpack.c.b16 %v12783, %v12782
  %v12826 = vpack.c.b16 %v12785, %v12784
  %v12827 = vpack.c.b16 %v12787, %v12786
  %v12828 = vpack.c.b16 %v12789, %v12788
  %v12829 = vpack.c.b16 %v12791, %v12790
  %v12830 = vpack.c.b16 %v12793, %v12792
  %v12831 = vpack.c.b16 %v12795, %v12794
  %v12832 = vpack.c.b16 %v12797, %v12796
  %v12833 = vpack.c.b16 %v12799, %v12798
  %v12834 = vpack.c.b16 %v12801, %v12800
  %v12835 = vpack.c.b16 %v12803, %v12802
  %v12868 = vunpack.c.l.b16 %v9968
  %v12869 = vunpack.c.l.b16 %v9978
  %v12870 = vunpack.c.l.b16 %v9992
  %v12871 = vunpack.c.l.b16 %v10002
  %v12872 = vunpack.c.l.b16 %v10016
  %v12873 = vunpack.c.l.b16 %v10026
  %v12874 = vunpack.c.l.b16 %v10040
  %v12875 = vunpack.c.l.b16 %v10050
  %v12876 = vunpack.c.l.b16 %v10064
  %v12877 = vunpack.c.l.b16 %v10074
  %v12878 = vunpack.c.l.b16 %v10088
  %v12879 = vunpack.c.l.b16 %v10098
  %v12880 = vunpack.c.l.b16 %v10112
  %v12881 = vunpack.c.l.b16 %v10122
  %v12882 = vunpack.c.l.b16 %v10136
  %v12883 = vunpack.c.l.b16 %v10146
  %v12884 = vunpack.c.l.b16 %v10160
  %v12885 = vunpack.c.l.b16 %v10170
  %v12886 = vunpack.c.l.b16 %v10184
  %v12887 = vunpack.c.l.b16 %v10194
  %v12888 = vunpack.c.l.b16 %v10208
  %v12889 = vunpack.c.l.b16 %v10218
  %v12890 = vunpack.c.l.b16 %v10232
  %v12891 = vunpack.c.l.b16 %v10242
  %v12892 = vunpack.c.l.b16 %v10256
  %v12893 = vunpack.c.l.b16 %v10266
  %v12894 = vunpack.c.l.b16 %v10280
  %v12895 = vunpack.c.l.b16 %v10290
  %v12896 = vunpack.c.l.b16 %v10304
  %v12897 = vunpack.c.l.b16 %v10314
  %v12898 = vunpack.c.l.b16 %v10328
  %v12899 = vunpack.c.l.b16 %v10338
  %v12900 = vunpack.c.l.b16 %v10352
  %v12901 = vunpack.c.l.b16 %v10362
  %v12902 = vunpack.c.l.b16 %v10376
  %v12903 = vunpack.c.l.b16 %v10386
  %v12904 = vunpack.c.l.b16 %v10400
  %v12905 = vunpack.c.l.b16 %v10410
  %v12906 = vunpack.c.l.b16 %v10424
  %v12907 = vunpack.c.l.b16 %v10434
  %v12908 = vunpack.c.l.b16 %v10448
  %v12909 = vunpack.c.l.b16 %v10458
  %v12910 = vunpack.c.l.b16 %v10472
  %v12911 = vunpack.c.l.b16 %v10482
  %v12912 = vunpack.c.l.b16 %v10496
  %v12913 = vunpack.c.l.b16 %v10506
  %v12914 = vunpack.c.l.b16 %v10520
  %v12915 = vunpack.c.l.b16 %v10530
  %v12916 = vunpack.c.l.b16 %v10544
  %v12917 = vunpack.c.l.b16 %v10554
  %v12918 = vunpack.c.l.b16 %v10568
  %v12919 = vunpack.c.l.b16 %v10578
  %v12920 = vunpack.c.l.b16 %v10592
  %v12921 = vunpack.c.l.b16 %v10602
  %v12922 = vunpack.c.l.b16 %v10616
  %v12923 = vunpack.c.l.b16 %v10626
  %v12924 = vunpack.c.l.b16 %v10640
  %v12925 = vunpack.c.l.b16 %v10650
  %v12926 = vunpack.c.l.b16 %v10664
  %v12927 = vunpack.c.l.b16 %v10674
  %v12928 = vunpack.c.l.b16 %v10688
  %v12929 = vunpack.c.l.b16 %v10698
  %v12930 = vunpack.c.l.b16 %v10712
  %v12931 = vunpack.c.l.b16 %v10722
  %v12932 = vpack.c.b16 %v12869, %v12868
  %v12933 = vpack.c.b16 %v12871, %v12870
  %v12934 = vpack.c.b16 %v12873, %v12872
  %v12935 = vpack.c.b16 %v12875, %v12874
  %v12936 = vpack.c.b16 %v12877, %v12876
  %v12937 = vpack.c.b16 %v12879, %v12878
  %v12938 = vpack.c.b16 %v12881, %v12880
  %v12939 = vpack.c.b16 %v12883, %v12882
  %v12940 = vpack.c.b16 %v12885, %v12884
  %v12941 = vpack.c.b16 %v12887, %v12886
  %v12942 = vpack.c.b16 %v12889, %v12888
  %v12943 = vpack.c.b16 %v12891, %v12890
  %v12944 = vpack.c.b16 %v12893, %v12892
  %v12945 = vpack.c.b16 %v12895, %v12894
  %v12946 = vpack.c.b16 %v12897, %v12896
  %v12947 = vpack.c.b16 %v12899, %v12898
  %v12948 = vpack.c.b16 %v12901, %v12900
  %v12949 = vpack.c.b16 %v12903, %v12902
  %v12950 = vpack.c.b16 %v12905, %v12904
  %v12951 = vpack.c.b16 %v12907, %v12906
  %v12952 = vpack.c.b16 %v12909, %v12908
  %v12953 = vpack.c.b16 %v12911, %v12910
  %v12954 = vpack.c.b16 %v12913, %v12912
  %v12955 = vpack.c.b16 %v12915, %v12914
  %v12956 = vpack.c.b16 %v12917, %v12916
  %v12957 = vpack.c.b16 %v12919, %v12918
  %v12958 = vpack.c.b16 %v12921, %v12920
  %v12959 = vpack.c.b16 %v12923, %v12922
  %v12960 = vpack.c.b16 %v12925, %v12924
  %v12961 = vpack.c.b16 %v12927, %v12926
  %v12962 = vpack.c.b16 %v12929, %v12928
  %v12963 = vpack.c.b16 %v12931, %v12930
  %v12996 = vunpack.c.l.b16 %v10854
  %v12997 = vunpack.c.l.b16 %v10857
  %v12998 = vunpack.c.l.b16 %v10861
  %v12999 = vunpack.c.l.b16 %v10864
  %v13000 = vunpack.c.l.b16 %v10868
  %v13001 = vunpack.c.l.b16 %v10871
  %v13002 = vunpack.c.l.b16 %v10875
  %v13003 = vunpack.c.l.b16 %v10878
  %v13004 = vunpack.c.l.b16 %v10882
  %v13005 = vunpack.c.l.b16 %v10885
  %v13006 = vunpack.c.l.b16 %v10889
  %v13007 = vunpack.c.l.b16 %v10892
  %v13008 = vunpack.c.l.b16 %v10896
  %v13009 = vunpack.c.l.b16 %v10899
  %v13010 = vunpack.c.l.b16 %v10903
  %v13011 = vunpack.c.l.b16 %v10906
  %v13012 = vunpack.c.l.b16 %v10910
  %v13013 = vunpack.c.l.b16 %v10913
  %v13014 = vunpack.c.l.b16 %v10917
  %v13015 = vunpack.c.l.b16 %v10920
  %v13016 = vunpack.c.l.b16 %v10924
  %v13017 = vunpack.c.l.b16 %v10927
  %v13018 = vunpack.c.l.b16 %v10931
  %v13019 = vunpack.c.l.b16 %v10934
  %v13020 = vunpack.c.l.b16 %v10938
  %v13021 = vunpack.c.l.b16 %v10941
  %v13022 = vunpack.c.l.b16 %v10945
  %v13023 = vunpack.c.l.b16 %v10948
  %v13024 = vunpack.c.l.b16 %v10952
  %v13025 = vunpack.c.l.b16 %v10955
  %v13026 = vunpack.c.l.b16 %v10959
  %v13027 = vunpack.c.l.b16 %v10962
  %v13028 = vunpack.c.l.b16 %v10966
  %v13029 = vunpack.c.l.b16 %v10969
  %v13030 = vunpack.c.l.b16 %v10973
  %v13031 = vunpack.c.l.b16 %v10976
  %v13032 = vunpack.c.l.b16 %v10980
  %v13033 = vunpack.c.l.b16 %v10983
  %v13034 = vunpack.c.l.b16 %v10987
  %v13035 = vunpack.c.l.b16 %v10990
  %v13036 = vunpack.c.l.b16 %v10994
  %v13037 = vunpack.c.l.b16 %v10997
  %v13038 = vunpack.c.l.b16 %v11001
  %v13039 = vunpack.c.l.b16 %v11004
  %v13040 = vunpack.c.l.b16 %v11008
  %v13041 = vunpack.c.l.b16 %v11011
  %v13042 = vunpack.c.l.b16 %v11015
  %v13043 = vunpack.c.l.b16 %v11018
  %v13044 = vunpack.c.l.b16 %v11022
  %v13045 = vunpack.c.l.b16 %v11025
  %v13046 = vunpack.c.l.b16 %v11029
  %v13047 = vunpack.c.l.b16 %v11032
  %v13048 = vunpack.c.l.b16 %v11036
  %v13049 = vunpack.c.l.b16 %v11039
  %v13050 = vunpack.c.l.b16 %v11043
  %v13051 = vunpack.c.l.b16 %v11046
  %v13052 = vunpack.c.l.b16 %v11050
  %v13053 = vunpack.c.l.b16 %v11053
  %v13054 = vunpack.c.l.b16 %v11057
  %v13055 = vunpack.c.l.b16 %v11060
  %v13056 = vunpack.c.l.b16 %v11064
  %v13057 = vunpack.c.l.b16 %v11067
  %v13058 = vunpack.c.l.b16 %v11071
  %v13059 = vunpack.c.l.b16 %v11074
  %v13060 = vpack.c.b16 %v12997, %v12996
  %v13061 = vpack.c.b16 %v12999, %v12998
  %v13062 = vpack.c.b16 %v13001, %v13000
  %v13063 = vpack.c.b16 %v13003, %v13002
  %v13064 = vpack.c.b16 %v13005, %v13004
  %v13065 = vpack.c.b16 %v13007, %v13006
  %v13066 = vpack.c.b16 %v13009, %v13008
  %v13067 = vpack.c.b16 %v13011, %v13010
  %v13068 = vpack.c.b16 %v13013, %v13012
  %v13069 = vpack.c.b16 %v13015, %v13014
  %v13070 = vpack.c.b16 %v13017, %v13016
  %v13071 = vpack.c.b16 %v13019, %v13018
  %v13072 = vpack.c.b16 %v13021, %v13020
  %v13073 = vpack.c.b16 %v13023, %v13022
  %v13074 = vpack.c.b16 %v13025, %v13024
  %v13075 = vpack.c.b16 %v13027, %v13026
  %v13076 = vpack.c.b16 %v13029, %v13028
  %v13077 = vpack.c.b16 %v13031, %v13030
  %v13078 = vpack.c.b16 %v13033, %v13032
  %v13079 = vpack.c.b16 %v13035, %v13034
  %v13080 = vpack.c.b16 %v13037, %v13036
  %v13081 = vpack.c.b16 %v13039, %v13038
  %v13082 = vpack.c.b16 %v13041, %v13040
  %v13083 = vpack.c.b16 %v13043, %v13042
  %v13084 = vpack.c.b16 %v13045, %v13044
  %v13085 = vpack.c.b16 %v13047, %v13046
  %v13086 = vpack.c.b16 %v13049, %v13048
  %v13087 = vpack.c.b16 %v13051, %v13050
  %v13088 = vpack.c.b16 %v13053, %v13052
  %v13089 = vpack.c.b16 %v13055, %v13054
  %v13090 = vpack.c.b16 %v13057, %v13056
  %v13091 = vpack.c.b16 %v13059, %v13058
  %v13156 = vunpack.c.l.b16 %v11076
  %v13157 = vunpack.c.l.b16 %v11077
  %v13158 = vunpack.c.l.b16 %v11078
  %v13159 = vunpack.c.l.b16 %v11079
  %v13160 = vunpack.c.l.b16 %v11080
  %v13161 = vunpack.c.l.b16 %v11081
  %v13162 = vunpack.c.l.b16 %v11082
  %v13163 = vunpack.c.l.b16 %v11083
  %v13164 = vunpack.c.l.b16 %v11084
  %v13165 = vunpack.c.l.b16 %v11085
  %v13166 = vunpack.c.l.b16 %v11086
  %v13167 = vunpack.c.l.b16 %v11087
  %v13168 = vunpack.c.l.b16 %v11088
  %v13169 = vunpack.c.l.b16 %v11089
  %v13170 = vunpack.c.l.b16 %v11090
  %v13171 = vunpack.c.l.b16 %v11091
  %v13172 = vunpack.c.l.b16 %v11092
  %v13173 = vunpack.c.l.b16 %v11093
  %v13174 = vunpack.c.l.b16 %v11094
  %v13175 = vunpack.c.l.b16 %v11095
  %v13176 = vunpack.c.l.b16 %v11096
  %v13177 = vunpack.c.l.b16 %v11097
  %v13178 = vunpack.c.l.b16 %v11098
  %v13179 = vunpack.c.l.b16 %v11099
  %v13180 = vunpack.c.l.b16 %v11100
  %v13181 = vunpack.c.l.b16 %v11101
  %v13182 = vunpack.c.l.b16 %v11102
  %v13183 = vunpack.c.l.b16 %v11103
  %v13184 = vunpack.c.l.b16 %v11104
  %v13185 = vunpack.c.l.b16 %v11105
  %v13186 = vunpack.c.l.b16 %v11106
  %v13187 = vunpack.c.l.b16 %v11107
  %v13188 = vunpack.c.l.b16 %v11108
  %v13189 = vunpack.c.l.b16 %v11109
  %v13190 = vunpack.c.l.b16 %v11110
  %v13191 = vunpack.c.l.b16 %v11111
  %v13192 = vunpack.c.l.b16 %v11112
  %v13193 = vunpack.c.l.b16 %v11113
  %v13194 = vunpack.c.l.b16 %v11114
  %v13195 = vunpack.c.l.b16 %v11115
  %v13196 = vunpack.c.l.b16 %v11116
  %v13197 = vunpack.c.l.b16 %v11117
  %v13198 = vunpack.c.l.b16 %v11118
  %v13199 = vunpack.c.l.b16 %v11119
  %v13200 = vunpack.c.l.b16 %v11120
  %v13201 = vunpack.c.l.b16 %v11121
  %v13202 = vunpack.c.l.b16 %v11122
  %v13203 = vunpack.c.l.b16 %v11123
  %v13204 = vunpack.c.l.b16 %v11124
  %v13205 = vunpack.c.l.b16 %v11125
  %v13206 = vunpack.c.l.b16 %v11126
  %v13207 = vunpack.c.l.b16 %v11127
  %v13208 = vunpack.c.l.b16 %v11128
  %v13209 = vunpack.c.l.b16 %v11129
  %v13210 = vunpack.c.l.b16 %v11130
  %v13211 = vunpack.c.l.b16 %v11131
  %v13212 = vunpack.c.l.b16 %v11132
  %v13213 = vunpack.c.l.b16 %v11133
  %v13214 = vunpack.c.l.b16 %v11134
  %v13215 = vunpack.c.l.b16 %v11135
  %v13216 = vunpack.c.l.b16 %v11136
  %v13217 = vunpack.c.l.b16 %v11137
  %v13218 = vunpack.c.l.b16 %v11138
  %v13219 = vunpack.c.l.b16 %v11139
  %v13220 = vpack.c.b16 %v13157, %v13156
  %v13221 = vpack.c.b16 %v13159, %v13158
  %v13222 = vpack.c.b16 %v13161, %v13160
  %v13223 = vpack.c.b16 %v13163, %v13162
  %v13224 = vpack.c.b16 %v13165, %v13164
  %v13225 = vpack.c.b16 %v13167, %v13166
  %v13226 = vpack.c.b16 %v13169, %v13168
  %v13227 = vpack.c.b16 %v13171, %v13170
  %v13228 = vpack.c.b16 %v13173, %v13172
  %v13229 = vpack.c.b16 %v13175, %v13174
  %v13230 = vpack.c.b16 %v13177, %v13176
  %v13231 = vpack.c.b16 %v13179, %v13178
  %v13232 = vpack.c.b16 %v13181, %v13180
  %v13233 = vpack.c.b16 %v13183, %v13182
  %v13234 = vpack.c.b16 %v13185, %v13184
  %v13235 = vpack.c.b16 %v13187, %v13186
  %v13236 = vpack.c.b16 %v13189, %v13188
  %v13237 = vpack.c.b16 %v13191, %v13190
  %v13238 = vpack.c.b16 %v13193, %v13192
  %v13239 = vpack.c.b16 %v13195, %v13194
  %v13240 = vpack.c.b16 %v13197, %v13196
  %v13241 = vpack.c.b16 %v13199, %v13198
  %v13242 = vpack.c.b16 %v13201, %v13200
  %v13243 = vpack.c.b16 %v13203, %v13202
  %v13244 = vpack.c.b16 %v13205, %v13204
  %v13245 = vpack.c.b16 %v13207, %v13206
  %v13246 = vpack.c.b16 %v13209, %v13208
  %v13247 = vpack.c.b16 %v13211, %v13210
  %v13248 = vpack.c.b16 %v13213, %v13212
  %v13249 = vpack.c.b16 %v13215, %v13214
  %v13250 = vpack.c.b16 %v13217, %v13216
  %v13251 = vpack.c.b16 %v13219, %v13218
  %v13284 = vunpack.c.l.b16 %v11185
  %v13285 = vunpack.c.l.b16 %v11195
  %v13286 = vunpack.c.l.b16 %v11209
  %v13287 = vunpack.c.l.b16 %v11219
  %v13288 = vunpack.c.l.b16 %v11233
  %v13289 = vunpack.c.l.b16 %v11243
  %v13290 = vunpack.c.l.b16 %v11257
  %v13291 = vunpack.c.l.b16 %v11267
  %v13292 = vunpack.c.l.b16 %v11281
  %v13293 = vunpack.c.l.b16 %v11291
  %v13294 = vunpack.c.l.b16 %v11305
  %v13295 = vunpack.c.l.b16 %v11315
  %v13296 = vunpack.c.l.b16 %v11329
  %v13297 = vunpack.c.l.b16 %v11339
  %v13298 = vunpack.c.l.b16 %v11353
  %v13299 = vunpack.c.l.b16 %v11363
  %v13300 = vunpack.c.l.b16 %v11377
  %v13301 = vunpack.c.l.b16 %v11387
  %v13302 = vunpack.c.l.b16 %v11401
  %v13303 = vunpack.c.l.b16 %v11411
  %v13304 = vunpack.c.l.b16 %v11425
  %v13305 = vunpack.c.l.b16 %v11435
  %v13306 = vunpack.c.l.b16 %v11449
  %v13307 = vunpack.c.l.b16 %v11459
  %v13308 = vunpack.c.l.b16 %v11473
  %v13309 = vunpack.c.l.b16 %v11483
  %v13310 = vunpack.c.l.b16 %v11497
  %v13311 = vunpack.c.l.b16 %v11507
  %v13312 = vunpack.c.l.b16 %v11521
  %v13313 = vunpack.c.l.b16 %v11531
  %v13314 = vunpack.c.l.b16 %v11545
  %v13315 = vunpack.c.l.b16 %v11555
  %v13316 = vunpack.c.l.b16 %v11569
  %v13317 = vunpack.c.l.b16 %v11579
  %v13318 = vunpack.c.l.b16 %v11593
  %v13319 = vunpack.c.l.b16 %v11603
  %v13320 = vunpack.c.l.b16 %v11617
  %v13321 = vunpack.c.l.b16 %v11627
  %v13322 = vunpack.c.l.b16 %v11641
  %v13323 = vunpack.c.l.b16 %v11651
  %v13324 = vunpack.c.l.b16 %v11665
  %v13325 = vunpack.c.l.b16 %v11675
  %v13326 = vunpack.c.l.b16 %v11689
  %v13327 = vunpack.c.l.b16 %v11699
  %v13328 = vunpack.c.l.b16 %v11713
  %v13329 = vunpack.c.l.b16 %v11723
  %v13330 = vunpack.c.l.b16 %v11737
  %v13331 = vunpack.c.l.b16 %v11747
  %v13332 = vunpack.c.l.b16 %v11761
  %v13333 = vunpack.c.l.b16 %v11771
  %v13334 = vunpack.c.l.b16 %v11785
  %v13335 = vunpack.c.l.b16 %v11795
  %v13336 = vunpack.c.l.b16 %v11809
  %v13337 = vunpack.c.l.b16 %v11819
  %v13338 = vunpack.c.l.b16 %v11833
  %v13339 = vunpack.c.l.b16 %v11843
  %v13340 = vunpack.c.l.b16 %v11857
  %v13341 = vunpack.c.l.b16 %v11867
  %v13342 = vunpack.c.l.b16 %v11881
  %v13343 = vunpack.c.l.b16 %v11891
  %v13344 = vunpack.c.l.b16 %v11905
  %v13345 = vunpack.c.l.b16 %v11915
  %v13346 = vunpack.c.l.b16 %v11929
  %v13347 = vunpack.c.l.b16 %v11939
  %v13348 = vpack.c.b16 %v13285, %v13284
  %v13349 = vpack.c.b16 %v13287, %v13286
  %v13350 = vpack.c.b16 %v13289, %v13288
  %v13351 = vpack.c.b16 %v13291, %v13290
  %v13352 = vpack.c.b16 %v13293, %v13292
  %v13353 = vpack.c.b16 %v13295, %v13294
  %v13354 = vpack.c.b16 %v13297, %v13296
  %v13355 = vpack.c.b16 %v13299, %v13298
  %v13356 = vpack.c.b16 %v13301, %v13300
  %v13357 = vpack.c.b16 %v13303, %v13302
  %v13358 = vpack.c.b16 %v13305, %v13304
  %v13359 = vpack.c.b16 %v13307, %v13306
  %v13360 = vpack.c.b16 %v13309, %v13308
  %v13361 = vpack.c.b16 %v13311, %v13310
  %v13362 = vpack.c.b16 %v13313, %v13312
  %v13363 = vpack.c.b16 %v13315, %v13314
  %v13364 = vpack.c.b16 %v13317, %v13316
  %v13365 = vpack.c.b16 %v13319, %v13318
  %v13366 = vpack.c.b16 %v13321, %v13320
  %v13367 = vpack.c.b16 %v13323, %v13322
  %v13368 = vpack.c.b16 %v13325, %v13324
  %v13369 = vpack.c.b16 %v13327, %v13326
  %v13370 = vpack.c.b16 %v13329, %v13328
  %v13371 = vpack.c.b16 %v13331, %v13330
  %v13372 = vpack.c.b16 %v13333, %v13332
  %v13373 = vpack.c.b16 %v13335, %v13334
  %v13374 = vpack.c.b16 %v13337, %v13336
  %v13375 = vpack.c.b16 %v13339, %v13338
  %v13376 = vpack.c.b16 %v13341, %v13340
  %v13377 = vpack.c.b16 %v13343, %v13342
  %v13378 = vpack.c.b16 %v13345, %v13344
  %v13379 = vpack.c.b16 %v13347, %v13346
  %v13412 = vunpack.c.l.b16 %v12071
  %v13413 = vunpack.c.l.b16 %v12074
  %v13414 = vunpack.c.l.b16 %v12078
  %v13415 = vunpack.c.l.b16 %v12081
  %v13416 = vunpack.c.l.b16 %v12085
  %v13417 = vunpack.c.l.b16 %v12088
  %v13418 = vunpack.c.l.b16 %v12092
  %v13419 = vunpack.c.l.b16 %v12095
  %v13420 = vunpack.c.l.b16 %v12099
  %v13421 = vunpack.c.l.b16 %v12102
  %v13422 = vunpack.c.l.b16 %v12106
  %v13423 = vunpack.c.l.b16 %v12109
  %v13424 = vunpack.c.l.b16 %v12113
  %v13425 = vunpack.c.l.b16 %v12116
  %v13426 = vunpack.c.l.b16 %v12120
  %v13427 = vunpack.c.l.b16 %v12123
  %v13428 = vunpack.c.l.b16 %v12127
  %v13429 = vunpack.c.l.b16 %v12130
  %v13430 = vunpack.c.l.b16 %v12134
  %v13431 = vunpack.c.l.b16 %v12137
  %v13432 = vunpack.c.l.b16 %v12141
  %v13433 = vunpack.c.l.b16 %v12144
  %v13434 = vunpack.c.l.b16 %v12148
  %v13435 = vunpack.c.l.b16 %v12151
  %v13436 = vunpack.c.l.b16 %v12155
  %v13437 = vunpack.c.l.b16 %v12158
  %v13438 = vunpack.c.l.b16 %v12162
  %v13439 = vunpack.c.l.b16 %v12165
  %v13440 = vunpack.c.l.b16 %v12169
  %v13441 = vunpack.c.l.b16 %v12172
  %v13442 = vunpack.c.l.b16 %v12176
  %v13443 = vunpack.c.l.b16 %v12179
  %v13444 = vunpack.c.l.b16 %v12183
  %v13445 = vunpack.c.l.b16 %v12186
  %v13446 = vunpack.c.l.b16 %v12190
  %v13447 = vunpack.c.l.b16 %v12193
  %v13448 = vunpack.c.l.b16 %v12197
  %v13449 = vunpack.c.l.b16 %v12200
  %v13450 = vunpack.c.l.b16 %v12204
  %v13451 = vunpack.c.l.b16 %v12207
  %v13452 = vunpack.c.l.b16 %v12211
  %v13453 = vunpack.c.l.b16 %v12214
  %v13454 = vunpack.c.l.b16 %v12218
  %v13455 = vunpack.c.l.b16 %v12221
  %v13456 = vunpack.c.l.b16 %v12225
  %v13457 = vunpack.c.l.b16 %v12228
  %v13458 = vunpack.c.l.b16 %v12232
  %v13459 = vunpack.c.l.b16 %v12235
  %v13460 = vunpack.c.l.b16 %v12239
  %v13461 = vunpack.c.l.b16 %v12242
  %v13462 = vunpack.c.l.b16 %v12246
  %v13463 = vunpack.c.l.b16 %v12249
  %v13464 = vunpack.c.l.b16 %v12253
  %v13465 = vunpack.c.l.b16 %v12256
  %v13466 = vunpack.c.l.b16 %v12260
  %v13467 = vunpack.c.l.b16 %v12263
  %v13468 = vunpack.c.l.b16 %v12267
  %v13469 = vunpack.c.l.b16 %v12270
  %v13470 = vunpack.c.l.b16 %v12274
  %v13471 = vunpack.c.l.b16 %v12277
  %v13472 = vunpack.c.l.b16 %v12281
  %v13473 = vunpack.c.l.b16 %v12284
  %v13474 = vunpack.c.l.b16 %v12288
  %v13475 = vunpack.c.l.b16 %v12291
  %v13476 = vpack.c.b16 %v13413, %v13412
  %v13477 = vpack.c.b16 %v13415, %v13414
  %v13478 = vpack.c.b16 %v13417, %v13416
  %v13479 = vpack.c.b16 %v13419, %v13418
  %v13480 = vpack.c.b16 %v13421, %v13420
  %v13481 = vpack.c.b16 %v13423, %v13422
  %v13482 = vpack.c.b16 %v13425, %v13424
  %v13483 = vpack.c.b16 %v13427, %v13426
  %v13484 = vpack.c.b16 %v13429, %v13428
  %v13485 = vpack.c.b16 %v13431, %v13430
  %v13486 = vpack.c.b16 %v13433, %v13432
  %v13487 = vpack.c.b16 %v13435, %v13434
  %v13488 = vpack.c.b16 %v13437, %v13436
  %v13489 = vpack.c.b16 %v13439, %v13438
  %v13490 = vpack.c.b16 %v13441, %v13440
  %v13491 = vpack.c.b16 %v13443, %v13442
  %v13492 = vpack.c.b16 %v13445, %v13444
  %v13493 = vpack.c.b16 %v13447, %v13446
  %v13494 = vpack.c.b16 %v13449, %v13448
  %v13495 = vpack.c.b16 %v13451, %v13450
  %v13496 = vpack.c.b16 %v13453, %v13452
  %v13497 = vpack.c.b16 %v13455, %v13454
  %v13498 = vpack.c.b16 %v13457, %v13456
  %v13499 = vpack.c.b16 %v13459, %v13458
  %v13500 = vpack.c.b16 %v13461, %v13460
  %v13501 = vpack.c.b16 %v13463, %v13462
  %v13502 = vpack.c.b16 %v13465, %v13464
  %v13503 = vpack.c.b16 %v13467, %v13466
  %v13504 = vpack.c.b16 %v13469, %v13468
  %v13505 = vpack.c.b16 %v13471, %v13470
  %v13506 = vpack.c.b16 %v13473, %v13472
  %v13507 = vpack.c.b16 %v13475, %v13474
  %v13540 = vld [vmem:[%s5] sm:$0xf]
  %v13541 = vld [vmem:[%s5 + $0x4] sm:$0xf]
  %v13542 = vld [vmem:[%s5 + $0x8] sm:$0xf]
  %v13543 = vld [vmem:[%s5 + $0xc] sm:$0xf]
  %v13544 = vld [vmem:[%s5 + $0x10] sm:$0xf]
  %v13545 = vld [vmem:[%s5 + $0x14] sm:$0xf]
  %v13546 = vld [vmem:[%s5 + $0x18] sm:$0xf]
  %v13547 = vld [vmem:[%s5 + $0x1c] sm:$0xf]
  %v13548 = vld [vmem:[%s5 + $0x20] sm:$0xf]
  %v13549 = vld [vmem:[%s5 + $0x24] sm:$0xf]
  %v13550 = vld [vmem:[%s5 + $0x28] sm:$0xf]
  %v13551 = vld [vmem:[%s5 + $0x2c] sm:$0xf]
  %v13552 = vld [vmem:[%s5 + $0x30] sm:$0xf]
  %v13553 = vld [vmem:[%s5 + $0x34] sm:$0xf]
  %v13554 = vld [vmem:[%s5 + $0x38] sm:$0xf]
  %v13555 = vld [vmem:[%s5 + $0x3c] sm:$0xf]
  %v13556 = vld [vmem:[%s5 + $0x40] sm:$0xf]
  %v13557 = vld [vmem:[%s5 + $0x44] sm:$0xf]
  %v13558 = vld [vmem:[%s5 + $0x48] sm:$0xf]
  %v13559 = vld [vmem:[%s5 + $0x4c] sm:$0xf]
  %v13560 = vld [vmem:[%s5 + $0x50] sm:$0xf]
  %v13561 = vld [vmem:[%s5 + $0x54] sm:$0xf]
  %v13562 = vld [vmem:[%s5 + $0x58] sm:$0xf]
  %v13563 = vld [vmem:[%s5 + $0x5c] sm:$0xf]
  %v13564 = vld [vmem:[%s5 + $0x60] sm:$0xf]
  %v13565 = vld [vmem:[%s5 + $0x64] sm:$0xf]
  %v13566 = vld [vmem:[%s5 + $0x68] sm:$0xf]
  %v13567 = vld [vmem:[%s5 + $0x6c] sm:$0xf]
  %v13568 = vld [vmem:[%s5 + $0x70] sm:$0xf]
  %v13569 = vld [vmem:[%s5 + $0x74] sm:$0xf]
  %v13570 = vld [vmem:[%s5 + $0x78] sm:$0xf]
  %v13571 = vld [vmem:[%s5 + $0x7c] sm:$0xf]
  %v13572 = vld [vmem:[%s5 + $0x80] sm:$0xf]
  %v13573 = vld [vmem:[%s5 + $0x84] sm:$0xf]
  %v13574 = vld [vmem:[%s5 + $0x88] sm:$0xf]
  %v13575 = vld [vmem:[%s5 + $0x8c] sm:$0xf]
  %v13576 = vld [vmem:[%s5 + $0x90] sm:$0xf]
  %v13577 = vld [vmem:[%s5 + $0x94] sm:$0xf]
  %v13578 = vld [vmem:[%s5 + $0x98] sm:$0xf]
  %v13579 = vld [vmem:[%s5 + $0x9c] sm:$0xf]
  %v13580 = vld [vmem:[%s5 + $0xa0] sm:$0xf]
  %v13581 = vld [vmem:[%s5 + $0xa4] sm:$0xf]
  %v13582 = vld [vmem:[%s5 + $0xa8] sm:$0xf]
  %v13583 = vld [vmem:[%s5 + $0xac] sm:$0xf]
  %v13584 = vld [vmem:[%s5 + $0xb0] sm:$0xf]
  %v13585 = vld [vmem:[%s5 + $0xb4] sm:$0xf]
  %v13586 = vld [vmem:[%s5 + $0xb8] sm:$0xf]
  %v13587 = vld [vmem:[%s5 + $0xbc] sm:$0xf]
  %v13588 = vld [vmem:[%s5 + $0xc0] sm:$0xf]
  %v13589 = vld [vmem:[%s5 + $0xc4] sm:$0xf]
  %v13590 = vld [vmem:[%s5 + $0xc8] sm:$0xf]
  %v13591 = vld [vmem:[%s5 + $0xcc] sm:$0xf]
  %v13592 = vld [vmem:[%s5 + $0xd0] sm:$0xf]
  %v13593 = vld [vmem:[%s5 + $0xd4] sm:$0xf]
  %v13594 = vld [vmem:[%s5 + $0xd8] sm:$0xf]
  %v13595 = vld [vmem:[%s5 + $0xdc] sm:$0xf]
  %v13596 = vld [vmem:[%s5 + $0xe0] sm:$0xf]
  %v13597 = vld [vmem:[%s5 + $0xe4] sm:$0xf]
  %v13598 = vld [vmem:[%s5 + $0xe8] sm:$0xf]
  %v13599 = vld [vmem:[%s5 + $0xec] sm:$0xf]
  %v13600 = vld [vmem:[%s5 + $0xf0] sm:$0xf]
  %v13601 = vld [vmem:[%s5 + $0xf4] sm:$0xf]
  %v13602 = vld [vmem:[%s5 + $0xf8] sm:$0xf]
  %v13603 = vld [vmem:[%s5 + $0xfc] sm:$0xf]
  %v13604 = vld [vmem:[%s5 + $0x100] sm:$0xf]
  %v13605 = vld [vmem:[%s5 + $0x104] sm:$0xf]
  %v13606 = vld [vmem:[%s5 + $0x108] sm:$0xf]
  %v13607 = vld [vmem:[%s5 + $0x10c] sm:$0xf]
  %v13608 = vld [vmem:[%s5 + $0x110] sm:$0xf]
  %v13609 = vld [vmem:[%s5 + $0x114] sm:$0xf]
  %v13610 = vld [vmem:[%s5 + $0x118] sm:$0xf]
  %v13611 = vld [vmem:[%s5 + $0x11c] sm:$0xf]
  %v13612 = vld [vmem:[%s5 + $0x120] sm:$0xf]
  %v13613 = vld [vmem:[%s5 + $0x124] sm:$0xf]
  %v13614 = vld [vmem:[%s5 + $0x128] sm:$0xf]
  %v13615 = vld [vmem:[%s5 + $0x12c] sm:$0xf]
  %v13616 = vld [vmem:[%s5 + $0x130] sm:$0xf]
  %v13617 = vld [vmem:[%s5 + $0x134] sm:$0xf]
  %v13618 = vld [vmem:[%s5 + $0x138] sm:$0xf]
  %v13619 = vld [vmem:[%s5 + $0x13c] sm:$0xf]
  %v13620 = vld [vmem:[%s5 + $0x140] sm:$0xf]
  %v13621 = vld [vmem:[%s5 + $0x144] sm:$0xf]
  %v13622 = vld [vmem:[%s5 + $0x148] sm:$0xf]
  %v13623 = vld [vmem:[%s5 + $0x14c] sm:$0xf]
  %v13624 = vld [vmem:[%s5 + $0x150] sm:$0xf]
  %v13625 = vld [vmem:[%s5 + $0x154] sm:$0xf]
  %v13626 = vld [vmem:[%s5 + $0x158] sm:$0xf]
  %v13627 = vld [vmem:[%s5 + $0x15c] sm:$0xf]
  %v13628 = vld [vmem:[%s5 + $0x160] sm:$0xf]
  %v13629 = vld [vmem:[%s5 + $0x164] sm:$0xf]
  %v13630 = vld [vmem:[%s5 + $0x168] sm:$0xf]
  %v13631 = vld [vmem:[%s5 + $0x16c] sm:$0xf]
  %v13632 = vld [vmem:[%s5 + $0x170] sm:$0xf]
  %v13633 = vld [vmem:[%s5 + $0x174] sm:$0xf]
  %v13634 = vld [vmem:[%s5 + $0x178] sm:$0xf]
  %v13635 = vld [vmem:[%s5 + $0x17c] sm:$0xf]
  %v13636 = vld [vmem:[%s5 + $0x180] sm:$0xf]
  %v13637 = vld [vmem:[%s5 + $0x184] sm:$0xf]
  %v13638 = vld [vmem:[%s5 + $0x188] sm:$0xf]
  %v13639 = vld [vmem:[%s5 + $0x18c] sm:$0xf]
  %v13640 = vld [vmem:[%s5 + $0x190] sm:$0xf]
  %v13641 = vld [vmem:[%s5 + $0x194] sm:$0xf]
  %v13642 = vld [vmem:[%s5 + $0x198] sm:$0xf]
  %v13643 = vld [vmem:[%s5 + $0x19c] sm:$0xf]
  %v13644 = vld [vmem:[%s5 + $0x1a0] sm:$0xf]
  %v13645 = vld [vmem:[%s5 + $0x1a4] sm:$0xf]
  %v13646 = vld [vmem:[%s5 + $0x1a8] sm:$0xf]
  %v13647 = vld [vmem:[%s5 + $0x1ac] sm:$0xf]
  %v13648 = vld [vmem:[%s5 + $0x1b0] sm:$0xf]
  %v13649 = vld [vmem:[%s5 + $0x1b4] sm:$0xf]
  %v13650 = vld [vmem:[%s5 + $0x1b8] sm:$0xf]
  %v13651 = vld [vmem:[%s5 + $0x1bc] sm:$0xf]
  %v13652 = vld [vmem:[%s5 + $0x1c0] sm:$0xf]
  %v13653 = vld [vmem:[%s5 + $0x1c4] sm:$0xf]
  %v13654 = vld [vmem:[%s5 + $0x1c8] sm:$0xf]
  %v13655 = vld [vmem:[%s5 + $0x1cc] sm:$0xf]
  %v13656 = vld [vmem:[%s5 + $0x1d0] sm:$0xf]
  %v13657 = vld [vmem:[%s5 + $0x1d4] sm:$0xf]
  %v13658 = vld [vmem:[%s5 + $0x1d8] sm:$0xf]
  %v13659 = vld [vmem:[%s5 + $0x1dc] sm:$0xf]
  %v13660 = vld [vmem:[%s5 + $0x1e0] sm:$0xf]
  %v13661 = vld [vmem:[%s5 + $0x1e4] sm:$0xf]
  %v13662 = vld [vmem:[%s5 + $0x1e8] sm:$0xf]
  %v13663 = vld [vmem:[%s5 + $0x1ec] sm:$0xf]
  %v13664 = vld [vmem:[%s5 + $0x1f0] sm:$0xf]
  %v13665 = vld [vmem:[%s5 + $0x1f4] sm:$0xf]
  %v13666 = vld [vmem:[%s5 + $0x1f8] sm:$0xf]
  %v13667 = vld [vmem:[%s5 + $0x1fc] sm:$0xf]
  %v13668 = vld [vmem:[%s5 + $0x200] sm:$0xf]
  %v13669 = vld [vmem:[%s5 + $0x204] sm:$0xf]
  %v13670 = vld [vmem:[%s5 + $0x208] sm:$0xf]
  %v13671 = vld [vmem:[%s5 + $0x20c] sm:$0xf]
  %v13672 = vld [vmem:[%s5 + $0x210] sm:$0xf]
  %v13673 = vld [vmem:[%s5 + $0x214] sm:$0xf]
  %v13674 = vld [vmem:[%s5 + $0x218] sm:$0xf]
  %v13675 = vld [vmem:[%s5 + $0x21c] sm:$0xf]
  %v13676 = vld [vmem:[%s5 + $0x220] sm:$0xf]
  %v13677 = vld [vmem:[%s5 + $0x224] sm:$0xf]
  %v13678 = vld [vmem:[%s5 + $0x228] sm:$0xf]
  %v13679 = vld [vmem:[%s5 + $0x22c] sm:$0xf]
  %v13680 = vld [vmem:[%s5 + $0x230] sm:$0xf]
  %v13681 = vld [vmem:[%s5 + $0x234] sm:$0xf]
  %v13682 = vld [vmem:[%s5 + $0x238] sm:$0xf]
  %v13683 = vld [vmem:[%s5 + $0x23c] sm:$0xf]
  %v13828 = vunpack.c.l.b16 %v13540
  %v13829 = vunpack.c.l.b16 %v13541
  %v13830 = vunpack.c.l.b16 %v13542
  %v13831 = vunpack.c.l.b16 %v13543
  %v13832 = vunpack.c.l.b16 %v13544
  %v13833 = vunpack.c.l.b16 %v13545
  %v13834 = vunpack.c.l.b16 %v13546
  %v13835 = vunpack.c.l.b16 %v13547
  %v13836 = vunpack.c.l.b16 %v13548
  %v13837 = vunpack.c.l.b16 %v13549
  %v13838 = vunpack.c.l.b16 %v13550
  %v13839 = vunpack.c.l.b16 %v13551
  %v13840 = vunpack.c.l.b16 %v13552
  %v13841 = vunpack.c.l.b16 %v13553
  %v13842 = vunpack.c.l.b16 %v13554
  %v13843 = vunpack.c.l.b16 %v13555
  %v13844 = vunpack.c.l.b16 %v13556
  %v13845 = vunpack.c.l.b16 %v13557
  %v13846 = vunpack.c.l.b16 %v13558
  %v13847 = vunpack.c.l.b16 %v13559
  %v13848 = vunpack.c.l.b16 %v13560
  %v13849 = vunpack.c.l.b16 %v13561
  %v13850 = vunpack.c.l.b16 %v13562
  %v13851 = vunpack.c.l.b16 %v13563
  %v13852 = vunpack.c.l.b16 %v13564
  %v13853 = vunpack.c.l.b16 %v13565
  %v13854 = vunpack.c.l.b16 %v13566
  %v13855 = vunpack.c.l.b16 %v13567
  %v13856 = vunpack.c.l.b16 %v13568
  %v13857 = vunpack.c.l.b16 %v13569
  %v13858 = vunpack.c.l.b16 %v13570
  %v13859 = vunpack.c.l.b16 %v13571
  %v13860 = vunpack.c.l.b16 %v13572
  %v13861 = vunpack.c.l.b16 %v13573
  %v13862 = vunpack.c.l.b16 %v13574
  %v13863 = vunpack.c.l.b16 %v13575
  %v13864 = vunpack.c.l.b16 %v13576
  %v13865 = vunpack.c.l.b16 %v13577
  %v13866 = vunpack.c.l.b16 %v13578
  %v13867 = vunpack.c.l.b16 %v13579
  %v13868 = vunpack.c.l.b16 %v13580
  %v13869 = vunpack.c.l.b16 %v13581
  %v13870 = vunpack.c.l.b16 %v13582
  %v13871 = vunpack.c.l.b16 %v13583
  %v13872 = vunpack.c.l.b16 %v13584
  %v13873 = vunpack.c.l.b16 %v13585
  %v13874 = vunpack.c.l.b16 %v13586
  %v13875 = vunpack.c.l.b16 %v13587
  %v13876 = vunpack.c.l.b16 %v13588
  %v13877 = vunpack.c.l.b16 %v13589
  %v13878 = vunpack.c.l.b16 %v13590
  %v13879 = vunpack.c.l.b16 %v13591
  %v13880 = vunpack.c.l.b16 %v13592
  %v13881 = vunpack.c.l.b16 %v13593
  %v13882 = vunpack.c.l.b16 %v13594
  %v13883 = vunpack.c.l.b16 %v13595
  %v13884 = vunpack.c.l.b16 %v13596
  %v13885 = vunpack.c.l.b16 %v13597
  %v13886 = vunpack.c.l.b16 %v13598
  %v13887 = vunpack.c.l.b16 %v13599
  %v13888 = vunpack.c.l.b16 %v13600
  %v13889 = vunpack.c.l.b16 %v13601
  %v13890 = vunpack.c.l.b16 %v13602
  %v13891 = vunpack.c.l.b16 %v13603
  %v13892 = vunpack.c.l.b16 %v13604
  %v13893 = vunpack.c.l.b16 %v13605
  %v13894 = vunpack.c.l.b16 %v13606
  %v13895 = vunpack.c.l.b16 %v13607
  %v13896 = vunpack.c.l.b16 %v13608
  %v13897 = vunpack.c.l.b16 %v13609
  %v13898 = vunpack.c.l.b16 %v13610
  %v13899 = vunpack.c.l.b16 %v13611
  %v13900 = vunpack.c.l.b16 %v13612
  %v13901 = vunpack.c.l.b16 %v13613
  %v13902 = vunpack.c.l.b16 %v13614
  %v13903 = vunpack.c.l.b16 %v13615
  %v13904 = vunpack.c.l.b16 %v13616
  %v13905 = vunpack.c.l.b16 %v13617
  %v13906 = vunpack.c.l.b16 %v13618
  %v13907 = vunpack.c.l.b16 %v13619
  %v13908 = vunpack.c.l.b16 %v13620
  %v13909 = vunpack.c.l.b16 %v13621
  %v13910 = vunpack.c.l.b16 %v13622
  %v13911 = vunpack.c.l.b16 %v13623
  %v13912 = vunpack.c.l.b16 %v13624
  %v13913 = vunpack.c.l.b16 %v13625
  %v13914 = vunpack.c.l.b16 %v13626
  %v13915 = vunpack.c.l.b16 %v13627
  %v13916 = vunpack.c.l.b16 %v13628
  %v13917 = vunpack.c.l.b16 %v13629
  %v13918 = vunpack.c.l.b16 %v13630
  %v13919 = vunpack.c.l.b16 %v13631
  %v13920 = vunpack.c.l.b16 %v13632
  %v13921 = vunpack.c.l.b16 %v13633
  %v13922 = vunpack.c.l.b16 %v13634
  %v13923 = vunpack.c.l.b16 %v13635
  %v13924 = vunpack.c.l.b16 %v13636
  %v13925 = vunpack.c.l.b16 %v13637
  %v13926 = vunpack.c.l.b16 %v13638
  %v13927 = vunpack.c.l.b16 %v13639
  %v13928 = vunpack.c.l.b16 %v13640
  %v13929 = vunpack.c.l.b16 %v13641
  %v13930 = vunpack.c.l.b16 %v13642
  %v13931 = vunpack.c.l.b16 %v13643
  %v13932 = vunpack.c.l.b16 %v13644
  %v13933 = vunpack.c.l.b16 %v13645
  %v13934 = vunpack.c.l.b16 %v13646
  %v13935 = vunpack.c.l.b16 %v13647
  %v13936 = vunpack.c.l.b16 %v13648
  %v13937 = vunpack.c.l.b16 %v13649
  %v13938 = vunpack.c.l.b16 %v13650
  %v13939 = vunpack.c.l.b16 %v13651
  %v13940 = vunpack.c.l.b16 %v13652
  %v13941 = vunpack.c.l.b16 %v13653
  %v13942 = vunpack.c.l.b16 %v13654
  %v13943 = vunpack.c.l.b16 %v13655
  %v13944 = vunpack.c.l.b16 %v13656
  %v13945 = vunpack.c.l.b16 %v13657
  %v13946 = vunpack.c.l.b16 %v13658
  %v13947 = vunpack.c.l.b16 %v13659
  %v13948 = vunpack.c.l.b16 %v13660
  %v13949 = vunpack.c.l.b16 %v13661
  %v13950 = vunpack.c.l.b16 %v13662
  %v13951 = vunpack.c.l.b16 %v13663
  %v13952 = vunpack.c.l.b16 %v13664
  %v13953 = vunpack.c.l.b16 %v13665
  %v13954 = vunpack.c.l.b16 %v13666
  %v13955 = vunpack.c.l.b16 %v13667
  %v13956 = vunpack.c.l.b16 %v13668
  %v13957 = vunpack.c.l.b16 %v13669
  %v13958 = vunpack.c.l.b16 %v13670
  %v13959 = vunpack.c.l.b16 %v13671
  %v13960 = vunpack.c.l.b16 %v13672
  %v13961 = vunpack.c.l.b16 %v13673
  %v13962 = vunpack.c.l.b16 %v13674
  %v13963 = vunpack.c.l.b16 %v13675
  %v13964 = vunpack.c.l.b16 %v13676
  %v13965 = vunpack.c.l.b16 %v13677
  %v13966 = vunpack.c.l.b16 %v13678
  %v13967 = vunpack.c.l.b16 %v13679
  %v13968 = vunpack.c.l.b16 %v13680
  %v13969 = vunpack.c.l.b16 %v13681
  %v13970 = vunpack.c.l.b16 %v13682
  %v13971 = vunpack.c.l.b16 %v13683
  %v13972 = vpack.c.b16 %v13829, %v13828
  %v13973 = vpack.c.b16 %v13831, %v13830
  %v13974 = vpack.c.b16 %v13833, %v13832
  %v13975 = vpack.c.b16 %v13835, %v13834
  %v13976 = vpack.c.b16 %v13837, %v13836
  %v13977 = vpack.c.b16 %v13839, %v13838
  %v13978 = vpack.c.b16 %v13841, %v13840
  %v13979 = vpack.c.b16 %v13843, %v13842
  %v13980 = vpack.c.b16 %v13845, %v13844
  %v13981 = vpack.c.b16 %v13847, %v13846
  %v13982 = vpack.c.b16 %v13849, %v13848
  %v13983 = vpack.c.b16 %v13851, %v13850
  %v13984 = vpack.c.b16 %v13853, %v13852
  %v13985 = vpack.c.b16 %v13855, %v13854
  %v13986 = vpack.c.b16 %v13857, %v13856
  %v13987 = vpack.c.b16 %v13859, %v13858
  %v13988 = vpack.c.b16 %v13861, %v13860
  %v13989 = vpack.c.b16 %v13863, %v13862
  %v13990 = vpack.c.b16 %v13865, %v13864
  %v13991 = vpack.c.b16 %v13867, %v13866
  %v13992 = vpack.c.b16 %v13869, %v13868
  %v13993 = vpack.c.b16 %v13871, %v13870
  %v13994 = vpack.c.b16 %v13873, %v13872
  %v13995 = vpack.c.b16 %v13875, %v13874
  %v13996 = vpack.c.b16 %v13877, %v13876
  %v13997 = vpack.c.b16 %v13879, %v13878
  %v13998 = vpack.c.b16 %v13881, %v13880
  %v13999 = vpack.c.b16 %v13883, %v13882
  %v14000 = vpack.c.b16 %v13885, %v13884
  %v14001 = vpack.c.b16 %v13887, %v13886
  %v14002 = vpack.c.b16 %v13889, %v13888
  %v14003 = vpack.c.b16 %v13891, %v13890
  %v14004 = vpack.c.b16 %v13893, %v13892
  %v14005 = vpack.c.b16 %v13895, %v13894
  %v14006 = vpack.c.b16 %v13897, %v13896
  %v14007 = vpack.c.b16 %v13899, %v13898
  %v14008 = vpack.c.b16 %v13901, %v13900
  %v14009 = vpack.c.b16 %v13903, %v13902
  %v14010 = vpack.c.b16 %v13905, %v13904
  %v14011 = vpack.c.b16 %v13907, %v13906
  %v14012 = vpack.c.b16 %v13909, %v13908
  %v14013 = vpack.c.b16 %v13911, %v13910
  %v14014 = vpack.c.b16 %v13913, %v13912
  %v14015 = vpack.c.b16 %v13915, %v13914
  %v14016 = vpack.c.b16 %v13917, %v13916
  %v14017 = vpack.c.b16 %v13919, %v13918
  %v14018 = vpack.c.b16 %v13921, %v13920
  %v14019 = vpack.c.b16 %v13923, %v13922
  %v14020 = vpack.c.b16 %v13925, %v13924
  %v14021 = vpack.c.b16 %v13927, %v13926
  %v14022 = vpack.c.b16 %v13929, %v13928
  %v14023 = vpack.c.b16 %v13931, %v13930
  %v14024 = vpack.c.b16 %v13933, %v13932
  %v14025 = vpack.c.b16 %v13935, %v13934
  %v14026 = vpack.c.b16 %v13937, %v13936
  %v14027 = vpack.c.b16 %v13939, %v13938
  %v14028 = vpack.c.b16 %v13941, %v13940
  %v14029 = vpack.c.b16 %v13943, %v13942
  %v14030 = vpack.c.b16 %v13945, %v13944
  %v14031 = vpack.c.b16 %v13947, %v13946
  %v14032 = vpack.c.b16 %v13949, %v13948
  %v14033 = vpack.c.b16 %v13951, %v13950
  %v14034 = vpack.c.b16 %v13953, %v13952
  %v14035 = vpack.c.b16 %v13955, %v13954
  %v14036 = vpack.c.b16 %v13957, %v13956
  %v14037 = vpack.c.b16 %v13959, %v13958
  %v14038 = vpack.c.b16 %v13961, %v13960
  %v14039 = vpack.c.b16 %v13963, %v13962
  %v14040 = vpack.c.b16 %v13965, %v13964
  %v14041 = vpack.c.b16 %v13967, %v13966
  %v14042 = vpack.c.b16 %v13969, %v13968
  %v14043 = vpack.c.b16 %v13971, %v13970
  %14116 = vmatprep.subr.bf16.mxu0 0
  %14117 = vmatpush1.bf16.msra.mxu0 %v13979
  %14118 = vmatprep.subr.bf16.mxu0 0
  %14119 = vmatpush1.bf16.msra.mxu0 %v13978
  %14120 = vmatprep.subr.bf16.mxu0 0
  %14121 = vmatpush1.bf16.msra.mxu0 %v13977
  %14122 = vmatprep.subr.bf16.mxu0 0
  %14123 = vmatpush1.bf16.msra.mxu0 %v13976
  %14124 = vmatprep.subr.bf16.mxu0 0
  %14125 = vmatpush1.bf16.msra.mxu0 %v13975
  %14126 = vmatprep.subr.bf16.mxu0 0
  %14127 = vmatpush1.bf16.msra.mxu0 %v13974
  %14128 = vmatprep.subr.bf16.mxu0 0
  %14129 = vmatpush1.bf16.msra.mxu0 %v13973
  %14130 = vmatprep.subr.bf16.mxu0 0
  %14131 = vmatpush1.bf16.msra.mxu0 %v13972
  %14132 = vmatprep.subr.bf16.mxu0 0
  %14133 = vmatpush2.bf16.msra.mxu0 %v13987
  %14134 = vmatprep.subr.bf16.mxu0 0
  %14135 = vmatpush2.bf16.msra.mxu0 %v13986
  %14136 = vmatprep.subr.bf16.mxu0 0
  %14137 = vmatpush2.bf16.msra.mxu0 %v13985
  %14138 = vmatprep.subr.bf16.mxu0 0
  %14139 = vmatpush2.bf16.msra.mxu0 %v13984
  %14140 = vmatprep.subr.bf16.mxu0 0
  %14141 = vmatpush2.bf16.msra.mxu0 %v13983
  %14142 = vmatprep.subr.bf16.mxu0 0
  %14143 = vmatpush2.bf16.msra.mxu0 %v13982
  %14144 = vmatprep.subr.bf16.mxu0 0
  %14145 = vmatpush2.bf16.msra.mxu0 %v13981
  %14146 = vmatprep.subr.bf16.mxu0 0
  %14147 = vmatpush2.bf16.msra.mxu0 %v13980
  %14148 = vmatprep.mubr.bf16.mxu0 %v12516
  %14149 = vmatmul.mubr.bf16.gmra.mxu0 %v12388
  %v14150 = vpop.f32.mrf.mxu0
  %v14151 = vadd.f32 0.0, %v14150
  %v14152 = vpop.f32.mrf.mxu0
  %v14153 = vpop.f32.mrf.mxu0
  %v14154 = vadd.f32 0.0, %v14153
  %v14155 = vpop.f32.mrf.mxu0
  %14156 = vmatprep.mubr.bf16.mxu0 %v12517
  %14157 = vmatmul.mubr.bf16.gmra.mxu0 %v12389
  %v14158 = vpop.f32.mrf.mxu0
  %v14159 = vadd.f32 0.0, %v14158
  %v14160 = vpop.f32.mrf.mxu0
  %v14161 = vpop.f32.mrf.mxu0
  %v14162 = vadd.f32 0.0, %v14161
  %v14163 = vpop.f32.mrf.mxu0
  %14164 = vmatprep.mubr.bf16.mxu0 %v12518
  %14165 = vmatmul.mubr.bf16.gmra.mxu0 %v12390
  %v14166 = vpop.f32.mrf.mxu0
  %v14167 = vadd.f32 0.0, %v14166
  %v14168 = vpop.f32.mrf.mxu0
  %v14169 = vpop.f32.mrf.mxu0
  %v14170 = vadd.f32 0.0, %v14169
  %v14171 = vpop.f32.mrf.mxu0
  %14172 = vmatprep.mubr.bf16.mxu0 %v12519
  %14173 = vmatmul.mubr.bf16.gmra.mxu0 %v12391
  %v14174 = vpop.f32.mrf.mxu0
  %v14175 = vadd.f32 0.0, %v14174
  %v14176 = vpop.f32.mrf.mxu0
  %v14177 = vpop.f32.mrf.mxu0
  %v14178 = vadd.f32 0.0, %v14177
  %v14179 = vpop.f32.mrf.mxu0
  %14180 = vmatprep.mubr.bf16.mxu0 %v12520
  %14181 = vmatmul.mubr.bf16.gmra.mxu0 %v12392
  %v14182 = vpop.f32.mrf.mxu0
  %v14183 = vadd.f32 0.0, %v14182
  %v14184 = vpop.f32.mrf.mxu0
  %v14185 = vpop.f32.mrf.mxu0
  %v14186 = vadd.f32 0.0, %v14185
  %v14187 = vpop.f32.mrf.mxu0
  %14188 = vmatprep.mubr.bf16.mxu0 %v12521
  %14189 = vmatmul.mubr.bf16.gmra.mxu0 %v12393
  %v14190 = vpop.f32.mrf.mxu0
  %v14191 = vadd.f32 0.0, %v14190
  %v14192 = vpop.f32.mrf.mxu0
  %v14193 = vpop.f32.mrf.mxu0
  %v14194 = vadd.f32 0.0, %v14193
  %v14195 = vpop.f32.mrf.mxu0
  %14196 = vmatprep.mubr.bf16.mxu0 %v12522
  %14197 = vmatmul.mubr.bf16.gmra.mxu0 %v12394
  %v14198 = vpop.f32.mrf.mxu0
  %v14199 = vadd.f32 0.0, %v14198
  %v14200 = vpop.f32.mrf.mxu0
  %v14201 = vpop.f32.mrf.mxu0
  %v14202 = vadd.f32 0.0, %v14201
  %v14203 = vpop.f32.mrf.mxu0
  %14204 = vmatprep.mubr.bf16.mxu0 %v12523
  %14205 = vmatmul.mubr.bf16.gmra.mxu0 %v12395
  %v14206 = vpop.f32.mrf.mxu0
  %v14207 = vadd.f32 0.0, %v14206
  %v14208 = vpop.f32.mrf.mxu0
  %v14209 = vpop.f32.mrf.mxu0
  %v14210 = vadd.f32 0.0, %v14209
  %v14211 = vpop.f32.mrf.mxu0
  %14212 = vmatprep.mubr.bf16.mxu0 %v12524
  %14213 = vmatmul.mubr.bf16.gmra.mxu0 %v12396
  %v14214 = vpop.f32.mrf.mxu0
  %v14215 = vadd.f32 0.0, %v14214
  %v14216 = vpop.f32.mrf.mxu0
  %v14217 = vpop.f32.mrf.mxu0
  %v14218 = vadd.f32 0.0, %v14217
  %v14219 = vpop.f32.mrf.mxu0
  %14220 = vmatprep.mubr.bf16.mxu0 %v12525
  %14221 = vmatmul.mubr.bf16.gmra.mxu0 %v12397
  %v14222 = vpop.f32.mrf.mxu0
  %v14223 = vadd.f32 0.0, %v14222
  %v14224 = vpop.f32.mrf.mxu0
  %v14225 = vpop.f32.mrf.mxu0
  %v14226 = vadd.f32 0.0, %v14225
  %v14227 = vpop.f32.mrf.mxu0
  %14228 = vmatprep.mubr.bf16.mxu0 %v12526
  %14229 = vmatmul.mubr.bf16.gmra.mxu0 %v12398
  %v14230 = vpop.f32.mrf.mxu0
  %v14231 = vadd.f32 0.0, %v14230
  %v14232 = vpop.f32.mrf.mxu0
  %v14233 = vpop.f32.mrf.mxu0
  %v14234 = vadd.f32 0.0, %v14233
  %v14235 = vpop.f32.mrf.mxu0
  %14236 = vmatprep.mubr.bf16.mxu0 %v12527
  %14237 = vmatmul.mubr.bf16.gmra.mxu0 %v12399
  %v14238 = vpop.f32.mrf.mxu0
  %v14239 = vadd.f32 0.0, %v14238
  %v14240 = vpop.f32.mrf.mxu0
  %v14241 = vpop.f32.mrf.mxu0
  %v14242 = vadd.f32 0.0, %v14241
  %v14243 = vpop.f32.mrf.mxu0
  %14244 = vmatprep.mubr.bf16.mxu0 %v12528
  %14245 = vmatmul.mubr.bf16.gmra.mxu0 %v12400
  %v14246 = vpop.f32.mrf.mxu0
  %v14247 = vadd.f32 0.0, %v14246
  %v14248 = vpop.f32.mrf.mxu0
  %v14249 = vpop.f32.mrf.mxu0
  %v14250 = vadd.f32 0.0, %v14249
  %v14251 = vpop.f32.mrf.mxu0
  %14252 = vmatprep.mubr.bf16.mxu0 %v12529
  %14253 = vmatmul.mubr.bf16.gmra.mxu0 %v12401
  %v14254 = vpop.f32.mrf.mxu0
  %v14255 = vadd.f32 0.0, %v14254
  %v14256 = vpop.f32.mrf.mxu0
  %v14257 = vpop.f32.mrf.mxu0
  %v14258 = vadd.f32 0.0, %v14257
  %v14259 = vpop.f32.mrf.mxu0
  %14260 = vmatprep.mubr.bf16.mxu0 %v12530
  %14261 = vmatmul.mubr.bf16.gmra.mxu0 %v12402
  %v14262 = vpop.f32.mrf.mxu0
  %v14263 = vadd.f32 0.0, %v14262
  %v14264 = vpop.f32.mrf.mxu0
  %v14265 = vpop.f32.mrf.mxu0
  %v14266 = vadd.f32 0.0, %v14265
  %v14267 = vpop.f32.mrf.mxu0
  %14268 = vmatprep.mubr.bf16.mxu0 %v12531
  %14269 = vmatmul.mubr.bf16.gmra.mxu0 %v12403
  %v14270 = vpop.f32.mrf.mxu0
  %v14271 = vadd.f32 0.0, %v14270
  %v14272 = vpop.f32.mrf.mxu0
  %v14273 = vpop.f32.mrf.mxu0
  %v14274 = vadd.f32 0.0, %v14273
  %v14275 = vpop.f32.mrf.mxu0
  %14276 = vmatprep.mubr.bf16.mxu0 %v12532
  %14277 = vmatmul.mubr.bf16.gmra.mxu0 %v12404
  %v14278 = vpop.f32.mrf.mxu0
  %v14279 = vadd.f32 0.0, %v14278
  %v14280 = vpop.f32.mrf.mxu0
  %v14281 = vpop.f32.mrf.mxu0
  %v14282 = vadd.f32 0.0, %v14281
  %v14283 = vpop.f32.mrf.mxu0
  %14284 = vmatprep.mubr.bf16.mxu0 %v12533
  %14285 = vmatmul.mubr.bf16.gmra.mxu0 %v12405
  %v14286 = vpop.f32.mrf.mxu0
  %v14287 = vadd.f32 0.0, %v14286
  %v14288 = vpop.f32.mrf.mxu0
  %v14289 = vpop.f32.mrf.mxu0
  %v14290 = vadd.f32 0.0, %v14289
  %v14291 = vpop.f32.mrf.mxu0
  %14292 = vmatprep.mubr.bf16.mxu0 %v12534
  %14293 = vmatmul.mubr.bf16.gmra.mxu0 %v12406
  %v14294 = vpop.f32.mrf.mxu0
  %v14295 = vadd.f32 0.0, %v14294
  %v14296 = vpop.f32.mrf.mxu0
  %v14297 = vpop.f32.mrf.mxu0
  %v14298 = vadd.f32 0.0, %v14297
  %v14299 = vpop.f32.mrf.mxu0
  %14300 = vmatprep.mubr.bf16.mxu0 %v12535
  %14301 = vmatmul.mubr.bf16.gmra.mxu0 %v12407
  %v14302 = vpop.f32.mrf.mxu0
  %v14303 = vadd.f32 0.0, %v14302
  %v14304 = vpop.f32.mrf.mxu0
  %v14305 = vpop.f32.mrf.mxu0
  %v14306 = vadd.f32 0.0, %v14305
  %v14307 = vpop.f32.mrf.mxu0
  %14308 = vmatprep.mubr.bf16.mxu0 %v12536
  %14309 = vmatmul.mubr.bf16.gmra.mxu0 %v12408
  %v14310 = vpop.f32.mrf.mxu0
  %v14311 = vadd.f32 0.0, %v14310
  %v14312 = vpop.f32.mrf.mxu0
  %v14313 = vpop.f32.mrf.mxu0
  %v14314 = vadd.f32 0.0, %v14313
  %v14315 = vpop.f32.mrf.mxu0
  %14316 = vmatprep.mubr.bf16.mxu0 %v12537
  %14317 = vmatmul.mubr.bf16.gmra.mxu0 %v12409
  %v14318 = vpop.f32.mrf.mxu0
  %v14319 = vadd.f32 0.0, %v14318
  %v14320 = vpop.f32.mrf.mxu0
  %v14321 = vpop.f32.mrf.mxu0
  %v14322 = vadd.f32 0.0, %v14321
  %v14323 = vpop.f32.mrf.mxu0
  %14324 = vmatprep.mubr.bf16.mxu0 %v12538
  %14325 = vmatmul.mubr.bf16.gmra.mxu0 %v12410
  %v14326 = vpop.f32.mrf.mxu0
  %v14327 = vadd.f32 0.0, %v14326
  %v14328 = vpop.f32.mrf.mxu0
  %v14329 = vpop.f32.mrf.mxu0
  %v14330 = vadd.f32 0.0, %v14329
  %v14331 = vpop.f32.mrf.mxu0
  %14332 = vmatprep.mubr.bf16.mxu0 %v12539
  %14333 = vmatmul.mubr.bf16.gmra.mxu0 %v12411
  %v14334 = vpop.f32.mrf.mxu0
  %v14335 = vadd.f32 0.0, %v14334
  %v14336 = vpop.f32.mrf.mxu0
  %v14337 = vpop.f32.mrf.mxu0
  %v14338 = vadd.f32 0.0, %v14337
  %v14339 = vpop.f32.mrf.mxu0
  %14340 = vmatprep.mubr.bf16.mxu0 %v12540
  %14341 = vmatmul.mubr.bf16.gmra.mxu0 %v12412
  %v14342 = vpop.f32.mrf.mxu0
  %v14343 = vadd.f32 0.0, %v14342
  %v14344 = vpop.f32.mrf.mxu0
  %v14345 = vpop.f32.mrf.mxu0
  %v14346 = vadd.f32 0.0, %v14345
  %v14347 = vpop.f32.mrf.mxu0
  %14348 = vmatprep.mubr.bf16.mxu0 %v12541
  %14349 = vmatmul.mubr.bf16.gmra.mxu0 %v12413
  %v14350 = vpop.f32.mrf.mxu0
  %v14351 = vadd.f32 0.0, %v14350
  %v14352 = vpop.f32.mrf.mxu0
  %v14353 = vpop.f32.mrf.mxu0
  %v14354 = vadd.f32 0.0, %v14353
  %v14355 = vpop.f32.mrf.mxu0
  %14356 = vmatprep.mubr.bf16.mxu0 %v12542
  %14357 = vmatmul.mubr.bf16.gmra.mxu0 %v12414
  %v14358 = vpop.f32.mrf.mxu0
  %v14359 = vadd.f32 0.0, %v14358
  %v14360 = vpop.f32.mrf.mxu0
  %v14361 = vpop.f32.mrf.mxu0
  %v14362 = vadd.f32 0.0, %v14361
  %v14363 = vpop.f32.mrf.mxu0
  %14364 = vmatprep.mubr.bf16.mxu0 %v12543
  %14365 = vmatmul.mubr.bf16.gmra.mxu0 %v12415
  %v14366 = vpop.f32.mrf.mxu0
  %v14367 = vadd.f32 0.0, %v14366
  %v14368 = vpop.f32.mrf.mxu0
  %v14369 = vpop.f32.mrf.mxu0
  %v14370 = vadd.f32 0.0, %v14369
  %v14371 = vpop.f32.mrf.mxu0
  %14372 = vmatprep.mubr.bf16.mxu0 %v12544
  %14373 = vmatmul.mubr.bf16.gmra.mxu0 %v12416
  %v14374 = vpop.f32.mrf.mxu0
  %v14375 = vadd.f32 0.0, %v14374
  %v14376 = vpop.f32.mrf.mxu0
  %v14377 = vpop.f32.mrf.mxu0
  %v14378 = vadd.f32 0.0, %v14377
  %v14379 = vpop.f32.mrf.mxu0
  %14380 = vmatprep.mubr.bf16.mxu0 %v12545
  %14381 = vmatmul.mubr.bf16.gmra.mxu0 %v12417
  %v14382 = vpop.f32.mrf.mxu0
  %v14383 = vadd.f32 0.0, %v14382
  %v14384 = vpop.f32.mrf.mxu0
  %v14385 = vpop.f32.mrf.mxu0
  %v14386 = vadd.f32 0.0, %v14385
  %v14387 = vpop.f32.mrf.mxu0
  %14388 = vmatprep.mubr.bf16.mxu0 %v12546
  %14389 = vmatmul.mubr.bf16.gmra.mxu0 %v12418
  %v14390 = vpop.f32.mrf.mxu0
  %v14391 = vadd.f32 0.0, %v14390
  %v14392 = vpop.f32.mrf.mxu0
  %v14393 = vpop.f32.mrf.mxu0
  %v14394 = vadd.f32 0.0, %v14393
  %v14395 = vpop.f32.mrf.mxu0
  %14396 = vmatprep.mubr.bf16.mxu0 %v12547
  %14397 = vmatmul.mubr.bf16.gmra.mxu0 %v12419
  %v14398 = vpop.f32.mrf.mxu0
  %v14399 = vadd.f32 0.0, %v14398
  %v14400 = vpop.f32.mrf.mxu0
  %v14401 = vpop.f32.mrf.mxu0
  %v14402 = vadd.f32 0.0, %v14401
  %v14403 = vpop.f32.mrf.mxu0
  %14404 = vdwg.mxu0
  %14405 = vmatprep.subr.bf16.mxu0 0
  %14406 = vmatpush1.bf16.msra.mxu0 %v13995
  %14407 = vmatprep.subr.bf16.mxu0 0
  %14408 = vmatpush1.bf16.msra.mxu0 %v13994
  %14409 = vmatprep.subr.bf16.mxu0 0
  %14410 = vmatpush1.bf16.msra.mxu0 %v13993
  %14411 = vmatprep.subr.bf16.mxu0 0
  %14412 = vmatpush1.bf16.msra.mxu0 %v13992
  %14413 = vmatprep.subr.bf16.mxu0 0
  %14414 = vmatpush1.bf16.msra.mxu0 %v13991
  %14415 = vmatprep.subr.bf16.mxu0 0
  %14416 = vmatpush1.bf16.msra.mxu0 %v13990
  %14417 = vmatprep.subr.bf16.mxu0 0
  %14418 = vmatpush1.bf16.msra.mxu0 %v13989
  %14419 = vmatprep.subr.bf16.mxu0 0
  %14420 = vmatpush1.bf16.msra.mxu0 %v13988
  %14421 = vmatprep.subr.bf16.mxu0 0
  %14422 = vmatpush2.bf16.msra.mxu0 %v14003
  %14423 = vmatprep.subr.bf16.mxu0 0
  %14424 = vmatpush2.bf16.msra.mxu0 %v14002
  %14425 = vmatprep.subr.bf16.mxu0 0
  %14426 = vmatpush2.bf16.msra.mxu0 %v14001
  %14427 = vmatprep.subr.bf16.mxu0 0
  %14428 = vmatpush2.bf16.msra.mxu0 %v14000
  %14429 = vmatprep.subr.bf16.mxu0 0
  %14430 = vmatpush2.bf16.msra.mxu0 %v13999
  %14431 = vmatprep.subr.bf16.mxu0 0
  %14432 = vmatpush2.bf16.msra.mxu0 %v13998
  %14433 = vmatprep.subr.bf16.mxu0 0
  %14434 = vmatpush2.bf16.msra.mxu0 %v13997
  %14435 = vmatprep.subr.bf16.mxu0 0
  %14436 = vmatpush2.bf16.msra.mxu0 %v13996
  %14437 = vmatprep.mubr.bf16.mxu0 %v12804
  %14438 = vmatmul.mubr.bf16.gmra.mxu0 %v12644
  %v14439 = vpop.f32.mrf.mxu0
  %v14440 = vadd.f32 %v14151, %v14439
  %v14441 = vpop.f32.mrf.mxu0
  %v14442 = vpop.f32.mrf.mxu0
  %v14443 = vadd.f32 %v14154, %v14442
  %v14444 = vpop.f32.mrf.mxu0
  %14445 = vmatprep.mubr.bf16.mxu0 %v12805
  %14446 = vmatmul.mubr.bf16.gmra.mxu0 %v12645
  %v14447 = vpop.f32.mrf.mxu0
  %v14448 = vadd.f32 %v14159, %v14447
  %v14449 = vpop.f32.mrf.mxu0
  %v14450 = vpop.f32.mrf.mxu0
  %v14451 = vadd.f32 %v14162, %v14450
  %v14452 = vpop.f32.mrf.mxu0
  %14453 = vmatprep.mubr.bf16.mxu0 %v12806
  %14454 = vmatmul.mubr.bf16.gmra.mxu0 %v12646
  %v14455 = vpop.f32.mrf.mxu0
  %v14456 = vadd.f32 %v14167, %v14455
  %v14457 = vpop.f32.mrf.mxu0
  %v14458 = vpop.f32.mrf.mxu0
  %v14459 = vadd.f32 %v14170, %v14458
  %v14460 = vpop.f32.mrf.mxu0
  %14461 = vmatprep.mubr.bf16.mxu0 %v12807
  %14462 = vmatmul.mubr.bf16.gmra.mxu0 %v12647
  %v14463 = vpop.f32.mrf.mxu0
  %v14464 = vadd.f32 %v14175, %v14463
  %v14465 = vpop.f32.mrf.mxu0
  %v14466 = vpop.f32.mrf.mxu0
  %v14467 = vadd.f32 %v14178, %v14466
  %v14468 = vpop.f32.mrf.mxu0
  %14469 = vmatprep.mubr.bf16.mxu0 %v12808
  %14470 = vmatmul.mubr.bf16.gmra.mxu0 %v12648
  %v14471 = vpop.f32.mrf.mxu0
  %v14472 = vadd.f32 %v14183, %v14471
  %v14473 = vpop.f32.mrf.mxu0
  %v14474 = vpop.f32.mrf.mxu0
  %v14475 = vadd.f32 %v14186, %v14474
  %v14476 = vpop.f32.mrf.mxu0
  %14477 = vmatprep.mubr.bf16.mxu0 %v12809
  %14478 = vmatmul.mubr.bf16.gmra.mxu0 %v12649
  %v14479 = vpop.f32.mrf.mxu0
  %v14480 = vadd.f32 %v14191, %v14479
  %v14481 = vpop.f32.mrf.mxu0
  %v14482 = vpop.f32.mrf.mxu0
  %v14483 = vadd.f32 %v14194, %v14482
  %v14484 = vpop.f32.mrf.mxu0
  %14485 = vmatprep.mubr.bf16.mxu0 %v12810
  %14486 = vmatmul.mubr.bf16.gmra.mxu0 %v12650
  %v14487 = vpop.f32.mrf.mxu0
  %v14488 = vadd.f32 %v14199, %v14487
  %v14489 = vpop.f32.mrf.mxu0
  %v14490 = vpop.f32.mrf.mxu0
  %v14491 = vadd.f32 %v14202, %v14490
  %v14492 = vpop.f32.mrf.mxu0
  %14493 = vmatprep.mubr.bf16.mxu0 %v12811
  %14494 = vmatmul.mubr.bf16.gmra.mxu0 %v12651
  %v14495 = vpop.f32.mrf.mxu0
  %v14496 = vadd.f32 %v14207, %v14495
  %v14497 = vpop.f32.mrf.mxu0
  %v14498 = vpop.f32.mrf.mxu0
  %v14499 = vadd.f32 %v14210, %v14498
  %v14500 = vpop.f32.mrf.mxu0
  %14501 = vmatprep.mubr.bf16.mxu0 %v12812
  %14502 = vmatmul.mubr.bf16.gmra.mxu0 %v12652
  %v14503 = vpop.f32.mrf.mxu0
  %v14504 = vadd.f32 %v14215, %v14503
  %v14505 = vpop.f32.mrf.mxu0
  %v14506 = vpop.f32.mrf.mxu0
  %v14507 = vadd.f32 %v14218, %v14506
  %v14508 = vpop.f32.mrf.mxu0
  %14509 = vmatprep.mubr.bf16.mxu0 %v12813
  %14510 = vmatmul.mubr.bf16.gmra.mxu0 %v12653
  %v14511 = vpop.f32.mrf.mxu0
  %v14512 = vadd.f32 %v14223, %v14511
  %v14513 = vpop.f32.mrf.mxu0
  %v14514 = vpop.f32.mrf.mxu0
  %v14515 = vadd.f32 %v14226, %v14514
  %v14516 = vpop.f32.mrf.mxu0
  %14517 = vmatprep.mubr.bf16.mxu0 %v12814
  %14518 = vmatmul.mubr.bf16.gmra.mxu0 %v12654
  %v14519 = vpop.f32.mrf.mxu0
  %v14520 = vadd.f32 %v14231, %v14519
  %v14521 = vpop.f32.mrf.mxu0
  %v14522 = vpop.f32.mrf.mxu0
  %v14523 = vadd.f32 %v14234, %v14522
  %v14524 = vpop.f32.mrf.mxu0
  %14525 = vmatprep.mubr.bf16.mxu0 %v12815
  %14526 = vmatmul.mubr.bf16.gmra.mxu0 %v12655
  %v14527 = vpop.f32.mrf.mxu0
  %v14528 = vadd.f32 %v14239, %v14527
  %v14529 = vpop.f32.mrf.mxu0
  %v14530 = vpop.f32.mrf.mxu0
  %v14531 = vadd.f32 %v14242, %v14530
  %v14532 = vpop.f32.mrf.mxu0
  %14533 = vmatprep.mubr.bf16.mxu0 %v12816
  %14534 = vmatmul.mubr.bf16.gmra.mxu0 %v12656
  %v14535 = vpop.f32.mrf.mxu0
  %v14536 = vadd.f32 %v14247, %v14535
  %v14537 = vpop.f32.mrf.mxu0
  %v14538 = vpop.f32.mrf.mxu0
  %v14539 = vadd.f32 %v14250, %v14538
  %v14540 = vpop.f32.mrf.mxu0
  %14541 = vmatprep.mubr.bf16.mxu0 %v12817
  %14542 = vmatmul.mubr.bf16.gmra.mxu0 %v12657
  %v14543 = vpop.f32.mrf.mxu0
  %v14544 = vadd.f32 %v14255, %v14543
  %v14545 = vpop.f32.mrf.mxu0
  %v14546 = vpop.f32.mrf.mxu0
  %v14547 = vadd.f32 %v14258, %v14546
  %v14548 = vpop.f32.mrf.mxu0
  %14549 = vmatprep.mubr.bf16.mxu0 %v12818
  %14550 = vmatmul.mubr.bf16.gmra.mxu0 %v12658
  %v14551 = vpop.f32.mrf.mxu0
  %v14552 = vadd.f32 %v14263, %v14551
  %v14553 = vpop.f32.mrf.mxu0
  %v14554 = vpop.f32.mrf.mxu0
  %v14555 = vadd.f32 %v14266, %v14554
  %v14556 = vpop.f32.mrf.mxu0
  %14557 = vmatprep.mubr.bf16.mxu0 %v12819
  %14558 = vmatmul.mubr.bf16.gmra.mxu0 %v12659
  %v14559 = vpop.f32.mrf.mxu0
  %v14560 = vadd.f32 %v14271, %v14559
  %v14561 = vpop.f32.mrf.mxu0
  %v14562 = vpop.f32.mrf.mxu0
  %v14563 = vadd.f32 %v14274, %v14562
  %v14564 = vpop.f32.mrf.mxu0
  %14565 = vmatprep.mubr.bf16.mxu0 %v12820
  %14566 = vmatmul.mubr.bf16.gmra.mxu0 %v12660
  %v14567 = vpop.f32.mrf.mxu0
  %v14568 = vadd.f32 %v14279, %v14567
  %v14569 = vpop.f32.mrf.mxu0
  %v14570 = vpop.f32.mrf.mxu0
  %v14571 = vadd.f32 %v14282, %v14570
  %v14572 = vpop.f32.mrf.mxu0
  %14573 = vmatprep.mubr.bf16.mxu0 %v12821
  %14574 = vmatmul.mubr.bf16.gmra.mxu0 %v12661
  %v14575 = vpop.f32.mrf.mxu0
  %v14576 = vadd.f32 %v14287, %v14575
  %v14577 = vpop.f32.mrf.mxu0
  %v14578 = vpop.f32.mrf.mxu0
  %v14579 = vadd.f32 %v14290, %v14578
  %v14580 = vpop.f32.mrf.mxu0
  %14581 = vmatprep.mubr.bf16.mxu0 %v12822
  %14582 = vmatmul.mubr.bf16.gmra.mxu0 %v12662
  %v14583 = vpop.f32.mrf.mxu0
  %v14584 = vadd.f32 %v14295, %v14583
  %v14585 = vpop.f32.mrf.mxu0
  %v14586 = vpop.f32.mrf.mxu0
  %v14587 = vadd.f32 %v14298, %v14586
  %v14588 = vpop.f32.mrf.mxu0
  %14589 = vmatprep.mubr.bf16.mxu0 %v12823
  %14590 = vmatmul.mubr.bf16.gmra.mxu0 %v12663
  %v14591 = vpop.f32.mrf.mxu0
  %v14592 = vadd.f32 %v14303, %v14591
  %v14593 = vpop.f32.mrf.mxu0
  %v14594 = vpop.f32.mrf.mxu0
  %v14595 = vadd.f32 %v14306, %v14594
  %v14596 = vpop.f32.mrf.mxu0
  %14597 = vmatprep.mubr.bf16.mxu0 %v12824
  %14598 = vmatmul.mubr.bf16.gmra.mxu0 %v12664
  %v14599 = vpop.f32.mrf.mxu0
  %v14600 = vadd.f32 %v14311, %v14599
  %v14601 = vpop.f32.mrf.mxu0
  %v14602 = vpop.f32.mrf.mxu0
  %v14603 = vadd.f32 %v14314, %v14602
  %v14604 = vpop.f32.mrf.mxu0
  %14605 = vmatprep.mubr.bf16.mxu0 %v12825
  %14606 = vmatmul.mubr.bf16.gmra.mxu0 %v12665
  %v14607 = vpop.f32.mrf.mxu0
  %v14608 = vadd.f32 %v14319, %v14607
  %v14609 = vpop.f32.mrf.mxu0
  %v14610 = vpop.f32.mrf.mxu0
  %v14611 = vadd.f32 %v14322, %v14610
  %v14612 = vpop.f32.mrf.mxu0
  %14613 = vmatprep.mubr.bf16.mxu0 %v12826
  %14614 = vmatmul.mubr.bf16.gmra.mxu0 %v12666
  %v14615 = vpop.f32.mrf.mxu0
  %v14616 = vadd.f32 %v14327, %v14615
  %v14617 = vpop.f32.mrf.mxu0
  %v14618 = vpop.f32.mrf.mxu0
  %v14619 = vadd.f32 %v14330, %v14618
  %v14620 = vpop.f32.mrf.mxu0
  %14621 = vmatprep.mubr.bf16.mxu0 %v12827
  %14622 = vmatmul.mubr.bf16.gmra.mxu0 %v12667
  %v14623 = vpop.f32.mrf.mxu0
  %v14624 = vadd.f32 %v14335, %v14623
  %v14625 = vpop.f32.mrf.mxu0
  %v14626 = vpop.f32.mrf.mxu0
  %v14627 = vadd.f32 %v14338, %v14626
  %v14628 = vpop.f32.mrf.mxu0
  %14629 = vmatprep.mubr.bf16.mxu0 %v12828
  %14630 = vmatmul.mubr.bf16.gmra.mxu0 %v12668
  %v14631 = vpop.f32.mrf.mxu0
  %v14632 = vadd.f32 %v14343, %v14631
  %v14633 = vpop.f32.mrf.mxu0
  %v14634 = vpop.f32.mrf.mxu0
  %v14635 = vadd.f32 %v14346, %v14634
  %v14636 = vpop.f32.mrf.mxu0
  %14637 = vmatprep.mubr.bf16.mxu0 %v12829
  %14638 = vmatmul.mubr.bf16.gmra.mxu0 %v12669
  %v14639 = vpop.f32.mrf.mxu0
  %v14640 = vadd.f32 %v14351, %v14639
  %v14641 = vpop.f32.mrf.mxu0
  %v14642 = vpop.f32.mrf.mxu0
  %v14643 = vadd.f32 %v14354, %v14642
  %v14644 = vpop.f32.mrf.mxu0
  %14645 = vmatprep.mubr.bf16.mxu0 %v12830
  %14646 = vmatmul.mubr.bf16.gmra.mxu0 %v12670
  %v14647 = vpop.f32.mrf.mxu0
  %v14648 = vadd.f32 %v14359, %v14647
  %v14649 = vpop.f32.mrf.mxu0
  %v14650 = vpop.f32.mrf.mxu0
  %v14651 = vadd.f32 %v14362, %v14650
  %v14652 = vpop.f32.mrf.mxu0
  %14653 = vmatprep.mubr.bf16.mxu0 %v12831
  %14654 = vmatmul.mubr.bf16.gmra.mxu0 %v12671
  %v14655 = vpop.f32.mrf.mxu0
  %v14656 = vadd.f32 %v14367, %v14655
  %v14657 = vpop.f32.mrf.mxu0
  %v14658 = vpop.f32.mrf.mxu0
  %v14659 = vadd.f32 %v14370, %v14658
  %v14660 = vpop.f32.mrf.mxu0
  %14661 = vmatprep.mubr.bf16.mxu0 %v12832
  %14662 = vmatmul.mubr.bf16.gmra.mxu0 %v12672
  %v14663 = vpop.f32.mrf.mxu0
  %v14664 = vadd.f32 %v14375, %v14663
  %v14665 = vpop.f32.mrf.mxu0
  %v14666 = vpop.f32.mrf.mxu0
  %v14667 = vadd.f32 %v14378, %v14666
  %v14668 = vpop.f32.mrf.mxu0
  %14669 = vmatprep.mubr.bf16.mxu0 %v12833
  %14670 = vmatmul.mubr.bf16.gmra.mxu0 %v12673
  %v14671 = vpop.f32.mrf.mxu0
  %v14672 = vadd.f32 %v14383, %v14671
  %v14673 = vpop.f32.mrf.mxu0
  %v14674 = vpop.f32.mrf.mxu0
  %v14675 = vadd.f32 %v14386, %v14674
  %v14676 = vpop.f32.mrf.mxu0
  %14677 = vmatprep.mubr.bf16.mxu0 %v12834
  %14678 = vmatmul.mubr.bf16.gmra.mxu0 %v12674
  %v14679 = vpop.f32.mrf.mxu0
  %v14680 = vadd.f32 %v14391, %v14679
  %v14681 = vpop.f32.mrf.mxu0
  %v14682 = vpop.f32.mrf.mxu0
  %v14683 = vadd.f32 %v14394, %v14682
  %v14684 = vpop.f32.mrf.mxu0
  %14685 = vmatprep.mubr.bf16.mxu0 %v12835
  %14686 = vmatmul.mubr.bf16.gmra.mxu0 %v12675
  %v14687 = vpop.f32.mrf.mxu0
  %v14688 = vadd.f32 %v14399, %v14687
  %v14689 = vpop.f32.mrf.mxu0
  %v14690 = vpop.f32.mrf.mxu0
  %v14691 = vadd.f32 %v14402, %v14690
  %v14692 = vpop.f32.mrf.mxu0
  %14693 = vdwg.mxu0
  %14694 = vmatprep.subr.bf16.mxu0 0
  %14695 = vmatpush1.bf16.msra.mxu0 %v14011
  %14696 = vmatprep.subr.bf16.mxu0 0
  %14697 = vmatpush1.bf16.msra.mxu0 %v14010
  %14698 = vmatprep.subr.bf16.mxu0 0
  %14699 = vmatpush1.bf16.msra.mxu0 %v14009
  %14700 = vmatprep.subr.bf16.mxu0 0
  %14701 = vmatpush1.bf16.msra.mxu0 %v14008
  %14702 = vmatprep.subr.bf16.mxu0 0
  %14703 = vmatpush1.bf16.msra.mxu0 %v14007
  %14704 = vmatprep.subr.bf16.mxu0 0
  %14705 = vmatpush1.bf16.msra.mxu0 %v14006
  %14706 = vmatprep.subr.bf16.mxu0 0
  %14707 = vmatpush1.bf16.msra.mxu0 %v14005
  %14708 = vmatprep.subr.bf16.mxu0 0
  %14709 = vmatpush1.bf16.msra.mxu0 %v14004
  %14710 = vmatprep.subr.bf16.mxu0 0
  %14711 = vmatpush2.bf16.msra.mxu0 %v14019
  %14712 = vmatprep.subr.bf16.mxu0 0
  %14713 = vmatpush2.bf16.msra.mxu0 %v14018
  %14714 = vmatprep.subr.bf16.mxu0 0
  %14715 = vmatpush2.bf16.msra.mxu0 %v14017
  %14716 = vmatprep.subr.bf16.mxu0 0
  %14717 = vmatpush2.bf16.msra.mxu0 %v14016
  %14718 = vmatprep.subr.bf16.mxu0 0
  %14719 = vmatpush2.bf16.msra.mxu0 %v14015
  %14720 = vmatprep.subr.bf16.mxu0 0
  %14721 = vmatpush2.bf16.msra.mxu0 %v14014
  %14722 = vmatprep.subr.bf16.mxu0 0
  %14723 = vmatpush2.bf16.msra.mxu0 %v14013
  %14724 = vmatprep.subr.bf16.mxu0 0
  %14725 = vmatpush2.bf16.msra.mxu0 %v14012
  %14726 = vmatprep.mubr.bf16.mxu0 %v13060
  %14727 = vmatmul.mubr.bf16.gmra.mxu0 %v12932
  %v14728 = vpop.f32.mrf.mxu0
  %v14729 = vadd.f32 %v14440, %v14728
  %v14730 = vpop.f32.mrf.mxu0
  %v14731 = vpop.f32.mrf.mxu0
  %v14732 = vadd.f32 %v14443, %v14731
  %v14733 = vpop.f32.mrf.mxu0
  %14734 = vmatprep.mubr.bf16.mxu0 %v13061
  %14735 = vmatmul.mubr.bf16.gmra.mxu0 %v12933
  %v14736 = vpop.f32.mrf.mxu0
  %v14737 = vadd.f32 %v14448, %v14736
  %v14738 = vpop.f32.mrf.mxu0
  %v14739 = vpop.f32.mrf.mxu0
  %v14740 = vadd.f32 %v14451, %v14739
  %v14741 = vpop.f32.mrf.mxu0
  %14742 = vmatprep.mubr.bf16.mxu0 %v13062
  %14743 = vmatmul.mubr.bf16.gmra.mxu0 %v12934
  %v14744 = vpop.f32.mrf.mxu0
  %v14745 = vadd.f32 %v14456, %v14744
  %v14746 = vpop.f32.mrf.mxu0
  %v14747 = vpop.f32.mrf.mxu0
  %v14748 = vadd.f32 %v14459, %v14747
  %v14749 = vpop.f32.mrf.mxu0
  %14750 = vmatprep.mubr.bf16.mxu0 %v13063
  %14751 = vmatmul.mubr.bf16.gmra.mxu0 %v12935
  %v14752 = vpop.f32.mrf.mxu0
  %v14753 = vadd.f32 %v14464, %v14752
  %v14754 = vpop.f32.mrf.mxu0
  %v14755 = vpop.f32.mrf.mxu0
  %v14756 = vadd.f32 %v14467, %v14755
  %v14757 = vpop.f32.mrf.mxu0
  %14758 = vmatprep.mubr.bf16.mxu0 %v13064
  %14759 = vmatmul.mubr.bf16.gmra.mxu0 %v12936
  %v14760 = vpop.f32.mrf.mxu0
  %v14761 = vadd.f32 %v14472, %v14760
  %v14762 = vpop.f32.mrf.mxu0
  %v14763 = vpop.f32.mrf.mxu0
  %v14764 = vadd.f32 %v14475, %v14763
  %v14765 = vpop.f32.mrf.mxu0
  %14766 = vmatprep.mubr.bf16.mxu0 %v13065
  %14767 = vmatmul.mubr.bf16.gmra.mxu0 %v12937
  %v14768 = vpop.f32.mrf.mxu0
  %v14769 = vadd.f32 %v14480, %v14768
  %v14770 = vpop.f32.mrf.mxu0
  %v14771 = vpop.f32.mrf.mxu0
  %v14772 = vadd.f32 %v14483, %v14771
  %v14773 = vpop.f32.mrf.mxu0
  %14774 = vmatprep.mubr.bf16.mxu0 %v13066
  %14775 = vmatmul.mubr.bf16.gmra.mxu0 %v12938
  %v14776 = vpop.f32.mrf.mxu0
  %v14777 = vadd.f32 %v14488, %v14776
  %v14778 = vpop.f32.mrf.mxu0
  %v14779 = vpop.f32.mrf.mxu0
  %v14780 = vadd.f32 %v14491, %v14779
  %v14781 = vpop.f32.mrf.mxu0
  %14782 = vmatprep.mubr.bf16.mxu0 %v13067
  %14783 = vmatmul.mubr.bf16.gmra.mxu0 %v12939
  %v14784 = vpop.f32.mrf.mxu0
  %v14785 = vadd.f32 %v14496, %v14784
  %v14786 = vpop.f32.mrf.mxu0
  %v14787 = vpop.f32.mrf.mxu0
  %v14788 = vadd.f32 %v14499, %v14787
  %v14789 = vpop.f32.mrf.mxu0
  %14790 = vmatprep.mubr.bf16.mxu0 %v13068
  %14791 = vmatmul.mubr.bf16.gmra.mxu0 %v12940
  %v14792 = vpop.f32.mrf.mxu0
  %v14793 = vadd.f32 %v14504, %v14792
  %v14794 = vpop.f32.mrf.mxu0
  %v14795 = vpop.f32.mrf.mxu0
  %v14796 = vadd.f32 %v14507, %v14795
  %v14797 = vpop.f32.mrf.mxu0
  %14798 = vmatprep.mubr.bf16.mxu0 %v13069
  %14799 = vmatmul.mubr.bf16.gmra.mxu0 %v12941
  %v14800 = vpop.f32.mrf.mxu0
  %v14801 = vadd.f32 %v14512, %v14800
  %v14802 = vpop.f32.mrf.mxu0
  %v14803 = vpop.f32.mrf.mxu0
  %v14804 = vadd.f32 %v14515, %v14803
  %v14805 = vpop.f32.mrf.mxu0
  %14806 = vmatprep.mubr.bf16.mxu0 %v13070
  %14807 = vmatmul.mubr.bf16.gmra.mxu0 %v12942
  %v14808 = vpop.f32.mrf.mxu0
  %v14809 = vadd.f32 %v14520, %v14808
  %v14810 = vpop.f32.mrf.mxu0
  %v14811 = vpop.f32.mrf.mxu0
  %v14812 = vadd.f32 %v14523, %v14811
  %v14813 = vpop.f32.mrf.mxu0
  %14814 = vmatprep.mubr.bf16.mxu0 %v13071
  %14815 = vmatmul.mubr.bf16.gmra.mxu0 %v12943
  %v14816 = vpop.f32.mrf.mxu0
  %v14817 = vadd.f32 %v14528, %v14816
  %v14818 = vpop.f32.mrf.mxu0
  %v14819 = vpop.f32.mrf.mxu0
  %v14820 = vadd.f32 %v14531, %v14819
  %v14821 = vpop.f32.mrf.mxu0
  %14822 = vmatprep.mubr.bf16.mxu0 %v13072
  %14823 = vmatmul.mubr.bf16.gmra.mxu0 %v12944
  %v14824 = vpop.f32.mrf.mxu0
  %v14825 = vadd.f32 %v14536, %v14824
  %v14826 = vpop.f32.mrf.mxu0
  %v14827 = vpop.f32.mrf.mxu0
  %v14828 = vadd.f32 %v14539, %v14827
  %v14829 = vpop.f32.mrf.mxu0
  %14830 = vmatprep.mubr.bf16.mxu0 %v13073
  %14831 = vmatmul.mubr.bf16.gmra.mxu0 %v12945
  %v14832 = vpop.f32.mrf.mxu0
  %v14833 = vadd.f32 %v14544, %v14832
  %v14834 = vpop.f32.mrf.mxu0
  %v14835 = vpop.f32.mrf.mxu0
  %v14836 = vadd.f32 %v14547, %v14835
  %v14837 = vpop.f32.mrf.mxu0
  %14838 = vmatprep.mubr.bf16.mxu0 %v13074
  %14839 = vmatmul.mubr.bf16.gmra.mxu0 %v12946
  %v14840 = vpop.f32.mrf.mxu0
  %v14841 = vadd.f32 %v14552, %v14840
  %v14842 = vpop.f32.mrf.mxu0
  %v14843 = vpop.f32.mrf.mxu0
  %v14844 = vadd.f32 %v14555, %v14843
  %v14845 = vpop.f32.mrf.mxu0
  %14846 = vmatprep.mubr.bf16.mxu0 %v13075
  %14847 = vmatmul.mubr.bf16.gmra.mxu0 %v12947
  %v14848 = vpop.f32.mrf.mxu0
  %v14849 = vadd.f32 %v14560, %v14848
  %v14850 = vpop.f32.mrf.mxu0
  %v14851 = vpop.f32.mrf.mxu0
  %v14852 = vadd.f32 %v14563, %v14851
  %v14853 = vpop.f32.mrf.mxu0
  %14854 = vmatprep.mubr.bf16.mxu0 %v13076
  %14855 = vmatmul.mubr.bf16.gmra.mxu0 %v12948
  %v14856 = vpop.f32.mrf.mxu0
  %v14857 = vadd.f32 %v14568, %v14856
  %v14858 = vpop.f32.mrf.mxu0
  %v14859 = vpop.f32.mrf.mxu0
  %v14860 = vadd.f32 %v14571, %v14859
  %v14861 = vpop.f32.mrf.mxu0
  %14862 = vmatprep.mubr.bf16.mxu0 %v13077
  %14863 = vmatmul.mubr.bf16.gmra.mxu0 %v12949
  %v14864 = vpop.f32.mrf.mxu0
  %v14865 = vadd.f32 %v14576, %v14864
  %v14866 = vpop.f32.mrf.mxu0
  %v14867 = vpop.f32.mrf.mxu0
  %v14868 = vadd.f32 %v14579, %v14867
  %v14869 = vpop.f32.mrf.mxu0
  %14870 = vmatprep.mubr.bf16.mxu0 %v13078
  %14871 = vmatmul.mubr.bf16.gmra.mxu0 %v12950
  %v14872 = vpop.f32.mrf.mxu0
  %v14873 = vadd.f32 %v14584, %v14872
  %v14874 = vpop.f32.mrf.mxu0
  %v14875 = vpop.f32.mrf.mxu0
  %v14876 = vadd.f32 %v14587, %v14875
  %v14877 = vpop.f32.mrf.mxu0
  %14878 = vmatprep.mubr.bf16.mxu0 %v13079
  %14879 = vmatmul.mubr.bf16.gmra.mxu0 %v12951
  %v14880 = vpop.f32.mrf.mxu0
  %v14881 = vadd.f32 %v14592, %v14880
  %v14882 = vpop.f32.mrf.mxu0
  %v14883 = vpop.f32.mrf.mxu0
  %v14884 = vadd.f32 %v14595, %v14883
  %v14885 = vpop.f32.mrf.mxu0
  %14886 = vmatprep.mubr.bf16.mxu0 %v13080
  %14887 = vmatmul.mubr.bf16.gmra.mxu0 %v12952
  %v14888 = vpop.f32.mrf.mxu0
  %v14889 = vadd.f32 %v14600, %v14888
  %v14890 = vpop.f32.mrf.mxu0
  %v14891 = vpop.f32.mrf.mxu0
  %v14892 = vadd.f32 %v14603, %v14891
  %v14893 = vpop.f32.mrf.mxu0
  %14894 = vmatprep.mubr.bf16.mxu0 %v13081
  %14895 = vmatmul.mubr.bf16.gmra.mxu0 %v12953
  %v14896 = vpop.f32.mrf.mxu0
  %v14897 = vadd.f32 %v14608, %v14896
  %v14898 = vpop.f32.mrf.mxu0
  %v14899 = vpop.f32.mrf.mxu0
  %v14900 = vadd.f32 %v14611, %v14899
  %v14901 = vpop.f32.mrf.mxu0
  %14902 = vmatprep.mubr.bf16.mxu0 %v13082
  %14903 = vmatmul.mubr.bf16.gmra.mxu0 %v12954
  %v14904 = vpop.f32.mrf.mxu0
  %v14905 = vadd.f32 %v14616, %v14904
  %v14906 = vpop.f32.mrf.mxu0
  %v14907 = vpop.f32.mrf.mxu0
  %v14908 = vadd.f32 %v14619, %v14907
  %v14909 = vpop.f32.mrf.mxu0
  %14910 = vmatprep.mubr.bf16.mxu0 %v13083
  %14911 = vmatmul.mubr.bf16.gmra.mxu0 %v12955
  %v14912 = vpop.f32.mrf.mxu0
  %v14913 = vadd.f32 %v14624, %v14912
  %v14914 = vpop.f32.mrf.mxu0
  %v14915 = vpop.f32.mrf.mxu0
  %v14916 = vadd.f32 %v14627, %v14915
  %v14917 = vpop.f32.mrf.mxu0
  %14918 = vmatprep.mubr.bf16.mxu0 %v13084
  %14919 = vmatmul.mubr.bf16.gmra.mxu0 %v12956
  %v14920 = vpop.f32.mrf.mxu0
  %v14921 = vadd.f32 %v14632, %v14920
  %v14922 = vpop.f32.mrf.mxu0
  %v14923 = vpop.f32.mrf.mxu0
  %v14924 = vadd.f32 %v14635, %v14923
  %v14925 = vpop.f32.mrf.mxu0
  %14926 = vmatprep.mubr.bf16.mxu0 %v13085
  %14927 = vmatmul.mubr.bf16.gmra.mxu0 %v12957
  %v14928 = vpop.f32.mrf.mxu0
  %v14929 = vadd.f32 %v14640, %v14928
  %v14930 = vpop.f32.mrf.mxu0
  %v14931 = vpop.f32.mrf.mxu0
  %v14932 = vadd.f32 %v14643, %v14931
  %v14933 = vpop.f32.mrf.mxu0
  %14934 = vmatprep.mubr.bf16.mxu0 %v13086
  %14935 = vmatmul.mubr.bf16.gmra.mxu0 %v12958
  %v14936 = vpop.f32.mrf.mxu0
  %v14937 = vadd.f32 %v14648, %v14936
  %v14938 = vpop.f32.mrf.mxu0
  %v14939 = vpop.f32.mrf.mxu0
  %v14940 = vadd.f32 %v14651, %v14939
  %v14941 = vpop.f32.mrf.mxu0
  %14942 = vmatprep.mubr.bf16.mxu0 %v13087
  %14943 = vmatmul.mubr.bf16.gmra.mxu0 %v12959
  %v14944 = vpop.f32.mrf.mxu0
  %v14945 = vadd.f32 %v14656, %v14944
  %v14946 = vpop.f32.mrf.mxu0
  %v14947 = vpop.f32.mrf.mxu0
  %v14948 = vadd.f32 %v14659, %v14947
  %v14949 = vpop.f32.mrf.mxu0
  %14950 = vmatprep.mubr.bf16.mxu0 %v13088
  %14951 = vmatmul.mubr.bf16.gmra.mxu0 %v12960
  %v14952 = vpop.f32.mrf.mxu0
  %v14953 = vadd.f32 %v14664, %v14952
  %v14954 = vpop.f32.mrf.mxu0
  %v14955 = vpop.f32.mrf.mxu0
  %v14956 = vadd.f32 %v14667, %v14955
  %v14957 = vpop.f32.mrf.mxu0
  %14958 = vmatprep.mubr.bf16.mxu0 %v13089
  %14959 = vmatmul.mubr.bf16.gmra.mxu0 %v12961
  %v14960 = vpop.f32.mrf.mxu0
  %v14961 = vadd.f32 %v14672, %v14960
  %v14962 = vpop.f32.mrf.mxu0
  %v14963 = vpop.f32.mrf.mxu0
  %v14964 = vadd.f32 %v14675, %v14963
  %v14965 = vpop.f32.mrf.mxu0
  %14966 = vmatprep.mubr.bf16.mxu0 %v13090
  %14967 = vmatmul.mubr.bf16.gmra.mxu0 %v12962
  %v14968 = vpop.f32.mrf.mxu0
  %v14969 = vadd.f32 %v14680, %v14968
  %v14970 = vpop.f32.mrf.mxu0
  %v14971 = vpop.f32.mrf.mxu0
  %v14972 = vadd.f32 %v14683, %v14971
  %v14973 = vpop.f32.mrf.mxu0
  %14974 = vmatprep.mubr.bf16.mxu0 %v13091
  %14975 = vmatmul.mubr.bf16.gmra.mxu0 %v12963
  %v14976 = vpop.f32.mrf.mxu0
  %v14977 = vadd.f32 %v14688, %v14976
  %v14978 = vpop.f32.mrf.mxu0
  %v14979 = vpop.f32.mrf.mxu0
  %v14980 = vadd.f32 %v14691, %v14979
  %v14981 = vpop.f32.mrf.mxu0
  %14982 = vdwg.mxu0
  %14983 = vmatprep.subr.bf16.mxu0 0
  %14984 = vmatpush1.bf16.msra.mxu0 %v14027
  %14985 = vmatprep.subr.bf16.mxu0 0
  %14986 = vmatpush1.bf16.msra.mxu0 %v14026
  %14987 = vmatprep.subr.bf16.mxu0 0
  %14988 = vmatpush1.bf16.msra.mxu0 %v14025
  %14989 = vmatprep.subr.bf16.mxu0 0
  %14990 = vmatpush1.bf16.msra.mxu0 %v14024
  %14991 = vmatprep.subr.bf16.mxu0 0
  %14992 = vmatpush1.bf16.msra.mxu0 %v14023
  %14993 = vmatprep.subr.bf16.mxu0 0
  %14994 = vmatpush1.bf16.msra.mxu0 %v14022
  %14995 = vmatprep.subr.bf16.mxu0 0
  %14996 = vmatpush1.bf16.msra.mxu0 %v14021
  %14997 = vmatprep.subr.bf16.mxu0 0
  %14998 = vmatpush1.bf16.msra.mxu0 %v14020
  %14999 = vmatprep.subr.bf16.mxu0 0
  %15000 = vmatpush2.bf16.msra.mxu0 %v14035
  %15001 = vmatprep.subr.bf16.mxu0 0
  %15002 = vmatpush2.bf16.msra.mxu0 %v14034
  %15003 = vmatprep.subr.bf16.mxu0 0
  %15004 = vmatpush2.bf16.msra.mxu0 %v14033
  %15005 = vmatprep.subr.bf16.mxu0 0
  %15006 = vmatpush2.bf16.msra.mxu0 %v14032
  %15007 = vmatprep.subr.bf16.mxu0 0
  %15008 = vmatpush2.bf16.msra.mxu0 %v14031
  %15009 = vmatprep.subr.bf16.mxu0 0
  %15010 = vmatpush2.bf16.msra.mxu0 %v14030
  %15011 = vmatprep.subr.bf16.mxu0 0
  %15012 = vmatpush2.bf16.msra.mxu0 %v14029
  %15013 = vmatprep.subr.bf16.mxu0 0
  %15014 = vmatpush2.bf16.msra.mxu0 %v14028
  %15015 = vmatprep.mubr.bf16.mxu0 %v13348
  %15016 = vmatmul.mubr.bf16.gmra.mxu0 %v13220
  %v15017 = vpop.f32.mrf.mxu0
  %v15018 = vadd.f32 %v14729, %v15017
  %v15019 = vpop.f32.mrf.mxu0
  %v15020 = vpop.f32.mrf.mxu0
  %v15021 = vadd.f32 %v14732, %v15020
  %v15022 = vpop.f32.mrf.mxu0
  %15023 = vmatprep.mubr.bf16.mxu0 %v13349
  %15024 = vmatmul.mubr.bf16.gmra.mxu0 %v13221
  %v15025 = vpop.f32.mrf.mxu0
  %v15026 = vadd.f32 %v14737, %v15025
  %v15027 = vpop.f32.mrf.mxu0
  %v15028 = vpop.f32.mrf.mxu0
  %v15029 = vadd.f32 %v14740, %v15028
  %v15030 = vpop.f32.mrf.mxu0
  %15031 = vmatprep.mubr.bf16.mxu0 %v13350
  %15032 = vmatmul.mubr.bf16.gmra.mxu0 %v13222
  %v15033 = vpop.f32.mrf.mxu0
  %v15034 = vadd.f32 %v14745, %v15033
  %v15035 = vpop.f32.mrf.mxu0
  %v15036 = vpop.f32.mrf.mxu0
  %v15037 = vadd.f32 %v14748, %v15036
  %v15038 = vpop.f32.mrf.mxu0
  %15039 = vmatprep.mubr.bf16.mxu0 %v13351
  %15040 = vmatmul.mubr.bf16.gmra.mxu0 %v13223
  %v15041 = vpop.f32.mrf.mxu0
  %v15042 = vadd.f32 %v14753, %v15041
  %v15043 = vpop.f32.mrf.mxu0
  %v15044 = vpop.f32.mrf.mxu0
  %v15045 = vadd.f32 %v14756, %v15044
  %v15046 = vpop.f32.mrf.mxu0
  %15047 = vmatprep.mubr.bf16.mxu0 %v13352
  %15048 = vmatmul.mubr.bf16.gmra.mxu0 %v13224
  %v15049 = vpop.f32.mrf.mxu0
  %v15050 = vadd.f32 %v14761, %v15049
  %v15051 = vpop.f32.mrf.mxu0
  %v15052 = vpop.f32.mrf.mxu0
  %v15053 = vadd.f32 %v14764, %v15052
  %v15054 = vpop.f32.mrf.mxu0
  %15055 = vmatprep.mubr.bf16.mxu0 %v13353
  %15056 = vmatmul.mubr.bf16.gmra.mxu0 %v13225
  %v15057 = vpop.f32.mrf.mxu0
  %v15058 = vadd.f32 %v14769, %v15057
  %v15059 = vpop.f32.mrf.mxu0
  %v15060 = vpop.f32.mrf.mxu0
  %v15061 = vadd.f32 %v14772, %v15060
  %v15062 = vpop.f32.mrf.mxu0
  %15063 = vmatprep.mubr.bf16.mxu0 %v13354
  %15064 = vmatmul.mubr.bf16.gmra.mxu0 %v13226
  %v15065 = vpop.f32.mrf.mxu0
  %v15066 = vadd.f32 %v14777, %v15065
  %v15067 = vpop.f32.mrf.mxu0
  %v15068 = vpop.f32.mrf.mxu0
  %v15069 = vadd.f32 %v14780, %v15068
  %v15070 = vpop.f32.mrf.mxu0
  %15071 = vmatprep.mubr.bf16.mxu0 %v13355
  %15072 = vmatmul.mubr.bf16.gmra.mxu0 %v13227
  %v15073 = vpop.f32.mrf.mxu0
  %v15074 = vadd.f32 %v14785, %v15073
  %v15075 = vpop.f32.mrf.mxu0
  %v15076 = vpop.f32.mrf.mxu0
  %v15077 = vadd.f32 %v14788, %v15076
  %v15078 = vpop.f32.mrf.mxu0
  %15079 = vmatprep.mubr.bf16.mxu0 %v13356
  %15080 = vmatmul.mubr.bf16.gmra.mxu0 %v13228
  %v15081 = vpop.f32.mrf.mxu0
  %v15082 = vadd.f32 %v14793, %v15081
  %v15083 = vpop.f32.mrf.mxu0
  %v15084 = vpop.f32.mrf.mxu0
  %v15085 = vadd.f32 %v14796, %v15084
  %v15086 = vpop.f32.mrf.mxu0
  %15087 = vmatprep.mubr.bf16.mxu0 %v13357
  %15088 = vmatmul.mubr.bf16.gmra.mxu0 %v13229
  %v15089 = vpop.f32.mrf.mxu0
  %v15090 = vadd.f32 %v14801, %v15089
  %v15091 = vpop.f32.mrf.mxu0
  %v15092 = vpop.f32.mrf.mxu0
  %v15093 = vadd.f32 %v14804, %v15092
  %v15094 = vpop.f32.mrf.mxu0
  %15095 = vmatprep.mubr.bf16.mxu0 %v13358
  %15096 = vmatmul.mubr.bf16.gmra.mxu0 %v13230
  %v15097 = vpop.f32.mrf.mxu0
  %v15098 = vadd.f32 %v14809, %v15097
  %v15099 = vpop.f32.mrf.mxu0
  %v15100 = vpop.f32.mrf.mxu0
  %v15101 = vadd.f32 %v14812, %v15100
  %v15102 = vpop.f32.mrf.mxu0
  %15103 = vmatprep.mubr.bf16.mxu0 %v13359
  %15104 = vmatmul.mubr.bf16.gmra.mxu0 %v13231
  %v15105 = vpop.f32.mrf.mxu0
  %v15106 = vadd.f32 %v14817, %v15105
  %v15107 = vpop.f32.mrf.mxu0
  %v15108 = vpop.f32.mrf.mxu0
  %v15109 = vadd.f32 %v14820, %v15108
  %v15110 = vpop.f32.mrf.mxu0
  %15111 = vmatprep.mubr.bf16.mxu0 %v13360
  %15112 = vmatmul.mubr.bf16.gmra.mxu0 %v13232
  %v15113 = vpop.f32.mrf.mxu0
  %v15114 = vadd.f32 %v14825, %v15113
  %v15115 = vpop.f32.mrf.mxu0
  %v15116 = vpop.f32.mrf.mxu0
  %v15117 = vadd.f32 %v14828, %v15116
  %v15118 = vpop.f32.mrf.mxu0
  %15119 = vmatprep.mubr.bf16.mxu0 %v13361
  %15120 = vmatmul.mubr.bf16.gmra.mxu0 %v13233
  %v15121 = vpop.f32.mrf.mxu0
  %v15122 = vadd.f32 %v14833, %v15121
  %v15123 = vpop.f32.mrf.mxu0
  %v15124 = vpop.f32.mrf.mxu0
  %v15125 = vadd.f32 %v14836, %v15124
  %v15126 = vpop.f32.mrf.mxu0
  %15127 = vmatprep.mubr.bf16.mxu0 %v13362
  %15128 = vmatmul.mubr.bf16.gmra.mxu0 %v13234
  %v15129 = vpop.f32.mrf.mxu0
  %v15130 = vadd.f32 %v14841, %v15129
  %v15131 = vpop.f32.mrf.mxu0
  %v15132 = vpop.f32.mrf.mxu0
  %v15133 = vadd.f32 %v14844, %v15132
  %v15134 = vpop.f32.mrf.mxu0
  %15135 = vmatprep.mubr.bf16.mxu0 %v13363
  %15136 = vmatmul.mubr.bf16.gmra.mxu0 %v13235
  %v15137 = vpop.f32.mrf.mxu0
  %v15138 = vadd.f32 %v14849, %v15137
  %v15139 = vpop.f32.mrf.mxu0
  %v15140 = vpop.f32.mrf.mxu0
  %v15141 = vadd.f32 %v14852, %v15140
  %v15142 = vpop.f32.mrf.mxu0
  %15143 = vmatprep.mubr.bf16.mxu0 %v13364
  %15144 = vmatmul.mubr.bf16.gmra.mxu0 %v13236
  %v15145 = vpop.f32.mrf.mxu0
  %v15146 = vadd.f32 %v14857, %v15145
  %v15147 = vpop.f32.mrf.mxu0
  %v15148 = vpop.f32.mrf.mxu0
  %v15149 = vadd.f32 %v14860, %v15148
  %v15150 = vpop.f32.mrf.mxu0
  %15151 = vmatprep.mubr.bf16.mxu0 %v13365
  %15152 = vmatmul.mubr.bf16.gmra.mxu0 %v13237
  %v15153 = vpop.f32.mrf.mxu0
  %v15154 = vadd.f32 %v14865, %v15153
  %v15155 = vpop.f32.mrf.mxu0
  %v15156 = vpop.f32.mrf.mxu0
  %v15157 = vadd.f32 %v14868, %v15156
  %v15158 = vpop.f32.mrf.mxu0
  %15159 = vmatprep.mubr.bf16.mxu0 %v13366
  %15160 = vmatmul.mubr.bf16.gmra.mxu0 %v13238
  %v15161 = vpop.f32.mrf.mxu0
  %v15162 = vadd.f32 %v14873, %v15161
  %v15163 = vpop.f32.mrf.mxu0
  %v15164 = vpop.f32.mrf.mxu0
  %v15165 = vadd.f32 %v14876, %v15164
  %v15166 = vpop.f32.mrf.mxu0
  %15167 = vmatprep.mubr.bf16.mxu0 %v13367
  %15168 = vmatmul.mubr.bf16.gmra.mxu0 %v13239
  %v15169 = vpop.f32.mrf.mxu0
  %v15170 = vadd.f32 %v14881, %v15169
  %v15171 = vpop.f32.mrf.mxu0
  %v15172 = vpop.f32.mrf.mxu0
  %v15173 = vadd.f32 %v14884, %v15172
  %v15174 = vpop.f32.mrf.mxu0
  %15175 = vmatprep.mubr.bf16.mxu0 %v13368
  %15176 = vmatmul.mubr.bf16.gmra.mxu0 %v13240
  %v15177 = vpop.f32.mrf.mxu0
  %v15178 = vadd.f32 %v14889, %v15177
  %v15179 = vpop.f32.mrf.mxu0
  %v15180 = vpop.f32.mrf.mxu0
  %v15181 = vadd.f32 %v14892, %v15180
  %v15182 = vpop.f32.mrf.mxu0
  %15183 = vmatprep.mubr.bf16.mxu0 %v13369
  %15184 = vmatmul.mubr.bf16.gmra.mxu0 %v13241
  %v15185 = vpop.f32.mrf.mxu0
  %v15186 = vadd.f32 %v14897, %v15185
  %v15187 = vpop.f32.mrf.mxu0
  %v15188 = vpop.f32.mrf.mxu0
  %v15189 = vadd.f32 %v14900, %v15188
  %v15190 = vpop.f32.mrf.mxu0
  %15191 = vmatprep.mubr.bf16.mxu0 %v13370
  %15192 = vmatmul.mubr.bf16.gmra.mxu0 %v13242
  %v15193 = vpop.f32.mrf.mxu0
  %v15194 = vadd.f32 %v14905, %v15193
  %v15195 = vpop.f32.mrf.mxu0
  %v15196 = vpop.f32.mrf.mxu0
  %v15197 = vadd.f32 %v14908, %v15196
  %v15198 = vpop.f32.mrf.mxu0
  %15199 = vmatprep.mubr.bf16.mxu0 %v13371
  %15200 = vmatmul.mubr.bf16.gmra.mxu0 %v13243
  %v15201 = vpop.f32.mrf.mxu0
  %v15202 = vadd.f32 %v14913, %v15201
  %v15203 = vpop.f32.mrf.mxu0
  %v15204 = vpop.f32.mrf.mxu0
  %v15205 = vadd.f32 %v14916, %v15204
  %v15206 = vpop.f32.mrf.mxu0
  %15207 = vmatprep.mubr.bf16.mxu0 %v13372
  %15208 = vmatmul.mubr.bf16.gmra.mxu0 %v13244
  %v15209 = vpop.f32.mrf.mxu0
  %v15210 = vadd.f32 %v14921, %v15209
  %v15211 = vpop.f32.mrf.mxu0
  %v15212 = vpop.f32.mrf.mxu0
  %v15213 = vadd.f32 %v14924, %v15212
  %v15214 = vpop.f32.mrf.mxu0
  %15215 = vmatprep.mubr.bf16.mxu0 %v13373
  %15216 = vmatmul.mubr.bf16.gmra.mxu0 %v13245
  %v15217 = vpop.f32.mrf.mxu0
  %v15218 = vadd.f32 %v14929, %v15217
  %v15219 = vpop.f32.mrf.mxu0
  %v15220 = vpop.f32.mrf.mxu0
  %v15221 = vadd.f32 %v14932, %v15220
  %v15222 = vpop.f32.mrf.mxu0
  %15223 = vmatprep.mubr.bf16.mxu0 %v13374
  %15224 = vmatmul.mubr.bf16.gmra.mxu0 %v13246
  %v15225 = vpop.f32.mrf.mxu0
  %v15226 = vadd.f32 %v14937, %v15225
  %v15227 = vpop.f32.mrf.mxu0
  %v15228 = vpop.f32.mrf.mxu0
  %v15229 = vadd.f32 %v14940, %v15228
  %v15230 = vpop.f32.mrf.mxu0
  %15231 = vmatprep.mubr.bf16.mxu0 %v13375
  %15232 = vmatmul.mubr.bf16.gmra.mxu0 %v13247
  %v15233 = vpop.f32.mrf.mxu0
  %v15234 = vadd.f32 %v14945, %v15233
  %v15235 = vpop.f32.mrf.mxu0
  %v15236 = vpop.f32.mrf.mxu0
  %v15237 = vadd.f32 %v14948, %v15236
  %v15238 = vpop.f32.mrf.mxu0
  %15239 = vmatprep.mubr.bf16.mxu0 %v13376
  %15240 = vmatmul.mubr.bf16.gmra.mxu0 %v13248
  %v15241 = vpop.f32.mrf.mxu0
  %v15242 = vadd.f32 %v14953, %v15241
  %v15243 = vpop.f32.mrf.mxu0
  %v15244 = vpop.f32.mrf.mxu0
  %v15245 = vadd.f32 %v14956, %v15244
  %v15246 = vpop.f32.mrf.mxu0
  %15247 = vmatprep.mubr.bf16.mxu0 %v13377
  %15248 = vmatmul.mubr.bf16.gmra.mxu0 %v13249
  %v15249 = vpop.f32.mrf.mxu0
  %v15250 = vadd.f32 %v14961, %v15249
  %v15251 = vpop.f32.mrf.mxu0
  %v15252 = vpop.f32.mrf.mxu0
  %v15253 = vadd.f32 %v14964, %v15252
  %v15254 = vpop.f32.mrf.mxu0
  %15255 = vmatprep.mubr.bf16.mxu0 %v13378
  %15256 = vmatmul.mubr.bf16.gmra.mxu0 %v13250
  %v15257 = vpop.f32.mrf.mxu0
  %v15258 = vadd.f32 %v14969, %v15257
  %v15259 = vpop.f32.mrf.mxu0
  %v15260 = vpop.f32.mrf.mxu0
  %v15261 = vadd.f32 %v14972, %v15260
  %v15262 = vpop.f32.mrf.mxu0
  %15263 = vmatprep.mubr.bf16.mxu0 %v13379
  %15264 = vmatmul.mubr.bf16.gmra.mxu0 %v13251
  %v15265 = vpop.f32.mrf.mxu0
  %v15266 = vadd.f32 %v14977, %v15265
  %v15267 = vpop.f32.mrf.mxu0
  %v15268 = vpop.f32.mrf.mxu0
  %v15269 = vadd.f32 %v14980, %v15268
  %v15270 = vpop.f32.mrf.mxu0
  %15271 = vdwg.mxu0
  %15272 = vmatprep.subr.bf16.mxu0 0
  %15273 = vmatpush1.bf16.msra.mxu0 %v14043
  %15274 = vmatprep.subr.bf16.mxu0 0
  %15275 = vmatpush1.bf16.msra.mxu0 %v14042
  %15276 = vmatprep.subr.bf16.mxu0 0
  %15277 = vmatpush1.bf16.msra.mxu0 %v14041
  %15278 = vmatprep.subr.bf16.mxu0 0
  %15279 = vmatpush1.bf16.msra.mxu0 %v14040
  %15280 = vmatprep.subr.bf16.mxu0 0
  %15281 = vmatpush1.bf16.msra.mxu0 %v14039
  %15282 = vmatprep.subr.bf16.mxu0 0
  %15283 = vmatpush1.bf16.msra.mxu0 %v14038
  %15284 = vmatprep.subr.bf16.mxu0 0
  %15285 = vmatpush1.bf16.msra.mxu0 %v14037
  %15286 = vmatprep.subr.bf16.mxu0 0
  %15287 = vmatpush1.bf16.msra.mxu0 %v14036
  %15288 = vmatprep.subr.bf16.mxu0 0
  %15289 = vmatpush2.bf16.msra.mxu0 0
  %15290 = vmatprep.subr.bf16.mxu0 0
  %15291 = vmatpush2.bf16.msra.mxu0 0
  %15292 = vmatprep.subr.bf16.mxu0 0
  %15293 = vmatpush2.bf16.msra.mxu0 0
  %15294 = vmatprep.subr.bf16.mxu0 0
  %15295 = vmatpush2.bf16.msra.mxu0 0
  %15296 = vmatprep.subr.bf16.mxu0 0
  %15297 = vmatpush2.bf16.msra.mxu0 0
  %15298 = vmatprep.subr.bf16.mxu0 0
  %15299 = vmatpush2.bf16.msra.mxu0 0
  %15300 = vmatprep.subr.bf16.mxu0 0
  %15301 = vmatpush2.bf16.msra.mxu0 0
  %15302 = vmatprep.subr.bf16.mxu0 0
  %15303 = vmatpush2.bf16.msra.mxu0 0
  %15304 = vmatprep.mubr.bf16.mxu0 0
  %15305 = vmatmul.mubr.bf16.gmra.mxu0 %v13476
  %v15306 = vpop.f32.mrf.mxu0
  %v15307 = vadd.f32 %v15018, %v15306
  %v15308 = vpop.f32.mrf.mxu0
  %v15309 = vpop.f32.mrf.mxu0
  %v15310 = vadd.f32 %v15021, %v15309
  %v15311 = vpop.f32.mrf.mxu0
  %15312 = vmatprep.mubr.bf16.mxu0 0
  %15313 = vmatmul.mubr.bf16.gmra.mxu0 %v13477
  %v15314 = vpop.f32.mrf.mxu0
  %v15315 = vadd.f32 %v15026, %v15314
  %v15316 = vpop.f32.mrf.mxu0
  %v15317 = vpop.f32.mrf.mxu0
  %v15318 = vadd.f32 %v15029, %v15317
  %v15319 = vpop.f32.mrf.mxu0
  %15320 = vmatprep.mubr.bf16.mxu0 0
  %15321 = vmatmul.mubr.bf16.gmra.mxu0 %v13478
  %v15322 = vpop.f32.mrf.mxu0
  %v15323 = vadd.f32 %v15034, %v15322
  %v15324 = vpop.f32.mrf.mxu0
  %v15325 = vpop.f32.mrf.mxu0
  %v15326 = vadd.f32 %v15037, %v15325
  %v15327 = vpop.f32.mrf.mxu0
  %15328 = vmatprep.mubr.bf16.mxu0 0
  %15329 = vmatmul.mubr.bf16.gmra.mxu0 %v13479
  %v15330 = vpop.f32.mrf.mxu0
  %v15331 = vadd.f32 %v15042, %v15330
  %v15332 = vpop.f32.mrf.mxu0
  %v15333 = vpop.f32.mrf.mxu0
  %v15334 = vadd.f32 %v15045, %v15333
  %v15335 = vpop.f32.mrf.mxu0
  %15336 = vmatprep.mubr.bf16.mxu0 0
  %15337 = vmatmul.mubr.bf16.gmra.mxu0 %v13480
  %v15338 = vpop.f32.mrf.mxu0
  %v15339 = vadd.f32 %v15050, %v15338
  %v15340 = vpop.f32.mrf.mxu0
  %v15341 = vpop.f32.mrf.mxu0
  %v15342 = vadd.f32 %v15053, %v15341
  %v15343 = vpop.f32.mrf.mxu0
  %15344 = vmatprep.mubr.bf16.mxu0 0
  %15345 = vmatmul.mubr.bf16.gmra.mxu0 %v13481
  %v15346 = vpop.f32.mrf.mxu0
  %v15347 = vadd.f32 %v15058, %v15346
  %v15348 = vpop.f32.mrf.mxu0
  %v15349 = vpop.f32.mrf.mxu0
  %v15350 = vadd.f32 %v15061, %v15349
  %v15351 = vpop.f32.mrf.mxu0
  %15352 = vmatprep.mubr.bf16.mxu0 0
  %15353 = vmatmul.mubr.bf16.gmra.mxu0 %v13482
  %v15354 = vpop.f32.mrf.mxu0
  %v15355 = vadd.f32 %v15066, %v15354
  %v15356 = vpop.f32.mrf.mxu0
  %v15357 = vpop.f32.mrf.mxu0
  %v15358 = vadd.f32 %v15069, %v15357
  %v15359 = vpop.f32.mrf.mxu0
  %15360 = vmatprep.mubr.bf16.mxu0 0
  %15361 = vmatmul.mubr.bf16.gmra.mxu0 %v13483
  %v15362 = vpop.f32.mrf.mxu0
  %v15363 = vadd.f32 %v15074, %v15362
  %v15364 = vpop.f32.mrf.mxu0
  %v15365 = vpop.f32.mrf.mxu0
  %v15366 = vadd.f32 %v15077, %v15365
  %v15367 = vpop.f32.mrf.mxu0
  %15368 = vmatprep.mubr.bf16.mxu0 0
  %15369 = vmatmul.mubr.bf16.gmra.mxu0 %v13484
  %v15370 = vpop.f32.mrf.mxu0
  %v15371 = vadd.f32 %v15082, %v15370
  %v15372 = vpop.f32.mrf.mxu0
  %v15373 = vpop.f32.mrf.mxu0
  %v15374 = vadd.f32 %v15085, %v15373
  %v15375 = vpop.f32.mrf.mxu0
  %15376 = vmatprep.mubr.bf16.mxu0 0
  %15377 = vmatmul.mubr.bf16.gmra.mxu0 %v13485
  %v15378 = vpop.f32.mrf.mxu0
  %v15379 = vadd.f32 %v15090, %v15378
  %v15380 = vpop.f32.mrf.mxu0
  %v15381 = vpop.f32.mrf.mxu0
  %v15382 = vadd.f32 %v15093, %v15381
  %v15383 = vpop.f32.mrf.mxu0
  %15384 = vmatprep.mubr.bf16.mxu0 0
  %15385 = vmatmul.mubr.bf16.gmra.mxu0 %v13486
  %v15386 = vpop.f32.mrf.mxu0
  %v15387 = vadd.f32 %v15098, %v15386
  %v15388 = vpop.f32.mrf.mxu0
  %v15389 = vpop.f32.mrf.mxu0
  %v15390 = vadd.f32 %v15101, %v15389
  %v15391 = vpop.f32.mrf.mxu0
  %15392 = vmatprep.mubr.bf16.mxu0 0
  %15393 = vmatmul.mubr.bf16.gmra.mxu0 %v13487
  %v15394 = vpop.f32.mrf.mxu0
  %v15395 = vadd.f32 %v15106, %v15394
  %v15396 = vpop.f32.mrf.mxu0
  %v15397 = vpop.f32.mrf.mxu0
  %v15398 = vadd.f32 %v15109, %v15397
  %v15399 = vpop.f32.mrf.mxu0
  %15400 = vmatprep.mubr.bf16.mxu0 0
  %15401 = vmatmul.mubr.bf16.gmra.mxu0 %v13488
  %v15402 = vpop.f32.mrf.mxu0
  %v15403 = vadd.f32 %v15114, %v15402
  %v15404 = vpop.f32.mrf.mxu0
  %v15405 = vpop.f32.mrf.mxu0
  %v15406 = vadd.f32 %v15117, %v15405
  %v15407 = vpop.f32.mrf.mxu0
  %15408 = vmatprep.mubr.bf16.mxu0 0
  %15409 = vmatmul.mubr.bf16.gmra.mxu0 %v13489
  %v15410 = vpop.f32.mrf.mxu0
  %v15411 = vadd.f32 %v15122, %v15410
  %v15412 = vpop.f32.mrf.mxu0
  %v15413 = vpop.f32.mrf.mxu0
  %v15414 = vadd.f32 %v15125, %v15413
  %v15415 = vpop.f32.mrf.mxu0
  %15416 = vmatprep.mubr.bf16.mxu0 0
  %15417 = vmatmul.mubr.bf16.gmra.mxu0 %v13490
  %v15418 = vpop.f32.mrf.mxu0
  %v15419 = vadd.f32 %v15130, %v15418
  %v15420 = vpop.f32.mrf.mxu0
  %v15421 = vpop.f32.mrf.mxu0
  %v15422 = vadd.f32 %v15133, %v15421
  %v15423 = vpop.f32.mrf.mxu0
  %15424 = vmatprep.mubr.bf16.mxu0 0
  %15425 = vmatmul.mubr.bf16.gmra.mxu0 %v13491
  %v15426 = vpop.f32.mrf.mxu0
  %v15427 = vadd.f32 %v15138, %v15426
  %v15428 = vpop.f32.mrf.mxu0
  %v15429 = vpop.f32.mrf.mxu0
  %v15430 = vadd.f32 %v15141, %v15429
  %v15431 = vpop.f32.mrf.mxu0
  %15432 = vmatprep.mubr.bf16.mxu0 0
  %15433 = vmatmul.mubr.bf16.gmra.mxu0 %v13492
  %v15434 = vpop.f32.mrf.mxu0
  %v15435 = vadd.f32 %v15146, %v15434
  %v15436 = vpop.f32.mrf.mxu0
  %v15437 = vpop.f32.mrf.mxu0
  %v15438 = vadd.f32 %v15149, %v15437
  %v15439 = vpop.f32.mrf.mxu0
  %15440 = vmatprep.mubr.bf16.mxu0 0
  %15441 = vmatmul.mubr.bf16.gmra.mxu0 %v13493
  %v15442 = vpop.f32.mrf.mxu0
  %v15443 = vadd.f32 %v15154, %v15442
  %v15444 = vpop.f32.mrf.mxu0
  %v15445 = vpop.f32.mrf.mxu0
  %v15446 = vadd.f32 %v15157, %v15445
  %v15447 = vpop.f32.mrf.mxu0
  %15448 = vmatprep.mubr.bf16.mxu0 0
  %15449 = vmatmul.mubr.bf16.gmra.mxu0 %v13494
  %v15450 = vpop.f32.mrf.mxu0
  %v15451 = vadd.f32 %v15162, %v15450
  %v15452 = vpop.f32.mrf.mxu0
  %v15453 = vpop.f32.mrf.mxu0
  %v15454 = vadd.f32 %v15165, %v15453
  %v15455 = vpop.f32.mrf.mxu0
  %15456 = vmatprep.mubr.bf16.mxu0 0
  %15457 = vmatmul.mubr.bf16.gmra.mxu0 %v13495
  %v15458 = vpop.f32.mrf.mxu0
  %v15459 = vadd.f32 %v15170, %v15458
  %v15460 = vpop.f32.mrf.mxu0
  %v15461 = vpop.f32.mrf.mxu0
  %v15462 = vadd.f32 %v15173, %v15461
  %v15463 = vpop.f32.mrf.mxu0
  %15464 = vmatprep.mubr.bf16.mxu0 0
  %15465 = vmatmul.mubr.bf16.gmra.mxu0 %v13496
  %v15466 = vpop.f32.mrf.mxu0
  %v15467 = vadd.f32 %v15178, %v15466
  %v15468 = vpop.f32.mrf.mxu0
  %v15469 = vpop.f32.mrf.mxu0
  %v15470 = vadd.f32 %v15181, %v15469
  %v15471 = vpop.f32.mrf.mxu0
  %15472 = vmatprep.mubr.bf16.mxu0 0
  %15473 = vmatmul.mubr.bf16.gmra.mxu0 %v13497
  %v15474 = vpop.f32.mrf.mxu0
  %v15475 = vadd.f32 %v15186, %v15474
  %v15476 = vpop.f32.mrf.mxu0
  %v15477 = vpop.f32.mrf.mxu0
  %v15478 = vadd.f32 %v15189, %v15477
  %v15479 = vpop.f32.mrf.mxu0
  %15480 = vmatprep.mubr.bf16.mxu0 0
  %15481 = vmatmul.mubr.bf16.gmra.mxu0 %v13498
  %v15482 = vpop.f32.mrf.mxu0
  %v15483 = vadd.f32 %v15194, %v15482
  %v15484 = vpop.f32.mrf.mxu0
  %v15485 = vpop.f32.mrf.mxu0
  %v15486 = vadd.f32 %v15197, %v15485
  %v15487 = vpop.f32.mrf.mxu0
  %15488 = vmatprep.mubr.bf16.mxu0 0
  %15489 = vmatmul.mubr.bf16.gmra.mxu0 %v13499
  %v15490 = vpop.f32.mrf.mxu0
  %v15491 = vadd.f32 %v15202, %v15490
  %v15492 = vpop.f32.mrf.mxu0
  %v15493 = vpop.f32.mrf.mxu0
  %v15494 = vadd.f32 %v15205, %v15493
  %v15495 = vpop.f32.mrf.mxu0
  %15496 = vmatprep.mubr.bf16.mxu0 0
  %15497 = vmatmul.mubr.bf16.gmra.mxu0 %v13500
  %v15498 = vpop.f32.mrf.mxu0
  %v15499 = vadd.f32 %v15210, %v15498
  %v15500 = vpop.f32.mrf.mxu0
  %v15501 = vpop.f32.mrf.mxu0
  %v15502 = vadd.f32 %v15213, %v15501
  %v15503 = vpop.f32.mrf.mxu0
  %15504 = vmatprep.mubr.bf16.mxu0 0
  %15505 = vmatmul.mubr.bf16.gmra.mxu0 %v13501
  %v15506 = vpop.f32.mrf.mxu0
  %v15507 = vadd.f32 %v15218, %v15506
  %v15508 = vpop.f32.mrf.mxu0
  %v15509 = vpop.f32.mrf.mxu0
  %v15510 = vadd.f32 %v15221, %v15509
  %v15511 = vpop.f32.mrf.mxu0
  %15512 = vmatprep.mubr.bf16.mxu0 0
  %15513 = vmatmul.mubr.bf16.gmra.mxu0 %v13502
  %v15514 = vpop.f32.mrf.mxu0
  %v15515 = vadd.f32 %v15226, %v15514
  %v15516 = vpop.f32.mrf.mxu0
  %v15517 = vpop.f32.mrf.mxu0
  %v15518 = vadd.f32 %v15229, %v15517
  %v15519 = vpop.f32.mrf.mxu0
  %15520 = vmatprep.mubr.bf16.mxu0 0
  %15521 = vmatmul.mubr.bf16.gmra.mxu0 %v13503
  %v15522 = vpop.f32.mrf.mxu0
  %v15523 = vadd.f32 %v15234, %v15522
  %v15524 = vpop.f32.mrf.mxu0
  %v15525 = vpop.f32.mrf.mxu0
  %v15526 = vadd.f32 %v15237, %v15525
  %v15527 = vpop.f32.mrf.mxu0
  %15528 = vmatprep.mubr.bf16.mxu0 0
  %15529 = vmatmul.mubr.bf16.gmra.mxu0 %v13504
  %v15530 = vpop.f32.mrf.mxu0
  %v15531 = vadd.f32 %v15242, %v15530
  %v15532 = vpop.f32.mrf.mxu0
  %v15533 = vpop.f32.mrf.mxu0
  %v15534 = vadd.f32 %v15245, %v15533
  %v15535 = vpop.f32.mrf.mxu0
  %15536 = vmatprep.mubr.bf16.mxu0 0
  %15537 = vmatmul.mubr.bf16.gmra.mxu0 %v13505
  %v15538 = vpop.f32.mrf.mxu0
  %v15539 = vadd.f32 %v15250, %v15538
  %v15540 = vpop.f32.mrf.mxu0
  %v15541 = vpop.f32.mrf.mxu0
  %v15542 = vadd.f32 %v15253, %v15541
  %v15543 = vpop.f32.mrf.mxu0
  %15544 = vmatprep.mubr.bf16.mxu0 0
  %15545 = vmatmul.mubr.bf16.gmra.mxu0 %v13506
  %v15546 = vpop.f32.mrf.mxu0
  %v15547 = vadd.f32 %v15258, %v15546
  %v15548 = vpop.f32.mrf.mxu0
  %v15549 = vpop.f32.mrf.mxu0
  %v15550 = vadd.f32 %v15261, %v15549
  %v15551 = vpop.f32.mrf.mxu0
  %15552 = vmatprep.mubr.bf16.mxu0 0
  %15553 = vmatmul.mubr.bf16.gmra.mxu0 %v13507
  %v15554 = vpop.f32.mrf.mxu0
  %v15555 = vadd.f32 %v15266, %v15554
  %v15556 = vpop.f32.mrf.mxu0
  %v15557 = vpop.f32.mrf.mxu0
  %v15558 = vadd.f32 %v15269, %v15557
  %v15559 = vpop.f32.mrf.mxu0
  %15560 = vdwg.mxu0
  %v15561 = vadd.f32 %v15307, %v15310
  %v15562 = vadd.f32 %v15561, %v15315
  %v15563 = vadd.f32 %v15562, %v15318
  %v15564 = vadd.f32 %v15563, %v15323
  %v15565 = vadd.f32 %v15564, %v15326
  %v15566 = vadd.f32 %v15565, %v15331
  %v15567 = vadd.f32 %v15566, %v15334
  %v15568 = vadd.f32 %v15567, %v15339
  %v15569 = vadd.f32 %v15568, %v15342
  %v15570 = vadd.f32 %v15569, %v15347
  %v15571 = vadd.f32 %v15570, %v15350
  %v15572 = vadd.f32 %v15571, %v15355
  %v15573 = vadd.f32 %v15572, %v15358
  %v15574 = vadd.f32 %v15573, %v15363
  %v15575 = vadd.f32 %v15574, %v15366
  %v15576 = vadd.f32 %v15575, %v15371
  %v15577 = vadd.f32 %v15576, %v15374
  %v15578 = vadd.f32 %v15577, %v15379
  %v15579 = vadd.f32 %v15578, %v15382
  %v15580 = vadd.f32 %v15579, %v15387
  %v15581 = vadd.f32 %v15580, %v15390
  %v15582 = vadd.f32 %v15581, %v15395
  %v15583 = vadd.f32 %v15582, %v15398
  %v15584 = vadd.f32 %v15583, %v15403
  %v15585 = vadd.f32 %v15584, %v15406
  %v15586 = vadd.f32 %v15585, %v15411
  %v15587 = vadd.f32 %v15586, %v15414
  %v15588 = vadd.f32 %v15587, %v15419
  %v15589 = vadd.f32 %v15588, %v15422
  %v15590 = vadd.f32 %v15589, %v15427
  %v15591 = vadd.f32 %v15590, %v15430
  %v15592 = vadd.f32 %v15591, %v15435
  %v15593 = vadd.f32 %v15592, %v15438
  %v15594 = vadd.f32 %v15593, %v15443
  %v15595 = vadd.f32 %v15594, %v15446
  %v15596 = vadd.f32 %v15595, %v15451
  %v15597 = vadd.f32 %v15596, %v15454
  %v15598 = vadd.f32 %v15597, %v15459
  %v15599 = vadd.f32 %v15598, %v15462
  %v15600 = vadd.f32 %v15599, %v15467
  %v15601 = vadd.f32 %v15600, %v15470
  %v15602 = vadd.f32 %v15601, %v15475
  %v15603 = vadd.f32 %v15602, %v15478
  %v15604 = vadd.f32 %v15603, %v15483
  %v15605 = vadd.f32 %v15604, %v15486
  %v15606 = vadd.f32 %v15605, %v15491
  %v15607 = vadd.f32 %v15606, %v15494
  %v15608 = vadd.f32 %v15607, %v15499
  %v15609 = vadd.f32 %v15608, %v15502
  %v15610 = vadd.f32 %v15609, %v15507
  %v15611 = vadd.f32 %v15610, %v15510
  %v15612 = vadd.f32 %v15611, %v15515
  %v15613 = vadd.f32 %v15612, %v15518
  %v15614 = vadd.f32 %v15613, %v15523
  %v15615 = vadd.f32 %v15614, %v15526
  %v15616 = vadd.f32 %v15615, %v15531
  %v15617 = vadd.f32 %v15616, %v15534
  %v15618 = vadd.f32 %v15617, %v15539
  %v15619 = vadd.f32 %v15618, %v15542
  %v15620 = vadd.f32 %v15619, %v15547
  %v15621 = vadd.f32 %v15620, %v15550
  %v15622 = vadd.f32 %v15621, %v15555
  %v15623 = vadd.f32 %v15622, %v15558
  %v15624 = vrot.slane %v15623, 4
  %v15625 = vadd.f32 %v15623, %v15624
  %v15626 = vrot.slane %v15625, 2
  %v15627 = vadd.f32 %v15625, %v15626
  %v15628 = vrot.slane %v15627, 1
  %v15629 = vadd.f32 %v15627, %v15628
  %v15630 = vmul.f32 %v15629, 0.001953125
  %v15631 = vmul.f32 %v15307, %v15307
  %v15632 = vmul.f32 %v15310, %v15310
  %v15633 = vmul.f32 %v15315, %v15315
  %v15634 = vmul.f32 %v15318, %v15318
  %v15635 = vmul.f32 %v15323, %v15323
  %v15636 = vmul.f32 %v15326, %v15326
  %v15637 = vmul.f32 %v15331, %v15331
  %v15638 = vmul.f32 %v15334, %v15334
  %v15639 = vmul.f32 %v15339, %v15339
  %v15640 = vmul.f32 %v15342, %v15342
  %v15641 = vmul.f32 %v15347, %v15347
  %v15642 = vmul.f32 %v15350, %v15350
  %v15643 = vmul.f32 %v15355, %v15355
  %v15644 = vmul.f32 %v15358, %v15358
  %v15645 = vmul.f32 %v15363, %v15363
  %v15646 = vmul.f32 %v15366, %v15366
  %v15647 = vmul.f32 %v15371, %v15371
  %v15648 = vmul.f32 %v15374, %v15374
  %v15649 = vmul.f32 %v15379, %v15379
  %v15650 = vmul.f32 %v15382, %v15382
  %v15651 = vmul.f32 %v15387, %v15387
  %v15652 = vmul.f32 %v15390, %v15390
  %v15653 = vmul.f32 %v15395, %v15395
  %v15654 = vmul.f32 %v15398, %v15398
  %v15655 = vmul.f32 %v15403, %v15403
  %v15656 = vmul.f32 %v15406, %v15406
  %v15657 = vmul.f32 %v15411, %v15411
  %v15658 = vmul.f32 %v15414, %v15414
  %v15659 = vmul.f32 %v15419, %v15419
  %v15660 = vmul.f32 %v15422, %v15422
  %v15661 = vmul.f32 %v15427, %v15427
  %v15662 = vmul.f32 %v15430, %v15430
  %v15663 = vmul.f32 %v15435, %v15435
  %v15664 = vmul.f32 %v15438, %v15438
  %v15665 = vmul.f32 %v15443, %v15443
  %v15666 = vmul.f32 %v15446, %v15446
  %v15667 = vmul.f32 %v15451, %v15451
  %v15668 = vmul.f32 %v15454, %v15454
  %v15669 = vmul.f32 %v15459, %v15459
  %v15670 = vmul.f32 %v15462, %v15462
  %v15671 = vmul.f32 %v15467, %v15467
  %v15672 = vmul.f32 %v15470, %v15470
  %v15673 = vmul.f32 %v15475, %v15475
  %v15674 = vmul.f32 %v15478, %v15478
  %v15675 = vmul.f32 %v15483, %v15483
  %v15676 = vmul.f32 %v15486, %v15486
  %v15677 = vmul.f32 %v15491, %v15491
  %v15678 = vmul.f32 %v15494, %v15494
  %v15679 = vmul.f32 %v15499, %v15499
  %v15680 = vmul.f32 %v15502, %v15502
  %v15681 = vmul.f32 %v15507, %v15507
  %v15682 = vmul.f32 %v15510, %v15510
  %v15683 = vmul.f32 %v15515, %v15515
  %v15684 = vmul.f32 %v15518, %v15518
  %v15685 = vmul.f32 %v15523, %v15523
  %v15686 = vmul.f32 %v15526, %v15526
  %v15687 = vmul.f32 %v15531, %v15531
  %v15688 = vmul.f32 %v15534, %v15534
  %v15689 = vmul.f32 %v15539, %v15539
  %v15690 = vmul.f32 %v15542, %v15542
  %v15691 = vmul.f32 %v15547, %v15547
  %v15692 = vmul.f32 %v15550, %v15550
  %v15693 = vmul.f32 %v15555, %v15555
  %v15694 = vmul.f32 %v15558, %v15558
  %v15695 = vadd.f32 %v15631, %v15632
  %v15696 = vadd.f32 %v15695, %v15633
  %v15697 = vadd.f32 %v15696, %v15634
  %v15698 = vadd.f32 %v15697, %v15635
  %v15699 = vadd.f32 %v15698, %v15636
  %v15700 = vadd.f32 %v15699, %v15637
  %v15701 = vadd.f32 %v15700, %v15638
  %v15702 = vadd.f32 %v15701, %v15639
  %v15703 = vadd.f32 %v15702, %v15640
  %v15704 = vadd.f32 %v15703, %v15641
  %v15705 = vadd.f32 %v15704, %v15642
  %v15706 = vadd.f32 %v15705, %v15643
  %v15707 = vadd.f32 %v15706, %v15644
  %v15708 = vadd.f32 %v15707, %v15645
  %v15709 = vadd.f32 %v15708, %v15646
  %v15710 = vadd.f32 %v15709, %v15647
  %v15711 = vadd.f32 %v15710, %v15648
  %v15712 = vadd.f32 %v15711, %v15649
  %v15713 = vadd.f32 %v15712, %v15650
  %v15714 = vadd.f32 %v15713, %v15651
  %v15715 = vadd.f32 %v15714, %v15652
  %v15716 = vadd.f32 %v15715, %v15653
  %v15717 = vadd.f32 %v15716, %v15654
  %v15718 = vadd.f32 %v15717, %v15655
  %v15719 = vadd.f32 %v15718, %v15656
  %v15720 = vadd.f32 %v15719, %v15657
  %v15721 = vadd.f32 %v15720, %v15658
  %v15722 = vadd.f32 %v15721, %v15659
  %v15723 = vadd.f32 %v15722, %v15660
  %v15724 = vadd.f32 %v15723, %v15661
  %v15725 = vadd.f32 %v15724, %v15662
  %v15726 = vadd.f32 %v15725, %v15663
  %v15727 = vadd.f32 %v15726, %v15664
  %v15728 = vadd.f32 %v15727, %v15665
  %v15729 = vadd.f32 %v15728, %v15666
  %v15730 = vadd.f32 %v15729, %v15667
  %v15731 = vadd.f32 %v15730, %v15668
  %v15732 = vadd.f32 %v15731, %v15669
  %v15733 = vadd.f32 %v15732, %v15670
  %v15734 = vadd.f32 %v15733, %v15671
  %v15735 = vadd.f32 %v15734, %v15672
  %v15736 = vadd.f32 %v15735, %v15673
  %v15737 = vadd.f32 %v15736, %v15674
  %v15738 = vadd.f32 %v15737, %v15675
  %v15739 = vadd.f32 %v15738, %v15676
  %v15740 = vadd.f32 %v15739, %v15677
  %v15741 = vadd.f32 %v15740, %v15678
  %v15742 = vadd.f32 %v15741, %v15679
  %v15743 = vadd.f32 %v15742, %v15680
  %v15744 = vadd.f32 %v15743, %v15681
  %v15745 = vadd.f32 %v15744, %v15682
  %v15746 = vadd.f32 %v15745, %v15683
  %v15747 = vadd.f32 %v15746, %v15684
  %v15748 = vadd.f32 %v15747, %v15685
  %v15749 = vadd.f32 %v15748, %v15686
  %v15750 = vadd.f32 %v15749, %v15687
  %v15751 = vadd.f32 %v15750, %v15688
  %v15752 = vadd.f32 %v15751, %v15689
  %v15753 = vadd.f32 %v15752, %v15690
  %v15754 = vadd.f32 %v15753, %v15691
  %v15755 = vadd.f32 %v15754, %v15692
  %v15756 = vadd.f32 %v15755, %v15693
  %v15757 = vadd.f32 %v15756, %v15694
  %v15758 = vrot.slane %v15757, 4
  %v15759 = vadd.f32 %v15757, %v15758
  %v15760 = vrot.slane %v15759, 2
  %v15761 = vadd.f32 %v15759, %v15760
  %v15762 = vrot.slane %v15761, 1
  %v15763 = vadd.f32 %v15761, %v15762
  %v15764 = vmul.f32 %v15763, 0.001953125
  %v15765 = vmul.f32 %v15630, %v15630
  %v15766 = vsub.f32 %v15764, %v15765
  %v15767 = vld [vmem:[%s6] sm:$0x1]
  %v15768 = vadd.f32 %v15766, 1e-05
  %v15769 = vrsqrt.pop %v15768
  %v15770 = vmul.f32 %v15767, %v15769
  %v15771 = vld [vmem:[%s7] sm:$0x1]
  %v15772 = vmul.f32 %v15630, %v15770
  %v15773 = vsub.f32 %v15771, %v15772
  %v15775 = vlaneseq
  %v15776 = vshrl.u32 %v15775, 7
  %v15777 = vsub.s32 0, %v15776
  %v15778 = vrot.slane %v15770, %v15777
  %v15780 = vmul.f32 %v15307, %v15778
  %v15781 = vmul.f32 %v15310, %v15778
  %v15782 = vmul.f32 %v15315, %v15778
  %v15783 = vmul.f32 %v15318, %v15778
  %v15784 = vmul.f32 %v15323, %v15778
  %v15785 = vmul.f32 %v15326, %v15778
  %v15786 = vmul.f32 %v15331, %v15778
  %v15787 = vmul.f32 %v15334, %v15778
  %v15788 = vmul.f32 %v15339, %v15778
  %v15789 = vmul.f32 %v15342, %v15778
  %v15790 = vmul.f32 %v15347, %v15778
  %v15791 = vmul.f32 %v15350, %v15778
  %v15792 = vmul.f32 %v15355, %v15778
  %v15793 = vmul.f32 %v15358, %v15778
  %v15794 = vmul.f32 %v15363, %v15778
  %v15795 = vmul.f32 %v15366, %v15778
  %v15796 = vmul.f32 %v15371, %v15778
  %v15797 = vmul.f32 %v15374, %v15778
  %v15798 = vmul.f32 %v15379, %v15778
  %v15799 = vmul.f32 %v15382, %v15778
  %v15800 = vmul.f32 %v15387, %v15778
  %v15801 = vmul.f32 %v15390, %v15778
  %v15802 = vmul.f32 %v15395, %v15778
  %v15803 = vmul.f32 %v15398, %v15778
  %v15804 = vmul.f32 %v15403, %v15778
  %v15805 = vmul.f32 %v15406, %v15778
  %v15806 = vmul.f32 %v15411, %v15778
  %v15807 = vmul.f32 %v15414, %v15778
  %v15808 = vmul.f32 %v15419, %v15778
  %v15809 = vmul.f32 %v15422, %v15778
  %v15810 = vmul.f32 %v15427, %v15778
  %v15811 = vmul.f32 %v15430, %v15778
  %v15812 = vmul.f32 %v15435, %v15778
  %v15813 = vmul.f32 %v15438, %v15778
  %v15814 = vmul.f32 %v15443, %v15778
  %v15815 = vmul.f32 %v15446, %v15778
  %v15816 = vmul.f32 %v15451, %v15778
  %v15817 = vmul.f32 %v15454, %v15778
  %v15818 = vmul.f32 %v15459, %v15778
  %v15819 = vmul.f32 %v15462, %v15778
  %v15820 = vmul.f32 %v15467, %v15778
  %v15821 = vmul.f32 %v15470, %v15778
  %v15822 = vmul.f32 %v15475, %v15778
  %v15823 = vmul.f32 %v15478, %v15778
  %v15824 = vmul.f32 %v15483, %v15778
  %v15825 = vmul.f32 %v15486, %v15778
  %v15826 = vmul.f32 %v15491, %v15778
  %v15827 = vmul.f32 %v15494, %v15778
  %v15828 = vmul.f32 %v15499, %v15778
  %v15829 = vmul.f32 %v15502, %v15778
  %v15830 = vmul.f32 %v15507, %v15778
  %v15831 = vmul.f32 %v15510, %v15778
  %v15832 = vmul.f32 %v15515, %v15778
  %v15833 = vmul.f32 %v15518, %v15778
  %v15834 = vmul.f32 %v15523, %v15778
  %v15835 = vmul.f32 %v15526, %v15778
  %v15836 = vmul.f32 %v15531, %v15778
  %v15837 = vmul.f32 %v15534, %v15778
  %v15838 = vmul.f32 %v15539, %v15778
  %v15839 = vmul.f32 %v15542, %v15778
  %v15840 = vmul.f32 %v15547, %v15778
  %v15841 = vmul.f32 %v15550, %v15778
  %v15842 = vmul.f32 %v15555, %v15778
  %v15843 = vmul.f32 %v15558, %v15778
  %v15845 = vlaneseq
  %v15846 = vshrl.u32 %v15845, 7
  %v15847 = vsub.s32 0, %v15846
  %v15848 = vrot.slane %v15773, %v15847
  %v15850 = vadd.f32 %v15780, %v15848
  %v15851 = vadd.f32 %v15781, %v15848
  %v15852 = vadd.f32 %v15782, %v15848
  %v15853 = vadd.f32 %v15783, %v15848
  %v15854 = vadd.f32 %v15784, %v15848
  %v15855 = vadd.f32 %v15785, %v15848
  %v15856 = vadd.f32 %v15786, %v15848
  %v15857 = vadd.f32 %v15787, %v15848
  %v15858 = vadd.f32 %v15788, %v15848
  %v15859 = vadd.f32 %v15789, %v15848
  %v15860 = vadd.f32 %v15790, %v15848
  %v15861 = vadd.f32 %v15791, %v15848
  %v15862 = vadd.f32 %v15792, %v15848
  %v15863 = vadd.f32 %v15793, %v15848
  %v15864 = vadd.f32 %v15794, %v15848
  %v15865 = vadd.f32 %v15795, %v15848
  %v15866 = vadd.f32 %v15796, %v15848
  %v15867 = vadd.f32 %v15797, %v15848
  %v15868 = vadd.f32 %v15798, %v15848
  %v15869 = vadd.f32 %v15799, %v15848
  %v15870 = vadd.f32 %v15800, %v15848
  %v15871 = vadd.f32 %v15801, %v15848
  %v15872 = vadd.f32 %v15802, %v15848
  %v15873 = vadd.f32 %v15803, %v15848
  %v15874 = vadd.f32 %v15804, %v15848
  %v15875 = vadd.f32 %v15805, %v15848
  %v15876 = vadd.f32 %v15806, %v15848
  %v15877 = vadd.f32 %v15807, %v15848
  %v15878 = vadd.f32 %v15808, %v15848
  %v15879 = vadd.f32 %v15809, %v15848
  %v15880 = vadd.f32 %v15810, %v15848
  %v15881 = vadd.f32 %v15811, %v15848
  %v15882 = vadd.f32 %v15812, %v15848
  %v15883 = vadd.f32 %v15813, %v15848
  %v15884 = vadd.f32 %v15814, %v15848
  %v15885 = vadd.f32 %v15815, %v15848
  %v15886 = vadd.f32 %v15816, %v15848
  %v15887 = vadd.f32 %v15817, %v15848
  %v15888 = vadd.f32 %v15818, %v15848
  %v15889 = vadd.f32 %v15819, %v15848
  %v15890 = vadd.f32 %v15820, %v15848
  %v15891 = vadd.f32 %v15821, %v15848
  %v15892 = vadd.f32 %v15822, %v15848
  %v15893 = vadd.f32 %v15823, %v15848
  %v15894 = vadd.f32 %v15824, %v15848
  %v15895 = vadd.f32 %v15825, %v15848
  %v15896 = vadd.f32 %v15826, %v15848
  %v15897 = vadd.f32 %v15827, %v15848
  %v15898 = vadd.f32 %v15828, %v15848
  %v15899 = vadd.f32 %v15829, %v15848
  %v15900 = vadd.f32 %v15830, %v15848
  %v15901 = vadd.f32 %v15831, %v15848
  %v15902 = vadd.f32 %v15832, %v15848
  %v15903 = vadd.f32 %v15833, %v15848
  %v15904 = vadd.f32 %v15834, %v15848
  %v15905 = vadd.f32 %v15835, %v15848
  %v15906 = vadd.f32 %v15836, %v15848
  %v15907 = vadd.f32 %v15837, %v15848
  %v15908 = vadd.f32 %v15838, %v15848
  %v15909 = vadd.f32 %v15839, %v15848
  %v15910 = vadd.f32 %v15840, %v15848
  %v15911 = vadd.f32 %v15841, %v15848
  %v15912 = vadd.f32 %v15842, %v15848
  %v15913 = vadd.f32 %v15843, %v15848
  %v15914 = vld [vmem:[%s1] sm:$0xff]
  %v15915 = vld [vmem:[%s1 + $0x8] sm:$0xff]
  %v15916 = vld [vmem:[%s1 + $0x10] sm:$0xff]
  %v15917 = vld [vmem:[%s1 + $0x18] sm:$0xff]
  %v15918 = vld [vmem:[%s1 + $0x20] sm:$0xff]
  %v15919 = vld [vmem:[%s1 + $0x28] sm:$0xff]
  %v15920 = vld [vmem:[%s1 + $0x30] sm:$0xff]
  %v15921 = vld [vmem:[%s1 + $0x38] sm:$0xff]
  %v15922 = vld [vmem:[%s1 + $0x40] sm:$0xff]
  %v15923 = vld [vmem:[%s1 + $0x48] sm:$0xff]
  %v15924 = vld [vmem:[%s1 + $0x50] sm:$0xff]
  %v15925 = vld [vmem:[%s1 + $0x58] sm:$0xff]
  %v15926 = vld [vmem:[%s1 + $0x60] sm:$0xff]
  %v15927 = vld [vmem:[%s1 + $0x68] sm:$0xff]
  %v15928 = vld [vmem:[%s1 + $0x70] sm:$0xff]
  %v15929 = vld [vmem:[%s1 + $0x78] sm:$0xff]
  %v15930 = vld [vmem:[%s1 + $0x80] sm:$0xff]
  %v15931 = vld [vmem:[%s1 + $0x88] sm:$0xff]
  %v15932 = vld [vmem:[%s1 + $0x90] sm:$0xff]
  %v15933 = vld [vmem:[%s1 + $0x98] sm:$0xff]
  %v15934 = vld [vmem:[%s1 + $0xa0] sm:$0xff]
  %v15935 = vld [vmem:[%s1 + $0xa8] sm:$0xff]
  %v15936 = vld [vmem:[%s1 + $0xb0] sm:$0xff]
  %v15937 = vld [vmem:[%s1 + $0xb8] sm:$0xff]
  %v15938 = vld [vmem:[%s1 + $0xc0] sm:$0xff]
  %v15939 = vld [vmem:[%s1 + $0xc8] sm:$0xff]
  %v15940 = vld [vmem:[%s1 + $0xd0] sm:$0xff]
  %v15941 = vld [vmem:[%s1 + $0xd8] sm:$0xff]
  %v15942 = vld [vmem:[%s1 + $0xe0] sm:$0xff]
  %v15943 = vld [vmem:[%s1 + $0xe8] sm:$0xff]
  %v15944 = vld [vmem:[%s1 + $0xf0] sm:$0xff]
  %v15945 = vld [vmem:[%s1 + $0xf8] sm:$0xff]
  %v15946 = vld [vmem:[%s1 + $0x100] sm:$0xff]
  %v15947 = vld [vmem:[%s1 + $0x108] sm:$0xff]
  %v15948 = vld [vmem:[%s1 + $0x110] sm:$0xff]
  %v15949 = vld [vmem:[%s1 + $0x118] sm:$0xff]
  %v15950 = vld [vmem:[%s1 + $0x120] sm:$0xff]
  %v15951 = vld [vmem:[%s1 + $0x128] sm:$0xff]
  %v15952 = vld [vmem:[%s1 + $0x130] sm:$0xff]
  %v15953 = vld [vmem:[%s1 + $0x138] sm:$0xff]
  %v15954 = vld [vmem:[%s1 + $0x140] sm:$0xff]
  %v15955 = vld [vmem:[%s1 + $0x148] sm:$0xff]
  %v15956 = vld [vmem:[%s1 + $0x150] sm:$0xff]
  %v15957 = vld [vmem:[%s1 + $0x158] sm:$0xff]
  %v15958 = vld [vmem:[%s1 + $0x160] sm:$0xff]
  %v15959 = vld [vmem:[%s1 + $0x168] sm:$0xff]
  %v15960 = vld [vmem:[%s1 + $0x170] sm:$0xff]
  %v15961 = vld [vmem:[%s1 + $0x178] sm:$0xff]
  %v15962 = vld [vmem:[%s1 + $0x180] sm:$0xff]
  %v15963 = vld [vmem:[%s1 + $0x188] sm:$0xff]
  %v15964 = vld [vmem:[%s1 + $0x190] sm:$0xff]
  %v15965 = vld [vmem:[%s1 + $0x198] sm:$0xff]
  %v15966 = vld [vmem:[%s1 + $0x1a0] sm:$0xff]
  %v15967 = vld [vmem:[%s1 + $0x1a8] sm:$0xff]
  %v15968 = vld [vmem:[%s1 + $0x1b0] sm:$0xff]
  %v15969 = vld [vmem:[%s1 + $0x1b8] sm:$0xff]
  %v15970 = vld [vmem:[%s1 + $0x1c0] sm:$0xff]
  %v15971 = vld [vmem:[%s1 + $0x1c8] sm:$0xff]
  %v15972 = vld [vmem:[%s1 + $0x1d0] sm:$0xff]
  %v15973 = vld [vmem:[%s1 + $0x1d8] sm:$0xff]
  %v15974 = vld [vmem:[%s1 + $0x1e0] sm:$0xff]
  %v15975 = vld [vmem:[%s1 + $0x1e8] sm:$0xff]
  %v15976 = vld [vmem:[%s1 + $0x1f0] sm:$0xff]
  %v15977 = vld [vmem:[%s1 + $0x1f8] sm:$0xff]
  %v15978 = vadd.f32 %v15850, %v15914
  %v15979 = vadd.f32 %v15851, %v15915
  %v15980 = vadd.f32 %v15852, %v15916
  %v15981 = vadd.f32 %v15853, %v15917
  %v15982 = vadd.f32 %v15854, %v15918
  %v15983 = vadd.f32 %v15855, %v15919
  %v15984 = vadd.f32 %v15856, %v15920
  %v15985 = vadd.f32 %v15857, %v15921
  %v15986 = vadd.f32 %v15858, %v15922
  %v15987 = vadd.f32 %v15859, %v15923
  %v15988 = vadd.f32 %v15860, %v15924
  %v15989 = vadd.f32 %v15861, %v15925
  %v15990 = vadd.f32 %v15862, %v15926
  %v15991 = vadd.f32 %v15863, %v15927
  %v15992 = vadd.f32 %v15864, %v15928
  %v15993 = vadd.f32 %v15865, %v15929
  %v15994 = vadd.f32 %v15866, %v15930
  %v15995 = vadd.f32 %v15867, %v15931
  %v15996 = vadd.f32 %v15868, %v15932
  %v15997 = vadd.f32 %v15869, %v15933
  %v15998 = vadd.f32 %v15870, %v15934
  %v15999 = vadd.f32 %v15871, %v15935
  %v16000 = vadd.f32 %v15872, %v15936
  %v16001 = vadd.f32 %v15873, %v15937
  %v16002 = vadd.f32 %v15874, %v15938
  %v16003 = vadd.f32 %v15875, %v15939
  %v16004 = vadd.f32 %v15876, %v15940
  %v16005 = vadd.f32 %v15877, %v15941
  %v16006 = vadd.f32 %v15878, %v15942
  %v16007 = vadd.f32 %v15879, %v15943
  %v16008 = vadd.f32 %v15880, %v15944
  %v16009 = vadd.f32 %v15881, %v15945
  %v16010 = vadd.f32 %v15882, %v15946
  %v16011 = vadd.f32 %v15883, %v15947
  %v16012 = vadd.f32 %v15884, %v15948
  %v16013 = vadd.f32 %v15885, %v15949
  %v16014 = vadd.f32 %v15886, %v15950
  %v16015 = vadd.f32 %v15887, %v15951
  %v16016 = vadd.f32 %v15888, %v15952
  %v16017 = vadd.f32 %v15889, %v15953
  %v16018 = vadd.f32 %v15890, %v15954
  %v16019 = vadd.f32 %v15891, %v15955
  %v16020 = vadd.f32 %v15892, %v15956
  %v16021 = vadd.f32 %v15893, %v15957
  %v16022 = vadd.f32 %v15894, %v15958
  %v16023 = vadd.f32 %v15895, %v15959
  %v16024 = vadd.f32 %v15896, %v15960
  %v16025 = vadd.f32 %v15897, %v15961
  %v16026 = vadd.f32 %v15898, %v15962
  %v16027 = vadd.f32 %v15899, %v15963
  %v16028 = vadd.f32 %v15900, %v15964
  %v16029 = vadd.f32 %v15901, %v15965
  %v16030 = vadd.f32 %v15902, %v15966
  %v16031 = vadd.f32 %v15903, %v15967
  %v16032 = vadd.f32 %v15904, %v15968
  %v16033 = vadd.f32 %v15905, %v15969
  %v16034 = vadd.f32 %v15906, %v15970
  %v16035 = vadd.f32 %v15907, %v15971
  %v16036 = vadd.f32 %v15908, %v15972
  %v16037 = vadd.f32 %v15909, %v15973
  %v16038 = vadd.f32 %v15910, %v15974
  %v16039 = vadd.f32 %v15911, %v15975
  %v16040 = vadd.f32 %v15912, %v15976
  %v16041 = vadd.f32 %v15913, %v15977
  %v16042 = vmax.f32 %v15978, 0.0
  %v16043 = vmax.f32 %v15979, 0.0
  %v16044 = vmax.f32 %v15980, 0.0
  %v16045 = vmax.f32 %v15981, 0.0
  %v16046 = vmax.f32 %v15982, 0.0
  %v16047 = vmax.f32 %v15983, 0.0
  %v16048 = vmax.f32 %v15984, 0.0
  %v16049 = vmax.f32 %v15985, 0.0
  %v16050 = vmax.f32 %v15986, 0.0
  %v16051 = vmax.f32 %v15987, 0.0
  %v16052 = vmax.f32 %v15988, 0.0
  %v16053 = vmax.f32 %v15989, 0.0
  %v16054 = vmax.f32 %v15990, 0.0
  %v16055 = vmax.f32 %v15991, 0.0
  %v16056 = vmax.f32 %v15992, 0.0
  %v16057 = vmax.f32 %v15993, 0.0
  %v16058 = vmax.f32 %v15994, 0.0
  %v16059 = vmax.f32 %v15995, 0.0
  %v16060 = vmax.f32 %v15996, 0.0
  %v16061 = vmax.f32 %v15997, 0.0
  %v16062 = vmax.f32 %v15998, 0.0
  %v16063 = vmax.f32 %v15999, 0.0
  %v16064 = vmax.f32 %v16000, 0.0
  %v16065 = vmax.f32 %v16001, 0.0
  %v16066 = vmax.f32 %v16002, 0.0
  %v16067 = vmax.f32 %v16003, 0.0
  %v16068 = vmax.f32 %v16004, 0.0
  %v16069 = vmax.f32 %v16005, 0.0
  %v16070 = vmax.f32 %v16006, 0.0
  %v16071 = vmax.f32 %v16007, 0.0
  %v16072 = vmax.f32 %v16008, 0.0
  %v16073 = vmax.f32 %v16009, 0.0
  %v16074 = vmax.f32 %v16010, 0.0
  %v16075 = vmax.f32 %v16011, 0.0
  %v16076 = vmax.f32 %v16012, 0.0
  %v16077 = vmax.f32 %v16013, 0.0
  %v16078 = vmax.f32 %v16014, 0.0
  %v16079 = vmax.f32 %v16015, 0.0
  %v16080 = vmax.f32 %v16016, 0.0
  %v16081 = vmax.f32 %v16017, 0.0
  %v16082 = vmax.f32 %v16018, 0.0
  %v16083 = vmax.f32 %v16019, 0.0
  %v16084 = vmax.f32 %v16020, 0.0
  %v16085 = vmax.f32 %v16021, 0.0
  %v16086 = vmax.f32 %v16022, 0.0
  %v16087 = vmax.f32 %v16023, 0.0
  %v16088 = vmax.f32 %v16024, 0.0
  %v16089 = vmax.f32 %v16025, 0.0
  %v16090 = vmax.f32 %v16026, 0.0
  %v16091 = vmax.f32 %v16027, 0.0
  %v16092 = vmax.f32 %v16028, 0.0
  %v16093 = vmax.f32 %v16029, 0.0
  %v16094 = vmax.f32 %v16030, 0.0
  %v16095 = vmax.f32 %v16031, 0.0
  %v16096 = vmax.f32 %v16032, 0.0
  %v16097 = vmax.f32 %v16033, 0.0
  %v16098 = vmax.f32 %v16034, 0.0
  %v16099 = vmax.f32 %v16035, 0.0
  %v16100 = vmax.f32 %v16036, 0.0
  %v16101 = vmax.f32 %v16037, 0.0
  %v16102 = vmax.f32 %v16038, 0.0
  %v16103 = vmax.f32 %v16039, 0.0
  %v16104 = vmax.f32 %v16040, 0.0
  %v16105 = vmax.f32 %v16041, 0.0
  %16106 = vst [vmem:[%s8] sm:$0xff] %v16042
  %16107 = vst [vmem:[%s8 + $0x8] sm:$0xff] %v16043
  %16108 = vst [vmem:[%s8 + $0x10] sm:$0xff] %v16044
  %16109 = vst [vmem:[%s8 + $0x18] sm:$0xff] %v16045
  %16110 = vst [vmem:[%s8 + $0x20] sm:$0xff] %v16046
  %16111 = vst [vmem:[%s8 + $0x28] sm:$0xff] %v16047
  %16112 = vst [vmem:[%s8 + $0x30] sm:$0xff] %v16048
  %16113 = vst [vmem:[%s8 + $0x38] sm:$0xff] %v16049
  %16114 = vst [vmem:[%s8 + $0x40] sm:$0xff] %v16050
  %16115 = vst [vmem:[%s8 + $0x48] sm:$0xff] %v16051
  %16116 = vst [vmem:[%s8 + $0x50] sm:$0xff] %v16052
  %16117 = vst [vmem:[%s8 + $0x58] sm:$0xff] %v16053
  %16118 = vst [vmem:[%s8 + $0x60] sm:$0xff] %v16054
  %16119 = vst [vmem:[%s8 + $0x68] sm:$0xff] %v16055
  %16120 = vst [vmem:[%s8 + $0x70] sm:$0xff] %v16056
  %16121 = vst [vmem:[%s8 + $0x78] sm:$0xff] %v16057
  %16122 = vst [vmem:[%s8 + $0x80] sm:$0xff] %v16058
  %16123 = vst [vmem:[%s8 + $0x88] sm:$0xff] %v16059
  %16124 = vst [vmem:[%s8 + $0x90] sm:$0xff] %v16060
  %16125 = vst [vmem:[%s8 + $0x98] sm:$0xff] %v16061
  %16126 = vst [vmem:[%s8 + $0xa0] sm:$0xff] %v16062
  %16127 = vst [vmem:[%s8 + $0xa8] sm:$0xff] %v16063
  %16128 = vst [vmem:[%s8 + $0xb0] sm:$0xff] %v16064
  %16129 = vst [vmem:[%s8 + $0xb8] sm:$0xff] %v16065
  %16130 = vst [vmem:[%s8 + $0xc0] sm:$0xff] %v16066
  %16131 = vst [vmem:[%s8 + $0xc8] sm:$0xff] %v16067
  %16132 = vst [vmem:[%s8 + $0xd0] sm:$0xff] %v16068
  %16133 = vst [vmem:[%s8 + $0xd8] sm:$0xff] %v16069
  %16134 = vst [vmem:[%s8 + $0xe0] sm:$0xff] %v16070
  %16135 = vst [vmem:[%s8 + $0xe8] sm:$0xff] %v16071
  %16136 = vst [vmem:[%s8 + $0xf0] sm:$0xff] %v16072
  %16137 = vst [vmem:[%s8 + $0xf8] sm:$0xff] %v16073
  %16138 = vst [vmem:[%s8 + $0x100] sm:$0xff] %v16074
  %16139 = vst [vmem:[%s8 + $0x108] sm:$0xff] %v16075
  %16140 = vst [vmem:[%s8 + $0x110] sm:$0xff] %v16076
  %16141 = vst [vmem:[%s8 + $0x118] sm:$0xff] %v16077
  %16142 = vst [vmem:[%s8 + $0x120] sm:$0xff] %v16078
  %16143 = vst [vmem:[%s8 + $0x128] sm:$0xff] %v16079
  %16144 = vst [vmem:[%s8 + $0x130] sm:$0xff] %v16080
  %16145 = vst [vmem:[%s8 + $0x138] sm:$0xff] %v16081
  %16146 = vst [vmem:[%s8 + $0x140] sm:$0xff] %v16082
  %16147 = vst [vmem:[%s8 + $0x148] sm:$0xff] %v16083
  %16148 = vst [vmem:[%s8 + $0x150] sm:$0xff] %v16084
  %16149 = vst [vmem:[%s8 + $0x158] sm:$0xff] %v16085
  %16150 = vst [vmem:[%s8 + $0x160] sm:$0xff] %v16086
  %16151 = vst [vmem:[%s8 + $0x168] sm:$0xff] %v16087
  %16152 = vst [vmem:[%s8 + $0x170] sm:$0xff] %v16088
  %16153 = vst [vmem:[%s8 + $0x178] sm:$0xff] %v16089
  %16154 = vst [vmem:[%s8 + $0x180] sm:$0xff] %v16090
  %16155 = vst [vmem:[%s8 + $0x188] sm:$0xff] %v16091
  %16156 = vst [vmem:[%s8 + $0x190] sm:$0xff] %v16092
  %16157 = vst [vmem:[%s8 + $0x198] sm:$0xff] %v16093
  %16158 = vst [vmem:[%s8 + $0x1a0] sm:$0xff] %v16094
  %16159 = vst [vmem:[%s8 + $0x1a8] sm:$0xff] %v16095
  %16160 = vst [vmem:[%s8 + $0x1b0] sm:$0xff] %v16096
  %16161 = vst [vmem:[%s8 + $0x1b8] sm:$0xff] %v16097
  %16162 = vst [vmem:[%s8 + $0x1c0] sm:$0xff] %v16098
  %16163 = vst [vmem:[%s8 + $0x1c8] sm:$0xff] %v16099
  %16164 = vst [vmem:[%s8 + $0x1d0] sm:$0xff] %v16100
  %16165 = vst [vmem:[%s8 + $0x1d8] sm:$0xff] %v16101
  %16166 = vst [vmem:[%s8 + $0x1e0] sm:$0xff] %v16102
  %16167 = vst [vmem:[%s8 + $0x1e8] sm:$0xff] %v16103
  %16168 = vst [vmem:[%s8 + $0x1f0] sm:$0xff] %v16104
  %16169 = vst [vmem:[%s8 + $0x1f8] sm:$0xff] %v16105
  // Predicated region
  $region34: #{resnet_basic_block.1} parent=0 // pred_check
    _
  $region35: #{resnet_basic_block.1} parent=0 // pred_check_branch
    %16171 = sbr.rel (0) target = $region37
  $region36: #{resnet_basic_block.1} parent=0 // pred_region
    _
  $region37: #{resnet_basic_block.1} parent=0 // pred_fallthru
    _
  // Predicated region
  $region38: #{resnet_basic_block.1} parent=0 // pred_check
    _
  $region39: #{resnet_basic_block.1} parent=0 // pred_check_branch
    %16173 = sbr.rel (0) target = $region41
  $region40: #{resnet_basic_block.1} parent=0 // pred_region
    _
  $region41: #{resnet_basic_block.1} parent=0 // pred_fallthru
    _

</llo_original>
